<compile_context>
chip_gen: v7x
topology: tpu7x:2x2x1
jax: 0.10.0
libtpu: 0.0.40
codegen_flags: <defaults>
</compile_context>

<pallas_src>
import jax
import jax.numpy as jnp
from jax.experimental import pallas as pl
from jax.experimental.pallas import tpu as pltpu

# ---- static geometry (fixed by the module: Linear(50688) = 256*11*18 => 13x20 input) ----
H_IN, W_IN = 13, 20            # input spatial size implied by fc = Linear(50688, 1)
K = 4                          # conv kernel size
C1, C2 = 128, 256              # conv output channels
H1, W1 = H_IN - 1, W_IN - 1    # conv1 output: 12 x 19   (k=4, s=1, p=1)
H2, W2 = H1 - 1, W1 - 1        # conv2 output: 11 x 18
H1P, W1P = H1 + 2, W1 + 2      # conv1 output zero-padded for conv2: 14 x 21
R_WIDE = H2 * W1P              # 231 "wide" conv2 rows (w2 in [0,21); w2 >= 18 are garbage)
R_PAD1 = 320                   # rows of padded conv1 frame (>= 3*21+3 + 231 = 297, 8-aligned)
NTAP = K * K                   # 16 conv taps
K1 = NTAP + 1                  # 17 = 16 taps + bias/indicator column
FC_IN = C2 * H2 * W2           # 50688
assert FC_IN == 50688


# ----------------------------- fused Pallas kernel ---------------------------------------

def _cnn_fused_kernel(p1_ref, w1_ref, w2_ref, b2_ref, fcw_ref, fcb_ref,
                      out_ref, pad1_ref, acc2_ref):
    # conv1 (+bias via augmented indicator column) + ReLU, written straight into the
    # zero-padded frame conv2 reads.  Border / tail rows of p1 are all-zero, so ReLU
    # leaves them exactly 0 == conv2's zero padding.
    pad1_ref[...] = jnp.maximum(
        jnp.dot(p1_ref[...], w1_ref[...], preferred_element_type=jnp.float32), 0.0)

    # conv2 as 16 shifted matmuls accumulated in an f32 VMEM scratch (no im2col).
    acc2_ref[...] = jnp.zeros_like(acc2_ref)
    for kh in range(K):
        for kw in range(K):
            t = kh * K + kw
            off = kh * W1P + kw
            lhs = pad1_ref[pl.ds(off, R_WIDE), :]                      # (231, 128)
            acc2_ref[...] += jnp.dot(lhs, w2_ref[t],
                                     preferred_element_type=jnp.float32)

    # conv2 bias + ReLU + fused FC epilogue.  fcw has the (C,H,W)->(H,W,C) permutation
    # baked in and zeros on the garbage (w2 >= 18) rows, so no masking is needed here.
    act2 = jnp.maximum(acc2_ref[...] + b2_ref[...], 0.0)               # (231, 256)
    prod = act2 * fcw_ref[...]
    col = jnp.sum(prod, axis=0, keepdims=True)                         # (1, 256)
    tot = jnp.sum(col, axis=1, keepdims=True) + fcb_ref[...]           # (1, 1)
    out_ref[...] = jnp.broadcast_to(tot, out_ref.shape)                # lane-dense store


# ----------------------------- host-side glue (tiny) -------------------------------------

def _conv1_patches_wide(x):
    """(B,1,13,20) -> (B, R_PAD1, 17): conv1 im2col + bias indicator, laid out directly in
    conv2's zero-padded row-major frame (row f = h*21 + w)."""
    B = x.shape[0]
    xp = jnp.pad(x[:, 0], ((0, 0), (1, 1), (1, 1)))                    # (B, 15, 22)
    cols = [xp[:, kh:kh + H1, kw:kw + W1] for kh in range(K) for kw in range(K)]
    patches = jnp.stack(cols, axis=-1)                                 # (B, 12, 19, 16)
    frame = jnp.zeros((B, H1P, W1P, K1), jnp.float32)
    frame = frame.at[:, 1:1 + H1, 1:1 + W1, :NTAP].set(patches)
    frame = frame.at[:, 1:1 + H1, 1:1 + W1, NTAP].set(1.0)             # bias indicator
    flat = frame.reshape(B, H1P * W1P, K1)
    return jnp.pad(flat, ((0, 0), (0, R_PAD1 - H1P * W1P), (0, 0)))


def pack_params(params):
    """One-off weight permutation/augmentation into kernel-friendly layout."""
    w1, b1 = params["w1"], params["b1"]
    w2, b2 = params["w2"], params["b2"]
    fc_w, fc_b = params["fc_w"], params["fc_b"]
    w1_aug = jnp.concatenate([w1.reshape(C1, NTAP).T, b1.reshape(1, C1)], axis=0)  # (17,128)
    w2_taps = jnp.transpose(w2, (2, 3, 1, 0)).reshape(NTAP, C1, C2)                # (16,128,256)
    fcr = fc_w.reshape(C2, H2, W2).transpose(1, 2, 0)                              # (11,18,256)
    fcw_wide = jnp.zeros((H2, W1P, C2), jnp.float32).at[:, :W2, :].set(fcr)
    fcw_wide = fcw_wide.reshape(R_WIDE, C2)                                        # (231,256)
    return dict(w1_aug=w1_aug, w2_taps=w2_taps, b2=b2.reshape(1, C2),
                fcw=fcw_wide, fcb=fc_b.reshape(1, 1))


@jax.jit
def cnn_forward(packed, x):
    B = x.shape[0]
    p1 = _conv1_patches_wide(x)
    out = pl.pallas_call(
        _cnn_fused_kernel,
        out_shape=jax.ShapeDtypeStruct((B, 1, 128), jnp.float32),
        grid=(B,),
        in_specs=[
            pl.BlockSpec((None, R_PAD1, K1), lambda b: (b, 0, 0)),   # per-batch conv1 patches
            pl.BlockSpec((K1, C1), lambda b: (0, 0)),                # w1 (+ bias row)
            pl.BlockSpec((NTAP, C1, C2), lambda b: (0, 0, 0)),       # w2 per-tap matrices
            pl.BlockSpec((1, C2), lambda b: (0, 0)),                 # conv2 bias
            pl.BlockSpec((R_WIDE, C2), lambda b: (0, 0)),            # permuted+masked fc weights
            pl.BlockSpec((1, 1), lambda b: (0, 0)),                  # fc bias
        ],
        out_specs=pl.BlockSpec((None, 1, 128), lambda b: (b, 0, 0)),
        scratch_shapes=[
            pltpu.VMEM((R_PAD1, C1), jnp.float32),    # padded conv1-output frame
            pltpu.VMEM((R_WIDE, C2), jnp.float32),    # conv2 accumulator
        ],
        compiler_params=pltpu.CompilerParams(
            dimension_semantics=("parallel",)),       # batches shard over TCs on v7x
    )(p1, packed["w1_aug"], packed["w2_taps"], packed["b2"], packed["fcw"], packed["fcb"])
    return out[:, 0, :1]                              # (B, 1)


# ----------------------------- params / reference ----------------------------------------

def init_params(key):
    k1, k2, k3, k4, k5, k6 = jax.random.split(key, 6)
    fan1 = 1 * K * K
    w1 = jax.random.uniform(k1, (C1, 1, K, K), jnp.float32, -1.0, 1.0) / jnp.sqrt(fan1)
    b1 = jax.random.uniform(k2, (C1,), jnp.float32, -1.0, 1.0) / jnp.sqrt(fan1)
    fan2 = C1 * K * K
    w2 = jax.random.uniform(k3, (C2, C1, K, K), jnp.float32, -1.0, 1.0) / jnp.sqrt(fan2)
    b2 = jax.random.uniform(k4, (C2,), jnp.float32, -1.0, 1.0) / jnp.sqrt(fan2)
    xav = jnp.sqrt(6.0 / (FC_IN + 1))
    fc_w = jax.random.uniform(k5, (1, FC_IN), jnp.float32, -xav, xav)
    fc_b = jax.random.uniform(k6, (1,), jnp.float32, -1.0, 1.0) / jnp.sqrt(FC_IN)
    return dict(w1=w1, b1=b1, w2=w2, b2=b2, fc_w=fc_w, fc_b=fc_b)


def cnn_reference(params, x):
    """Pure-JAX reference with PyTorch semantics (f32 precision) for validation."""
    hi = jax.lax.Precision.HIGHEST
    out = jax.lax.conv_general_dilated(
        x, params["w1"], (1, 1), ((1, 1), (1, 1)),
        dimension_numbers=("NCHW", "OIHW", "NCHW"), precision=hi)
    out = jax.nn.relu(out + params["b1"][None, :, None, None])
    out = jax.lax.conv_general_dilated(
        out, params["w2"], (1, 1), ((1, 1), (1, 1)),
        dimension_numbers=("NCHW", "OIHW", "NCHW"), precision=hi)
    out = jax.nn.relu(out + params["b2"][None, :, None, None])
    flat = out.reshape(x.shape[0], -1)
    return jnp.dot(flat, params["fc_w"].T, precision=hi) + params["fc_b"]


if __name__ == "__main__":
    key = jax.random.PRNGKey(0)
    pkey, xkey = jax.random.split(key)
    params = init_params(pkey)
    packed = pack_params(params)
    x = jax.random.normal(xkey, (2, 1, H_IN, W_IN), jnp.float32)   # batch=2, 1ch, 13x20
    y = cnn_forward(packed, x)
    jax.block_until_ready(y)
    assert y.shape == (2, 1), y.shape
    y_ref = cnn_reference(params, x)
    assert jnp.allclose(y, y_ref, atol=2e-3, rtol=2e-3), (y, y_ref)
    print("KERNEL_OK")
</pallas_src>

<mosaic_0001>
module attributes {stable_mosaic.version = 11 : i64} {
  func.func @_cnn_fused_kernel(%arg0: i32, %arg1: memref<1x320x17xf32, #tpu.memory_space<vmem>>, %arg2: memref<17x128xf32, #tpu.memory_space<vmem>>, %arg3: memref<16x128x256xf32, #tpu.memory_space<vmem>>, %arg4: memref<1x256xf32, #tpu.memory_space<vmem>>, %arg5: memref<231x256xf32, #tpu.memory_space<vmem>>, %arg6: memref<1x1xf32, #tpu.memory_space<vmem>>, %arg7: memref<1x1x128xf32, #tpu.memory_space<vmem>>, %arg8: memref<320x128xf32, #tpu.memory_space<vmem>>, %arg9: memref<231x256xf32, #tpu.memory_space<vmem>>) attributes {dimension_semantics = [#tpu.dimension_semantics<parallel>], iteration_bounds = array<i64: 2>, scalar_prefetch = 0 : i64, scratch_operands = 2 : i64, tpu.core_type = #tpu.core_type<tc>, window_params = [{transform_indices = @transform_0, window_bounds = array<i64: 1, 320, 17>}, {pipeline_mode = #tpu.pipeline_mode<synchronous>, transform_indices = @transform_1, window_bounds = array<i64: 17, 128>}, {pipeline_mode = #tpu.pipeline_mode<synchronous>, transform_indices = @transform_2, window_bounds = array<i64: 16, 128, 256>}, {pipeline_mode = #tpu.pipeline_mode<synchronous>, transform_indices = @transform_3, window_bounds = array<i64: 1, 256>}, {pipeline_mode = #tpu.pipeline_mode<synchronous>, transform_indices = @transform_4, window_bounds = array<i64: 231, 256>}, {pipeline_mode = #tpu.pipeline_mode<synchronous>, transform_indices = @transform_5, window_bounds = array<i64: 1, 1>}, {transform_indices = @transform_6, window_bounds = array<i64: 1, 1, 128>}]} {
    %c0 = arith.constant 0 : index
    %c0_0 = arith.constant 0 : index
    %c0_1 = arith.constant 0 : index
    %0 = vector.load %arg1[%c0, %c0_0, %c0_1] : memref<1x320x17xf32, #tpu.memory_space<vmem>>, vector<1x320x17xf32>
    %1 = vector.shape_cast %0 : vector<1x320x17xf32> to vector<320x17xf32>
    %c0_2 = arith.constant 0 : index
    %c0_3 = arith.constant 0 : index
    %2 = vector.load %arg2[%c0_2, %c0_3] : memref<17x128xf32, #tpu.memory_space<vmem>>, vector<17x128xf32>
    %cst = arith.constant dense<0.000000e+00> : vector<320x128xf32>
    %3 = tpu.matmul %1, %2, %cst {dimension_numbers = #tpu.dot_dimension_numbers<[1], [0], [0], [1], [0, 0, 1, 1], [], []>} : vector<320x17xf32>, vector<17x128xf32>, vector<320x128xf32> -> vector<320x128xf32>
    %cst_4 = arith.constant 0.000000e+00 : f32
    %4 = vector.broadcast %cst_4 : f32 to vector<320x128xf32>
    %5 = arith.maximumf %3, %4 : vector<320x128xf32>
    %c0_5 = arith.constant 0 : index
    %c0_6 = arith.constant 0 : index
    %6 = vector.load %arg8[%c0_5, %c0_6] : memref<320x128xf32, #tpu.memory_space<vmem>>, vector<320x128xf32>
    tpu.vector_store %arg8[%c0_5, %c0_6], %5 {strides = array<i32>} : memref<320x128xf32, #tpu.memory_space<vmem>>, vector<320x128xf32>,
    %cst_7 = arith.constant 0.000000e+00 : f32
    %7 = vector.broadcast %cst_7 : f32 to vector<231x256xf32>
    %c0_8 = arith.constant 0 : index
    %c0_9 = arith.constant 0 : index
    %8 = vector.load %arg9[%c0_8, %c0_9] : memref<231x256xf32, #tpu.memory_space<vmem>>, vector<231x256xf32>
    tpu.vector_store %arg9[%c0_8, %c0_9], %7 {strides = array<i32>} : memref<231x256xf32, #tpu.memory_space<vmem>>, vector<231x256xf32>,
    %c0_10 = arith.constant 0 : index
    %c0_11 = arith.constant 0 : index
    %9 = vector.load %arg8[%c0_10, %c0_11] : memref<320x128xf32, #tpu.memory_space<vmem>>, vector<231x128xf32>
    %c0_12 = arith.constant 0 : index
    %c0_13 = arith.constant 0 : index
    %10 = vector.load %arg9[%c0_12, %c0_13] : memref<231x256xf32, #tpu.memory_space<vmem>>, vector<231x256xf32>
    %c0_14 = arith.constant 0 : index
    %c0_15 = arith.constant 0 : index
    %c0_16 = arith.constant 0 : index
    %11 = vector.load %arg3[%c0_14, %c0_15, %c0_16] : memref<16x128x256xf32, #tpu.memory_space<vmem>>, vector<1x128x256xf32>
    %12 = vector.shape_cast %11 : vector<1x128x256xf32> to vector<128x256xf32>
    %cst_17 = arith.constant dense<0.000000e+00> : vector<231x256xf32>
    %13 = tpu.matmul %9, %12, %cst_17 {dimension_numbers = #tpu.dot_dimension_numbers<[1], [0], [0], [1], [0, 0, 1, 1], [], []>} : vector<231x128xf32>, vector<128x256xf32>, vector<231x256xf32> -> vector<231x256xf32>
    %14 = arith.addf %10, %13 : vector<231x256xf32>
    %c0_18 = arith.constant 0 : index
    %c0_19 = arith.constant 0 : index
    %15 = vector.load %arg9[%c0_18, %c0_19] : memref<231x256xf32, #tpu.memory_space<vmem>>, vector<231x256xf32>
    tpu.vector_store %arg9[%c0_18, %c0_19], %14 {strides = array<i32>} : memref<231x256xf32, #tpu.memory_space<vmem>>, vector<231x256xf32>,
    %c1 = arith.constant 1 : index
    %c0_20 = arith.constant 0 : index
    %16 = vector.load %arg8[%c1, %c0_20] : memref<320x128xf32, #tpu.memory_space<vmem>>, vector<231x128xf32>
    %c0_21 = arith.constant 0 : index
    %c0_22 = arith.constant 0 : index
    %17 = vector.load %arg9[%c0_21, %c0_22] : memref<231x256xf32, #tpu.memory_space<vmem>>, vector<231x256xf32>
    %c1_23 = arith.constant 1 : index
    %c0_24 = arith.constant 0 : index
    %c0_25 = arith.constant 0 : index
    %18 = vector.load %arg3[%c1_23, %c0_24, %c0_25] : memref<16x128x256xf32, #tpu.memory_space<vmem>>, vector<1x128x256xf32>
    %19 = vector.shape_cast %18 : vector<1x128x256xf32> to vector<128x256xf32>
    %cst_26 = arith.constant dense<0.000000e+00> : vector<231x256xf32>
    %20 = tpu.matmul %16, %19, %cst_26 {dimension_numbers = #tpu.dot_dimension_numbers<[1], [0], [0], [1], [0, 0, 1, 1], [], []>} : vector<231x128xf32>, vector<128x256xf32>, vector<231x256xf32> -> vector<231x256xf32>
    %21 = arith.addf %17, %20 : vector<231x256xf32>
    %c0_27 = arith.constant 0 : index
    %c0_28 = arith.constant 0 : index
    %22 = vector.load %arg9[%c0_27, %c0_28] : memref<231x256xf32, #tpu.memory_space<vmem>>, vector<231x256xf32>
    tpu.vector_store %arg9[%c0_27, %c0_28], %21 {strides = array<i32>} : memref<231x256xf32, #tpu.memory_space<vmem>>, vector<231x256xf32>,
    %c2 = arith.constant 2 : index
    %c0_29 = arith.constant 0 : index
    %23 = vector.load %arg8[%c2, %c0_29] : memref<320x128xf32, #tpu.memory_space<vmem>>, vector<231x128xf32>
    %c0_30 = arith.constant 0 : index
    %c0_31 = arith.constant 0 : index
    %24 = vector.load %arg9[%c0_30, %c0_31] : memref<231x256xf32, #tpu.memory_space<vmem>>, vector<231x256xf32>
    %c2_32 = arith.constant 2 : index
    %c0_33 = arith.constant 0 : index
    %c0_34 = arith.constant 0 : index
    %25 = vector.load %arg3[%c2_32, %c0_33, %c0_34] : memref<16x128x256xf32, #tpu.memory_space<vmem>>, vector<1x128x256xf32>
    %26 = vector.shape_cast %25 : vector<1x128x256xf32> to vector<128x256xf32>
    %cst_35 = arith.constant dense<0.000000e+00> : vector<231x256xf32>
    %27 = tpu.matmul %23, %26, %cst_35 {dimension_numbers = #tpu.dot_dimension_numbers<[1], [0], [0], [1], [0, 0, 1, 1], [], []>} : vector<231x128xf32>, vector<128x256xf32>, vector<231x256xf32> -> vector<231x256xf32>
    %28 = arith.addf %24, %27 : vector<231x256xf32>
    %c0_36 = arith.constant 0 : index
    %c0_37 = arith.constant 0 : index
    %29 = vector.load %arg9[%c0_36, %c0_37] : memref<231x256xf32, #tpu.memory_space<vmem>>, vector<231x256xf32>
    tpu.vector_store %arg9[%c0_36, %c0_37], %28 {strides = array<i32>} : memref<231x256xf32, #tpu.memory_space<vmem>>, vector<231x256xf32>,
    %c3 = arith.constant 3 : index
    %c0_38 = arith.constant 0 : index
    %30 = vector.load %arg8[%c3, %c0_38] : memref<320x128xf32, #tpu.memory_space<vmem>>, vector<231x128xf32>
    %c0_39 = arith.constant 0 : index
    %c0_40 = arith.constant 0 : index
    %31 = vector.load %arg9[%c0_39, %c0_40] : memref<231x256xf32, #tpu.memory_space<vmem>>, vector<231x256xf32>
    %c3_41 = arith.constant 3 : index
    %c0_42 = arith.constant 0 : index
    %c0_43 = arith.constant 0 : index
    %32 = vector.load %arg3[%c3_41, %c0_42, %c0_43] : memref<16x128x256xf32, #tpu.memory_space<vmem>>, vector<1x128x256xf32>
    %33 = vector.shape_cast %32 : vector<1x128x256xf32> to vector<128x256xf32>
    %cst_44 = arith.constant dense<0.000000e+00> : vector<231x256xf32>
    %34 = tpu.matmul %30, %33, %cst_44 {dimension_numbers = #tpu.dot_dimension_numbers<[1], [0], [0], [1], [0, 0, 1, 1], [], []>} : vector<231x128xf32>, vector<128x256xf32>, vector<231x256xf32> -> vector<231x256xf32>
    %35 = arith.addf %31, %34 : vector<231x256xf32>
    %c0_45 = arith.constant 0 : index
    %c0_46 = arith.constant 0 : index
    %36 = vector.load %arg9[%c0_45, %c0_46] : memref<231x256xf32, #tpu.memory_space<vmem>>, vector<231x256xf32>
    tpu.vector_store %arg9[%c0_45, %c0_46], %35 {strides = array<i32>} : memref<231x256xf32, #tpu.memory_space<vmem>>, vector<231x256xf32>,
    %c21 = arith.constant 21 : index
    %c0_47 = arith.constant 0 : index
    %37 = vector.load %arg8[%c21, %c0_47] : memref<320x128xf32, #tpu.memory_space<vmem>>, vector<231x128xf32>
    %c0_48 = arith.constant 0 : index
    %c0_49 = arith.constant 0 : index
    %38 = vector.load %arg9[%c0_48, %c0_49] : memref<231x256xf32, #tpu.memory_space<vmem>>, vector<231x256xf32>
    %c4 = arith.constant 4 : index
    %c0_50 = arith.constant 0 : index
    %c0_51 = arith.constant 0 : index
    %39 = vector.load %arg3[%c4, %c0_50, %c0_51] : memref<16x128x256xf32, #tpu.memory_space<vmem>>, vector<1x128x256xf32>
    %40 = vector.shape_cast %39 : vector<1x128x256xf32> to vector<128x256xf32>
    %cst_52 = arith.constant dense<0.000000e+00> : vector<231x256xf32>
    %41 = tpu.matmul %37, %40, %cst_52 {dimension_numbers = #tpu.dot_dimension_numbers<[1], [0], [0], [1], [0, 0, 1, 1], [], []>} : vector<231x128xf32>, vector<128x256xf32>, vector<231x256xf32> -> vector<231x256xf32>
    %42 = arith.addf %38, %41 : vector<231x256xf32>
    %c0_53 = arith.constant 0 : index
    %c0_54 = arith.constant 0 : index
    %43 = vector.load %arg9[%c0_53, %c0_54] : memref<231x256xf32, #tpu.memory_space<vmem>>, vector<231x256xf32>
    tpu.vector_store %arg9[%c0_53, %c0_54], %42 {strides = array<i32>} : memref<231x256xf32, #tpu.memory_space<vmem>>, vector<231x256xf32>,
    %c22 = arith.constant 22 : index
    %c0_55 = arith.constant 0 : index
    %44 = vector.load %arg8[%c22, %c0_55] : memref<320x128xf32, #tpu.memory_space<vmem>>, vector<231x128xf32>
    %c0_56 = arith.constant 0 : index
    %c0_57 = arith.constant 0 : index
    %45 = vector.load %arg9[%c0_56, %c0_57] : memref<231x256xf32, #tpu.memory_space<vmem>>, vector<231x256xf32>
    %c5 = arith.constant 5 : index
    %c0_58 = arith.constant 0 : index
    %c0_59 = arith.constant 0 : index
    %46 = vector.load %arg3[%c5, %c0_58, %c0_59] : memref<16x128x256xf32, #tpu.memory_space<vmem>>, vector<1x128x256xf32>
    %47 = vector.shape_cast %46 : vector<1x128x256xf32> to vector<128x256xf32>
    %cst_60 = arith.constant dense<0.000000e+00> : vector<231x256xf32>
    %48 = tpu.matmul %44, %47, %cst_60 {dimension_numbers = #tpu.dot_dimension_numbers<[1], [0], [0], [1], [0, 0, 1, 1], [], []>} : vector<231x128xf32>, vector<128x256xf32>, vector<231x256xf32> -> vector<231x256xf32>
    %49 = arith.addf %45, %48 : vector<231x256xf32>
    %c0_61 = arith.constant 0 : index
    %c0_62 = arith.constant 0 : index
    %50 = vector.load %arg9[%c0_61, %c0_62] : memref<231x256xf32, #tpu.memory_space<vmem>>, vector<231x256xf32>
    tpu.vector_store %arg9[%c0_61, %c0_62], %49 {strides = array<i32>} : memref<231x256xf32, #tpu.memory_space<vmem>>, vector<231x256xf32>,
    %c23 = arith.constant 23 : index
    %c0_63 = arith.constant 0 : index
    %51 = vector.load %arg8[%c23, %c0_63] : memref<320x128xf32, #tpu.memory_space<vmem>>, vector<231x128xf32>
    %c0_64 = arith.constant 0 : index
    %c0_65 = arith.constant 0 : index
    %52 = vector.load %arg9[%c0_64, %c0_65] : memref<231x256xf32, #tpu.memory_space<vmem>>, vector<231x256xf32>
    %c6 = arith.constant 6 : index
    %c0_66 = arith.constant 0 : index
    %c0_67 = arith.constant 0 : index
    %53 = vector.load %arg3[%c6, %c0_66, %c0_67] : memref<16x128x256xf32, #tpu.memory_space<vmem>>, vector<1x128x256xf32>
    %54 = vector.shape_cast %53 : vector<1x128x256xf32> to vector<128x256xf32>
    %cst_68 = arith.constant dense<0.000000e+00> : vector<231x256xf32>
    %55 = tpu.matmul %51, %54, %cst_68 {dimension_numbers = #tpu.dot_dimension_numbers<[1], [0], [0], [1], [0, 0, 1, 1], [], []>} : vector<231x128xf32>, vector<128x256xf32>, vector<231x256xf32> -> vector<231x256xf32>
    %56 = arith.addf %52, %55 : vector<231x256xf32>
    %c0_69 = arith.constant 0 : index
    %c0_70 = arith.constant 0 : index
    %57 = vector.load %arg9[%c0_69, %c0_70] : memref<231x256xf32, #tpu.memory_space<vmem>>, vector<231x256xf32>
    tpu.vector_store %arg9[%c0_69, %c0_70], %56 {strides = array<i32>} : memref<231x256xf32, #tpu.memory_space<vmem>>, vector<231x256xf32>,
    %c24 = arith.constant 24 : index
    %c0_71 = arith.constant 0 : index
    %58 = vector.load %arg8[%c24, %c0_71] : memref<320x128xf32, #tpu.memory_space<vmem>>, vector<231x128xf32>
    %c0_72 = arith.constant 0 : index
    %c0_73 = arith.constant 0 : index
    %59 = vector.load %arg9[%c0_72, %c0_73] : memref<231x256xf32, #tpu.memory_space<vmem>>, vector<231x256xf32>
    %c7 = arith.constant 7 : index
    %c0_74 = arith.constant 0 : index
    %c0_75 = arith.constant 0 : index
    %60 = vector.load %arg3[%c7, %c0_74, %c0_75] : memref<16x128x256xf32, #tpu.memory_space<vmem>>, vector<1x128x256xf32>
    %61 = vector.shape_cast %60 : vector<1x128x256xf32> to vector<128x256xf32>
    %cst_76 = arith.constant dense<0.000000e+00> : vector<231x256xf32>
    %62 = tpu.matmul %58, %61, %cst_76 {dimension_numbers = #tpu.dot_dimension_numbers<[1], [0], [0], [1], [0, 0, 1, 1], [], []>} : vector<231x128xf32>, vector<128x256xf32>, vector<231x256xf32> -> vector<231x256xf32>
    %63 = arith.addf %59, %62 : vector<231x256xf32>
    %c0_77 = arith.constant 0 : index
    %c0_78 = arith.constant 0 : index
    %64 = vector.load %arg9[%c0_77, %c0_78] : memref<231x256xf32, #tpu.memory_space<vmem>>, vector<231x256xf32>
    tpu.vector_store %arg9[%c0_77, %c0_78], %63 {strides = array<i32>} : memref<231x256xf32, #tpu.memory_space<vmem>>, vector<231x256xf32>,
    %c42 = arith.constant 42 : index
    %c0_79 = arith.constant 0 : index
    %65 = vector.load %arg8[%c42, %c0_79] : memref<320x128xf32, #tpu.memory_space<vmem>>, vector<231x128xf32>
    %c0_80 = arith.constant 0 : index
    %c0_81 = arith.constant 0 : index
    %66 = vector.load %arg9[%c0_80, %c0_81] : memref<231x256xf32, #tpu.memory_space<vmem>>, vector<231x256xf32>
    %c8 = arith.constant 8 : index
    %c0_82 = arith.constant 0 : index
    %c0_83 = arith.constant 0 : index
    %67 = vector.load %arg3[%c8, %c0_82, %c0_83] : memref<16x128x256xf32, #tpu.memory_space<vmem>>, vector<1x128x256xf32>
    %68 = vector.shape_cast %67 : vector<1x128x256xf32> to vector<128x256xf32>
    %cst_84 = arith.constant dense<0.000000e+00> : vector<231x256xf32>
    %69 = tpu.matmul %65, %68, %cst_84 {dimension_numbers = #tpu.dot_dimension_numbers<[1], [0], [0], [1], [0, 0, 1, 1], [], []>} : vector<231x128xf32>, vector<128x256xf32>, vector<231x256xf32> -> vector<231x256xf32>
    %70 = arith.addf %66, %69 : vector<231x256xf32>
    %c0_85 = arith.constant 0 : index
    %c0_86 = arith.constant 0 : index
    %71 = vector.load %arg9[%c0_85, %c0_86] : memref<231x256xf32, #tpu.memory_space<vmem>>, vector<231x256xf32>
    tpu.vector_store %arg9[%c0_85, %c0_86], %70 {strides = array<i32>} : memref<231x256xf32, #tpu.memory_space<vmem>>, vector<231x256xf32>,
    %c43 = arith.constant 43 : index
    %c0_87 = arith.constant 0 : index
    %72 = vector.load %arg8[%c43, %c0_87] : memref<320x128xf32, #tpu.memory_space<vmem>>, vector<231x128xf32>
    %c0_88 = arith.constant 0 : index
    %c0_89 = arith.constant 0 : index
    %73 = vector.load %arg9[%c0_88, %c0_89] : memref<231x256xf32, #tpu.memory_space<vmem>>, vector<231x256xf32>
    %c9 = arith.constant 9 : index
    %c0_90 = arith.constant 0 : index
    %c0_91 = arith.constant 0 : index
    %74 = vector.load %arg3[%c9, %c0_90, %c0_91] : memref<16x128x256xf32, #tpu.memory_space<vmem>>, vector<1x128x256xf32>
    %75 = vector.shape_cast %74 : vector<1x128x256xf32> to vector<128x256xf32>
    %cst_92 = arith.constant dense<0.000000e+00> : vector<231x256xf32>
    %76 = tpu.matmul %72, %75, %cst_92 {dimension_numbers = #tpu.dot_dimension_numbers<[1], [0], [0], [1], [0, 0, 1, 1], [], []>} : vector<231x128xf32>, vector<128x256xf32>, vector<231x256xf32> -> vector<231x256xf32>
    %77 = arith.addf %73, %76 : vector<231x256xf32>
    %c0_93 = arith.constant 0 : index
    %c0_94 = arith.constant 0 : index
    %78 = vector.load %arg9[%c0_93, %c0_94] : memref<231x256xf32, #tpu.memory_space<vmem>>, vector<231x256xf32>
    tpu.vector_store %arg9[%c0_93, %c0_94], %77 {strides = array<i32>} : memref<231x256xf32, #tpu.memory_space<vmem>>, vector<231x256xf32>,
    %c44 = arith.constant 44 : index
    %c0_95 = arith.constant 0 : index
    %79 = vector.load %arg8[%c44, %c0_95] : memref<320x128xf32, #tpu.memory_space<vmem>>, vector<231x128xf32>
    %c0_96 = arith.constant 0 : index
    %c0_97 = arith.constant 0 : index
    %80 = vector.load %arg9[%c0_96, %c0_97] : memref<231x256xf32, #tpu.memory_space<vmem>>, vector<231x256xf32>
    %c10 = arith.constant 10 : index
    %c0_98 = arith.constant 0 : index
    %c0_99 = arith.constant 0 : index
    %81 = vector.load %arg3[%c10, %c0_98, %c0_99] : memref<16x128x256xf32, #tpu.memory_space<vmem>>, vector<1x128x256xf32>
    %82 = vector.shape_cast %81 : vector<1x128x256xf32> to vector<128x256xf32>
    %cst_100 = arith.constant dense<0.000000e+00> : vector<231x256xf32>
    %83 = tpu.matmul %79, %82, %cst_100 {dimension_numbers = #tpu.dot_dimension_numbers<[1], [0], [0], [1], [0, 0, 1, 1], [], []>} : vector<231x128xf32>, vector<128x256xf32>, vector<231x256xf32> -> vector<231x256xf32>
    %84 = arith.addf %80, %83 : vector<231x256xf32>
    %c0_101 = arith.constant 0 : index
    %c0_102 = arith.constant 0 : index
    %85 = vector.load %arg9[%c0_101, %c0_102] : memref<231x256xf32, #tpu.memory_space<vmem>>, vector<231x256xf32>
    tpu.vector_store %arg9[%c0_101, %c0_102], %84 {strides = array<i32>} : memref<231x256xf32, #tpu.memory_space<vmem>>, vector<231x256xf32>,
    %c45 = arith.constant 45 : index
    %c0_103 = arith.constant 0 : index
    %86 = vector.load %arg8[%c45, %c0_103] : memref<320x128xf32, #tpu.memory_space<vmem>>, vector<231x128xf32>
    %c0_104 = arith.constant 0 : index
    %c0_105 = arith.constant 0 : index
    %87 = vector.load %arg9[%c0_104, %c0_105] : memref<231x256xf32, #tpu.memory_space<vmem>>, vector<231x256xf32>
    %c11 = arith.constant 11 : index
    %c0_106 = arith.constant 0 : index
    %c0_107 = arith.constant 0 : index
    %88 = vector.load %arg3[%c11, %c0_106, %c0_107] : memref<16x128x256xf32, #tpu.memory_space<vmem>>, vector<1x128x256xf32>
    %89 = vector.shape_cast %88 : vector<1x128x256xf32> to vector<128x256xf32>
    %cst_108 = arith.constant dense<0.000000e+00> : vector<231x256xf32>
    %90 = tpu.matmul %86, %89, %cst_108 {dimension_numbers = #tpu.dot_dimension_numbers<[1], [0], [0], [1], [0, 0, 1, 1], [], []>} : vector<231x128xf32>, vector<128x256xf32>, vector<231x256xf32> -> vector<231x256xf32>
    %91 = arith.addf %87, %90 : vector<231x256xf32>
    %c0_109 = arith.constant 0 : index
    %c0_110 = arith.constant 0 : index
    %92 = vector.load %arg9[%c0_109, %c0_110] : memref<231x256xf32, #tpu.memory_space<vmem>>, vector<231x256xf32>
    tpu.vector_store %arg9[%c0_109, %c0_110], %91 {strides = array<i32>} : memref<231x256xf32, #tpu.memory_space<vmem>>, vector<231x256xf32>,
    %c63 = arith.constant 63 : index
    %c0_111 = arith.constant 0 : index
    %93 = vector.load %arg8[%c63, %c0_111] : memref<320x128xf32, #tpu.memory_space<vmem>>, vector<231x128xf32>
    %c0_112 = arith.constant 0 : index
    %c0_113 = arith.constant 0 : index
    %94 = vector.load %arg9[%c0_112, %c0_113] : memref<231x256xf32, #tpu.memory_space<vmem>>, vector<231x256xf32>
    %c12 = arith.constant 12 : index
    %c0_114 = arith.constant 0 : index
    %c0_115 = arith.constant 0 : index
    %95 = vector.load %arg3[%c12, %c0_114, %c0_115] : memref<16x128x256xf32, #tpu.memory_space<vmem>>, vector<1x128x256xf32>
    %96 = vector.shape_cast %95 : vector<1x128x256xf32> to vector<128x256xf32>
    %cst_116 = arith.constant dense<0.000000e+00> : vector<231x256xf32>
    %97 = tpu.matmul %93, %96, %cst_116 {dimension_numbers = #tpu.dot_dimension_numbers<[1], [0], [0], [1], [0, 0, 1, 1], [], []>} : vector<231x128xf32>, vector<128x256xf32>, vector<231x256xf32> -> vector<231x256xf32>
    %98 = arith.addf %94, %97 : vector<231x256xf32>
    %c0_117 = arith.constant 0 : index
    %c0_118 = arith.constant 0 : index
    %99 = vector.load %arg9[%c0_117, %c0_118] : memref<231x256xf32, #tpu.memory_space<vmem>>, vector<231x256xf32>
    tpu.vector_store %arg9[%c0_117, %c0_118], %98 {strides = array<i32>} : memref<231x256xf32, #tpu.memory_space<vmem>>, vector<231x256xf32>,
    %c64 = arith.constant 64 : index
    %c0_119 = arith.constant 0 : index
    %100 = vector.load %arg8[%c64, %c0_119] : memref<320x128xf32, #tpu.memory_space<vmem>>, vector<231x128xf32>
    %c0_120 = arith.constant 0 : index
    %c0_121 = arith.constant 0 : index
    %101 = vector.load %arg9[%c0_120, %c0_121] : memref<231x256xf32, #tpu.memory_space<vmem>>, vector<231x256xf32>
    %c13 = arith.constant 13 : index
    %c0_122 = arith.constant 0 : index
    %c0_123 = arith.constant 0 : index
    %102 = vector.load %arg3[%c13, %c0_122, %c0_123] : memref<16x128x256xf32, #tpu.memory_space<vmem>>, vector<1x128x256xf32>
    %103 = vector.shape_cast %102 : vector<1x128x256xf32> to vector<128x256xf32>
    %cst_124 = arith.constant dense<0.000000e+00> : vector<231x256xf32>
    %104 = tpu.matmul %100, %103, %cst_124 {dimension_numbers = #tpu.dot_dimension_numbers<[1], [0], [0], [1], [0, 0, 1, 1], [], []>} : vector<231x128xf32>, vector<128x256xf32>, vector<231x256xf32> -> vector<231x256xf32>
    %105 = arith.addf %101, %104 : vector<231x256xf32>
    %c0_125 = arith.constant 0 : index
    %c0_126 = arith.constant 0 : index
    %106 = vector.load %arg9[%c0_125, %c0_126] : memref<231x256xf32, #tpu.memory_space<vmem>>, vector<231x256xf32>
    tpu.vector_store %arg9[%c0_125, %c0_126], %105 {strides = array<i32>} : memref<231x256xf32, #tpu.memory_space<vmem>>, vector<231x256xf32>,
    %c65 = arith.constant 65 : index
    %c0_127 = arith.constant 0 : index
    %107 = vector.load %arg8[%c65, %c0_127] : memref<320x128xf32, #tpu.memory_space<vmem>>, vector<231x128xf32>
    %c0_128 = arith.constant 0 : index
    %c0_129 = arith.constant 0 : index
    %108 = vector.load %arg9[%c0_128, %c0_129] : memref<231x256xf32, #tpu.memory_space<vmem>>, vector<231x256xf32>
    %c14 = arith.constant 14 : index
    %c0_130 = arith.constant 0 : index
    %c0_131 = arith.constant 0 : index
    %109 = vector.load %arg3[%c14, %c0_130, %c0_131] : memref<16x128x256xf32, #tpu.memory_space<vmem>>, vector<1x128x256xf32>
    %110 = vector.shape_cast %109 : vector<1x128x256xf32> to vector<128x256xf32>
    %cst_132 = arith.constant dense<0.000000e+00> : vector<231x256xf32>
    %111 = tpu.matmul %107, %110, %cst_132 {dimension_numbers = #tpu.dot_dimension_numbers<[1], [0], [0], [1], [0, 0, 1, 1], [], []>} : vector<231x128xf32>, vector<128x256xf32>, vector<231x256xf32> -> vector<231x256xf32>
    %112 = arith.addf %108, %111 : vector<231x256xf32>
    %c0_133 = arith.constant 0 : index
    %c0_134 = arith.constant 0 : index
    %113 = vector.load %arg9[%c0_133, %c0_134] : memref<231x256xf32, #tpu.memory_space<vmem>>, vector<231x256xf32>
    tpu.vector_store %arg9[%c0_133, %c0_134], %112 {strides = array<i32>} : memref<231x256xf32, #tpu.memory_space<vmem>>, vector<231x256xf32>,
    %c66 = arith.constant 66 : index
    %c0_135 = arith.constant 0 : index
    %114 = vector.load %arg8[%c66, %c0_135] : memref<320x128xf32, #tpu.memory_space<vmem>>, vector<231x128xf32>
    %c0_136 = arith.constant 0 : index
    %c0_137 = arith.constant 0 : index
    %115 = vector.load %arg9[%c0_136, %c0_137] : memref<231x256xf32, #tpu.memory_space<vmem>>, vector<231x256xf32>
    %c15 = arith.constant 15 : index
    %c0_138 = arith.constant 0 : index
    %c0_139 = arith.constant 0 : index
    %116 = vector.load %arg3[%c15, %c0_138, %c0_139] : memref<16x128x256xf32, #tpu.memory_space<vmem>>, vector<1x128x256xf32>
    %117 = vector.shape_cast %116 : vector<1x128x256xf32> to vector<128x256xf32>
    %cst_140 = arith.constant dense<0.000000e+00> : vector<231x256xf32>
    %118 = tpu.matmul %114, %117, %cst_140 {dimension_numbers = #tpu.dot_dimension_numbers<[1], [0], [0], [1], [0, 0, 1, 1], [], []>} : vector<231x128xf32>, vector<128x256xf32>, vector<231x256xf32> -> vector<231x256xf32>
    %119 = arith.addf %115, %118 : vector<231x256xf32>
    %c0_141 = arith.constant 0 : index
    %c0_142 = arith.constant 0 : index
    %120 = vector.load %arg9[%c0_141, %c0_142] : memref<231x256xf32, #tpu.memory_space<vmem>>, vector<231x256xf32>
    tpu.vector_store %arg9[%c0_141, %c0_142], %119 {strides = array<i32>} : memref<231x256xf32, #tpu.memory_space<vmem>>, vector<231x256xf32>,
    %c0_143 = arith.constant 0 : index
    %c0_144 = arith.constant 0 : index
    %121 = vector.load %arg9[%c0_143, %c0_144] : memref<231x256xf32, #tpu.memory_space<vmem>>, vector<231x256xf32>
    %c0_145 = arith.constant 0 : index
    %c0_146 = arith.constant 0 : index
    %122 = vector.load %arg4[%c0_145, %c0_146] : memref<1x256xf32, #tpu.memory_space<vmem>>, vector<1x256xf32>
    %123 = vector.broadcast %122 : vector<1x256xf32> to vector<231x256xf32>
    %124 = arith.addf %121, %123 : vector<231x256xf32>
    %cst_147 = arith.constant 0.000000e+00 : f32
    %125 = vector.broadcast %cst_147 : f32 to vector<231x256xf32>
    %126 = arith.maximumf %124, %125 : vector<231x256xf32>
    %c0_148 = arith.constant 0 : index
    %c0_149 = arith.constant 0 : index
    %127 = vector.load %arg5[%c0_148, %c0_149] : memref<231x256xf32, #tpu.memory_space<vmem>>, vector<231x256xf32>
    %128 = arith.mulf %126, %127 : vector<231x256xf32>
    %cst_150 = arith.constant dense<0.000000e+00> : vector<256xf32>
    %129 = vector.multi_reduction <add>, %128, %cst_150 [0] : vector<231x256xf32> to vector<256xf32>
    %130 = vector.shape_cast %129 : vector<256xf32> to vector<1x256xf32>
    %cst_151 = arith.constant dense<0.000000e+00> : vector<1xf32>
    %131 = vector.multi_reduction <add>, %130, %cst_151 [1] : vector<1x256xf32> to vector<1xf32>
    %132 = vector.shape_cast %131 : vector<1xf32> to vector<1x1xf32>
    %c0_152 = arith.constant 0 : index
    %c0_153 = arith.constant 0 : index
    %133 = vector.load %arg6[%c0_152, %c0_153] : memref<1x1xf32, #tpu.memory_space<vmem>>, vector<1x1xf32>
    %134 = arith.addf %132, %133 : vector<1x1xf32>
    %135 = vector.shape_cast %134 : vector<1x1xf32> to vector<1x1xf32>
    %136 = vector.broadcast %135 : vector<1x1xf32> to vector<1x128xf32>
    %c0_154 = arith.constant 0 : index
    %c0_155 = arith.constant 0 : index
    %c0_156 = arith.constant 0 : index
    %137 = vector.load %arg7[%c0_154, %c0_155, %c0_156] : memref<1x1x128xf32, #tpu.memory_space<vmem>>, vector<1x1x128xf32>
    %138 = vector.shape_cast %137 : vector<1x1x128xf32> to vector<1x128xf32>
    %139 = vector.shape_cast %136 : vector<1x128xf32> to vector<1x1x128xf32>
    tpu.vector_store %arg7[%c0_154, %c0_155, %c0_156], %139 {strides = array<i32>} : memref<1x1x128xf32, #tpu.memory_space<vmem>>, vector<1x1x128xf32>,
    return
  }
  func.func @transform_0(%arg0: i32) -> (i32, i32, i32) {
    %c0_i32 = arith.constant 0 : i32
    %c0_i32_0 = arith.constant 0 : i32
    %c0_i32_1 = arith.constant 0 : i32
    return %arg0, %c0_i32, %c0_i32_0 : i32, i32, i32
  }
  func.func @transform_1(%arg0: i32) -> (i32, i32) {
    %c0_i32 = arith.constant 0 : i32
    %c0_i32_0 = arith.constant 0 : i32
    %c0_i32_1 = arith.constant 0 : i32
    return %c0_i32, %c0_i32_0 : i32, i32
  }
  func.func @transform_2(%arg0: i32) -> (i32, i32, i32) {
    %c0_i32 = arith.constant 0 : i32
    %c0_i32_0 = arith.constant 0 : i32
    %c0_i32_1 = arith.constant 0 : i32
    %c0_i32_2 = arith.constant 0 : i32
    return %c0_i32, %c0_i32_0, %c0_i32_1 : i32, i32, i32
  }
  func.func @transform_3(%arg0: i32) -> (i32, i32) {
    %c0_i32 = arith.constant 0 : i32
    %c0_i32_0 = arith.constant 0 : i32
    %c0_i32_1 = arith.constant 0 : i32
    return %c0_i32, %c0_i32_0 : i32, i32
  }
  func.func @transform_4(%arg0: i32) -> (i32, i32) {
    %c0_i32 = arith.constant 0 : i32
    %c0_i32_0 = arith.constant 0 : i32
    %c0_i32_1 = arith.constant 0 : i32
    return %c0_i32, %c0_i32_0 : i32, i32
  }
  func.func @transform_5(%arg0: i32) -> (i32, i32) {
    %c0_i32 = arith.constant 0 : i32
    %c0_i32_0 = arith.constant 0 : i32
    %c0_i32_1 = arith.constant 0 : i32
    return %c0_i32, %c0_i32_0 : i32, i32
  }
  func.func @transform_6(%arg0: i32) -> (i32, i32, i32) {
    %c0_i32 = arith.constant 0 : i32
    %c0_i32_0 = arith.constant 0 : i32
    %c0_i32_1 = arith.constant 0 : i32
    return %arg0, %c0_i32, %c0_i32_0 : i32, i32, i32
  }
}

</mosaic_0001>

<llo_original>
// kernel: cnn_forward.1
$region0: #{cnn_forward.1}
  #allocation0 [shape = 'u32[]', space=smem, size = 0x4, offset = 0x4, fixed_abs, tag = 'smem constant byte address 0x4 - core index']
  #allocation1 [shape = 'u32[144,128]{1,0:T(1,128)}', space=vmem, size = 0x12000, scoped, tag = 'internal scratch']
  #allocation2 [shape = 'f32[320,128]{1,0:T(8,128)}', space=vmem, size = 0x28000, scoped, tag = 'scratch operand']
  #allocation3 [shape = 'f32[231,256]{1,0:T(8,128)}', space=vmem, size = 0x3a000, scoped, tag = 'scratch operand']
  #allocation4 [shape = 'f32[1,1]{1,0:T(1,128)S(1)}', space=vmem, size = 0x200, scoped, tag = 'scoped memory for cnn_forward.1']
  %s0 = inlined_call_operand.vmem [shape: f32[2,320,17], index: 0, kind: input, shape index: {}]
  %s1 = inlined_call_operand.vmem [shape: f32[17,128], index: 1, kind: input, shape index: {}]
  %s2 = inlined_call_operand.vmem [shape: f32[16,128,256], index: 2, kind: input, shape index: {}]
  %s3 = inlined_call_operand.vmem [shape: f32[1,256], index: 3, kind: input, shape index: {}]
  %s4 = inlined_call_operand.vmem [shape: f32[231,256], index: 4, kind: input, shape index: {}]
  %s5 = inlined_call_operand.<no memory space> [shape: f32[1,1], index: 5, kind: input, shape index: {}]
  %s6 = inlined_call_operand.vmem [shape: f32[2,1,128], index: 6, kind: output, shape index: {}]
  %s7 = sld [smem:[#allocation0]]
  $region57: #{cnn_forward.1} parent=0
    _
  %s9 = ssub.s32 1, %s7
  %s10 = scalar_select 0, %s9, %s7
  %v11 = vstv %s5
  %12 = vst [vmem:[#allocation4] sm:$0x1] %v11
  loop: start=0, step=1, limit=4
  $region2: #{cnn_forward.1} parent=0 // loop_pre_header
    _
  $region3: #{cnn_forward.1} parent=0 // loop_header
    %s14 = sphi 0, %s18
    %p15 = scmp.ge.s32.totalorder %s14, 4
    %s24 = sphi 0, %s26
    %s27 = sphi 0, %s24
    %s28 = sphi 0, %s27
    %s44 = sphi 0, %s28
    %s48 = sphi 0, %s48
    %s50 = sphi 0, %s48
    %s51 = sphi 0, %s50
    %s65 = sphi 0, %s51
    %s69 = sphi 0, %s69
    %s71 = sphi 0, %s69
    %s72 = sphi 0, %s71
    %s86 = sphi 0, %s72
    %s90 = sphi 0, %s90
    %s92 = sphi 0, %s90
    %s93 = sphi 0, %s92
    %s107 = sphi 0, %s93
    %s111 = sphi 0, %s111
    %s113 = sphi 0, %s111
    %s114 = sphi 0, %s113
    %s128 = sphi 0, %s114
    %s132 = sphi 0, %s132
    %s134 = sphi 0, %s132
    %s135 = sphi 0, %s134
    %s149 = sphi 0, %s135
    %s155 = sphi 0, %s157
    %s158 = sphi 0, %s155
    %s159 = sphi 0, %s158
    %s175 = sphi 0, %s159
  $region4: #{cnn_forward.1} parent=0 // loop_header_branch
    %17 = sbr.rel (%p15) target = $region8
  $region5: #{cnn_forward.1} parent=0 // loop_body
    %s19 = ssub.s32 %s14, 1
    %s20 = ssub.s32 %s14, 2
    %s21 = sadd.s32 %s14, 1
    %s22 = ssub.s32 %s14, %s21
    %p23 = scmp.eq.s32.totalorder %s22, 0
    %s25 = sadd.s32 %s24, 1
    %s26 = scalar_select %p23, %s24, %s25
    %p29 = pneg %p23
    %p30 = scmp.eq.s32.totalorder %s14, 1
    %p31 = por %p29, %p30
    %p32 = scmp.ne.s32.totalorder %s24, %s27
    %p33 = scmp.eq.s32.totalorder %s14, 0
    %p34 = por %p32, %p33
    %p35 = scmp.ne.s32.totalorder %s24, %s27
    %p36 = scmp.eq.s32.totalorder %s19, 1
    %p37 = por %p35, %p36
    %p38 = scmp.ne.s32.totalorder %s27, %s28
    %p39 = scmp.eq.s32.totalorder %s19, 0
    %p40 = por %p38, %p39
    %p41 = scmp.ne.s32.totalorder %s27, %s28
    %p42 = scmp.eq.s32.totalorder %s20, 1
    %p43 = por %p41, %p42
    %p45 = scmp.ne.s32.totalorder %s28, %s44
    %p46 = scmp.eq.s32.totalorder %s20, 0
    %p47 = por %p45, %p46
    %s49 = sadd.s32 %s48, 1
    %p52 = scmp.eq.s32.totalorder %s14, 1
    %p53 = scmp.ne.s32.totalorder %s48, %s50
    %p54 = scmp.eq.s32.totalorder %s14, 0
    %p55 = por %p53, %p54
    %p56 = scmp.ne.s32.totalorder %s48, %s50
    %p57 = scmp.eq.s32.totalorder %s19, 1
    %p58 = por %p56, %p57
    %p59 = scmp.ne.s32.totalorder %s50, %s51
    %p60 = scmp.eq.s32.totalorder %s19, 0
    %p61 = por %p59, %p60
    %p62 = scmp.ne.s32.totalorder %s50, %s51
    %p63 = scmp.eq.s32.totalorder %s20, 1
    %p64 = por %p62, %p63
    %p66 = scmp.ne.s32.totalorder %s51, %s65
    %p67 = scmp.eq.s32.totalorder %s20, 0
    %p68 = por %p66, %p67
    %s70 = sadd.s32 %s69, 1
    %p73 = scmp.eq.s32.totalorder %s14, 1
    %p74 = scmp.ne.s32.totalorder %s69, %s71
    %p75 = scmp.eq.s32.totalorder %s14, 0
    %p76 = por %p74, %p75
    %p77 = scmp.ne.s32.totalorder %s69, %s71
    %p78 = scmp.eq.s32.totalorder %s19, 1
    %p79 = por %p77, %p78
    %p80 = scmp.ne.s32.totalorder %s71, %s72
    %p81 = scmp.eq.s32.totalorder %s19, 0
    %p82 = por %p80, %p81
    %p83 = scmp.ne.s32.totalorder %s71, %s72
    %p84 = scmp.eq.s32.totalorder %s20, 1
    %p85 = por %p83, %p84
    %p87 = scmp.ne.s32.totalorder %s72, %s86
    %p88 = scmp.eq.s32.totalorder %s20, 0
    %p89 = por %p87, %p88
    %s91 = sadd.s32 %s90, 1
    %p94 = scmp.eq.s32.totalorder %s14, 1
    %p95 = scmp.ne.s32.totalorder %s90, %s92
    %p96 = scmp.eq.s32.totalorder %s14, 0
    %p97 = por %p95, %p96
    %p98 = scmp.ne.s32.totalorder %s90, %s92
    %p99 = scmp.eq.s32.totalorder %s19, 1
    %p100 = por %p98, %p99
    %p101 = scmp.ne.s32.totalorder %s92, %s93
    %p102 = scmp.eq.s32.totalorder %s19, 0
    %p103 = por %p101, %p102
    %p104 = scmp.ne.s32.totalorder %s92, %s93
    %p105 = scmp.eq.s32.totalorder %s20, 1
    %p106 = por %p104, %p105
    %p108 = scmp.ne.s32.totalorder %s93, %s107
    %p109 = scmp.eq.s32.totalorder %s20, 0
    %p110 = por %p108, %p109
    %s112 = sadd.s32 %s111, 1
    %p115 = scmp.eq.s32.totalorder %s14, 1
    %p116 = scmp.ne.s32.totalorder %s111, %s113
    %p117 = scmp.eq.s32.totalorder %s14, 0
    %p118 = por %p116, %p117
    %p119 = scmp.ne.s32.totalorder %s111, %s113
    %p120 = scmp.eq.s32.totalorder %s19, 1
    %p121 = por %p119, %p120
    %p122 = scmp.ne.s32.totalorder %s113, %s114
    %p123 = scmp.eq.s32.totalorder %s19, 0
    %p124 = por %p122, %p123
    %p125 = scmp.ne.s32.totalorder %s113, %s114
    %p126 = scmp.eq.s32.totalorder %s20, 1
    %p127 = por %p125, %p126
    %p129 = scmp.ne.s32.totalorder %s114, %s128
    %p130 = scmp.eq.s32.totalorder %s20, 0
    %p131 = por %p129, %p130
    %s133 = sadd.s32 %s132, 1
    %p136 = scmp.eq.s32.totalorder %s14, 1
    %p137 = scmp.ne.s32.totalorder %s132, %s134
    %p138 = scmp.eq.s32.totalorder %s14, 0
    %p139 = por %p137, %p138
    %p140 = scmp.ne.s32.totalorder %s132, %s134
    %p141 = scmp.eq.s32.totalorder %s19, 1
    %p142 = por %p140, %p141
    %p143 = scmp.ne.s32.totalorder %s134, %s135
    %p144 = scmp.eq.s32.totalorder %s19, 0
    %p145 = por %p143, %p144
    %p146 = scmp.ne.s32.totalorder %s134, %s135
    %p147 = scmp.eq.s32.totalorder %s20, 1
    %p148 = por %p146, %p147
    %p150 = scmp.ne.s32.totalorder %s135, %s149
    %p151 = scmp.eq.s32.totalorder %s20, 0
    %p152 = por %p150, %p151
    %s153 = ssub.s32 %s14, %s21
    %p154 = scmp.eq.s32.totalorder %s153, 0
    %s156 = sadd.s32 %s155, 1
    %s157 = scalar_select %p154, %s155, %s156
    %p160 = pneg %p154
    %p161 = scmp.eq.s32.totalorder %s14, 1
    %p162 = por %p160, %p161
    %p163 = scmp.ne.s32.totalorder %s155, %s158
    %p164 = scmp.eq.s32.totalorder %s14, 0
    %p165 = por %p163, %p164
    %p166 = scmp.ne.s32.totalorder %s155, %s158
    %p167 = scmp.eq.s32.totalorder %s19, 1
    %p168 = por %p166, %p167
    %p169 = scmp.ne.s32.totalorder %s158, %s159
    %p170 = scmp.eq.s32.totalorder %s19, 0
    %p171 = por %p169, %p170
    %p172 = scmp.ne.s32.totalorder %s158, %s159
    %p173 = scmp.eq.s32.totalorder %s20, 1
    %p174 = por %p172, %p173
    %p176 = scmp.ne.s32.totalorder %s159, %s175
    %p177 = scmp.eq.s32.totalorder %s20, 0
    %p178 = por %p176, %p177
    %p179 = scmp.le.s32.totalorder 1, %s14
    %p180 = scmp.lt.s32.totalorder %s14, 3
    %p181 = pnand %p179, %p180
    %p182 = pneg %p181
    // Predicated region
    $region9: #{cnn_forward.1} parent=5 // pred_check
      _
    $region10: #{cnn_forward.1} parent=5 // pred_check_branch
      %184 = sbr.rel (%p181) target = $region12
    $region11: #{cnn_forward.1} parent=5 // pred_region
      %s185 = ssub.s32 %s14, 1
      // Predicated region
      $region13: #{cnn_forward.1} parent=11 // pred_check
        %p186 = pneg %p61
      $region14: #{cnn_forward.1} parent=11 // pred_check_branch
        %188 = sbr.rel (%p186) target = $region16
      $region15: #{cnn_forward.1} parent=11 // pred_region
        _
      $region16: #{cnn_forward.1} parent=11 // pred_fallthru
        _
      // Predicated region
      $region17: #{cnn_forward.1} parent=11 // pred_check
        %p189 = pneg %p82
      $region18: #{cnn_forward.1} parent=11 // pred_check_branch
        %191 = sbr.rel (%p189) target = $region20
      $region19: #{cnn_forward.1} parent=11 // pred_region
        _
      $region20: #{cnn_forward.1} parent=11 // pred_fallthru
        _
      // Predicated region
      $region21: #{cnn_forward.1} parent=11 // pred_check
        %p192 = pneg %p103
      $region22: #{cnn_forward.1} parent=11 // pred_check_branch
        %194 = sbr.rel (%p192) target = $region24
      $region23: #{cnn_forward.1} parent=11 // pred_region
        _
      $region24: #{cnn_forward.1} parent=11 // pred_fallthru
        _
      // Predicated region
      $region25: #{cnn_forward.1} parent=11 // pred_check
        %p195 = pneg %p124
      $region26: #{cnn_forward.1} parent=11 // pred_check_branch
        %197 = sbr.rel (%p195) target = $region28
      $region27: #{cnn_forward.1} parent=11 // pred_region
        _
      $region28: #{cnn_forward.1} parent=11 // pred_fallthru
        _
      // Predicated region
      $region29: #{cnn_forward.1} parent=11 // pred_check
        %p198 = pneg %p145
      $region30: #{cnn_forward.1} parent=11 // pred_check_branch
        %200 = sbr.rel (%p198) target = $region32
      $region31: #{cnn_forward.1} parent=11 // pred_region
        _
      $region32: #{cnn_forward.1} parent=11 // pred_fallthru
        _
    $region12: #{cnn_forward.1} parent=5 // pred_fallthru
      _
    %p201 = scmp.lt.s32.totalorder %s14, 2
    // Predicated region
    $region33: #{cnn_forward.1} parent=5 // pred_check
      %p202 = pneg %p201
    $region34: #{cnn_forward.1} parent=5 // pred_check_branch
      %204 = sbr.rel (%p202) target = $region36
    $region35: #{cnn_forward.1} parent=5 // pred_region
      // Predicated region
      $region37: #{cnn_forward.1} parent=35 // pred_check
        %p205 = pneg %p34
      $region38: #{cnn_forward.1} parent=35 // pred_check_branch
        %207 = sbr.rel (%p205) target = $region40
      $region39: #{cnn_forward.1} parent=35 // pred_region
        %p208 = scmp.lt.s32.totalorder %s14, 1
        %s209 = scalar_select %p208, %s14, 1
        %s210 = smul.addr %s209, 40
        %s211 = smul.addr %s210, 8
        %s212 = scalar_lea.vmem %s0, %s211
      $region40: #{cnn_forward.1} parent=35 // pred_fallthru
        _
    $region36: #{cnn_forward.1} parent=5 // pred_fallthru
      _
    %p213 = scmp.le.s32.totalorder 1, %s14
    %p214 = scmp.lt.s32.totalorder %s14, 3
    %p215 = pnand %p213, %p214
    %p216 = pneg %p215
    // Predicated region
    $region41: #{cnn_forward.1} parent=5 // pred_check
      _
    $region42: #{cnn_forward.1} parent=5 // pred_check_branch
      %218 = sbr.rel (%p215) target = $region44
    $region43: #{cnn_forward.1} parent=5 // pred_region
      %s219 = ssub.s32 %s14, 1
      %p220 = scmp.lt.s32.totalorder %s19, 1
      %s221 = scalar_select %p220, %s19, 1
      %s222 = smul.addr %s221, 40
      %s223 = smul.addr %s222, 8
      %s224 = scalar_lea.vmem %s0, %s223
      %p225 = pneg %p40
      %p226 = pneg %p37
      %p227 = pneg %p61
      %p228 = pneg %p58
      %p229 = pneg %p82
      %p230 = pneg %p79
      %p231 = pneg %p103
      %p232 = pneg %p100
      %p233 = pneg %p124
      %p234 = pneg %p121
      %p235 = pneg %p145
      %p236 = pneg %p142
      %p237 = pneg %p171
      %p238 = pneg %p168
      %p239 = scmp.lt.s32.totalorder %s19, 1
      %s240 = scalar_select %p239, %s19, 1
      %s241 = scalar_lea.vmem %s6, %s240
      %p242 = scmp.lt.s32.totalorder %s19, 1
      %s243 = scalar_select %p242, %s19, 1
      %s244 = smul.addr %s243, 40
      %s245 = smul.addr %s244, 8
      %s246 = scalar_lea.vmem %s0, %s245
      %p247 = scmp.lt.s32.totalorder %s19, 1
      %s248 = scalar_select %p247, %s19, 1
      %s249 = scalar_lea.vmem %s6, %s248
      %v250 = vld [vmem:[%s246] sm:$0xff]
      %v251 = vld [vmem:[%s246 + $0x8] sm:$0xff]
      %v252 = vld [vmem:[%s246 + $0x10] sm:$0xff]
      %v253 = vld [vmem:[%s246 + $0x18] sm:$0xff]
      %v254 = vld [vmem:[%s246 + $0x20] sm:$0xff]
      %v255 = vld [vmem:[%s246 + $0x28] sm:$0xff]
      %v256 = vld [vmem:[%s246 + $0x30] sm:$0xff]
      %v257 = vld [vmem:[%s246 + $0x38] sm:$0xff]
      %v258 = vld [vmem:[%s246 + $0x40] sm:$0xff]
      %v259 = vld [vmem:[%s246 + $0x48] sm:$0xff]
      %v260 = vld [vmem:[%s246 + $0x50] sm:$0xff]
      %v261 = vld [vmem:[%s246 + $0x58] sm:$0xff]
      %v262 = vld [vmem:[%s246 + $0x60] sm:$0xff]
      %v263 = vld [vmem:[%s246 + $0x68] sm:$0xff]
      %v264 = vld [vmem:[%s246 + $0x70] sm:$0xff]
      %v265 = vld [vmem:[%s246 + $0x78] sm:$0xff]
      %v266 = vld [vmem:[%s246 + $0x80] sm:$0xff]
      %v267 = vld [vmem:[%s246 + $0x88] sm:$0xff]
      %v268 = vld [vmem:[%s246 + $0x90] sm:$0xff]
      %v269 = vld [vmem:[%s246 + $0x98] sm:$0xff]
      %v270 = vld [vmem:[%s246 + $0xa0] sm:$0xff]
      %v271 = vld [vmem:[%s246 + $0xa8] sm:$0xff]
      %v272 = vld [vmem:[%s246 + $0xb0] sm:$0xff]
      %v273 = vld [vmem:[%s246 + $0xb8] sm:$0xff]
      %v274 = vld [vmem:[%s246 + $0xc0] sm:$0xff]
      %v275 = vld [vmem:[%s246 + $0xc8] sm:$0xff]
      %v276 = vld [vmem:[%s246 + $0xd0] sm:$0xff]
      %v277 = vld [vmem:[%s246 + $0xd8] sm:$0xff]
      %v278 = vld [vmem:[%s246 + $0xe0] sm:$0xff]
      %v279 = vld [vmem:[%s246 + $0xe8] sm:$0xff]
      %v280 = vld [vmem:[%s246 + $0xf0] sm:$0xff]
      %v281 = vld [vmem:[%s246 + $0xf8] sm:$0xff]
      %v282 = vld [vmem:[%s246 + $0x100] sm:$0xff]
      %v283 = vld [vmem:[%s246 + $0x108] sm:$0xff]
      %v284 = vld [vmem:[%s246 + $0x110] sm:$0xff]
      %v285 = vld [vmem:[%s246 + $0x118] sm:$0xff]
      %v286 = vld [vmem:[%s246 + $0x120] sm:$0xff]
      %v287 = vld [vmem:[%s246 + $0x128] sm:$0xff]
      %v288 = vld [vmem:[%s246 + $0x130] sm:$0xff]
      %v289 = vld [vmem:[%s246 + $0x138] sm:$0xff]
      %v290 = vld [vmem:[%s1] sm:$0xff]
      %v291 = vld [vmem:[%s1 + $0x8] sm:$0xff]
      %v292 = vld [vmem:[%s1 + $0x10] sm:$0x1]
      %vm293 = vcmask 138240
      %v295 = vsel %vm293, %v250, 0
      %v298 = vsel %vm293, %v251, 0
      %v301 = vsel %vm293, %v252, 0
      %v304 = vsel %vm293, %v253, 0
      %v307 = vsel %vm293, %v254, 0
      %v310 = vsel %vm293, %v255, 0
      %v313 = vsel %vm293, %v256, 0
      %v316 = vsel %vm293, %v257, 0
      %v319 = vsel %vm293, %v258, 0
      %v322 = vsel %vm293, %v259, 0
      %v325 = vsel %vm293, %v260, 0
      %v328 = vsel %vm293, %v261, 0
      %v331 = vsel %vm293, %v262, 0
      %v334 = vsel %vm293, %v263, 0
      %v337 = vsel %vm293, %v264, 0
      %v340 = vsel %vm293, %v265, 0
      %v343 = vsel %vm293, %v266, 0
      %v346 = vsel %vm293, %v267, 0
      %v349 = vsel %vm293, %v268, 0
      %v352 = vsel %vm293, %v269, 0
      %v355 = vsel %vm293, %v270, 0
      %v358 = vsel %vm293, %v271, 0
      %v361 = vsel %vm293, %v272, 0
      %v364 = vsel %vm293, %v273, 0
      %v367 = vsel %vm293, %v274, 0
      %v370 = vsel %vm293, %v275, 0
      %v373 = vsel %vm293, %v276, 0
      %v376 = vsel %vm293, %v277, 0
      %v379 = vsel %vm293, %v278, 0
      %v382 = vsel %vm293, %v279, 0
      %v385 = vsel %vm293, %v280, 0
      %v388 = vsel %vm293, %v281, 0
      %v391 = vsel %vm293, %v282, 0
      %v394 = vsel %vm293, %v283, 0
      %v397 = vsel %vm293, %v284, 0
      %v400 = vsel %vm293, %v285, 0
      %v403 = vsel %vm293, %v286, 0
      %v406 = vsel %vm293, %v287, 0
      %v409 = vsel %vm293, %v288, 0
      %v412 = vsel %vm293, %v289, 0
      %vm414 = vcmask 1040384
      %v416 = vsel %vm414, %v292, 0
      %418 = vmatprep.subr.mxu0 0.0
      %419 = vmatpush1.msra.mxu0 %v290
      %420 = vmatprep.subr.mxu0 0.0
      %421 = vmatpush1.msra.mxu0 %v291
      %422 = vmatprep.subr.mxu0 0.0
      %423 = vmatpush1.msra.mxu0 %v416
      %424 = vmatprep.subr.mxu0 0.0
      %425 = vmatpush1.msra.mxu0 0.0
      %426 = vmatprep.subr.mxu0 0.0
      %427 = vmatpush1.msra.mxu0 0.0
      %428 = vmatprep.subr.mxu0 0.0
      %429 = vmatpush1.msra.mxu0 0.0
      %430 = vmatprep.subr.mxu0 0.0
      %431 = vmatpush1.msra.mxu0 0.0
      %432 = vmatprep.subr.mxu0 0.0
      %433 = vmatpush1.msra.mxu0 0.0
      %434 = vmatprep.subr.mxu0 0.0
      %435 = vmatpush1.msra.mxu0 0.0
      %436 = vmatprep.subr.mxu0 0.0
      %437 = vmatpush1.msra.mxu0 0.0
      %438 = vmatprep.subr.mxu0 0.0
      %439 = vmatpush1.msra.mxu0 0.0
      %440 = vmatprep.subr.mxu0 0.0
      %441 = vmatpush1.msra.mxu0 0.0
      %442 = vmatprep.subr.mxu0 0.0
      %443 = vmatpush1.msra.mxu0 0.0
      %444 = vmatprep.subr.mxu0 0.0
      %445 = vmatpush1.msra.mxu0 0.0
      %446 = vmatprep.subr.mxu0 0.0
      %447 = vmatpush1.msra.mxu0 0.0
      %448 = vmatprep.subr.mxu0 0.0
      %449 = vmatpush1.msra.mxu0 0.0
      %450 = vmatprep.subr.mxu0 0.0
      %451 = vmatpush1.msra.mxu0 0.0
      %452 = vmatprep.subr.mxu0 0.0
      %453 = vmatpush1.msra.mxu0 0.0
      %454 = vmatprep.subr.mxu0 0.0
      %455 = vmatpush1.msra.mxu0 0.0
      %456 = vmatprep.subr.mxu0 0.0
      %457 = vmatpush1.msra.mxu0 0.0
      %458 = vmatprep.subr.mxu0 0.0
      %459 = vmatpush1.msra.mxu0 0.0
      %460 = vmatprep.subr.mxu0 0.0
      %461 = vmatpush1.msra.mxu0 0.0
      %462 = vmatprep.subr.mxu0 0.0
      %463 = vmatpush1.msra.mxu0 0.0
      %464 = vmatprep.subr.mxu0 0.0
      %465 = vmatpush1.msra.mxu0 0.0
      %466 = vmatprep.subr.mxu0 0.0
      %467 = vmatpush1.msra.mxu0 0.0
      %468 = vmatprep.subr.mxu0 0.0
      %469 = vmatpush1.msra.mxu0 0.0
      %470 = vmatprep.subr.mxu0 0.0
      %471 = vmatpush1.msra.mxu0 0.0
      %472 = vmatprep.subr.mxu0 0.0
      %473 = vmatpush1.msra.mxu0 0.0
      %474 = vmatprep.subr.mxu0 0.0
      %475 = vmatpush1.msra.mxu0 0.0
      %476 = vmatprep.subr.mxu0 0.0
      %477 = vmatpush1.msra.mxu0 0.0
      %478 = vmatprep.subr.mxu0 0.0
      %479 = vmatpush1.msra.mxu0 0.0
      %480 = vmatprep.subr.mxu0 0.0
      %481 = vmatpush1.msra.mxu0 0.0
      %482 = vmatprep.mubr.f32.mxu0 0.0
      %483 = vmatmul.mubr.f32.gmra.mrb[0].mxu0 %v295
      %v484 = vpop.f32.mrb[0].mxu0
      %v485 = vadd.f32 0.0, %v484
      %v486 = vpop.f32.mrb[0].mxu0
      %487 = vmatprep.mubr.f32.mxu0 0.0
      %488 = vmatmul.mubr.f32.gmra.mrb[0].mxu0 %v298
      %v489 = vpop.f32.mrb[0].mxu0
      %v490 = vadd.f32 0.0, %v489
      %v491 = vpop.f32.mrb[0].mxu0
      %492 = vmatprep.mubr.f32.mxu0 0.0
      %493 = vmatmul.mubr.f32.gmra.mrb[0].mxu0 %v301
      %v494 = vpop.f32.mrb[0].mxu0
      %v495 = vadd.f32 0.0, %v494
      %v496 = vpop.f32.mrb[0].mxu0
      %497 = vmatprep.mubr.f32.mxu0 0.0
      %498 = vmatmul.mubr.f32.gmra.mrb[0].mxu0 %v304
      %v499 = vpop.f32.mrb[0].mxu0
      %v500 = vadd.f32 0.0, %v499
      %v501 = vpop.f32.mrb[0].mxu0
      %502 = vmatprep.mubr.f32.mxu0 0.0
      %503 = vmatmul.mubr.f32.gmra.mrb[0].mxu0 %v307
      %v504 = vpop.f32.mrb[0].mxu0
      %v505 = vadd.f32 0.0, %v504
      %v506 = vpop.f32.mrb[0].mxu0
      %507 = vmatprep.mubr.f32.mxu0 0.0
      %508 = vmatmul.mubr.f32.gmra.mrb[0].mxu0 %v310
      %v509 = vpop.f32.mrb[0].mxu0
      %v510 = vadd.f32 0.0, %v509
      %v511 = vpop.f32.mrb[0].mxu0
      %512 = vmatprep.mubr.f32.mxu0 0.0
      %513 = vmatmul.mubr.f32.gmra.mrb[0].mxu0 %v313
      %v514 = vpop.f32.mrb[0].mxu0
      %v515 = vadd.f32 0.0, %v514
      %v516 = vpop.f32.mrb[0].mxu0
      %517 = vmatprep.mubr.f32.mxu0 0.0
      %518 = vmatmul.mubr.f32.gmra.mrb[0].mxu0 %v316
      %v519 = vpop.f32.mrb[0].mxu0
      %v520 = vadd.f32 0.0, %v519
      %v521 = vpop.f32.mrb[0].mxu0
      %522 = vmatprep.mubr.f32.mxu0 0.0
      %523 = vmatmul.mubr.f32.gmra.mrb[0].mxu0 %v319
      %v524 = vpop.f32.mrb[0].mxu0
      %v525 = vadd.f32 0.0, %v524
      %v526 = vpop.f32.mrb[0].mxu0
      %527 = vmatprep.mubr.f32.mxu0 0.0
      %528 = vmatmul.mubr.f32.gmra.mrb[0].mxu0 %v322
      %v529 = vpop.f32.mrb[0].mxu0
      %v530 = vadd.f32 0.0, %v529
      %v531 = vpop.f32.mrb[0].mxu0
      %532 = vmatprep.mubr.f32.mxu0 0.0
      %533 = vmatmul.mubr.f32.gmra.mrb[0].mxu0 %v325
      %v534 = vpop.f32.mrb[0].mxu0
      %v535 = vadd.f32 0.0, %v534
      %v536 = vpop.f32.mrb[0].mxu0
      %537 = vmatprep.mubr.f32.mxu0 0.0
      %538 = vmatmul.mubr.f32.gmra.mrb[0].mxu0 %v328
      %v539 = vpop.f32.mrb[0].mxu0
      %v540 = vadd.f32 0.0, %v539
      %v541 = vpop.f32.mrb[0].mxu0
      %542 = vmatprep.mubr.f32.mxu0 0.0
      %543 = vmatmul.mubr.f32.gmra.mrb[0].mxu0 %v331
      %v544 = vpop.f32.mrb[0].mxu0
      %v545 = vadd.f32 0.0, %v544
      %v546 = vpop.f32.mrb[0].mxu0
      %547 = vmatprep.mubr.f32.mxu0 0.0
      %548 = vmatmul.mubr.f32.gmra.mrb[0].mxu0 %v334
      %v549 = vpop.f32.mrb[0].mxu0
      %v550 = vadd.f32 0.0, %v549
      %v551 = vpop.f32.mrb[0].mxu0
      %552 = vmatprep.mubr.f32.mxu0 0.0
      %553 = vmatmul.mubr.f32.gmra.mrb[0].mxu0 %v337
      %v554 = vpop.f32.mrb[0].mxu0
      %v555 = vadd.f32 0.0, %v554
      %v556 = vpop.f32.mrb[0].mxu0
      %557 = vmatprep.mubr.f32.mxu0 0.0
      %558 = vmatmul.mubr.f32.gmra.mrb[0].mxu0 %v340
      %v559 = vpop.f32.mrb[0].mxu0
      %v560 = vadd.f32 0.0, %v559
      %v561 = vpop.f32.mrb[0].mxu0
      %562 = vmatprep.mubr.f32.mxu0 0.0
      %563 = vmatmul.mubr.f32.gmra.mrb[0].mxu0 %v343
      %v564 = vpop.f32.mrb[0].mxu0
      %v565 = vadd.f32 0.0, %v564
      %v566 = vpop.f32.mrb[0].mxu0
      %567 = vmatprep.mubr.f32.mxu0 0.0
      %568 = vmatmul.mubr.f32.gmra.mrb[0].mxu0 %v346
      %v569 = vpop.f32.mrb[0].mxu0
      %v570 = vadd.f32 0.0, %v569
      %v571 = vpop.f32.mrb[0].mxu0
      %572 = vmatprep.mubr.f32.mxu0 0.0
      %573 = vmatmul.mubr.f32.gmra.mrb[0].mxu0 %v349
      %v574 = vpop.f32.mrb[0].mxu0
      %v575 = vadd.f32 0.0, %v574
      %v576 = vpop.f32.mrb[0].mxu0
      %577 = vmatprep.mubr.f32.mxu0 0.0
      %578 = vmatmul.mubr.f32.gmra.mrb[0].mxu0 %v352
      %v579 = vpop.f32.mrb[0].mxu0
      %v580 = vadd.f32 0.0, %v579
      %v581 = vpop.f32.mrb[0].mxu0
      %582 = vmatprep.mubr.f32.mxu0 0.0
      %583 = vmatmul.mubr.f32.gmra.mrb[0].mxu0 %v355
      %v584 = vpop.f32.mrb[0].mxu0
      %v585 = vadd.f32 0.0, %v584
      %v586 = vpop.f32.mrb[0].mxu0
      %587 = vmatprep.mubr.f32.mxu0 0.0
      %588 = vmatmul.mubr.f32.gmra.mrb[0].mxu0 %v358
      %v589 = vpop.f32.mrb[0].mxu0
      %v590 = vadd.f32 0.0, %v589
      %v591 = vpop.f32.mrb[0].mxu0
      %592 = vmatprep.mubr.f32.mxu0 0.0
      %593 = vmatmul.mubr.f32.gmra.mrb[0].mxu0 %v361
      %v594 = vpop.f32.mrb[0].mxu0
      %v595 = vadd.f32 0.0, %v594
      %v596 = vpop.f32.mrb[0].mxu0
      %597 = vmatprep.mubr.f32.mxu0 0.0
      %598 = vmatmul.mubr.f32.gmra.mrb[0].mxu0 %v364
      %v599 = vpop.f32.mrb[0].mxu0
      %v600 = vadd.f32 0.0, %v599
      %v601 = vpop.f32.mrb[0].mxu0
      %602 = vmatprep.mubr.f32.mxu0 0.0
      %603 = vmatmul.mubr.f32.gmra.mrb[0].mxu0 %v367
      %v604 = vpop.f32.mrb[0].mxu0
      %v605 = vadd.f32 0.0, %v604
      %v606 = vpop.f32.mrb[0].mxu0
      %607 = vmatprep.mubr.f32.mxu0 0.0
      %608 = vmatmul.mubr.f32.gmra.mrb[0].mxu0 %v370
      %v609 = vpop.f32.mrb[0].mxu0
      %v610 = vadd.f32 0.0, %v609
      %v611 = vpop.f32.mrb[0].mxu0
      %612 = vmatprep.mubr.f32.mxu0 0.0
      %613 = vmatmul.mubr.f32.gmra.mrb[0].mxu0 %v373
      %v614 = vpop.f32.mrb[0].mxu0
      %v615 = vadd.f32 0.0, %v614
      %v616 = vpop.f32.mrb[0].mxu0
      %617 = vmatprep.mubr.f32.mxu0 0.0
      %618 = vmatmul.mubr.f32.gmra.mrb[0].mxu0 %v376
      %v619 = vpop.f32.mrb[0].mxu0
      %v620 = vadd.f32 0.0, %v619
      %v621 = vpop.f32.mrb[0].mxu0
      %622 = vmatprep.mubr.f32.mxu0 0.0
      %623 = vmatmul.mubr.f32.gmra.mrb[0].mxu0 %v379
      %v624 = vpop.f32.mrb[0].mxu0
      %v625 = vadd.f32 0.0, %v624
      %v626 = vpop.f32.mrb[0].mxu0
      %627 = vmatprep.mubr.f32.mxu0 0.0
      %628 = vmatmul.mubr.f32.gmra.mrb[0].mxu0 %v382
      %v629 = vpop.f32.mrb[0].mxu0
      %v630 = vadd.f32 0.0, %v629
      %v631 = vpop.f32.mrb[0].mxu0
      %632 = vmatprep.mubr.f32.mxu0 0.0
      %633 = vmatmul.mubr.f32.gmra.mrb[0].mxu0 %v385
      %v634 = vpop.f32.mrb[0].mxu0
      %v635 = vadd.f32 0.0, %v634
      %v636 = vpop.f32.mrb[0].mxu0
      %637 = vmatprep.mubr.f32.mxu0 0.0
      %638 = vmatmul.mubr.f32.gmra.mrb[0].mxu0 %v388
      %v639 = vpop.f32.mrb[0].mxu0
      %v640 = vadd.f32 0.0, %v639
      %v641 = vpop.f32.mrb[0].mxu0
      %642 = vmatprep.mubr.f32.mxu0 0.0
      %643 = vmatmul.mubr.f32.gmra.mrb[0].mxu0 %v391
      %v644 = vpop.f32.mrb[0].mxu0
      %v645 = vadd.f32 0.0, %v644
      %v646 = vpop.f32.mrb[0].mxu0
      %647 = vmatprep.mubr.f32.mxu0 0.0
      %648 = vmatmul.mubr.f32.gmra.mrb[0].mxu0 %v394
      %v649 = vpop.f32.mrb[0].mxu0
      %v650 = vadd.f32 0.0, %v649
      %v651 = vpop.f32.mrb[0].mxu0
      %652 = vmatprep.mubr.f32.mxu0 0.0
      %653 = vmatmul.mubr.f32.gmra.mrb[0].mxu0 %v397
      %v654 = vpop.f32.mrb[0].mxu0
      %v655 = vadd.f32 0.0, %v654
      %v656 = vpop.f32.mrb[0].mxu0
      %657 = vmatprep.mubr.f32.mxu0 0.0
      %658 = vmatmul.mubr.f32.gmra.mrb[0].mxu0 %v400
      %v659 = vpop.f32.mrb[0].mxu0
      %v660 = vadd.f32 0.0, %v659
      %v661 = vpop.f32.mrb[0].mxu0
      %662 = vmatprep.mubr.f32.mxu0 0.0
      %663 = vmatmul.mubr.f32.gmra.mrb[0].mxu0 %v403
      %v664 = vpop.f32.mrb[0].mxu0
      %v665 = vadd.f32 0.0, %v664
      %v666 = vpop.f32.mrb[0].mxu0
      %667 = vmatprep.mubr.f32.mxu0 0.0
      %668 = vmatmul.mubr.f32.gmra.mrb[0].mxu0 %v406
      %v669 = vpop.f32.mrb[0].mxu0
      %v670 = vadd.f32 0.0, %v669
      %v671 = vpop.f32.mrb[0].mxu0
      %672 = vmatprep.mubr.f32.mxu0 0.0
      %673 = vmatmul.mubr.f32.gmra.mrb[0].mxu0 %v409
      %v674 = vpop.f32.mrb[0].mxu0
      %v675 = vadd.f32 0.0, %v674
      %v676 = vpop.f32.mrb[0].mxu0
      %677 = vmatprep.mubr.f32.mxu0 0.0
      %678 = vmatmul.mubr.f32.gmra.mrb[0].mxu0 %v412
      %v679 = vpop.f32.mrb[0].mxu0
      %v680 = vadd.f32 0.0, %v679
      %v681 = vpop.f32.mrb[0].mxu0
      %682 = vdwg.mxu0
      %v683 = vmax.f32 %v485, 0.0
      %v684 = vmax.f32 %v490, 0.0
      %v685 = vmax.f32 %v495, 0.0
      %v686 = vmax.f32 %v500, 0.0
      %v687 = vmax.f32 %v505, 0.0
      %v688 = vmax.f32 %v510, 0.0
      %v689 = vmax.f32 %v515, 0.0
      %v690 = vmax.f32 %v520, 0.0
      %v691 = vmax.f32 %v525, 0.0
      %v692 = vmax.f32 %v530, 0.0
      %v693 = vmax.f32 %v535, 0.0
      %v694 = vmax.f32 %v540, 0.0
      %v695 = vmax.f32 %v545, 0.0
      %v696 = vmax.f32 %v550, 0.0
      %v697 = vmax.f32 %v555, 0.0
      %v698 = vmax.f32 %v560, 0.0
      %v699 = vmax.f32 %v565, 0.0
      %v700 = vmax.f32 %v570, 0.0
      %v701 = vmax.f32 %v575, 0.0
      %v702 = vmax.f32 %v580, 0.0
      %v703 = vmax.f32 %v585, 0.0
      %v704 = vmax.f32 %v590, 0.0
      %v705 = vmax.f32 %v595, 0.0
      %v706 = vmax.f32 %v600, 0.0
      %v707 = vmax.f32 %v605, 0.0
      %v708 = vmax.f32 %v610, 0.0
      %v709 = vmax.f32 %v615, 0.0
      %v710 = vmax.f32 %v620, 0.0
      %v711 = vmax.f32 %v625, 0.0
      %v712 = vmax.f32 %v630, 0.0
      %v713 = vmax.f32 %v635, 0.0
      %v714 = vmax.f32 %v640, 0.0
      %v715 = vmax.f32 %v645, 0.0
      %v716 = vmax.f32 %v650, 0.0
      %v717 = vmax.f32 %v655, 0.0
      %v718 = vmax.f32 %v660, 0.0
      %v719 = vmax.f32 %v665, 0.0
      %v720 = vmax.f32 %v670, 0.0
      %v721 = vmax.f32 %v675, 0.0
      %v722 = vmax.f32 %v680, 0.0
      %723 = vst [vmem:[#allocation2] sm:$0xff] %v683
      %724 = vst [vmem:[#allocation2 + $0x8] sm:$0xff] %v684
      %725 = vst [vmem:[#allocation2 + $0x10] sm:$0xff] %v685
      %726 = vst [vmem:[#allocation2 + $0x18] sm:$0xff] %v686
      %727 = vst [vmem:[#allocation2 + $0x20] sm:$0xff] %v687
      %728 = vst [vmem:[#allocation2 + $0x28] sm:$0xff] %v688
      %729 = vst [vmem:[#allocation2 + $0x30] sm:$0xff] %v689
      %730 = vst [vmem:[#allocation2 + $0x38] sm:$0xff] %v690
      %731 = vst [vmem:[#allocation2 + $0x40] sm:$0xff] %v691
      %732 = vst [vmem:[#allocation2 + $0x48] sm:$0xff] %v692
      %733 = vst [vmem:[#allocation2 + $0x50] sm:$0xff] %v693
      %734 = vst [vmem:[#allocation2 + $0x58] sm:$0xff] %v694
      %735 = vst [vmem:[#allocation2 + $0x60] sm:$0xff] %v695
      %736 = vst [vmem:[#allocation2 + $0x68] sm:$0xff] %v696
      %737 = vst [vmem:[#allocation2 + $0x70] sm:$0xff] %v697
      %738 = vst [vmem:[#allocation2 + $0x78] sm:$0xff] %v698
      %739 = vst [vmem:[#allocation2 + $0x80] sm:$0xff] %v699
      %740 = vst [vmem:[#allocation2 + $0x88] sm:$0xff] %v700
      %741 = vst [vmem:[#allocation2 + $0x90] sm:$0xff] %v701
      %742 = vst [vmem:[#allocation2 + $0x98] sm:$0xff] %v702
      %743 = vst [vmem:[#allocation2 + $0xa0] sm:$0xff] %v703
      %744 = vst [vmem:[#allocation2 + $0xa8] sm:$0xff] %v704
      %745 = vst [vmem:[#allocation2 + $0xb0] sm:$0xff] %v705
      %746 = vst [vmem:[#allocation2 + $0xb8] sm:$0xff] %v706
      %747 = vst [vmem:[#allocation2 + $0xc0] sm:$0xff] %v707
      %748 = vst [vmem:[#allocation2 + $0xc8] sm:$0xff] %v708
      %749 = vst [vmem:[#allocation2 + $0xd0] sm:$0xff] %v709
      %750 = vst [vmem:[#allocation2 + $0xd8] sm:$0xff] %v710
      %751 = vst [vmem:[#allocation2 + $0xe0] sm:$0xff] %v711
      %752 = vst [vmem:[#allocation2 + $0xe8] sm:$0xff] %v712
      %753 = vst [vmem:[#allocation2 + $0xf0] sm:$0xff] %v713
      %754 = vst [vmem:[#allocation2 + $0xf8] sm:$0xff] %v714
      %755 = vst [vmem:[#allocation2 + $0x100] sm:$0xff] %v715
      %756 = vst [vmem:[#allocation2 + $0x108] sm:$0xff] %v716
      %757 = vst [vmem:[#allocation2 + $0x110] sm:$0xff] %v717
      %758 = vst [vmem:[#allocation2 + $0x118] sm:$0xff] %v718
      %759 = vst [vmem:[#allocation2 + $0x120] sm:$0xff] %v719
      %760 = vst [vmem:[#allocation2 + $0x128] sm:$0xff] %v720
      %761 = vst [vmem:[#allocation2 + $0x130] sm:$0xff] %v721
      %762 = vst [vmem:[#allocation2 + $0x138] sm:$0xff] %v722
      %763 = vst [vmem:[#allocation3] sm:$0xff] 0.0
      %764 = vst [vmem:[#allocation3 + $0x8] sm:$0xff] 0.0
      %765 = vst [vmem:[#allocation3 + $0x10] sm:$0xff] 0.0
      %766 = vst [vmem:[#allocation3 + $0x18] sm:$0xff] 0.0
      %767 = vst [vmem:[#allocation3 + $0x20] sm:$0xff] 0.0
      %768 = vst [vmem:[#allocation3 + $0x28] sm:$0xff] 0.0
      %769 = vst [vmem:[#allocation3 + $0x30] sm:$0xff] 0.0
      %770 = vst [vmem:[#allocation3 + $0x38] sm:$0xff] 0.0
      %771 = vst [vmem:[#allocation3 + $0x40] sm:$0xff] 0.0
      %772 = vst [vmem:[#allocation3 + $0x48] sm:$0xff] 0.0
      %773 = vst [vmem:[#allocation3 + $0x50] sm:$0xff] 0.0
      %774 = vst [vmem:[#allocation3 + $0x58] sm:$0xff] 0.0
      %775 = vst [vmem:[#allocation3 + $0x60] sm:$0xff] 0.0
      %776 = vst [vmem:[#allocation3 + $0x68] sm:$0xff] 0.0
      %777 = vst [vmem:[#allocation3 + $0x70] sm:$0xff] 0.0
      %778 = vst [vmem:[#allocation3 + $0x78] sm:$0xff] 0.0
      %779 = vst [vmem:[#allocation3 + $0x80] sm:$0xff] 0.0
      %780 = vst [vmem:[#allocation3 + $0x88] sm:$0xff] 0.0
      %781 = vst [vmem:[#allocation3 + $0x90] sm:$0xff] 0.0
      %782 = vst [vmem:[#allocation3 + $0x98] sm:$0xff] 0.0
      %783 = vst [vmem:[#allocation3 + $0xa0] sm:$0xff] 0.0
      %784 = vst [vmem:[#allocation3 + $0xa8] sm:$0xff] 0.0
      %785 = vst [vmem:[#allocation3 + $0xb0] sm:$0xff] 0.0
      %786 = vst [vmem:[#allocation3 + $0xb8] sm:$0xff] 0.0
      %787 = vst [vmem:[#allocation3 + $0xc0] sm:$0xff] 0.0
      %788 = vst [vmem:[#allocation3 + $0xc8] sm:$0xff] 0.0
      %789 = vst [vmem:[#allocation3 + $0xd0] sm:$0xff] 0.0
      %790 = vst [vmem:[#allocation3 + $0xd8] sm:$0xff] 0.0
      %791 = vst [vmem:[#allocation3 + $0xe0] sm:$0xff] 0.0
      %792 = vst [vmem:[#allocation3 + $0xe8] sm:$0xff] 0.0
      %793 = vst [vmem:[#allocation3 + $0xf0] sm:$0xff] 0.0
      %794 = vst [vmem:[#allocation3 + $0xf8] sm:$0xff] 0.0
      %795 = vst [vmem:[#allocation3 + $0x100] sm:$0xff] 0.0
      %796 = vst [vmem:[#allocation3 + $0x108] sm:$0xff] 0.0
      %797 = vst [vmem:[#allocation3 + $0x110] sm:$0xff] 0.0
      %798 = vst [vmem:[#allocation3 + $0x118] sm:$0xff] 0.0
      %799 = vst [vmem:[#allocation3 + $0x120] sm:$0xff] 0.0
      %800 = vst [vmem:[#allocation3 + $0x128] sm:$0xff] 0.0
      %801 = vst [vmem:[#allocation3 + $0x130] sm:$0xff] 0.0
      %802 = vst [vmem:[#allocation3 + $0x138] sm:$0xff] 0.0
      %803 = vst [vmem:[#allocation3 + $0x140] sm:$0xff] 0.0
      %804 = vst [vmem:[#allocation3 + $0x148] sm:$0xff] 0.0
      %805 = vst [vmem:[#allocation3 + $0x150] sm:$0xff] 0.0
      %806 = vst [vmem:[#allocation3 + $0x158] sm:$0xff] 0.0
      %807 = vst [vmem:[#allocation3 + $0x160] sm:$0xff] 0.0
      %808 = vst [vmem:[#allocation3 + $0x168] sm:$0xff] 0.0
      %809 = vst [vmem:[#allocation3 + $0x170] sm:$0xff] 0.0
      %810 = vst [vmem:[#allocation3 + $0x178] sm:$0xff] 0.0
      %811 = vst [vmem:[#allocation3 + $0x180] sm:$0xff] 0.0
      %812 = vst [vmem:[#allocation3 + $0x188] sm:$0xff] 0.0
      %813 = vst [vmem:[#allocation3 + $0x190] sm:$0xff] 0.0
      %814 = vst [vmem:[#allocation3 + $0x198] sm:$0xff] 0.0
      %815 = vst [vmem:[#allocation3 + $0x1a0] sm:$0xff] 0.0
      %816 = vst [vmem:[#allocation3 + $0x1a8] sm:$0xff] 0.0
      %817 = vst [vmem:[#allocation3 + $0x1b0] sm:$0xff] 0.0
      %818 = vst [vmem:[#allocation3 + $0x1b8] sm:$0xff] 0.0
      %819 = vst [vmem:[#allocation3 + $0x1c0] sm:$0x7f] 0.0
      %820 = vst [vmem:[#allocation3 + $0x1c8] sm:$0x7f] 0.0
      %v821 = vld [vmem:[#allocation2] sm:$0xff]
      %v822 = vld [vmem:[#allocation2 + $0x8] sm:$0xff]
      %v823 = vld [vmem:[#allocation2 + $0x10] sm:$0xff]
      %v824 = vld [vmem:[#allocation2 + $0x18] sm:$0xff]
      %v825 = vld [vmem:[#allocation2 + $0x20] sm:$0xff]
      %v826 = vld [vmem:[#allocation2 + $0x28] sm:$0xff]
      %v827 = vld [vmem:[#allocation2 + $0x30] sm:$0xff]
      %v828 = vld [vmem:[#allocation2 + $0x38] sm:$0xff]
      %v829 = vld [vmem:[#allocation2 + $0x40] sm:$0xff]
      %v830 = vld [vmem:[#allocation2 + $0x48] sm:$0xff]
      %v831 = vld [vmem:[#allocation2 + $0x50] sm:$0xff]
      %v832 = vld [vmem:[#allocation2 + $0x58] sm:$0xff]
      %v833 = vld [vmem:[#allocation2 + $0x60] sm:$0xff]
      %v834 = vld [vmem:[#allocation2 + $0x68] sm:$0xff]
      %v835 = vld [vmem:[#allocation2 + $0x70] sm:$0xff]
      %v836 = vld [vmem:[#allocation2 + $0x78] sm:$0xff]
      %v837 = vld [vmem:[#allocation2 + $0x80] sm:$0xff]
      %v838 = vld [vmem:[#allocation2 + $0x88] sm:$0xff]
      %v839 = vld [vmem:[#allocation2 + $0x90] sm:$0xff]
      %v840 = vld [vmem:[#allocation2 + $0x98] sm:$0xff]
      %v841 = vld [vmem:[#allocation2 + $0xa0] sm:$0xff]
      %v842 = vld [vmem:[#allocation2 + $0xa8] sm:$0xff]
      %v843 = vld [vmem:[#allocation2 + $0xb0] sm:$0xff]
      %v844 = vld [vmem:[#allocation2 + $0xb8] sm:$0xff]
      %v845 = vld [vmem:[#allocation2 + $0xc0] sm:$0xff]
      %v846 = vld [vmem:[#allocation2 + $0xc8] sm:$0xff]
      %v847 = vld [vmem:[#allocation2 + $0xd0] sm:$0xff]
      %v848 = vld [vmem:[#allocation2 + $0xd8] sm:$0xff]
      %v849 = vld [vmem:[#allocation2 + $0xe0] sm:$0x7f]
      %v850 = vld [vmem:[#allocation3] sm:$0xff]
      %v851 = vld [vmem:[#allocation3 + $0x8] sm:$0xff]
      %v852 = vld [vmem:[#allocation3 + $0x10] sm:$0xff]
      %v853 = vld [vmem:[#allocation3 + $0x18] sm:$0xff]
      %v854 = vld [vmem:[#allocation3 + $0x20] sm:$0xff]
      %v855 = vld [vmem:[#allocation3 + $0x28] sm:$0xff]
      %v856 = vld [vmem:[#allocation3 + $0x30] sm:$0xff]
      %v857 = vld [vmem:[#allocation3 + $0x38] sm:$0xff]
      %v858 = vld [vmem:[#allocation3 + $0x40] sm:$0xff]
      %v859 = vld [vmem:[#allocation3 + $0x48] sm:$0xff]
      %v860 = vld [vmem:[#allocation3 + $0x50] sm:$0xff]
      %v861 = vld [vmem:[#allocation3 + $0x58] sm:$0xff]
      %v862 = vld [vmem:[#allocation3 + $0x60] sm:$0xff]
      %v863 = vld [vmem:[#allocation3 + $0x68] sm:$0xff]
      %v864 = vld [vmem:[#allocation3 + $0x70] sm:$0xff]
      %v865 = vld [vmem:[#allocation3 + $0x78] sm:$0xff]
      %v866 = vld [vmem:[#allocation3 + $0x80] sm:$0xff]
      %v867 = vld [vmem:[#allocation3 + $0x88] sm:$0xff]
      %v868 = vld [vmem:[#allocation3 + $0x90] sm:$0xff]
      %v869 = vld [vmem:[#allocation3 + $0x98] sm:$0xff]
      %v870 = vld [vmem:[#allocation3 + $0xa0] sm:$0xff]
      %v871 = vld [vmem:[#allocation3 + $0xa8] sm:$0xff]
      %v872 = vld [vmem:[#allocation3 + $0xb0] sm:$0xff]
      %v873 = vld [vmem:[#allocation3 + $0xb8] sm:$0xff]
      %v874 = vld [vmem:[#allocation3 + $0xc0] sm:$0xff]
      %v875 = vld [vmem:[#allocation3 + $0xc8] sm:$0xff]
      %v876 = vld [vmem:[#allocation3 + $0xd0] sm:$0xff]
      %v877 = vld [vmem:[#allocation3 + $0xd8] sm:$0xff]
      %v878 = vld [vmem:[#allocation3 + $0xe0] sm:$0xff]
      %v879 = vld [vmem:[#allocation3 + $0xe8] sm:$0xff]
      %v880 = vld [vmem:[#allocation3 + $0xf0] sm:$0xff]
      %v881 = vld [vmem:[#allocation3 + $0xf8] sm:$0xff]
      %v882 = vld [vmem:[#allocation3 + $0x100] sm:$0xff]
      %v883 = vld [vmem:[#allocation3 + $0x108] sm:$0xff]
      %v884 = vld [vmem:[#allocation3 + $0x110] sm:$0xff]
      %v885 = vld [vmem:[#allocation3 + $0x118] sm:$0xff]
      %v886 = vld [vmem:[#allocation3 + $0x120] sm:$0xff]
      %v887 = vld [vmem:[#allocation3 + $0x128] sm:$0xff]
      %v888 = vld [vmem:[#allocation3 + $0x130] sm:$0xff]
      %v889 = vld [vmem:[#allocation3 + $0x138] sm:$0xff]
      %v890 = vld [vmem:[#allocation3 + $0x140] sm:$0xff]
      %v891 = vld [vmem:[#allocation3 + $0x148] sm:$0xff]
      %v892 = vld [vmem:[#allocation3 + $0x150] sm:$0xff]
      %v893 = vld [vmem:[#allocation3 + $0x158] sm:$0xff]
      %v894 = vld [vmem:[#allocation3 + $0x160] sm:$0xff]
      %v895 = vld [vmem:[#allocation3 + $0x168] sm:$0xff]
      %v896 = vld [vmem:[#allocation3 + $0x170] sm:$0xff]
      %v897 = vld [vmem:[#allocation3 + $0x178] sm:$0xff]
      %v898 = vld [vmem:[#allocation3 + $0x180] sm:$0xff]
      %v899 = vld [vmem:[#allocation3 + $0x188] sm:$0xff]
      %v900 = vld [vmem:[#allocation3 + $0x190] sm:$0xff]
      %v901 = vld [vmem:[#allocation3 + $0x198] sm:$0xff]
      %v902 = vld [vmem:[#allocation3 + $0x1a0] sm:$0xff]
      %v903 = vld [vmem:[#allocation3 + $0x1a8] sm:$0xff]
      %v904 = vld [vmem:[#allocation3 + $0x1b0] sm:$0xff]
      %v905 = vld [vmem:[#allocation3 + $0x1b8] sm:$0xff]
      %v906 = vld [vmem:[#allocation3 + $0x1c0] sm:$0x7f]
      %v907 = vld [vmem:[#allocation3 + $0x1c8] sm:$0x7f]
      %v908 = vld [vmem:[%s2] sm:$0xff]
      %v909 = vld [vmem:[%s2 + $0x8] sm:$0xff]
      %v910 = vld [vmem:[%s2 + $0x10] sm:$0xff]
      %v911 = vld [vmem:[%s2 + $0x18] sm:$0xff]
      %v912 = vld [vmem:[%s2 + $0x20] sm:$0xff]
      %v913 = vld [vmem:[%s2 + $0x28] sm:$0xff]
      %v914 = vld [vmem:[%s2 + $0x30] sm:$0xff]
      %v915 = vld [vmem:[%s2 + $0x38] sm:$0xff]
      %v916 = vld [vmem:[%s2 + $0x40] sm:$0xff]
      %v917 = vld [vmem:[%s2 + $0x48] sm:$0xff]
      %v918 = vld [vmem:[%s2 + $0x50] sm:$0xff]
      %v919 = vld [vmem:[%s2 + $0x58] sm:$0xff]
      %v920 = vld [vmem:[%s2 + $0x60] sm:$0xff]
      %v921 = vld [vmem:[%s2 + $0x68] sm:$0xff]
      %v922 = vld [vmem:[%s2 + $0x70] sm:$0xff]
      %v923 = vld [vmem:[%s2 + $0x78] sm:$0xff]
      %v924 = vld [vmem:[%s2 + $0x80] sm:$0xff]
      %v925 = vld [vmem:[%s2 + $0x88] sm:$0xff]
      %v926 = vld [vmem:[%s2 + $0x90] sm:$0xff]
      %v927 = vld [vmem:[%s2 + $0x98] sm:$0xff]
      %v928 = vld [vmem:[%s2 + $0xa0] sm:$0xff]
      %v929 = vld [vmem:[%s2 + $0xa8] sm:$0xff]
      %v930 = vld [vmem:[%s2 + $0xb0] sm:$0xff]
      %v931 = vld [vmem:[%s2 + $0xb8] sm:$0xff]
      %v932 = vld [vmem:[%s2 + $0xc0] sm:$0xff]
      %v933 = vld [vmem:[%s2 + $0xc8] sm:$0xff]
      %v934 = vld [vmem:[%s2 + $0xd0] sm:$0xff]
      %v935 = vld [vmem:[%s2 + $0xd8] sm:$0xff]
      %v936 = vld [vmem:[%s2 + $0xe0] sm:$0xff]
      %v937 = vld [vmem:[%s2 + $0xe8] sm:$0xff]
      %v938 = vld [vmem:[%s2 + $0xf0] sm:$0xff]
      %v939 = vld [vmem:[%s2 + $0xf8] sm:$0xff]
      %940 = vmatprep.subr.mxu0 %v909
      %941 = vmatpush1.msra.mxu0 %v908
      %942 = vmatprep.subr.mxu0 %v911
      %943 = vmatpush1.msra.mxu0 %v910
      %944 = vmatprep.subr.mxu0 %v913
      %945 = vmatpush1.msra.mxu0 %v912
      %946 = vmatprep.subr.mxu0 %v915
      %947 = vmatpush1.msra.mxu0 %v914
      %948 = vmatprep.subr.mxu0 %v917
      %949 = vmatpush1.msra.mxu0 %v916
      %950 = vmatprep.subr.mxu0 %v919
      %951 = vmatpush1.msra.mxu0 %v918
      %952 = vmatprep.subr.mxu0 %v921
      %953 = vmatpush1.msra.mxu0 %v920
      %954 = vmatprep.subr.mxu0 %v923
      %955 = vmatpush1.msra.mxu0 %v922
      %956 = vmatprep.subr.mxu0 %v925
      %957 = vmatpush1.msra.mxu0 %v924
      %958 = vmatprep.subr.mxu0 %v927
      %959 = vmatpush1.msra.mxu0 %v926
      %960 = vmatprep.subr.mxu0 %v929
      %961 = vmatpush1.msra.mxu0 %v928
      %962 = vmatprep.subr.mxu0 %v931
      %963 = vmatpush1.msra.mxu0 %v930
      %964 = vmatprep.subr.mxu0 %v933
      %965 = vmatpush1.msra.mxu0 %v932
      %966 = vmatprep.subr.mxu0 %v935
      %967 = vmatpush1.msra.mxu0 %v934
      %968 = vmatprep.subr.mxu0 %v937
      %969 = vmatpush1.msra.mxu0 %v936
      %970 = vmatprep.subr.mxu0 %v939
      %971 = vmatpush1.msra.mxu0 %v938
      %972 = vmatprep.subr.mxu0 0.0
      %973 = vmatpush1.msra.mxu0 0.0
      %974 = vmatprep.subr.mxu0 0.0
      %975 = vmatpush1.msra.mxu0 0.0
      %976 = vmatprep.subr.mxu0 0.0
      %977 = vmatpush1.msra.mxu0 0.0
      %978 = vmatprep.subr.mxu0 0.0
      %979 = vmatpush1.msra.mxu0 0.0
      %980 = vmatprep.subr.mxu0 0.0
      %981 = vmatpush1.msra.mxu0 0.0
      %982 = vmatprep.subr.mxu0 0.0
      %983 = vmatpush1.msra.mxu0 0.0
      %984 = vmatprep.subr.mxu0 0.0
      %985 = vmatpush1.msra.mxu0 0.0
      %986 = vmatprep.subr.mxu0 0.0
      %987 = vmatpush1.msra.mxu0 0.0
      %988 = vmatprep.subr.mxu0 0.0
      %989 = vmatpush1.msra.mxu0 0.0
      %990 = vmatprep.subr.mxu0 0.0
      %991 = vmatpush1.msra.mxu0 0.0
      %992 = vmatprep.subr.mxu0 0.0
      %993 = vmatpush1.msra.mxu0 0.0
      %994 = vmatprep.subr.mxu0 0.0
      %995 = vmatpush1.msra.mxu0 0.0
      %996 = vmatprep.subr.mxu0 0.0
      %997 = vmatpush1.msra.mxu0 0.0
      %998 = vmatprep.subr.mxu0 0.0
      %999 = vmatpush1.msra.mxu0 0.0
      %1000 = vmatprep.subr.mxu0 0.0
      %1001 = vmatpush1.msra.mxu0 0.0
      %1002 = vmatprep.subr.mxu0 0.0
      %1003 = vmatpush1.msra.mxu0 0.0
      %1004 = vmatprep.mubr.f32.mxu0 0.0
      %1005 = vmatmul.mubr.f32.gmra.mrb[0].mxu0 %v821
      %v1006 = vpop.f32.mrb[0].mxu0
      %v1007 = vadd.f32 0.0, %v1006
      %v1008 = vpop.f32.mrb[0].mxu0
      %v1009 = vadd.f32 0.0, %v1008
      %1010 = vmatprep.mubr.f32.mxu0 0.0
      %1011 = vmatmul.mubr.f32.gmra.mrb[0].mxu0 %v822
      %v1012 = vpop.f32.mrb[0].mxu0
      %v1013 = vadd.f32 0.0, %v1012
      %v1014 = vpop.f32.mrb[0].mxu0
      %v1015 = vadd.f32 0.0, %v1014
      %1016 = vmatprep.mubr.f32.mxu0 0.0
      %1017 = vmatmul.mubr.f32.gmra.mrb[0].mxu0 %v823
      %v1018 = vpop.f32.mrb[0].mxu0
      %v1019 = vadd.f32 0.0, %v1018
      %v1020 = vpop.f32.mrb[0].mxu0
      %v1021 = vadd.f32 0.0, %v1020
      %1022 = vmatprep.mubr.f32.mxu0 0.0
      %1023 = vmatmul.mubr.f32.gmra.mrb[0].mxu0 %v824
      %v1024 = vpop.f32.mrb[0].mxu0
      %v1025 = vadd.f32 0.0, %v1024
      %v1026 = vpop.f32.mrb[0].mxu0
      %v1027 = vadd.f32 0.0, %v1026
      %1028 = vmatprep.mubr.f32.mxu0 0.0
      %1029 = vmatmul.mubr.f32.gmra.mrb[0].mxu0 %v825
      %v1030 = vpop.f32.mrb[0].mxu0
      %v1031 = vadd.f32 0.0, %v1030
      %v1032 = vpop.f32.mrb[0].mxu0
      %v1033 = vadd.f32 0.0, %v1032
      %1034 = vmatprep.mubr.f32.mxu0 0.0
      %1035 = vmatmul.mubr.f32.gmra.mrb[0].mxu0 %v826
      %v1036 = vpop.f32.mrb[0].mxu0
      %v1037 = vadd.f32 0.0, %v1036
      %v1038 = vpop.f32.mrb[0].mxu0
      %v1039 = vadd.f32 0.0, %v1038
      %1040 = vmatprep.mubr.f32.mxu0 0.0
      %1041 = vmatmul.mubr.f32.gmra.mrb[0].mxu0 %v827
      %v1042 = vpop.f32.mrb[0].mxu0
      %v1043 = vadd.f32 0.0, %v1042
      %v1044 = vpop.f32.mrb[0].mxu0
      %v1045 = vadd.f32 0.0, %v1044
      %1046 = vmatprep.mubr.f32.mxu0 0.0
      %1047 = vmatmul.mubr.f32.gmra.mrb[0].mxu0 %v828
      %v1048 = vpop.f32.mrb[0].mxu0
      %v1049 = vadd.f32 0.0, %v1048
      %v1050 = vpop.f32.mrb[0].mxu0
      %v1051 = vadd.f32 0.0, %v1050
      %1052 = vmatprep.mubr.f32.mxu0 0.0
      %1053 = vmatmul.mubr.f32.gmra.mrb[0].mxu0 %v829
      %v1054 = vpop.f32.mrb[0].mxu0
      %v1055 = vadd.f32 0.0, %v1054
      %v1056 = vpop.f32.mrb[0].mxu0
      %v1057 = vadd.f32 0.0, %v1056
      %1058 = vmatprep.mubr.f32.mxu0 0.0
      %1059 = vmatmul.mubr.f32.gmra.mrb[0].mxu0 %v830
      %v1060 = vpop.f32.mrb[0].mxu0
      %v1061 = vadd.f32 0.0, %v1060
      %v1062 = vpop.f32.mrb[0].mxu0
      %v1063 = vadd.f32 0.0, %v1062
      %1064 = vmatprep.mubr.f32.mxu0 0.0
      %1065 = vmatmul.mubr.f32.gmra.mrb[0].mxu0 %v831
      %v1066 = vpop.f32.mrb[0].mxu0
      %v1067 = vadd.f32 0.0, %v1066
      %v1068 = vpop.f32.mrb[0].mxu0
      %v1069 = vadd.f32 0.0, %v1068
      %1070 = vmatprep.mubr.f32.mxu0 0.0
      %1071 = vmatmul.mubr.f32.gmra.mrb[0].mxu0 %v832
      %v1072 = vpop.f32.mrb[0].mxu0
      %v1073 = vadd.f32 0.0, %v1072
      %v1074 = vpop.f32.mrb[0].mxu0
      %v1075 = vadd.f32 0.0, %v1074
      %1076 = vmatprep.mubr.f32.mxu0 0.0
      %1077 = vmatmul.mubr.f32.gmra.mrb[0].mxu0 %v833
      %v1078 = vpop.f32.mrb[0].mxu0
      %v1079 = vadd.f32 0.0, %v1078
      %v1080 = vpop.f32.mrb[0].mxu0
      %v1081 = vadd.f32 0.0, %v1080
      %1082 = vmatprep.mubr.f32.mxu0 0.0
      %1083 = vmatmul.mubr.f32.gmra.mrb[0].mxu0 %v834
      %v1084 = vpop.f32.mrb[0].mxu0
      %v1085 = vadd.f32 0.0, %v1084
      %v1086 = vpop.f32.mrb[0].mxu0
      %v1087 = vadd.f32 0.0, %v1086
      %1088 = vmatprep.mubr.f32.mxu0 0.0
      %1089 = vmatmul.mubr.f32.gmra.mrb[0].mxu0 %v835
      %v1090 = vpop.f32.mrb[0].mxu0
      %v1091 = vadd.f32 0.0, %v1090
      %v1092 = vpop.f32.mrb[0].mxu0
      %v1093 = vadd.f32 0.0, %v1092
      %1094 = vmatprep.mubr.f32.mxu0 0.0
      %1095 = vmatmul.mubr.f32.gmra.mrb[0].mxu0 %v836
      %v1096 = vpop.f32.mrb[0].mxu0
      %v1097 = vadd.f32 0.0, %v1096
      %v1098 = vpop.f32.mrb[0].mxu0
      %v1099 = vadd.f32 0.0, %v1098
      %1100 = vmatprep.mubr.f32.mxu0 0.0
      %1101 = vmatmul.mubr.f32.gmra.mrb[0].mxu0 %v837
      %v1102 = vpop.f32.mrb[0].mxu0
      %v1103 = vadd.f32 0.0, %v1102
      %v1104 = vpop.f32.mrb[0].mxu0
      %v1105 = vadd.f32 0.0, %v1104
      %1106 = vmatprep.mubr.f32.mxu0 0.0
      %1107 = vmatmul.mubr.f32.gmra.mrb[0].mxu0 %v838
      %v1108 = vpop.f32.mrb[0].mxu0
      %v1109 = vadd.f32 0.0, %v1108
      %v1110 = vpop.f32.mrb[0].mxu0
      %v1111 = vadd.f32 0.0, %v1110
      %1112 = vmatprep.mubr.f32.mxu0 0.0
      %1113 = vmatmul.mubr.f32.gmra.mrb[0].mxu0 %v839
      %v1114 = vpop.f32.mrb[0].mxu0
      %v1115 = vadd.f32 0.0, %v1114
      %v1116 = vpop.f32.mrb[0].mxu0
      %v1117 = vadd.f32 0.0, %v1116
      %1118 = vmatprep.mubr.f32.mxu0 0.0
      %1119 = vmatmul.mubr.f32.gmra.mrb[0].mxu0 %v840
      %v1120 = vpop.f32.mrb[0].mxu0
      %v1121 = vadd.f32 0.0, %v1120
      %v1122 = vpop.f32.mrb[0].mxu0
      %v1123 = vadd.f32 0.0, %v1122
      %1124 = vmatprep.mubr.f32.mxu0 0.0
      %1125 = vmatmul.mubr.f32.gmra.mrb[0].mxu0 %v841
      %v1126 = vpop.f32.mrb[0].mxu0
      %v1127 = vadd.f32 0.0, %v1126
      %v1128 = vpop.f32.mrb[0].mxu0
      %v1129 = vadd.f32 0.0, %v1128
      %1130 = vmatprep.mubr.f32.mxu0 0.0
      %1131 = vmatmul.mubr.f32.gmra.mrb[0].mxu0 %v842
      %v1132 = vpop.f32.mrb[0].mxu0
      %v1133 = vadd.f32 0.0, %v1132
      %v1134 = vpop.f32.mrb[0].mxu0
      %v1135 = vadd.f32 0.0, %v1134
      %1136 = vmatprep.mubr.f32.mxu0 0.0
      %1137 = vmatmul.mubr.f32.gmra.mrb[0].mxu0 %v843
      %v1138 = vpop.f32.mrb[0].mxu0
      %v1139 = vadd.f32 0.0, %v1138
      %v1140 = vpop.f32.mrb[0].mxu0
      %v1141 = vadd.f32 0.0, %v1140
      %1142 = vmatprep.mubr.f32.mxu0 0.0
      %1143 = vmatmul.mubr.f32.gmra.mrb[0].mxu0 %v844
      %v1144 = vpop.f32.mrb[0].mxu0
      %v1145 = vadd.f32 0.0, %v1144
      %v1146 = vpop.f32.mrb[0].mxu0
      %v1147 = vadd.f32 0.0, %v1146
      %1148 = vmatprep.mubr.f32.mxu0 0.0
      %1149 = vmatmul.mubr.f32.gmra.mrb[0].mxu0 %v845
      %v1150 = vpop.f32.mrb[0].mxu0
      %v1151 = vadd.f32 0.0, %v1150
      %v1152 = vpop.f32.mrb[0].mxu0
      %v1153 = vadd.f32 0.0, %v1152
      %1154 = vmatprep.mubr.f32.mxu0 0.0
      %1155 = vmatmul.mubr.f32.gmra.mrb[0].mxu0 %v846
      %v1156 = vpop.f32.mrb[0].mxu0
      %v1157 = vadd.f32 0.0, %v1156
      %v1158 = vpop.f32.mrb[0].mxu0
      %v1159 = vadd.f32 0.0, %v1158
      %1160 = vmatprep.mubr.f32.mxu0 0.0
      %1161 = vmatmul.mubr.f32.gmra.mrb[0].mxu0 %v847
      %v1162 = vpop.f32.mrb[0].mxu0
      %v1163 = vadd.f32 0.0, %v1162
      %v1164 = vpop.f32.mrb[0].mxu0
      %v1165 = vadd.f32 0.0, %v1164
      %1166 = vmatprep.mubr.f32.mxu0 0.0
      %1167 = vmatmul.mubr.f32.gmra.mrb[0].mxu0 %v848
      %v1168 = vpop.f32.mrb[0].mxu0
      %v1169 = vadd.f32 0.0, %v1168
      %v1170 = vpop.f32.mrb[0].mxu0
      %v1171 = vadd.f32 0.0, %v1170
      %1172 = vmatprep.mubr.f32.mxu0 0.0
      %1173 = vmatmul.mubr.f32.gmra.mrb[0].mxu0 %v849
      %v1174 = vpop.f32.mrb[0].mxu0
      %v1175 = vadd.f32 0.0, %v1174
      %v1176 = vpop.f32.mrb[0].mxu0
      %v1177 = vadd.f32 0.0, %v1176
      %1178 = vdwg.mxu0
      %v1179 = vadd.f32 %v850, %v1007
      %v1180 = vadd.f32 %v851, %v1009
      %v1181 = vadd.f32 %v852, %v1013
      %v1182 = vadd.f32 %v853, %v1015
      %v1183 = vadd.f32 %v854, %v1019
      %v1184 = vadd.f32 %v855, %v1021
      %v1185 = vadd.f32 %v856, %v1025
      %v1186 = vadd.f32 %v857, %v1027
      %v1187 = vadd.f32 %v858, %v1031
      %v1188 = vadd.f32 %v859, %v1033
      %v1189 = vadd.f32 %v860, %v1037
      %v1190 = vadd.f32 %v861, %v1039
      %v1191 = vadd.f32 %v862, %v1043
      %v1192 = vadd.f32 %v863, %v1045
      %v1193 = vadd.f32 %v864, %v1049
      %v1194 = vadd.f32 %v865, %v1051
      %v1195 = vadd.f32 %v866, %v1055
      %v1196 = vadd.f32 %v867, %v1057
      %v1197 = vadd.f32 %v868, %v1061
      %v1198 = vadd.f32 %v869, %v1063
      %v1199 = vadd.f32 %v870, %v1067
      %v1200 = vadd.f32 %v871, %v1069
      %v1201 = vadd.f32 %v872, %v1073
      %v1202 = vadd.f32 %v873, %v1075
      %v1203 = vadd.f32 %v874, %v1079
      %v1204 = vadd.f32 %v875, %v1081
      %v1205 = vadd.f32 %v876, %v1085
      %v1206 = vadd.f32 %v877, %v1087
      %v1207 = vadd.f32 %v878, %v1091
      %v1208 = vadd.f32 %v879, %v1093
      %v1209 = vadd.f32 %v880, %v1097
      %v1210 = vadd.f32 %v881, %v1099
      %v1211 = vadd.f32 %v882, %v1103
      %v1212 = vadd.f32 %v883, %v1105
      %v1213 = vadd.f32 %v884, %v1109
      %v1214 = vadd.f32 %v885, %v1111
      %v1215 = vadd.f32 %v886, %v1115
      %v1216 = vadd.f32 %v887, %v1117
      %v1217 = vadd.f32 %v888, %v1121
      %v1218 = vadd.f32 %v889, %v1123
      %v1219 = vadd.f32 %v890, %v1127
      %v1220 = vadd.f32 %v891, %v1129
      %v1221 = vadd.f32 %v892, %v1133
      %v1222 = vadd.f32 %v893, %v1135
      %v1223 = vadd.f32 %v894, %v1139
      %v1224 = vadd.f32 %v895, %v1141
      %v1225 = vadd.f32 %v896, %v1145
      %v1226 = vadd.f32 %v897, %v1147
      %v1227 = vadd.f32 %v898, %v1151
      %v1228 = vadd.f32 %v899, %v1153
      %v1229 = vadd.f32 %v900, %v1157
      %v1230 = vadd.f32 %v901, %v1159
      %v1231 = vadd.f32 %v902, %v1163
      %v1232 = vadd.f32 %v903, %v1165
      %v1233 = vadd.f32 %v904, %v1169
      %v1234 = vadd.f32 %v905, %v1171
      %v1235 = vadd.f32 %v906, %v1175
      %v1236 = vadd.f32 %v907, %v1177
      %1237 = vst [vmem:[#allocation3] sm:$0xff] %v1179
      %1238 = vst [vmem:[#allocation3 + $0x8] sm:$0xff] %v1180
      %1239 = vst [vmem:[#allocation3 + $0x10] sm:$0xff] %v1181
      %1240 = vst [vmem:[#allocation3 + $0x18] sm:$0xff] %v1182
      %1241 = vst [vmem:[#allocation3 + $0x20] sm:$0xff] %v1183
      %1242 = vst [vmem:[#allocation3 + $0x28] sm:$0xff] %v1184
      %1243 = vst [vmem:[#allocation3 + $0x30] sm:$0xff] %v1185
      %1244 = vst [vmem:[#allocation3 + $0x38] sm:$0xff] %v1186
      %1245 = vst [vmem:[#allocation3 + $0x40] sm:$0xff] %v1187
      %1246 = vst [vmem:[#allocation3 + $0x48] sm:$0xff] %v1188
      %1247 = vst [vmem:[#allocation3 + $0x50] sm:$0xff] %v1189
      %1248 = vst [vmem:[#allocation3 + $0x58] sm:$0xff] %v1190
      %1249 = vst [vmem:[#allocation3 + $0x60] sm:$0xff] %v1191
      %1250 = vst [vmem:[#allocation3 + $0x68] sm:$0xff] %v1192
      %1251 = vst [vmem:[#allocation3 + $0x70] sm:$0xff] %v1193
      %1252 = vst [vmem:[#allocation3 + $0x78] sm:$0xff] %v1194
      %1253 = vst [vmem:[#allocation3 + $0x80] sm:$0xff] %v1195
      %1254 = vst [vmem:[#allocation3 + $0x88] sm:$0xff] %v1196
      %1255 = vst [vmem:[#allocation3 + $0x90] sm:$0xff] %v1197
      %1256 = vst [vmem:[#allocation3 + $0x98] sm:$0xff] %v1198
      %1257 = vst [vmem:[#allocation3 + $0xa0] sm:$0xff] %v1199
      %1258 = vst [vmem:[#allocation3 + $0xa8] sm:$0xff] %v1200
      %1259 = vst [vmem:[#allocation3 + $0xb0] sm:$0xff] %v1201
      %1260 = vst [vmem:[#allocation3 + $0xb8] sm:$0xff] %v1202
      %1261 = vst [vmem:[#allocation3 + $0xc0] sm:$0xff] %v1203
      %1262 = vst [vmem:[#allocation3 + $0xc8] sm:$0xff] %v1204
      %1263 = vst [vmem:[#allocation3 + $0xd0] sm:$0xff] %v1205
      %1264 = vst [vmem:[#allocation3 + $0xd8] sm:$0xff] %v1206
      %1265 = vst [vmem:[#allocation3 + $0xe0] sm:$0xff] %v1207
      %1266 = vst [vmem:[#allocation3 + $0xe8] sm:$0xff] %v1208
      %1267 = vst [vmem:[#allocation3 + $0xf0] sm:$0xff] %v1209
      %1268 = vst [vmem:[#allocation3 + $0xf8] sm:$0xff] %v1210
      %1269 = vst [vmem:[#allocation3 + $0x100] sm:$0xff] %v1211
      %1270 = vst [vmem:[#allocation3 + $0x108] sm:$0xff] %v1212
      %1271 = vst [vmem:[#allocation3 + $0x110] sm:$0xff] %v1213
      %1272 = vst [vmem:[#allocation3 + $0x118] sm:$0xff] %v1214
      %1273 = vst [vmem:[#allocation3 + $0x120] sm:$0xff] %v1215
      %1274 = vst [vmem:[#allocation3 + $0x128] sm:$0xff] %v1216
      %1275 = vst [vmem:[#allocation3 + $0x130] sm:$0xff] %v1217
      %1276 = vst [vmem:[#allocation3 + $0x138] sm:$0xff] %v1218
      %1277 = vst [vmem:[#allocation3 + $0x140] sm:$0xff] %v1219
      %1278 = vst [vmem:[#allocation3 + $0x148] sm:$0xff] %v1220
      %1279 = vst [vmem:[#allocation3 + $0x150] sm:$0xff] %v1221
      %1280 = vst [vmem:[#allocation3 + $0x158] sm:$0xff] %v1222
      %1281 = vst [vmem:[#allocation3 + $0x160] sm:$0xff] %v1223
      %1282 = vst [vmem:[#allocation3 + $0x168] sm:$0xff] %v1224
      %1283 = vst [vmem:[#allocation3 + $0x170] sm:$0xff] %v1225
      %1284 = vst [vmem:[#allocation3 + $0x178] sm:$0xff] %v1226
      %1285 = vst [vmem:[#allocation3 + $0x180] sm:$0xff] %v1227
      %1286 = vst [vmem:[#allocation3 + $0x188] sm:$0xff] %v1228
      %1287 = vst [vmem:[#allocation3 + $0x190] sm:$0xff] %v1229
      %1288 = vst [vmem:[#allocation3 + $0x198] sm:$0xff] %v1230
      %1289 = vst [vmem:[#allocation3 + $0x1a0] sm:$0xff] %v1231
      %1290 = vst [vmem:[#allocation3 + $0x1a8] sm:$0xff] %v1232
      %1291 = vst [vmem:[#allocation3 + $0x1b0] sm:$0xff] %v1233
      %1292 = vst [vmem:[#allocation3 + $0x1b8] sm:$0xff] %v1234
      %1293 = vst [vmem:[#allocation3 + $0x1c0] sm:$0x7f] %v1235
      %1294 = vst [vmem:[#allocation3 + $0x1c8] sm:$0x7f] %v1236
      %v1295 = vld [vmem:[#allocation2 + $0x1] sm:$0xff]
      %v1296 = vld [vmem:[#allocation2 + $0x9] sm:$0xff]
      %v1297 = vld [vmem:[#allocation2 + $0x11] sm:$0xff]
      %v1298 = vld [vmem:[#allocation2 + $0x19] sm:$0xff]
      %v1299 = vld [vmem:[#allocation2 + $0x21] sm:$0xff]
      %v1300 = vld [vmem:[#allocation2 + $0x29] sm:$0xff]
      %v1301 = vld [vmem:[#allocation2 + $0x31] sm:$0xff]
      %v1302 = vld [vmem:[#allocation2 + $0x39] sm:$0xff]
      %v1303 = vld [vmem:[#allocation2 + $0x41] sm:$0xff]
      %v1304 = vld [vmem:[#allocation2 + $0x49] sm:$0xff]
      %v1305 = vld [vmem:[#allocation2 + $0x51] sm:$0xff]
      %v1306 = vld [vmem:[#allocation2 + $0x59] sm:$0xff]
      %v1307 = vld [vmem:[#allocation2 + $0x61] sm:$0xff]
      %v1308 = vld [vmem:[#allocation2 + $0x69] sm:$0xff]
      %v1309 = vld [vmem:[#allocation2 + $0x71] sm:$0xff]
      %v1310 = vld [vmem:[#allocation2 + $0x79] sm:$0xff]
      %v1311 = vld [vmem:[#allocation2 + $0x81] sm:$0xff]
      %v1312 = vld [vmem:[#allocation2 + $0x89] sm:$0xff]
      %v1313 = vld [vmem:[#allocation2 + $0x91] sm:$0xff]
      %v1314 = vld [vmem:[#allocation2 + $0x99] sm:$0xff]
      %v1315 = vld [vmem:[#allocation2 + $0xa1] sm:$0xff]
      %v1316 = vld [vmem:[#allocation2 + $0xa9] sm:$0xff]
      %v1317 = vld [vmem:[#allocation2 + $0xb1] sm:$0xff]
      %v1318 = vld [vmem:[#allocation2 + $0xb9] sm:$0xff]
      %v1319 = vld [vmem:[#allocation2 + $0xc1] sm:$0xff]
      %v1320 = vld [vmem:[#allocation2 + $0xc9] sm:$0xff]
      %v1321 = vld [vmem:[#allocation2 + $0xd1] sm:$0xff]
      %v1322 = vld [vmem:[#allocation2 + $0xd9] sm:$0xff]
      %v1323 = vld [vmem:[#allocation2 + $0xe1] sm:$0x7f]
      %v1324 = vld [vmem:[#allocation3] sm:$0xff]
      %v1325 = vld [vmem:[#allocation3 + $0x8] sm:$0xff]
      %v1326 = vld [vmem:[#allocation3 + $0x10] sm:$0xff]
      %v1327 = vld [vmem:[#allocation3 + $0x18] sm:$0xff]
      %v1328 = vld [vmem:[#allocation3 + $0x20] sm:$0xff]
      %v1329 = vld [vmem:[#allocation3 + $0x28] sm:$0xff]
      %v1330 = vld [vmem:[#allocation3 + $0x30] sm:$0xff]
      %v1331 = vld [vmem:[#allocation3 + $0x38] sm:$0xff]
      %v1332 = vld [vmem:[#allocation3 + $0x40] sm:$0xff]
      %v1333 = vld [vmem:[#allocation3 + $0x48] sm:$0xff]
      %v1334 = vld [vmem:[#allocation3 + $0x50] sm:$0xff]
      %v1335 = vld [vmem:[#allocation3 + $0x58] sm:$0xff]
      %v1336 = vld [vmem:[#allocation3 + $0x60] sm:$0xff]
      %v1337 = vld [vmem:[#allocation3 + $0x68] sm:$0xff]
      %v1338 = vld [vmem:[#allocation3 + $0x70] sm:$0xff]
      %v1339 = vld [vmem:[#allocation3 + $0x78] sm:$0xff]
      %v1340 = vld [vmem:[#allocation3 + $0x80] sm:$0xff]
      %v1341 = vld [vmem:[#allocation3 + $0x88] sm:$0xff]
      %v1342 = vld [vmem:[#allocation3 + $0x90] sm:$0xff]
      %v1343 = vld [vmem:[#allocation3 + $0x98] sm:$0xff]
      %v1344 = vld [vmem:[#allocation3 + $0xa0] sm:$0xff]
      %v1345 = vld [vmem:[#allocation3 + $0xa8] sm:$0xff]
      %v1346 = vld [vmem:[#allocation3 + $0xb0] sm:$0xff]
      %v1347 = vld [vmem:[#allocation3 + $0xb8] sm:$0xff]
      %v1348 = vld [vmem:[#allocation3 + $0xc0] sm:$0xff]
      %v1349 = vld [vmem:[#allocation3 + $0xc8] sm:$0xff]
      %v1350 = vld [vmem:[#allocation3 + $0xd0] sm:$0xff]
      %v1351 = vld [vmem:[#allocation3 + $0xd8] sm:$0xff]
      %v1352 = vld [vmem:[#allocation3 + $0xe0] sm:$0xff]
      %v1353 = vld [vmem:[#allocation3 + $0xe8] sm:$0xff]
      %v1354 = vld [vmem:[#allocation3 + $0xf0] sm:$0xff]
      %v1355 = vld [vmem:[#allocation3 + $0xf8] sm:$0xff]
      %v1356 = vld [vmem:[#allocation3 + $0x100] sm:$0xff]
      %v1357 = vld [vmem:[#allocation3 + $0x108] sm:$0xff]
      %v1358 = vld [vmem:[#allocation3 + $0x110] sm:$0xff]
      %v1359 = vld [vmem:[#allocation3 + $0x118] sm:$0xff]
      %v1360 = vld [vmem:[#allocation3 + $0x120] sm:$0xff]
      %v1361 = vld [vmem:[#allocation3 + $0x128] sm:$0xff]
      %v1362 = vld [vmem:[#allocation3 + $0x130] sm:$0xff]
      %v1363 = vld [vmem:[#allocation3 + $0x138] sm:$0xff]
      %v1364 = vld [vmem:[#allocation3 + $0x140] sm:$0xff]
      %v1365 = vld [vmem:[#allocation3 + $0x148] sm:$0xff]
      %v1366 = vld [vmem:[#allocation3 + $0x150] sm:$0xff]
      %v1367 = vld [vmem:[#allocation3 + $0x158] sm:$0xff]
      %v1368 = vld [vmem:[#allocation3 + $0x160] sm:$0xff]
      %v1369 = vld [vmem:[#allocation3 + $0x168] sm:$0xff]
      %v1370 = vld [vmem:[#allocation3 + $0x170] sm:$0xff]
      %v1371 = vld [vmem:[#allocation3 + $0x178] sm:$0xff]
      %v1372 = vld [vmem:[#allocation3 + $0x180] sm:$0xff]
      %v1373 = vld [vmem:[#allocation3 + $0x188] sm:$0xff]
      %v1374 = vld [vmem:[#allocation3 + $0x190] sm:$0xff]
      %v1375 = vld [vmem:[#allocation3 + $0x198] sm:$0xff]
      %v1376 = vld [vmem:[#allocation3 + $0x1a0] sm:$0xff]
      %v1377 = vld [vmem:[#allocation3 + $0x1a8] sm:$0xff]
      %v1378 = vld [vmem:[#allocation3 + $0x1b0] sm:$0xff]
      %v1379 = vld [vmem:[#allocation3 + $0x1b8] sm:$0xff]
      %v1380 = vld [vmem:[#allocation3 + $0x1c0] sm:$0x7f]
      %v1381 = vld [vmem:[#allocation3 + $0x1c8] sm:$0x7f]
      %s1382 = scalar_lea.vmem %s2, 256
      %v1383 = vld [vmem:[%s1382] sm:$0xff]
      %v1384 = vld [vmem:[%s1382 + $0x8] sm:$0xff]
      %v1385 = vld [vmem:[%s1382 + $0x10] sm:$0xff]
      %v1386 = vld [vmem:[%s1382 + $0x18] sm:$0xff]
      %v1387 = vld [vmem:[%s1382 + $0x20] sm:$0xff]
      %v1388 = vld [vmem:[%s1382 + $0x28] sm:$0xff]
      %v1389 = vld [vmem:[%s1382 + $0x30] sm:$0xff]
      %v1390 = vld [vmem:[%s1382 + $0x38] sm:$0xff]
      %v1391 = vld [vmem:[%s1382 + $0x40] sm:$0xff]
      %v1392 = vld [vmem:[%s1382 + $0x48] sm:$0xff]
      %v1393 = vld [vmem:[%s1382 + $0x50] sm:$0xff]
      %v1394 = vld [vmem:[%s1382 + $0x58] sm:$0xff]
      %v1395 = vld [vmem:[%s1382 + $0x60] sm:$0xff]
      %v1396 = vld [vmem:[%s1382 + $0x68] sm:$0xff]
      %v1397 = vld [vmem:[%s1382 + $0x70] sm:$0xff]
      %v1398 = vld [vmem:[%s1382 + $0x78] sm:$0xff]
      %v1399 = vld [vmem:[%s1382 + $0x80] sm:$0xff]
      %v1400 = vld [vmem:[%s1382 + $0x88] sm:$0xff]
      %v1401 = vld [vmem:[%s1382 + $0x90] sm:$0xff]
      %v1402 = vld [vmem:[%s1382 + $0x98] sm:$0xff]
      %v1403 = vld [vmem:[%s1382 + $0xa0] sm:$0xff]
      %v1404 = vld [vmem:[%s1382 + $0xa8] sm:$0xff]
      %v1405 = vld [vmem:[%s1382 + $0xb0] sm:$0xff]
      %v1406 = vld [vmem:[%s1382 + $0xb8] sm:$0xff]
      %v1407 = vld [vmem:[%s1382 + $0xc0] sm:$0xff]
      %v1408 = vld [vmem:[%s1382 + $0xc8] sm:$0xff]
      %v1409 = vld [vmem:[%s1382 + $0xd0] sm:$0xff]
      %v1410 = vld [vmem:[%s1382 + $0xd8] sm:$0xff]
      %v1411 = vld [vmem:[%s1382 + $0xe0] sm:$0xff]
      %v1412 = vld [vmem:[%s1382 + $0xe8] sm:$0xff]
      %v1413 = vld [vmem:[%s1382 + $0xf0] sm:$0xff]
      %v1414 = vld [vmem:[%s1382 + $0xf8] sm:$0xff]
      %1415 = vmatprep.subr.mxu0 %v1384
      %1416 = vmatpush1.msra.mxu0 %v1383
      %1417 = vmatprep.subr.mxu0 %v1386
      %1418 = vmatpush1.msra.mxu0 %v1385
      %1419 = vmatprep.subr.mxu0 %v1388
      %1420 = vmatpush1.msra.mxu0 %v1387
      %1421 = vmatprep.subr.mxu0 %v1390
      %1422 = vmatpush1.msra.mxu0 %v1389
      %1423 = vmatprep.subr.mxu0 %v1392
      %1424 = vmatpush1.msra.mxu0 %v1391
      %1425 = vmatprep.subr.mxu0 %v1394
      %1426 = vmatpush1.msra.mxu0 %v1393
      %1427 = vmatprep.subr.mxu0 %v1396
      %1428 = vmatpush1.msra.mxu0 %v1395
      %1429 = vmatprep.subr.mxu0 %v1398
      %1430 = vmatpush1.msra.mxu0 %v1397
      %1431 = vmatprep.subr.mxu0 %v1400
      %1432 = vmatpush1.msra.mxu0 %v1399
      %1433 = vmatprep.subr.mxu0 %v1402
      %1434 = vmatpush1.msra.mxu0 %v1401
      %1435 = vmatprep.subr.mxu0 %v1404
      %1436 = vmatpush1.msra.mxu0 %v1403
      %1437 = vmatprep.subr.mxu0 %v1406
      %1438 = vmatpush1.msra.mxu0 %v1405
      %1439 = vmatprep.subr.mxu0 %v1408
      %1440 = vmatpush1.msra.mxu0 %v1407
      %1441 = vmatprep.subr.mxu0 %v1410
      %1442 = vmatpush1.msra.mxu0 %v1409
      %1443 = vmatprep.subr.mxu0 %v1412
      %1444 = vmatpush1.msra.mxu0 %v1411
      %1445 = vmatprep.subr.mxu0 %v1414
      %1446 = vmatpush1.msra.mxu0 %v1413
      %1447 = vmatprep.subr.mxu0 0.0
      %1448 = vmatpush1.msra.mxu0 0.0
      %1449 = vmatprep.subr.mxu0 0.0
      %1450 = vmatpush1.msra.mxu0 0.0
      %1451 = vmatprep.subr.mxu0 0.0
      %1452 = vmatpush1.msra.mxu0 0.0
      %1453 = vmatprep.subr.mxu0 0.0
      %1454 = vmatpush1.msra.mxu0 0.0
      %1455 = vmatprep.subr.mxu0 0.0
      %1456 = vmatpush1.msra.mxu0 0.0
      %1457 = vmatprep.subr.mxu0 0.0
      %1458 = vmatpush1.msra.mxu0 0.0
      %1459 = vmatprep.subr.mxu0 0.0
      %1460 = vmatpush1.msra.mxu0 0.0
      %1461 = vmatprep.subr.mxu0 0.0
      %1462 = vmatpush1.msra.mxu0 0.0
      %1463 = vmatprep.subr.mxu0 0.0
      %1464 = vmatpush1.msra.mxu0 0.0
      %1465 = vmatprep.subr.mxu0 0.0
      %1466 = vmatpush1.msra.mxu0 0.0
      %1467 = vmatprep.subr.mxu0 0.0
      %1468 = vmatpush1.msra.mxu0 0.0
      %1469 = vmatprep.subr.mxu0 0.0
      %1470 = vmatpush1.msra.mxu0 0.0
      %1471 = vmatprep.subr.mxu0 0.0
      %1472 = vmatpush1.msra.mxu0 0.0
      %1473 = vmatprep.subr.mxu0 0.0
      %1474 = vmatpush1.msra.mxu0 0.0
      %1475 = vmatprep.subr.mxu0 0.0
      %1476 = vmatpush1.msra.mxu0 0.0
      %1477 = vmatprep.subr.mxu0 0.0
      %1478 = vmatpush1.msra.mxu0 0.0
      %1479 = vmatprep.mubr.f32.mxu0 0.0
      %1480 = vmatmul.mubr.f32.gmra.mrb[0].mxu0 %v1295
      %v1481 = vpop.f32.mrb[0].mxu0
      %v1482 = vadd.f32 0.0, %v1481
      %v1483 = vpop.f32.mrb[0].mxu0
      %v1484 = vadd.f32 0.0, %v1483
      %1485 = vmatprep.mubr.f32.mxu0 0.0
      %1486 = vmatmul.mubr.f32.gmra.mrb[0].mxu0 %v1296
      %v1487 = vpop.f32.mrb[0].mxu0
      %v1488 = vadd.f32 0.0, %v1487
      %v1489 = vpop.f32.mrb[0].mxu0
      %v1490 = vadd.f32 0.0, %v1489
      %1491 = vmatprep.mubr.f32.mxu0 0.0
      %1492 = vmatmul.mubr.f32.gmra.mrb[0].mxu0 %v1297
      %v1493 = vpop.f32.mrb[0].mxu0
      %v1494 = vadd.f32 0.0, %v1493
      %v1495 = vpop.f32.mrb[0].mxu0
      %v1496 = vadd.f32 0.0, %v1495
      %1497 = vmatprep.mubr.f32.mxu0 0.0
      %1498 = vmatmul.mubr.f32.gmra.mrb[0].mxu0 %v1298
      %v1499 = vpop.f32.mrb[0].mxu0
      %v1500 = vadd.f32 0.0, %v1499
      %v1501 = vpop.f32.mrb[0].mxu0
      %v1502 = vadd.f32 0.0, %v1501
      %1503 = vmatprep.mubr.f32.mxu0 0.0
      %1504 = vmatmul.mubr.f32.gmra.mrb[0].mxu0 %v1299
      %v1505 = vpop.f32.mrb[0].mxu0
      %v1506 = vadd.f32 0.0, %v1505
      %v1507 = vpop.f32.mrb[0].mxu0
      %v1508 = vadd.f32 0.0, %v1507
      %1509 = vmatprep.mubr.f32.mxu0 0.0
      %1510 = vmatmul.mubr.f32.gmra.mrb[0].mxu0 %v1300
      %v1511 = vpop.f32.mrb[0].mxu0
      %v1512 = vadd.f32 0.0, %v1511
      %v1513 = vpop.f32.mrb[0].mxu0
      %v1514 = vadd.f32 0.0, %v1513
      %1515 = vmatprep.mubr.f32.mxu0 0.0
      %1516 = vmatmul.mubr.f32.gmra.mrb[0].mxu0 %v1301
      %v1517 = vpop.f32.mrb[0].mxu0
      %v1518 = vadd.f32 0.0, %v1517
      %v1519 = vpop.f32.mrb[0].mxu0
      %v1520 = vadd.f32 0.0, %v1519
      %1521 = vmatprep.mubr.f32.mxu0 0.0
      %1522 = vmatmul.mubr.f32.gmra.mrb[0].mxu0 %v1302
      %v1523 = vpop.f32.mrb[0].mxu0
      %v1524 = vadd.f32 0.0, %v1523
      %v1525 = vpop.f32.mrb[0].mxu0
      %v1526 = vadd.f32 0.0, %v1525
      %1527 = vmatprep.mubr.f32.mxu0 0.0
      %1528 = vmatmul.mubr.f32.gmra.mrb[0].mxu0 %v1303
      %v1529 = vpop.f32.mrb[0].mxu0
      %v1530 = vadd.f32 0.0, %v1529
      %v1531 = vpop.f32.mrb[0].mxu0
      %v1532 = vadd.f32 0.0, %v1531
      %1533 = vmatprep.mubr.f32.mxu0 0.0
      %1534 = vmatmul.mubr.f32.gmra.mrb[0].mxu0 %v1304
      %v1535 = vpop.f32.mrb[0].mxu0
      %v1536 = vadd.f32 0.0, %v1535
      %v1537 = vpop.f32.mrb[0].mxu0
      %v1538 = vadd.f32 0.0, %v1537
      %1539 = vmatprep.mubr.f32.mxu0 0.0
      %1540 = vmatmul.mubr.f32.gmra.mrb[0].mxu0 %v1305
      %v1541 = vpop.f32.mrb[0].mxu0
      %v1542 = vadd.f32 0.0, %v1541
      %v1543 = vpop.f32.mrb[0].mxu0
      %v1544 = vadd.f32 0.0, %v1543
      %1545 = vmatprep.mubr.f32.mxu0 0.0
      %1546 = vmatmul.mubr.f32.gmra.mrb[0].mxu0 %v1306
      %v1547 = vpop.f32.mrb[0].mxu0
      %v1548 = vadd.f32 0.0, %v1547
      %v1549 = vpop.f32.mrb[0].mxu0
      %v1550 = vadd.f32 0.0, %v1549
      %1551 = vmatprep.mubr.f32.mxu0 0.0
      %1552 = vmatmul.mubr.f32.gmra.mrb[0].mxu0 %v1307
      %v1553 = vpop.f32.mrb[0].mxu0
      %v1554 = vadd.f32 0.0, %v1553
      %v1555 = vpop.f32.mrb[0].mxu0
      %v1556 = vadd.f32 0.0, %v1555
      %1557 = vmatprep.mubr.f32.mxu0 0.0
      %1558 = vmatmul.mubr.f32.gmra.mrb[0].mxu0 %v1308
      %v1559 = vpop.f32.mrb[0].mxu0
      %v1560 = vadd.f32 0.0, %v1559
      %v1561 = vpop.f32.mrb[0].mxu0
      %v1562 = vadd.f32 0.0, %v1561
      %1563 = vmatprep.mubr.f32.mxu0 0.0
      %1564 = vmatmul.mubr.f32.gmra.mrb[0].mxu0 %v1309
      %v1565 = vpop.f32.mrb[0].mxu0
      %v1566 = vadd.f32 0.0, %v1565
      %v1567 = vpop.f32.mrb[0].mxu0
      %v1568 = vadd.f32 0.0, %v1567
      %1569 = vmatprep.mubr.f32.mxu0 0.0
      %1570 = vmatmul.mubr.f32.gmra.mrb[0].mxu0 %v1310
      %v1571 = vpop.f32.mrb[0].mxu0
      %v1572 = vadd.f32 0.0, %v1571
      %v1573 = vpop.f32.mrb[0].mxu0
      %v1574 = vadd.f32 0.0, %v1573
      %1575 = vmatprep.mubr.f32.mxu0 0.0
      %1576 = vmatmul.mubr.f32.gmra.mrb[0].mxu0 %v1311
      %v1577 = vpop.f32.mrb[0].mxu0
      %v1578 = vadd.f32 0.0, %v1577
      %v1579 = vpop.f32.mrb[0].mxu0
      %v1580 = vadd.f32 0.0, %v1579
      %1581 = vmatprep.mubr.f32.mxu0 0.0
      %1582 = vmatmul.mubr.f32.gmra.mrb[0].mxu0 %v1312
      %v1583 = vpop.f32.mrb[0].mxu0
      %v1584 = vadd.f32 0.0, %v1583
      %v1585 = vpop.f32.mrb[0].mxu0
      %v1586 = vadd.f32 0.0, %v1585
      %1587 = vmatprep.mubr.f32.mxu0 0.0
      %1588 = vmatmul.mubr.f32.gmra.mrb[0].mxu0 %v1313
      %v1589 = vpop.f32.mrb[0].mxu0
      %v1590 = vadd.f32 0.0, %v1589
      %v1591 = vpop.f32.mrb[0].mxu0
      %v1592 = vadd.f32 0.0, %v1591
      %1593 = vmatprep.mubr.f32.mxu0 0.0
      %1594 = vmatmul.mubr.f32.gmra.mrb[0].mxu0 %v1314
      %v1595 = vpop.f32.mrb[0].mxu0
      %v1596 = vadd.f32 0.0, %v1595
      %v1597 = vpop.f32.mrb[0].mxu0
      %v1598 = vadd.f32 0.0, %v1597
      %1599 = vmatprep.mubr.f32.mxu0 0.0
      %1600 = vmatmul.mubr.f32.gmra.mrb[0].mxu0 %v1315
      %v1601 = vpop.f32.mrb[0].mxu0
      %v1602 = vadd.f32 0.0, %v1601
      %v1603 = vpop.f32.mrb[0].mxu0
      %v1604 = vadd.f32 0.0, %v1603
      %1605 = vmatprep.mubr.f32.mxu0 0.0
      %1606 = vmatmul.mubr.f32.gmra.mrb[0].mxu0 %v1316
      %v1607 = vpop.f32.mrb[0].mxu0
      %v1608 = vadd.f32 0.0, %v1607
      %v1609 = vpop.f32.mrb[0].mxu0
      %v1610 = vadd.f32 0.0, %v1609
      %1611 = vmatprep.mubr.f32.mxu0 0.0
      %1612 = vmatmul.mubr.f32.gmra.mrb[0].mxu0 %v1317
      %v1613 = vpop.f32.mrb[0].mxu0
      %v1614 = vadd.f32 0.0, %v1613
      %v1615 = vpop.f32.mrb[0].mxu0
      %v1616 = vadd.f32 0.0, %v1615
      %1617 = vmatprep.mubr.f32.mxu0 0.0
      %1618 = vmatmul.mubr.f32.gmra.mrb[0].mxu0 %v1318
      %v1619 = vpop.f32.mrb[0].mxu0
      %v1620 = vadd.f32 0.0, %v1619
      %v1621 = vpop.f32.mrb[0].mxu0
      %v1622 = vadd.f32 0.0, %v1621
      %1623 = vmatprep.mubr.f32.mxu0 0.0
      %1624 = vmatmul.mubr.f32.gmra.mrb[0].mxu0 %v1319
      %v1625 = vpop.f32.mrb[0].mxu0
      %v1626 = vadd.f32 0.0, %v1625
      %v1627 = vpop.f32.mrb[0].mxu0
      %v1628 = vadd.f32 0.0, %v1627
      %1629 = vmatprep.mubr.f32.mxu0 0.0
      %1630 = vmatmul.mubr.f32.gmra.mrb[0].mxu0 %v1320
      %v1631 = vpop.f32.mrb[0].mxu0
      %v1632 = vadd.f32 0.0, %v1631
      %v1633 = vpop.f32.mrb[0].mxu0
      %v1634 = vadd.f32 0.0, %v1633
      %1635 = vmatprep.mubr.f32.mxu0 0.0
      %1636 = vmatmul.mubr.f32.gmra.mrb[0].mxu0 %v1321
      %v1637 = vpop.f32.mrb[0].mxu0
      %v1638 = vadd.f32 0.0, %v1637
      %v1639 = vpop.f32.mrb[0].mxu0
      %v1640 = vadd.f32 0.0, %v1639
      %1641 = vmatprep.mubr.f32.mxu0 0.0
      %1642 = vmatmul.mubr.f32.gmra.mrb[0].mxu0 %v1322
      %v1643 = vpop.f32.mrb[0].mxu0
      %v1644 = vadd.f32 0.0, %v1643
      %v1645 = vpop.f32.mrb[0].mxu0
      %v1646 = vadd.f32 0.0, %v1645
      %1647 = vmatprep.mubr.f32.mxu0 0.0
      %1648 = vmatmul.mubr.f32.gmra.mrb[0].mxu0 %v1323
      %v1649 = vpop.f32.mrb[0].mxu0
      %v1650 = vadd.f32 0.0, %v1649
      %v1651 = vpop.f32.mrb[0].mxu0
      %v1652 = vadd.f32 0.0, %v1651
      %1653 = vdwg.mxu0
      %v1654 = vadd.f32 %v1324, %v1482
      %v1655 = vadd.f32 %v1325, %v1484
      %v1656 = vadd.f32 %v1326, %v1488
      %v1657 = vadd.f32 %v1327, %v1490
      %v1658 = vadd.f32 %v1328, %v1494
      %v1659 = vadd.f32 %v1329, %v1496
      %v1660 = vadd.f32 %v1330, %v1500
      %v1661 = vadd.f32 %v1331, %v1502
      %v1662 = vadd.f32 %v1332, %v1506
      %v1663 = vadd.f32 %v1333, %v1508
      %v1664 = vadd.f32 %v1334, %v1512
      %v1665 = vadd.f32 %v1335, %v1514
      %v1666 = vadd.f32 %v1336, %v1518
      %v1667 = vadd.f32 %v1337, %v1520
      %v1668 = vadd.f32 %v1338, %v1524
      %v1669 = vadd.f32 %v1339, %v1526
      %v1670 = vadd.f32 %v1340, %v1530
      %v1671 = vadd.f32 %v1341, %v1532
      %v1672 = vadd.f32 %v1342, %v1536
      %v1673 = vadd.f32 %v1343, %v1538
      %v1674 = vadd.f32 %v1344, %v1542
      %v1675 = vadd.f32 %v1345, %v1544
      %v1676 = vadd.f32 %v1346, %v1548
      %v1677 = vadd.f32 %v1347, %v1550
      %v1678 = vadd.f32 %v1348, %v1554
      %v1679 = vadd.f32 %v1349, %v1556
      %v1680 = vadd.f32 %v1350, %v1560
      %v1681 = vadd.f32 %v1351, %v1562
      %v1682 = vadd.f32 %v1352, %v1566
      %v1683 = vadd.f32 %v1353, %v1568
      %v1684 = vadd.f32 %v1354, %v1572
      %v1685 = vadd.f32 %v1355, %v1574
      %v1686 = vadd.f32 %v1356, %v1578
      %v1687 = vadd.f32 %v1357, %v1580
      %v1688 = vadd.f32 %v1358, %v1584
      %v1689 = vadd.f32 %v1359, %v1586
      %v1690 = vadd.f32 %v1360, %v1590
      %v1691 = vadd.f32 %v1361, %v1592
      %v1692 = vadd.f32 %v1362, %v1596
      %v1693 = vadd.f32 %v1363, %v1598
      %v1694 = vadd.f32 %v1364, %v1602
      %v1695 = vadd.f32 %v1365, %v1604
      %v1696 = vadd.f32 %v1366, %v1608
      %v1697 = vadd.f32 %v1367, %v1610
      %v1698 = vadd.f32 %v1368, %v1614
      %v1699 = vadd.f32 %v1369, %v1616
      %v1700 = vadd.f32 %v1370, %v1620
      %v1701 = vadd.f32 %v1371, %v1622
      %v1702 = vadd.f32 %v1372, %v1626
      %v1703 = vadd.f32 %v1373, %v1628
      %v1704 = vadd.f32 %v1374, %v1632
      %v1705 = vadd.f32 %v1375, %v1634
      %v1706 = vadd.f32 %v1376, %v1638
      %v1707 = vadd.f32 %v1377, %v1640
      %v1708 = vadd.f32 %v1378, %v1644
      %v1709 = vadd.f32 %v1379, %v1646
      %v1710 = vadd.f32 %v1380, %v1650
      %v1711 = vadd.f32 %v1381, %v1652
      %1712 = vst [vmem:[#allocation3] sm:$0xff] %v1654
      %1713 = vst [vmem:[#allocation3 + $0x8] sm:$0xff] %v1655
      %1714 = vst [vmem:[#allocation3 + $0x10] sm:$0xff] %v1656
      %1715 = vst [vmem:[#allocation3 + $0x18] sm:$0xff] %v1657
      %1716 = vst [vmem:[#allocation3 + $0x20] sm:$0xff] %v1658
      %1717 = vst [vmem:[#allocation3 + $0x28] sm:$0xff] %v1659
      %1718 = vst [vmem:[#allocation3 + $0x30] sm:$0xff] %v1660
      %1719 = vst [vmem:[#allocation3 + $0x38] sm:$0xff] %v1661
      %1720 = vst [vmem:[#allocation3 + $0x40] sm:$0xff] %v1662
      %1721 = vst [vmem:[#allocation3 + $0x48] sm:$0xff] %v1663
      %1722 = vst [vmem:[#allocation3 + $0x50] sm:$0xff] %v1664
      %1723 = vst [vmem:[#allocation3 + $0x58] sm:$0xff] %v1665
      %1724 = vst [vmem:[#allocation3 + $0x60] sm:$0xff] %v1666
      %1725 = vst [vmem:[#allocation3 + $0x68] sm:$0xff] %v1667
      %1726 = vst [vmem:[#allocation3 + $0x70] sm:$0xff] %v1668
      %1727 = vst [vmem:[#allocation3 + $0x78] sm:$0xff] %v1669
      %1728 = vst [vmem:[#allocation3 + $0x80] sm:$0xff] %v1670
      %1729 = vst [vmem:[#allocation3 + $0x88] sm:$0xff] %v1671
      %1730 = vst [vmem:[#allocation3 + $0x90] sm:$0xff] %v1672
      %1731 = vst [vmem:[#allocation3 + $0x98] sm:$0xff] %v1673
      %1732 = vst [vmem:[#allocation3 + $0xa0] sm:$0xff] %v1674
      %1733 = vst [vmem:[#allocation3 + $0xa8] sm:$0xff] %v1675
      %1734 = vst [vmem:[#allocation3 + $0xb0] sm:$0xff] %v1676
      %1735 = vst [vmem:[#allocation3 + $0xb8] sm:$0xff] %v1677
      %1736 = vst [vmem:[#allocation3 + $0xc0] sm:$0xff] %v1678
      %1737 = vst [vmem:[#allocation3 + $0xc8] sm:$0xff] %v1679
      %1738 = vst [vmem:[#allocation3 + $0xd0] sm:$0xff] %v1680
      %1739 = vst [vmem:[#allocation3 + $0xd8] sm:$0xff] %v1681
      %1740 = vst [vmem:[#allocation3 + $0xe0] sm:$0xff] %v1682
      %1741 = vst [vmem:[#allocation3 + $0xe8] sm:$0xff] %v1683
      %1742 = vst [vmem:[#allocation3 + $0xf0] sm:$0xff] %v1684
      %1743 = vst [vmem:[#allocation3 + $0xf8] sm:$0xff] %v1685
      %1744 = vst [vmem:[#allocation3 + $0x100] sm:$0xff] %v1686
      %1745 = vst [vmem:[#allocation3 + $0x108] sm:$0xff] %v1687
      %1746 = vst [vmem:[#allocation3 + $0x110] sm:$0xff] %v1688
      %1747 = vst [vmem:[#allocation3 + $0x118] sm:$0xff] %v1689
      %1748 = vst [vmem:[#allocation3 + $0x120] sm:$0xff] %v1690
      %1749 = vst [vmem:[#allocation3 + $0x128] sm:$0xff] %v1691
      %1750 = vst [vmem:[#allocation3 + $0x130] sm:$0xff] %v1692
      %1751 = vst [vmem:[#allocation3 + $0x138] sm:$0xff] %v1693
      %1752 = vst [vmem:[#allocation3 + $0x140] sm:$0xff] %v1694
      %1753 = vst [vmem:[#allocation3 + $0x148] sm:$0xff] %v1695
      %1754 = vst [vmem:[#allocation3 + $0x150] sm:$0xff] %v1696
      %1755 = vst [vmem:[#allocation3 + $0x158] sm:$0xff] %v1697
      %1756 = vst [vmem:[#allocation3 + $0x160] sm:$0xff] %v1698
      %1757 = vst [vmem:[#allocation3 + $0x168] sm:$0xff] %v1699
      %1758 = vst [vmem:[#allocation3 + $0x170] sm:$0xff] %v1700
      %1759 = vst [vmem:[#allocation3 + $0x178] sm:$0xff] %v1701
      %1760 = vst [vmem:[#allocation3 + $0x180] sm:$0xff] %v1702
      %1761 = vst [vmem:[#allocation3 + $0x188] sm:$0xff] %v1703
      %1762 = vst [vmem:[#allocation3 + $0x190] sm:$0xff] %v1704
      %1763 = vst [vmem:[#allocation3 + $0x198] sm:$0xff] %v1705
      %1764 = vst [vmem:[#allocation3 + $0x1a0] sm:$0xff] %v1706
      %1765 = vst [vmem:[#allocation3 + $0x1a8] sm:$0xff] %v1707
      %1766 = vst [vmem:[#allocation3 + $0x1b0] sm:$0xff] %v1708
      %1767 = vst [vmem:[#allocation3 + $0x1b8] sm:$0xff] %v1709
      %1768 = vst [vmem:[#allocation3 + $0x1c0] sm:$0x7f] %v1710
      %1769 = vst [vmem:[#allocation3 + $0x1c8] sm:$0x7f] %v1711
      %v1770 = vld [vmem:[#allocation2 + $0x2] sm:$0xff]
      %v1771 = vld [vmem:[#allocation2 + $0xa] sm:$0xff]
      %v1772 = vld [vmem:[#allocation2 + $0x12] sm:$0xff]
      %v1773 = vld [vmem:[#allocation2 + $0x1a] sm:$0xff]
      %v1774 = vld [vmem:[#allocation2 + $0x22] sm:$0xff]
      %v1775 = vld [vmem:[#allocation2 + $0x2a] sm:$0xff]
      %v1776 = vld [vmem:[#allocation2 + $0x32] sm:$0xff]
      %v1777 = vld [vmem:[#allocation2 + $0x3a] sm:$0xff]
      %v1778 = vld [vmem:[#allocation2 + $0x42] sm:$0xff]
      %v1779 = vld [vmem:[#allocation2 + $0x4a] sm:$0xff]
      %v1780 = vld [vmem:[#allocation2 + $0x52] sm:$0xff]
      %v1781 = vld [vmem:[#allocation2 + $0x5a] sm:$0xff]
      %v1782 = vld [vmem:[#allocation2 + $0x62] sm:$0xff]
      %v1783 = vld [vmem:[#allocation2 + $0x6a] sm:$0xff]
      %v1784 = vld [vmem:[#allocation2 + $0x72] sm:$0xff]
      %v1785 = vld [vmem:[#allocation2 + $0x7a] sm:$0xff]
      %v1786 = vld [vmem:[#allocation2 + $0x82] sm:$0xff]
      %v1787 = vld [vmem:[#allocation2 + $0x8a] sm:$0xff]
      %v1788 = vld [vmem:[#allocation2 + $0x92] sm:$0xff]
      %v1789 = vld [vmem:[#allocation2 + $0x9a] sm:$0xff]
      %v1790 = vld [vmem:[#allocation2 + $0xa2] sm:$0xff]
      %v1791 = vld [vmem:[#allocation2 + $0xaa] sm:$0xff]
      %v1792 = vld [vmem:[#allocation2 + $0xb2] sm:$0xff]
      %v1793 = vld [vmem:[#allocation2 + $0xba] sm:$0xff]
      %v1794 = vld [vmem:[#allocation2 + $0xc2] sm:$0xff]
      %v1795 = vld [vmem:[#allocation2 + $0xca] sm:$0xff]
      %v1796 = vld [vmem:[#allocation2 + $0xd2] sm:$0xff]
      %v1797 = vld [vmem:[#allocation2 + $0xda] sm:$0xff]
      %v1798 = vld [vmem:[#allocation2 + $0xe2] sm:$0x7f]
      %v1799 = vld [vmem:[#allocation3] sm:$0xff]
      %v1800 = vld [vmem:[#allocation3 + $0x8] sm:$0xff]
      %v1801 = vld [vmem:[#allocation3 + $0x10] sm:$0xff]
      %v1802 = vld [vmem:[#allocation3 + $0x18] sm:$0xff]
      %v1803 = vld [vmem:[#allocation3 + $0x20] sm:$0xff]
      %v1804 = vld [vmem:[#allocation3 + $0x28] sm:$0xff]
      %v1805 = vld [vmem:[#allocation3 + $0x30] sm:$0xff]
      %v1806 = vld [vmem:[#allocation3 + $0x38] sm:$0xff]
      %v1807 = vld [vmem:[#allocation3 + $0x40] sm:$0xff]
      %v1808 = vld [vmem:[#allocation3 + $0x48] sm:$0xff]
      %v1809 = vld [vmem:[#allocation3 + $0x50] sm:$0xff]
      %v1810 = vld [vmem:[#allocation3 + $0x58] sm:$0xff]
      %v1811 = vld [vmem:[#allocation3 + $0x60] sm:$0xff]
      %v1812 = vld [vmem:[#allocation3 + $0x68] sm:$0xff]
      %v1813 = vld [vmem:[#allocation3 + $0x70] sm:$0xff]
      %v1814 = vld [vmem:[#allocation3 + $0x78] sm:$0xff]
      %v1815 = vld [vmem:[#allocation3 + $0x80] sm:$0xff]
      %v1816 = vld [vmem:[#allocation3 + $0x88] sm:$0xff]
      %v1817 = vld [vmem:[#allocation3 + $0x90] sm:$0xff]
      %v1818 = vld [vmem:[#allocation3 + $0x98] sm:$0xff]
      %v1819 = vld [vmem:[#allocation3 + $0xa0] sm:$0xff]
      %v1820 = vld [vmem:[#allocation3 + $0xa8] sm:$0xff]
      %v1821 = vld [vmem:[#allocation3 + $0xb0] sm:$0xff]
      %v1822 = vld [vmem:[#allocation3 + $0xb8] sm:$0xff]
      %v1823 = vld [vmem:[#allocation3 + $0xc0] sm:$0xff]
      %v1824 = vld [vmem:[#allocation3 + $0xc8] sm:$0xff]
      %v1825 = vld [vmem:[#allocation3 + $0xd0] sm:$0xff]
      %v1826 = vld [vmem:[#allocation3 + $0xd8] sm:$0xff]
      %v1827 = vld [vmem:[#allocation3 + $0xe0] sm:$0xff]
      %v1828 = vld [vmem:[#allocation3 + $0xe8] sm:$0xff]
      %v1829 = vld [vmem:[#allocation3 + $0xf0] sm:$0xff]
      %v1830 = vld [vmem:[#allocation3 + $0xf8] sm:$0xff]
      %v1831 = vld [vmem:[#allocation3 + $0x100] sm:$0xff]
      %v1832 = vld [vmem:[#allocation3 + $0x108] sm:$0xff]
      %v1833 = vld [vmem:[#allocation3 + $0x110] sm:$0xff]
      %v1834 = vld [vmem:[#allocation3 + $0x118] sm:$0xff]
      %v1835 = vld [vmem:[#allocation3 + $0x120] sm:$0xff]
      %v1836 = vld [vmem:[#allocation3 + $0x128] sm:$0xff]
      %v1837 = vld [vmem:[#allocation3 + $0x130] sm:$0xff]
      %v1838 = vld [vmem:[#allocation3 + $0x138] sm:$0xff]
      %v1839 = vld [vmem:[#allocation3 + $0x140] sm:$0xff]
      %v1840 = vld [vmem:[#allocation3 + $0x148] sm:$0xff]
      %v1841 = vld [vmem:[#allocation3 + $0x150] sm:$0xff]
      %v1842 = vld [vmem:[#allocation3 + $0x158] sm:$0xff]
      %v1843 = vld [vmem:[#allocation3 + $0x160] sm:$0xff]
      %v1844 = vld [vmem:[#allocation3 + $0x168] sm:$0xff]
      %v1845 = vld [vmem:[#allocation3 + $0x170] sm:$0xff]
      %v1846 = vld [vmem:[#allocation3 + $0x178] sm:$0xff]
      %v1847 = vld [vmem:[#allocation3 + $0x180] sm:$0xff]
      %v1848 = vld [vmem:[#allocation3 + $0x188] sm:$0xff]
      %v1849 = vld [vmem:[#allocation3 + $0x190] sm:$0xff]
      %v1850 = vld [vmem:[#allocation3 + $0x198] sm:$0xff]
      %v1851 = vld [vmem:[#allocation3 + $0x1a0] sm:$0xff]
      %v1852 = vld [vmem:[#allocation3 + $0x1a8] sm:$0xff]
      %v1853 = vld [vmem:[#allocation3 + $0x1b0] sm:$0xff]
      %v1854 = vld [vmem:[#allocation3 + $0x1b8] sm:$0xff]
      %v1855 = vld [vmem:[#allocation3 + $0x1c0] sm:$0x7f]
      %v1856 = vld [vmem:[#allocation3 + $0x1c8] sm:$0x7f]
      %s1857 = scalar_lea.vmem %s2, 512
      %v1858 = vld [vmem:[%s1857] sm:$0xff]
      %v1859 = vld [vmem:[%s1857 + $0x8] sm:$0xff]
      %v1860 = vld [vmem:[%s1857 + $0x10] sm:$0xff]
      %v1861 = vld [vmem:[%s1857 + $0x18] sm:$0xff]
      %v1862 = vld [vmem:[%s1857 + $0x20] sm:$0xff]
      %v1863 = vld [vmem:[%s1857 + $0x28] sm:$0xff]
      %v1864 = vld [vmem:[%s1857 + $0x30] sm:$0xff]
      %v1865 = vld [vmem:[%s1857 + $0x38] sm:$0xff]
      %v1866 = vld [vmem:[%s1857 + $0x40] sm:$0xff]
      %v1867 = vld [vmem:[%s1857 + $0x48] sm:$0xff]
      %v1868 = vld [vmem:[%s1857 + $0x50] sm:$0xff]
      %v1869 = vld [vmem:[%s1857 + $0x58] sm:$0xff]
      %v1870 = vld [vmem:[%s1857 + $0x60] sm:$0xff]
      %v1871 = vld [vmem:[%s1857 + $0x68] sm:$0xff]
      %v1872 = vld [vmem:[%s1857 + $0x70] sm:$0xff]
      %v1873 = vld [vmem:[%s1857 + $0x78] sm:$0xff]
      %v1874 = vld [vmem:[%s1857 + $0x80] sm:$0xff]
      %v1875 = vld [vmem:[%s1857 + $0x88] sm:$0xff]
      %v1876 = vld [vmem:[%s1857 + $0x90] sm:$0xff]
      %v1877 = vld [vmem:[%s1857 + $0x98] sm:$0xff]
      %v1878 = vld [vmem:[%s1857 + $0xa0] sm:$0xff]
      %v1879 = vld [vmem:[%s1857 + $0xa8] sm:$0xff]
      %v1880 = vld [vmem:[%s1857 + $0xb0] sm:$0xff]
      %v1881 = vld [vmem:[%s1857 + $0xb8] sm:$0xff]
      %v1882 = vld [vmem:[%s1857 + $0xc0] sm:$0xff]
      %v1883 = vld [vmem:[%s1857 + $0xc8] sm:$0xff]
      %v1884 = vld [vmem:[%s1857 + $0xd0] sm:$0xff]
      %v1885 = vld [vmem:[%s1857 + $0xd8] sm:$0xff]
      %v1886 = vld [vmem:[%s1857 + $0xe0] sm:$0xff]
      %v1887 = vld [vmem:[%s1857 + $0xe8] sm:$0xff]
      %v1888 = vld [vmem:[%s1857 + $0xf0] sm:$0xff]
      %v1889 = vld [vmem:[%s1857 + $0xf8] sm:$0xff]
      %1890 = vmatprep.subr.mxu0 %v1859
      %1891 = vmatpush1.msra.mxu0 %v1858
      %1892 = vmatprep.subr.mxu0 %v1861
      %1893 = vmatpush1.msra.mxu0 %v1860
      %1894 = vmatprep.subr.mxu0 %v1863
      %1895 = vmatpush1.msra.mxu0 %v1862
      %1896 = vmatprep.subr.mxu0 %v1865
      %1897 = vmatpush1.msra.mxu0 %v1864
      %1898 = vmatprep.subr.mxu0 %v1867
      %1899 = vmatpush1.msra.mxu0 %v1866
      %1900 = vmatprep.subr.mxu0 %v1869
      %1901 = vmatpush1.msra.mxu0 %v1868
      %1902 = vmatprep.subr.mxu0 %v1871
      %1903 = vmatpush1.msra.mxu0 %v1870
      %1904 = vmatprep.subr.mxu0 %v1873
      %1905 = vmatpush1.msra.mxu0 %v1872
      %1906 = vmatprep.subr.mxu0 %v1875
      %1907 = vmatpush1.msra.mxu0 %v1874
      %1908 = vmatprep.subr.mxu0 %v1877
      %1909 = vmatpush1.msra.mxu0 %v1876
      %1910 = vmatprep.subr.mxu0 %v1879
      %1911 = vmatpush1.msra.mxu0 %v1878
      %1912 = vmatprep.subr.mxu0 %v1881
      %1913 = vmatpush1.msra.mxu0 %v1880
      %1914 = vmatprep.subr.mxu0 %v1883
      %1915 = vmatpush1.msra.mxu0 %v1882
      %1916 = vmatprep.subr.mxu0 %v1885
      %1917 = vmatpush1.msra.mxu0 %v1884
      %1918 = vmatprep.subr.mxu0 %v1887
      %1919 = vmatpush1.msra.mxu0 %v1886
      %1920 = vmatprep.subr.mxu0 %v1889
      %1921 = vmatpush1.msra.mxu0 %v1888
      %1922 = vmatprep.subr.mxu0 0.0
      %1923 = vmatpush1.msra.mxu0 0.0
      %1924 = vmatprep.subr.mxu0 0.0
      %1925 = vmatpush1.msra.mxu0 0.0
      %1926 = vmatprep.subr.mxu0 0.0
      %1927 = vmatpush1.msra.mxu0 0.0
      %1928 = vmatprep.subr.mxu0 0.0
      %1929 = vmatpush1.msra.mxu0 0.0
      %1930 = vmatprep.subr.mxu0 0.0
      %1931 = vmatpush1.msra.mxu0 0.0
      %1932 = vmatprep.subr.mxu0 0.0
      %1933 = vmatpush1.msra.mxu0 0.0
      %1934 = vmatprep.subr.mxu0 0.0
      %1935 = vmatpush1.msra.mxu0 0.0
      %1936 = vmatprep.subr.mxu0 0.0
      %1937 = vmatpush1.msra.mxu0 0.0
      %1938 = vmatprep.subr.mxu0 0.0
      %1939 = vmatpush1.msra.mxu0 0.0
      %1940 = vmatprep.subr.mxu0 0.0
      %1941 = vmatpush1.msra.mxu0 0.0
      %1942 = vmatprep.subr.mxu0 0.0
      %1943 = vmatpush1.msra.mxu0 0.0
      %1944 = vmatprep.subr.mxu0 0.0
      %1945 = vmatpush1.msra.mxu0 0.0
      %1946 = vmatprep.subr.mxu0 0.0
      %1947 = vmatpush1.msra.mxu0 0.0
      %1948 = vmatprep.subr.mxu0 0.0
      %1949 = vmatpush1.msra.mxu0 0.0
      %1950 = vmatprep.subr.mxu0 0.0
      %1951 = vmatpush1.msra.mxu0 0.0
      %1952 = vmatprep.subr.mxu0 0.0
      %1953 = vmatpush1.msra.mxu0 0.0
      %1954 = vmatprep.mubr.f32.mxu0 0.0
      %1955 = vmatmul.mubr.f32.gmra.mrb[0].mxu0 %v1770
      %v1956 = vpop.f32.mrb[0].mxu0
      %v1957 = vadd.f32 0.0, %v1956
      %v1958 = vpop.f32.mrb[0].mxu0
      %v1959 = vadd.f32 0.0, %v1958
      %1960 = vmatprep.mubr.f32.mxu0 0.0
      %1961 = vmatmul.mubr.f32.gmra.mrb[0].mxu0 %v1771
      %v1962 = vpop.f32.mrb[0].mxu0
      %v1963 = vadd.f32 0.0, %v1962
      %v1964 = vpop.f32.mrb[0].mxu0
      %v1965 = vadd.f32 0.0, %v1964
      %1966 = vmatprep.mubr.f32.mxu0 0.0
      %1967 = vmatmul.mubr.f32.gmra.mrb[0].mxu0 %v1772
      %v1968 = vpop.f32.mrb[0].mxu0
      %v1969 = vadd.f32 0.0, %v1968
      %v1970 = vpop.f32.mrb[0].mxu0
      %v1971 = vadd.f32 0.0, %v1970
      %1972 = vmatprep.mubr.f32.mxu0 0.0
      %1973 = vmatmul.mubr.f32.gmra.mrb[0].mxu0 %v1773
      %v1974 = vpop.f32.mrb[0].mxu0
      %v1975 = vadd.f32 0.0, %v1974
      %v1976 = vpop.f32.mrb[0].mxu0
      %v1977 = vadd.f32 0.0, %v1976
      %1978 = vmatprep.mubr.f32.mxu0 0.0
      %1979 = vmatmul.mubr.f32.gmra.mrb[0].mxu0 %v1774
      %v1980 = vpop.f32.mrb[0].mxu0
      %v1981 = vadd.f32 0.0, %v1980
      %v1982 = vpop.f32.mrb[0].mxu0
      %v1983 = vadd.f32 0.0, %v1982
      %1984 = vmatprep.mubr.f32.mxu0 0.0
      %1985 = vmatmul.mubr.f32.gmra.mrb[0].mxu0 %v1775
      %v1986 = vpop.f32.mrb[0].mxu0
      %v1987 = vadd.f32 0.0, %v1986
      %v1988 = vpop.f32.mrb[0].mxu0
      %v1989 = vadd.f32 0.0, %v1988
      %1990 = vmatprep.mubr.f32.mxu0 0.0
      %1991 = vmatmul.mubr.f32.gmra.mrb[0].mxu0 %v1776
      %v1992 = vpop.f32.mrb[0].mxu0
      %v1993 = vadd.f32 0.0, %v1992
      %v1994 = vpop.f32.mrb[0].mxu0
      %v1995 = vadd.f32 0.0, %v1994
      %1996 = vmatprep.mubr.f32.mxu0 0.0
      %1997 = vmatmul.mubr.f32.gmra.mrb[0].mxu0 %v1777
      %v1998 = vpop.f32.mrb[0].mxu0
      %v1999 = vadd.f32 0.0, %v1998
      %v2000 = vpop.f32.mrb[0].mxu0
      %v2001 = vadd.f32 0.0, %v2000
      %2002 = vmatprep.mubr.f32.mxu0 0.0
      %2003 = vmatmul.mubr.f32.gmra.mrb[0].mxu0 %v1778
      %v2004 = vpop.f32.mrb[0].mxu0
      %v2005 = vadd.f32 0.0, %v2004
      %v2006 = vpop.f32.mrb[0].mxu0
      %v2007 = vadd.f32 0.0, %v2006
      %2008 = vmatprep.mubr.f32.mxu0 0.0
      %2009 = vmatmul.mubr.f32.gmra.mrb[0].mxu0 %v1779
      %v2010 = vpop.f32.mrb[0].mxu0
      %v2011 = vadd.f32 0.0, %v2010
      %v2012 = vpop.f32.mrb[0].mxu0
      %v2013 = vadd.f32 0.0, %v2012
      %2014 = vmatprep.mubr.f32.mxu0 0.0
      %2015 = vmatmul.mubr.f32.gmra.mrb[0].mxu0 %v1780
      %v2016 = vpop.f32.mrb[0].mxu0
      %v2017 = vadd.f32 0.0, %v2016
      %v2018 = vpop.f32.mrb[0].mxu0
      %v2019 = vadd.f32 0.0, %v2018
      %2020 = vmatprep.mubr.f32.mxu0 0.0
      %2021 = vmatmul.mubr.f32.gmra.mrb[0].mxu0 %v1781
      %v2022 = vpop.f32.mrb[0].mxu0
      %v2023 = vadd.f32 0.0, %v2022
      %v2024 = vpop.f32.mrb[0].mxu0
      %v2025 = vadd.f32 0.0, %v2024
      %2026 = vmatprep.mubr.f32.mxu0 0.0
      %2027 = vmatmul.mubr.f32.gmra.mrb[0].mxu0 %v1782
      %v2028 = vpop.f32.mrb[0].mxu0
      %v2029 = vadd.f32 0.0, %v2028
      %v2030 = vpop.f32.mrb[0].mxu0
      %v2031 = vadd.f32 0.0, %v2030
      %2032 = vmatprep.mubr.f32.mxu0 0.0
      %2033 = vmatmul.mubr.f32.gmra.mrb[0].mxu0 %v1783
      %v2034 = vpop.f32.mrb[0].mxu0
      %v2035 = vadd.f32 0.0, %v2034
      %v2036 = vpop.f32.mrb[0].mxu0
      %v2037 = vadd.f32 0.0, %v2036
      %2038 = vmatprep.mubr.f32.mxu0 0.0
      %2039 = vmatmul.mubr.f32.gmra.mrb[0].mxu0 %v1784
      %v2040 = vpop.f32.mrb[0].mxu0
      %v2041 = vadd.f32 0.0, %v2040
      %v2042 = vpop.f32.mrb[0].mxu0
      %v2043 = vadd.f32 0.0, %v2042
      %2044 = vmatprep.mubr.f32.mxu0 0.0
      %2045 = vmatmul.mubr.f32.gmra.mrb[0].mxu0 %v1785
      %v2046 = vpop.f32.mrb[0].mxu0
      %v2047 = vadd.f32 0.0, %v2046
      %v2048 = vpop.f32.mrb[0].mxu0
      %v2049 = vadd.f32 0.0, %v2048
      %2050 = vmatprep.mubr.f32.mxu0 0.0
      %2051 = vmatmul.mubr.f32.gmra.mrb[0].mxu0 %v1786
      %v2052 = vpop.f32.mrb[0].mxu0
      %v2053 = vadd.f32 0.0, %v2052
      %v2054 = vpop.f32.mrb[0].mxu0
      %v2055 = vadd.f32 0.0, %v2054
      %2056 = vmatprep.mubr.f32.mxu0 0.0
      %2057 = vmatmul.mubr.f32.gmra.mrb[0].mxu0 %v1787
      %v2058 = vpop.f32.mrb[0].mxu0
      %v2059 = vadd.f32 0.0, %v2058
      %v2060 = vpop.f32.mrb[0].mxu0
      %v2061 = vadd.f32 0.0, %v2060
      %2062 = vmatprep.mubr.f32.mxu0 0.0
      %2063 = vmatmul.mubr.f32.gmra.mrb[0].mxu0 %v1788
      %v2064 = vpop.f32.mrb[0].mxu0
      %v2065 = vadd.f32 0.0, %v2064
      %v2066 = vpop.f32.mrb[0].mxu0
      %v2067 = vadd.f32 0.0, %v2066
      %2068 = vmatprep.mubr.f32.mxu0 0.0
      %2069 = vmatmul.mubr.f32.gmra.mrb[0].mxu0 %v1789
      %v2070 = vpop.f32.mrb[0].mxu0
      %v2071 = vadd.f32 0.0, %v2070
      %v2072 = vpop.f32.mrb[0].mxu0
      %v2073 = vadd.f32 0.0, %v2072
      %2074 = vmatprep.mubr.f32.mxu0 0.0
      %2075 = vmatmul.mubr.f32.gmra.mrb[0].mxu0 %v1790
      %v2076 = vpop.f32.mrb[0].mxu0
      %v2077 = vadd.f32 0.0, %v2076
      %v2078 = vpop.f32.mrb[0].mxu0
      %v2079 = vadd.f32 0.0, %v2078
      %2080 = vmatprep.mubr.f32.mxu0 0.0
      %2081 = vmatmul.mubr.f32.gmra.mrb[0].mxu0 %v1791
      %v2082 = vpop.f32.mrb[0].mxu0
      %v2083 = vadd.f32 0.0, %v2082
      %v2084 = vpop.f32.mrb[0].mxu0
      %v2085 = vadd.f32 0.0, %v2084
      %2086 = vmatprep.mubr.f32.mxu0 0.0
      %2087 = vmatmul.mubr.f32.gmra.mrb[0].mxu0 %v1792
      %v2088 = vpop.f32.mrb[0].mxu0
      %v2089 = vadd.f32 0.0, %v2088
      %v2090 = vpop.f32.mrb[0].mxu0
      %v2091 = vadd.f32 0.0, %v2090
      %2092 = vmatprep.mubr.f32.mxu0 0.0
      %2093 = vmatmul.mubr.f32.gmra.mrb[0].mxu0 %v1793
      %v2094 = vpop.f32.mrb[0].mxu0
      %v2095 = vadd.f32 0.0, %v2094
      %v2096 = vpop.f32.mrb[0].mxu0
      %v2097 = vadd.f32 0.0, %v2096
      %2098 = vmatprep.mubr.f32.mxu0 0.0
      %2099 = vmatmul.mubr.f32.gmra.mrb[0].mxu0 %v1794
      %v2100 = vpop.f32.mrb[0].mxu0
      %v2101 = vadd.f32 0.0, %v2100
      %v2102 = vpop.f32.mrb[0].mxu0
      %v2103 = vadd.f32 0.0, %v2102
      %2104 = vmatprep.mubr.f32.mxu0 0.0
      %2105 = vmatmul.mubr.f32.gmra.mrb[0].mxu0 %v1795
      %v2106 = vpop.f32.mrb[0].mxu0
      %v2107 = vadd.f32 0.0, %v2106
      %v2108 = vpop.f32.mrb[0].mxu0
      %v2109 = vadd.f32 0.0, %v2108
      %2110 = vmatprep.mubr.f32.mxu0 0.0
      %2111 = vmatmul.mubr.f32.gmra.mrb[0].mxu0 %v1796
      %v2112 = vpop.f32.mrb[0].mxu0
      %v2113 = vadd.f32 0.0, %v2112
      %v2114 = vpop.f32.mrb[0].mxu0
      %v2115 = vadd.f32 0.0, %v2114
      %2116 = vmatprep.mubr.f32.mxu0 0.0
      %2117 = vmatmul.mubr.f32.gmra.mrb[0].mxu0 %v1797
      %v2118 = vpop.f32.mrb[0].mxu0
      %v2119 = vadd.f32 0.0, %v2118
      %v2120 = vpop.f32.mrb[0].mxu0
      %v2121 = vadd.f32 0.0, %v2120
      %2122 = vmatprep.mubr.f32.mxu0 0.0
      %2123 = vmatmul.mubr.f32.gmra.mrb[0].mxu0 %v1798
      %v2124 = vpop.f32.mrb[0].mxu0
      %v2125 = vadd.f32 0.0, %v2124
      %v2126 = vpop.f32.mrb[0].mxu0
      %v2127 = vadd.f32 0.0, %v2126
      %2128 = vdwg.mxu0
      %v2129 = vadd.f32 %v1799, %v1957
      %v2130 = vadd.f32 %v1800, %v1959
      %v2131 = vadd.f32 %v1801, %v1963
      %v2132 = vadd.f32 %v1802, %v1965
      %v2133 = vadd.f32 %v1803, %v1969
      %v2134 = vadd.f32 %v1804, %v1971
      %v2135 = vadd.f32 %v1805, %v1975
      %v2136 = vadd.f32 %v1806, %v1977
      %v2137 = vadd.f32 %v1807, %v1981
      %v2138 = vadd.f32 %v1808, %v1983
      %v2139 = vadd.f32 %v1809, %v1987
      %v2140 = vadd.f32 %v1810, %v1989
      %v2141 = vadd.f32 %v1811, %v1993
      %v2142 = vadd.f32 %v1812, %v1995
      %v2143 = vadd.f32 %v1813, %v1999
      %v2144 = vadd.f32 %v1814, %v2001
      %v2145 = vadd.f32 %v1815, %v2005
      %v2146 = vadd.f32 %v1816, %v2007
      %v2147 = vadd.f32 %v1817, %v2011
      %v2148 = vadd.f32 %v1818, %v2013
      %v2149 = vadd.f32 %v1819, %v2017
      %v2150 = vadd.f32 %v1820, %v2019
      %v2151 = vadd.f32 %v1821, %v2023
      %v2152 = vadd.f32 %v1822, %v2025
      %v2153 = vadd.f32 %v1823, %v2029
      %v2154 = vadd.f32 %v1824, %v2031
      %v2155 = vadd.f32 %v1825, %v2035
      %v2156 = vadd.f32 %v1826, %v2037
      %v2157 = vadd.f32 %v1827, %v2041
      %v2158 = vadd.f32 %v1828, %v2043
      %v2159 = vadd.f32 %v1829, %v2047
      %v2160 = vadd.f32 %v1830, %v2049
      %v2161 = vadd.f32 %v1831, %v2053
      %v2162 = vadd.f32 %v1832, %v2055
      %v2163 = vadd.f32 %v1833, %v2059
      %v2164 = vadd.f32 %v1834, %v2061
      %v2165 = vadd.f32 %v1835, %v2065
      %v2166 = vadd.f32 %v1836, %v2067
      %v2167 = vadd.f32 %v1837, %v2071
      %v2168 = vadd.f32 %v1838, %v2073
      %v2169 = vadd.f32 %v1839, %v2077
      %v2170 = vadd.f32 %v1840, %v2079
      %v2171 = vadd.f32 %v1841, %v2083
      %v2172 = vadd.f32 %v1842, %v2085
      %v2173 = vadd.f32 %v1843, %v2089
      %v2174 = vadd.f32 %v1844, %v2091
      %v2175 = vadd.f32 %v1845, %v2095
      %v2176 = vadd.f32 %v1846, %v2097
      %v2177 = vadd.f32 %v1847, %v2101
      %v2178 = vadd.f32 %v1848, %v2103
      %v2179 = vadd.f32 %v1849, %v2107
      %v2180 = vadd.f32 %v1850, %v2109
      %v2181 = vadd.f32 %v1851, %v2113
      %v2182 = vadd.f32 %v1852, %v2115
      %v2183 = vadd.f32 %v1853, %v2119
      %v2184 = vadd.f32 %v1854, %v2121
      %v2185 = vadd.f32 %v1855, %v2125
      %v2186 = vadd.f32 %v1856, %v2127
      %2187 = vst [vmem:[#allocation3] sm:$0xff] %v2129
      %2188 = vst [vmem:[#allocation3 + $0x8] sm:$0xff] %v2130
      %2189 = vst [vmem:[#allocation3 + $0x10] sm:$0xff] %v2131
      %2190 = vst [vmem:[#allocation3 + $0x18] sm:$0xff] %v2132
      %2191 = vst [vmem:[#allocation3 + $0x20] sm:$0xff] %v2133
      %2192 = vst [vmem:[#allocation3 + $0x28] sm:$0xff] %v2134
      %2193 = vst [vmem:[#allocation3 + $0x30] sm:$0xff] %v2135
      %2194 = vst [vmem:[#allocation3 + $0x38] sm:$0xff] %v2136
      %2195 = vst [vmem:[#allocation3 + $0x40] sm:$0xff] %v2137
      %2196 = vst [vmem:[#allocation3 + $0x48] sm:$0xff] %v2138
      %2197 = vst [vmem:[#allocation3 + $0x50] sm:$0xff] %v2139
      %2198 = vst [vmem:[#allocation3 + $0x58] sm:$0xff] %v2140
      %2199 = vst [vmem:[#allocation3 + $0x60] sm:$0xff] %v2141
      %2200 = vst [vmem:[#allocation3 + $0x68] sm:$0xff] %v2142
      %2201 = vst [vmem:[#allocation3 + $0x70] sm:$0xff] %v2143
      %2202 = vst [vmem:[#allocation3 + $0x78] sm:$0xff] %v2144
      %2203 = vst [vmem:[#allocation3 + $0x80] sm:$0xff] %v2145
      %2204 = vst [vmem:[#allocation3 + $0x88] sm:$0xff] %v2146
      %2205 = vst [vmem:[#allocation3 + $0x90] sm:$0xff] %v2147
      %2206 = vst [vmem:[#allocation3 + $0x98] sm:$0xff] %v2148
      %2207 = vst [vmem:[#allocation3 + $0xa0] sm:$0xff] %v2149
      %2208 = vst [vmem:[#allocation3 + $0xa8] sm:$0xff] %v2150
      %2209 = vst [vmem:[#allocation3 + $0xb0] sm:$0xff] %v2151
      %2210 = vst [vmem:[#allocation3 + $0xb8] sm:$0xff] %v2152
      %2211 = vst [vmem:[#allocation3 + $0xc0] sm:$0xff] %v2153
      %2212 = vst [vmem:[#allocation3 + $0xc8] sm:$0xff] %v2154
      %2213 = vst [vmem:[#allocation3 + $0xd0] sm:$0xff] %v2155
      %2214 = vst [vmem:[#allocation3 + $0xd8] sm:$0xff] %v2156
      %2215 = vst [vmem:[#allocation3 + $0xe0] sm:$0xff] %v2157
      %2216 = vst [vmem:[#allocation3 + $0xe8] sm:$0xff] %v2158
      %2217 = vst [vmem:[#allocation3 + $0xf0] sm:$0xff] %v2159
      %2218 = vst [vmem:[#allocation3 + $0xf8] sm:$0xff] %v2160
      %2219 = vst [vmem:[#allocation3 + $0x100] sm:$0xff] %v2161
      %2220 = vst [vmem:[#allocation3 + $0x108] sm:$0xff] %v2162
      %2221 = vst [vmem:[#allocation3 + $0x110] sm:$0xff] %v2163
      %2222 = vst [vmem:[#allocation3 + $0x118] sm:$0xff] %v2164
      %2223 = vst [vmem:[#allocation3 + $0x120] sm:$0xff] %v2165
      %2224 = vst [vmem:[#allocation3 + $0x128] sm:$0xff] %v2166
      %2225 = vst [vmem:[#allocation3 + $0x130] sm:$0xff] %v2167
      %2226 = vst [vmem:[#allocation3 + $0x138] sm:$0xff] %v2168
      %2227 = vst [vmem:[#allocation3 + $0x140] sm:$0xff] %v2169
      %2228 = vst [vmem:[#allocation3 + $0x148] sm:$0xff] %v2170
      %2229 = vst [vmem:[#allocation3 + $0x150] sm:$0xff] %v2171
      %2230 = vst [vmem:[#allocation3 + $0x158] sm:$0xff] %v2172
      %2231 = vst [vmem:[#allocation3 + $0x160] sm:$0xff] %v2173
      %2232 = vst [vmem:[#allocation3 + $0x168] sm:$0xff] %v2174
      %2233 = vst [vmem:[#allocation3 + $0x170] sm:$0xff] %v2175
      %2234 = vst [vmem:[#allocation3 + $0x178] sm:$0xff] %v2176
      %2235 = vst [vmem:[#allocation3 + $0x180] sm:$0xff] %v2177
      %2236 = vst [vmem:[#allocation3 + $0x188] sm:$0xff] %v2178
      %2237 = vst [vmem:[#allocation3 + $0x190] sm:$0xff] %v2179
      %2238 = vst [vmem:[#allocation3 + $0x198] sm:$0xff] %v2180
      %2239 = vst [vmem:[#allocation3 + $0x1a0] sm:$0xff] %v2181
      %2240 = vst [vmem:[#allocation3 + $0x1a8] sm:$0xff] %v2182
      %2241 = vst [vmem:[#allocation3 + $0x1b0] sm:$0xff] %v2183
      %2242 = vst [vmem:[#allocation3 + $0x1b8] sm:$0xff] %v2184
      %2243 = vst [vmem:[#allocation3 + $0x1c0] sm:$0x7f] %v2185
      %2244 = vst [vmem:[#allocation3 + $0x1c8] sm:$0x7f] %v2186
      %v2245 = vld [vmem:[#allocation2 + $0x3] sm:$0xff]
      %v2246 = vld [vmem:[#allocation2 + $0xb] sm:$0xff]
      %v2247 = vld [vmem:[#allocation2 + $0x13] sm:$0xff]
      %v2248 = vld [vmem:[#allocation2 + $0x1b] sm:$0xff]
      %v2249 = vld [vmem:[#allocation2 + $0x23] sm:$0xff]
      %v2250 = vld [vmem:[#allocation2 + $0x2b] sm:$0xff]
      %v2251 = vld [vmem:[#allocation2 + $0x33] sm:$0xff]
      %v2252 = vld [vmem:[#allocation2 + $0x3b] sm:$0xff]
      %v2253 = vld [vmem:[#allocation2 + $0x43] sm:$0xff]
      %v2254 = vld [vmem:[#allocation2 + $0x4b] sm:$0xff]
      %v2255 = vld [vmem:[#allocation2 + $0x53] sm:$0xff]
      %v2256 = vld [vmem:[#allocation2 + $0x5b] sm:$0xff]
      %v2257 = vld [vmem:[#allocation2 + $0x63] sm:$0xff]
      %v2258 = vld [vmem:[#allocation2 + $0x6b] sm:$0xff]
      %v2259 = vld [vmem:[#allocation2 + $0x73] sm:$0xff]
      %v2260 = vld [vmem:[#allocation2 + $0x7b] sm:$0xff]
      %v2261 = vld [vmem:[#allocation2 + $0x83] sm:$0xff]
      %v2262 = vld [vmem:[#allocation2 + $0x8b] sm:$0xff]
      %v2263 = vld [vmem:[#allocation2 + $0x93] sm:$0xff]
      %v2264 = vld [vmem:[#allocation2 + $0x9b] sm:$0xff]
      %v2265 = vld [vmem:[#allocation2 + $0xa3] sm:$0xff]
      %v2266 = vld [vmem:[#allocation2 + $0xab] sm:$0xff]
      %v2267 = vld [vmem:[#allocation2 + $0xb3] sm:$0xff]
      %v2268 = vld [vmem:[#allocation2 + $0xbb] sm:$0xff]
      %v2269 = vld [vmem:[#allocation2 + $0xc3] sm:$0xff]
      %v2270 = vld [vmem:[#allocation2 + $0xcb] sm:$0xff]
      %v2271 = vld [vmem:[#allocation2 + $0xd3] sm:$0xff]
      %v2272 = vld [vmem:[#allocation2 + $0xdb] sm:$0xff]
      %v2273 = vld [vmem:[#allocation2 + $0xe3] sm:$0x7f]
      %v2274 = vld [vmem:[#allocation3] sm:$0xff]
      %v2275 = vld [vmem:[#allocation3 + $0x8] sm:$0xff]
      %v2276 = vld [vmem:[#allocation3 + $0x10] sm:$0xff]
      %v2277 = vld [vmem:[#allocation3 + $0x18] sm:$0xff]
      %v2278 = vld [vmem:[#allocation3 + $0x20] sm:$0xff]
      %v2279 = vld [vmem:[#allocation3 + $0x28] sm:$0xff]
      %v2280 = vld [vmem:[#allocation3 + $0x30] sm:$0xff]
      %v2281 = vld [vmem:[#allocation3 + $0x38] sm:$0xff]
      %v2282 = vld [vmem:[#allocation3 + $0x40] sm:$0xff]
      %v2283 = vld [vmem:[#allocation3 + $0x48] sm:$0xff]
      %v2284 = vld [vmem:[#allocation3 + $0x50] sm:$0xff]
      %v2285 = vld [vmem:[#allocation3 + $0x58] sm:$0xff]
      %v2286 = vld [vmem:[#allocation3 + $0x60] sm:$0xff]
      %v2287 = vld [vmem:[#allocation3 + $0x68] sm:$0xff]
      %v2288 = vld [vmem:[#allocation3 + $0x70] sm:$0xff]
      %v2289 = vld [vmem:[#allocation3 + $0x78] sm:$0xff]
      %v2290 = vld [vmem:[#allocation3 + $0x80] sm:$0xff]
      %v2291 = vld [vmem:[#allocation3 + $0x88] sm:$0xff]
      %v2292 = vld [vmem:[#allocation3 + $0x90] sm:$0xff]
      %v2293 = vld [vmem:[#allocation3 + $0x98] sm:$0xff]
      %v2294 = vld [vmem:[#allocation3 + $0xa0] sm:$0xff]
      %v2295 = vld [vmem:[#allocation3 + $0xa8] sm:$0xff]
      %v2296 = vld [vmem:[#allocation3 + $0xb0] sm:$0xff]
      %v2297 = vld [vmem:[#allocation3 + $0xb8] sm:$0xff]
      %v2298 = vld [vmem:[#allocation3 + $0xc0] sm:$0xff]
      %v2299 = vld [vmem:[#allocation3 + $0xc8] sm:$0xff]
      %v2300 = vld [vmem:[#allocation3 + $0xd0] sm:$0xff]
      %v2301 = vld [vmem:[#allocation3 + $0xd8] sm:$0xff]
      %v2302 = vld [vmem:[#allocation3 + $0xe0] sm:$0xff]
      %v2303 = vld [vmem:[#allocation3 + $0xe8] sm:$0xff]
      %v2304 = vld [vmem:[#allocation3 + $0xf0] sm:$0xff]
      %v2305 = vld [vmem:[#allocation3 + $0xf8] sm:$0xff]
      %v2306 = vld [vmem:[#allocation3 + $0x100] sm:$0xff]
      %v2307 = vld [vmem:[#allocation3 + $0x108] sm:$0xff]
      %v2308 = vld [vmem:[#allocation3 + $0x110] sm:$0xff]
      %v2309 = vld [vmem:[#allocation3 + $0x118] sm:$0xff]
      %v2310 = vld [vmem:[#allocation3 + $0x120] sm:$0xff]
      %v2311 = vld [vmem:[#allocation3 + $0x128] sm:$0xff]
      %v2312 = vld [vmem:[#allocation3 + $0x130] sm:$0xff]
      %v2313 = vld [vmem:[#allocation3 + $0x138] sm:$0xff]
      %v2314 = vld [vmem:[#allocation3 + $0x140] sm:$0xff]
      %v2315 = vld [vmem:[#allocation3 + $0x148] sm:$0xff]
      %v2316 = vld [vmem:[#allocation3 + $0x150] sm:$0xff]
      %v2317 = vld [vmem:[#allocation3 + $0x158] sm:$0xff]
      %v2318 = vld [vmem:[#allocation3 + $0x160] sm:$0xff]
      %v2319 = vld [vmem:[#allocation3 + $0x168] sm:$0xff]
      %v2320 = vld [vmem:[#allocation3 + $0x170] sm:$0xff]
      %v2321 = vld [vmem:[#allocation3 + $0x178] sm:$0xff]
      %v2322 = vld [vmem:[#allocation3 + $0x180] sm:$0xff]
      %v2323 = vld [vmem:[#allocation3 + $0x188] sm:$0xff]
      %v2324 = vld [vmem:[#allocation3 + $0x190] sm:$0xff]
      %v2325 = vld [vmem:[#allocation3 + $0x198] sm:$0xff]
      %v2326 = vld [vmem:[#allocation3 + $0x1a0] sm:$0xff]
      %v2327 = vld [vmem:[#allocation3 + $0x1a8] sm:$0xff]
      %v2328 = vld [vmem:[#allocation3 + $0x1b0] sm:$0xff]
      %v2329 = vld [vmem:[#allocation3 + $0x1b8] sm:$0xff]
      %v2330 = vld [vmem:[#allocation3 + $0x1c0] sm:$0x7f]
      %v2331 = vld [vmem:[#allocation3 + $0x1c8] sm:$0x7f]
      %s2332 = scalar_lea.vmem %s2, 768
      %v2333 = vld [vmem:[%s2332] sm:$0xff]
      %v2334 = vld [vmem:[%s2332 + $0x8] sm:$0xff]
      %v2335 = vld [vmem:[%s2332 + $0x10] sm:$0xff]
      %v2336 = vld [vmem:[%s2332 + $0x18] sm:$0xff]
      %v2337 = vld [vmem:[%s2332 + $0x20] sm:$0xff]
      %v2338 = vld [vmem:[%s2332 + $0x28] sm:$0xff]
      %v2339 = vld [vmem:[%s2332 + $0x30] sm:$0xff]
      %v2340 = vld [vmem:[%s2332 + $0x38] sm:$0xff]
      %v2341 = vld [vmem:[%s2332 + $0x40] sm:$0xff]
      %v2342 = vld [vmem:[%s2332 + $0x48] sm:$0xff]
      %v2343 = vld [vmem:[%s2332 + $0x50] sm:$0xff]
      %v2344 = vld [vmem:[%s2332 + $0x58] sm:$0xff]
      %v2345 = vld [vmem:[%s2332 + $0x60] sm:$0xff]
      %v2346 = vld [vmem:[%s2332 + $0x68] sm:$0xff]
      %v2347 = vld [vmem:[%s2332 + $0x70] sm:$0xff]
      %v2348 = vld [vmem:[%s2332 + $0x78] sm:$0xff]
      %v2349 = vld [vmem:[%s2332 + $0x80] sm:$0xff]
      %v2350 = vld [vmem:[%s2332 + $0x88] sm:$0xff]
      %v2351 = vld [vmem:[%s2332 + $0x90] sm:$0xff]
      %v2352 = vld [vmem:[%s2332 + $0x98] sm:$0xff]
      %v2353 = vld [vmem:[%s2332 + $0xa0] sm:$0xff]
      %v2354 = vld [vmem:[%s2332 + $0xa8] sm:$0xff]
      %v2355 = vld [vmem:[%s2332 + $0xb0] sm:$0xff]
      %v2356 = vld [vmem:[%s2332 + $0xb8] sm:$0xff]
      %v2357 = vld [vmem:[%s2332 + $0xc0] sm:$0xff]
      %v2358 = vld [vmem:[%s2332 + $0xc8] sm:$0xff]
      %v2359 = vld [vmem:[%s2332 + $0xd0] sm:$0xff]
      %v2360 = vld [vmem:[%s2332 + $0xd8] sm:$0xff]
      %v2361 = vld [vmem:[%s2332 + $0xe0] sm:$0xff]
      %v2362 = vld [vmem:[%s2332 + $0xe8] sm:$0xff]
      %v2363 = vld [vmem:[%s2332 + $0xf0] sm:$0xff]
      %v2364 = vld [vmem:[%s2332 + $0xf8] sm:$0xff]
      %2365 = vmatprep.subr.mxu0 %v2334
      %2366 = vmatpush1.msra.mxu0 %v2333
      %2367 = vmatprep.subr.mxu0 %v2336
      %2368 = vmatpush1.msra.mxu0 %v2335
      %2369 = vmatprep.subr.mxu0 %v2338
      %2370 = vmatpush1.msra.mxu0 %v2337
      %2371 = vmatprep.subr.mxu0 %v2340
      %2372 = vmatpush1.msra.mxu0 %v2339
      %2373 = vmatprep.subr.mxu0 %v2342
      %2374 = vmatpush1.msra.mxu0 %v2341
      %2375 = vmatprep.subr.mxu0 %v2344
      %2376 = vmatpush1.msra.mxu0 %v2343
      %2377 = vmatprep.subr.mxu0 %v2346
      %2378 = vmatpush1.msra.mxu0 %v2345
      %2379 = vmatprep.subr.mxu0 %v2348
      %2380 = vmatpush1.msra.mxu0 %v2347
      %2381 = vmatprep.subr.mxu0 %v2350
      %2382 = vmatpush1.msra.mxu0 %v2349
      %2383 = vmatprep.subr.mxu0 %v2352
      %2384 = vmatpush1.msra.mxu0 %v2351
      %2385 = vmatprep.subr.mxu0 %v2354
      %2386 = vmatpush1.msra.mxu0 %v2353
      %2387 = vmatprep.subr.mxu0 %v2356
      %2388 = vmatpush1.msra.mxu0 %v2355
      %2389 = vmatprep.subr.mxu0 %v2358
      %2390 = vmatpush1.msra.mxu0 %v2357
      %2391 = vmatprep.subr.mxu0 %v2360
      %2392 = vmatpush1.msra.mxu0 %v2359
      %2393 = vmatprep.subr.mxu0 %v2362
      %2394 = vmatpush1.msra.mxu0 %v2361
      %2395 = vmatprep.subr.mxu0 %v2364
      %2396 = vmatpush1.msra.mxu0 %v2363
      %2397 = vmatprep.subr.mxu0 0.0
      %2398 = vmatpush1.msra.mxu0 0.0
      %2399 = vmatprep.subr.mxu0 0.0
      %2400 = vmatpush1.msra.mxu0 0.0
      %2401 = vmatprep.subr.mxu0 0.0
      %2402 = vmatpush1.msra.mxu0 0.0
      %2403 = vmatprep.subr.mxu0 0.0
      %2404 = vmatpush1.msra.mxu0 0.0
      %2405 = vmatprep.subr.mxu0 0.0
      %2406 = vmatpush1.msra.mxu0 0.0
      %2407 = vmatprep.subr.mxu0 0.0
      %2408 = vmatpush1.msra.mxu0 0.0
      %2409 = vmatprep.subr.mxu0 0.0
      %2410 = vmatpush1.msra.mxu0 0.0
      %2411 = vmatprep.subr.mxu0 0.0
      %2412 = vmatpush1.msra.mxu0 0.0
      %2413 = vmatprep.subr.mxu0 0.0
      %2414 = vmatpush1.msra.mxu0 0.0
      %2415 = vmatprep.subr.mxu0 0.0
      %2416 = vmatpush1.msra.mxu0 0.0
      %2417 = vmatprep.subr.mxu0 0.0
      %2418 = vmatpush1.msra.mxu0 0.0
      %2419 = vmatprep.subr.mxu0 0.0
      %2420 = vmatpush1.msra.mxu0 0.0
      %2421 = vmatprep.subr.mxu0 0.0
      %2422 = vmatpush1.msra.mxu0 0.0
      %2423 = vmatprep.subr.mxu0 0.0
      %2424 = vmatpush1.msra.mxu0 0.0
      %2425 = vmatprep.subr.mxu0 0.0
      %2426 = vmatpush1.msra.mxu0 0.0
      %2427 = vmatprep.subr.mxu0 0.0
      %2428 = vmatpush1.msra.mxu0 0.0
      %2429 = vmatprep.mubr.f32.mxu0 0.0
      %2430 = vmatmul.mubr.f32.gmra.mrb[0].mxu0 %v2245
      %v2431 = vpop.f32.mrb[0].mxu0
      %v2432 = vadd.f32 0.0, %v2431
      %v2433 = vpop.f32.mrb[0].mxu0
      %v2434 = vadd.f32 0.0, %v2433
      %2435 = vmatprep.mubr.f32.mxu0 0.0
      %2436 = vmatmul.mubr.f32.gmra.mrb[0].mxu0 %v2246
      %v2437 = vpop.f32.mrb[0].mxu0
      %v2438 = vadd.f32 0.0, %v2437
      %v2439 = vpop.f32.mrb[0].mxu0
      %v2440 = vadd.f32 0.0, %v2439
      %2441 = vmatprep.mubr.f32.mxu0 0.0
      %2442 = vmatmul.mubr.f32.gmra.mrb[0].mxu0 %v2247
      %v2443 = vpop.f32.mrb[0].mxu0
      %v2444 = vadd.f32 0.0, %v2443
      %v2445 = vpop.f32.mrb[0].mxu0
      %v2446 = vadd.f32 0.0, %v2445
      %2447 = vmatprep.mubr.f32.mxu0 0.0
      %2448 = vmatmul.mubr.f32.gmra.mrb[0].mxu0 %v2248
      %v2449 = vpop.f32.mrb[0].mxu0
      %v2450 = vadd.f32 0.0, %v2449
      %v2451 = vpop.f32.mrb[0].mxu0
      %v2452 = vadd.f32 0.0, %v2451
      %2453 = vmatprep.mubr.f32.mxu0 0.0
      %2454 = vmatmul.mubr.f32.gmra.mrb[0].mxu0 %v2249
      %v2455 = vpop.f32.mrb[0].mxu0
      %v2456 = vadd.f32 0.0, %v2455
      %v2457 = vpop.f32.mrb[0].mxu0
      %v2458 = vadd.f32 0.0, %v2457
      %2459 = vmatprep.mubr.f32.mxu0 0.0
      %2460 = vmatmul.mubr.f32.gmra.mrb[0].mxu0 %v2250
      %v2461 = vpop.f32.mrb[0].mxu0
      %v2462 = vadd.f32 0.0, %v2461
      %v2463 = vpop.f32.mrb[0].mxu0
      %v2464 = vadd.f32 0.0, %v2463
      %2465 = vmatprep.mubr.f32.mxu0 0.0
      %2466 = vmatmul.mubr.f32.gmra.mrb[0].mxu0 %v2251
      %v2467 = vpop.f32.mrb[0].mxu0
      %v2468 = vadd.f32 0.0, %v2467
      %v2469 = vpop.f32.mrb[0].mxu0
      %v2470 = vadd.f32 0.0, %v2469
      %2471 = vmatprep.mubr.f32.mxu0 0.0
      %2472 = vmatmul.mubr.f32.gmra.mrb[0].mxu0 %v2252
      %v2473 = vpop.f32.mrb[0].mxu0
      %v2474 = vadd.f32 0.0, %v2473
      %v2475 = vpop.f32.mrb[0].mxu0
      %v2476 = vadd.f32 0.0, %v2475
      %2477 = vmatprep.mubr.f32.mxu0 0.0
      %2478 = vmatmul.mubr.f32.gmra.mrb[0].mxu0 %v2253
      %v2479 = vpop.f32.mrb[0].mxu0
      %v2480 = vadd.f32 0.0, %v2479
      %v2481 = vpop.f32.mrb[0].mxu0
      %v2482 = vadd.f32 0.0, %v2481
      %2483 = vmatprep.mubr.f32.mxu0 0.0
      %2484 = vmatmul.mubr.f32.gmra.mrb[0].mxu0 %v2254
      %v2485 = vpop.f32.mrb[0].mxu0
      %v2486 = vadd.f32 0.0, %v2485
      %v2487 = vpop.f32.mrb[0].mxu0
      %v2488 = vadd.f32 0.0, %v2487
      %2489 = vmatprep.mubr.f32.mxu0 0.0
      %2490 = vmatmul.mubr.f32.gmra.mrb[0].mxu0 %v2255
      %v2491 = vpop.f32.mrb[0].mxu0
      %v2492 = vadd.f32 0.0, %v2491
      %v2493 = vpop.f32.mrb[0].mxu0
      %v2494 = vadd.f32 0.0, %v2493
      %2495 = vmatprep.mubr.f32.mxu0 0.0
      %2496 = vmatmul.mubr.f32.gmra.mrb[0].mxu0 %v2256
      %v2497 = vpop.f32.mrb[0].mxu0
      %v2498 = vadd.f32 0.0, %v2497
      %v2499 = vpop.f32.mrb[0].mxu0
      %v2500 = vadd.f32 0.0, %v2499
      %2501 = vmatprep.mubr.f32.mxu0 0.0
      %2502 = vmatmul.mubr.f32.gmra.mrb[0].mxu0 %v2257
      %v2503 = vpop.f32.mrb[0].mxu0
      %v2504 = vadd.f32 0.0, %v2503
      %v2505 = vpop.f32.mrb[0].mxu0
      %v2506 = vadd.f32 0.0, %v2505
      %2507 = vmatprep.mubr.f32.mxu0 0.0
      %2508 = vmatmul.mubr.f32.gmra.mrb[0].mxu0 %v2258
      %v2509 = vpop.f32.mrb[0].mxu0
      %v2510 = vadd.f32 0.0, %v2509
      %v2511 = vpop.f32.mrb[0].mxu0
      %v2512 = vadd.f32 0.0, %v2511
      %2513 = vmatprep.mubr.f32.mxu0 0.0
      %2514 = vmatmul.mubr.f32.gmra.mrb[0].mxu0 %v2259
      %v2515 = vpop.f32.mrb[0].mxu0
      %v2516 = vadd.f32 0.0, %v2515
      %v2517 = vpop.f32.mrb[0].mxu0
      %v2518 = vadd.f32 0.0, %v2517
      %2519 = vmatprep.mubr.f32.mxu0 0.0
      %2520 = vmatmul.mubr.f32.gmra.mrb[0].mxu0 %v2260
      %v2521 = vpop.f32.mrb[0].mxu0
      %v2522 = vadd.f32 0.0, %v2521
      %v2523 = vpop.f32.mrb[0].mxu0
      %v2524 = vadd.f32 0.0, %v2523
      %2525 = vmatprep.mubr.f32.mxu0 0.0
      %2526 = vmatmul.mubr.f32.gmra.mrb[0].mxu0 %v2261
      %v2527 = vpop.f32.mrb[0].mxu0
      %v2528 = vadd.f32 0.0, %v2527
      %v2529 = vpop.f32.mrb[0].mxu0
      %v2530 = vadd.f32 0.0, %v2529
      %2531 = vmatprep.mubr.f32.mxu0 0.0
      %2532 = vmatmul.mubr.f32.gmra.mrb[0].mxu0 %v2262
      %v2533 = vpop.f32.mrb[0].mxu0
      %v2534 = vadd.f32 0.0, %v2533
      %v2535 = vpop.f32.mrb[0].mxu0
      %v2536 = vadd.f32 0.0, %v2535
      %2537 = vmatprep.mubr.f32.mxu0 0.0
      %2538 = vmatmul.mubr.f32.gmra.mrb[0].mxu0 %v2263
      %v2539 = vpop.f32.mrb[0].mxu0
      %v2540 = vadd.f32 0.0, %v2539
      %v2541 = vpop.f32.mrb[0].mxu0
      %v2542 = vadd.f32 0.0, %v2541
      %2543 = vmatprep.mubr.f32.mxu0 0.0
      %2544 = vmatmul.mubr.f32.gmra.mrb[0].mxu0 %v2264
      %v2545 = vpop.f32.mrb[0].mxu0
      %v2546 = vadd.f32 0.0, %v2545
      %v2547 = vpop.f32.mrb[0].mxu0
      %v2548 = vadd.f32 0.0, %v2547
      %2549 = vmatprep.mubr.f32.mxu0 0.0
      %2550 = vmatmul.mubr.f32.gmra.mrb[0].mxu0 %v2265
      %v2551 = vpop.f32.mrb[0].mxu0
      %v2552 = vadd.f32 0.0, %v2551
      %v2553 = vpop.f32.mrb[0].mxu0
      %v2554 = vadd.f32 0.0, %v2553
      %2555 = vmatprep.mubr.f32.mxu0 0.0
      %2556 = vmatmul.mubr.f32.gmra.mrb[0].mxu0 %v2266
      %v2557 = vpop.f32.mrb[0].mxu0
      %v2558 = vadd.f32 0.0, %v2557
      %v2559 = vpop.f32.mrb[0].mxu0
      %v2560 = vadd.f32 0.0, %v2559
      %2561 = vmatprep.mubr.f32.mxu0 0.0
      %2562 = vmatmul.mubr.f32.gmra.mrb[0].mxu0 %v2267
      %v2563 = vpop.f32.mrb[0].mxu0
      %v2564 = vadd.f32 0.0, %v2563
      %v2565 = vpop.f32.mrb[0].mxu0
      %v2566 = vadd.f32 0.0, %v2565
      %2567 = vmatprep.mubr.f32.mxu0 0.0
      %2568 = vmatmul.mubr.f32.gmra.mrb[0].mxu0 %v2268
      %v2569 = vpop.f32.mrb[0].mxu0
      %v2570 = vadd.f32 0.0, %v2569
      %v2571 = vpop.f32.mrb[0].mxu0
      %v2572 = vadd.f32 0.0, %v2571
      %2573 = vmatprep.mubr.f32.mxu0 0.0
      %2574 = vmatmul.mubr.f32.gmra.mrb[0].mxu0 %v2269
      %v2575 = vpop.f32.mrb[0].mxu0
      %v2576 = vadd.f32 0.0, %v2575
      %v2577 = vpop.f32.mrb[0].mxu0
      %v2578 = vadd.f32 0.0, %v2577
      %2579 = vmatprep.mubr.f32.mxu0 0.0
      %2580 = vmatmul.mubr.f32.gmra.mrb[0].mxu0 %v2270
      %v2581 = vpop.f32.mrb[0].mxu0
      %v2582 = vadd.f32 0.0, %v2581
      %v2583 = vpop.f32.mrb[0].mxu0
      %v2584 = vadd.f32 0.0, %v2583
      %2585 = vmatprep.mubr.f32.mxu0 0.0
      %2586 = vmatmul.mubr.f32.gmra.mrb[0].mxu0 %v2271
      %v2587 = vpop.f32.mrb[0].mxu0
      %v2588 = vadd.f32 0.0, %v2587
      %v2589 = vpop.f32.mrb[0].mxu0
      %v2590 = vadd.f32 0.0, %v2589
      %2591 = vmatprep.mubr.f32.mxu0 0.0
      %2592 = vmatmul.mubr.f32.gmra.mrb[0].mxu0 %v2272
      %v2593 = vpop.f32.mrb[0].mxu0
      %v2594 = vadd.f32 0.0, %v2593
      %v2595 = vpop.f32.mrb[0].mxu0
      %v2596 = vadd.f32 0.0, %v2595
      %2597 = vmatprep.mubr.f32.mxu0 0.0
      %2598 = vmatmul.mubr.f32.gmra.mrb[0].mxu0 %v2273
      %v2599 = vpop.f32.mrb[0].mxu0
      %v2600 = vadd.f32 0.0, %v2599
      %v2601 = vpop.f32.mrb[0].mxu0
      %v2602 = vadd.f32 0.0, %v2601
      %2603 = vdwg.mxu0
      %v2604 = vadd.f32 %v2274, %v2432
      %v2605 = vadd.f32 %v2275, %v2434
      %v2606 = vadd.f32 %v2276, %v2438
      %v2607 = vadd.f32 %v2277, %v2440
      %v2608 = vadd.f32 %v2278, %v2444
      %v2609 = vadd.f32 %v2279, %v2446
      %v2610 = vadd.f32 %v2280, %v2450
      %v2611 = vadd.f32 %v2281, %v2452
      %v2612 = vadd.f32 %v2282, %v2456
      %v2613 = vadd.f32 %v2283, %v2458
      %v2614 = vadd.f32 %v2284, %v2462
      %v2615 = vadd.f32 %v2285, %v2464
      %v2616 = vadd.f32 %v2286, %v2468
      %v2617 = vadd.f32 %v2287, %v2470
      %v2618 = vadd.f32 %v2288, %v2474
      %v2619 = vadd.f32 %v2289, %v2476
      %v2620 = vadd.f32 %v2290, %v2480
      %v2621 = vadd.f32 %v2291, %v2482
      %v2622 = vadd.f32 %v2292, %v2486
      %v2623 = vadd.f32 %v2293, %v2488
      %v2624 = vadd.f32 %v2294, %v2492
      %v2625 = vadd.f32 %v2295, %v2494
      %v2626 = vadd.f32 %v2296, %v2498
      %v2627 = vadd.f32 %v2297, %v2500
      %v2628 = vadd.f32 %v2298, %v2504
      %v2629 = vadd.f32 %v2299, %v2506
      %v2630 = vadd.f32 %v2300, %v2510
      %v2631 = vadd.f32 %v2301, %v2512
      %v2632 = vadd.f32 %v2302, %v2516
      %v2633 = vadd.f32 %v2303, %v2518
      %v2634 = vadd.f32 %v2304, %v2522
      %v2635 = vadd.f32 %v2305, %v2524
      %v2636 = vadd.f32 %v2306, %v2528
      %v2637 = vadd.f32 %v2307, %v2530
      %v2638 = vadd.f32 %v2308, %v2534
      %v2639 = vadd.f32 %v2309, %v2536
      %v2640 = vadd.f32 %v2310, %v2540
      %v2641 = vadd.f32 %v2311, %v2542
      %v2642 = vadd.f32 %v2312, %v2546
      %v2643 = vadd.f32 %v2313, %v2548
      %v2644 = vadd.f32 %v2314, %v2552
      %v2645 = vadd.f32 %v2315, %v2554
      %v2646 = vadd.f32 %v2316, %v2558
      %v2647 = vadd.f32 %v2317, %v2560
      %v2648 = vadd.f32 %v2318, %v2564
      %v2649 = vadd.f32 %v2319, %v2566
      %v2650 = vadd.f32 %v2320, %v2570
      %v2651 = vadd.f32 %v2321, %v2572
      %v2652 = vadd.f32 %v2322, %v2576
      %v2653 = vadd.f32 %v2323, %v2578
      %v2654 = vadd.f32 %v2324, %v2582
      %v2655 = vadd.f32 %v2325, %v2584
      %v2656 = vadd.f32 %v2326, %v2588
      %v2657 = vadd.f32 %v2327, %v2590
      %v2658 = vadd.f32 %v2328, %v2594
      %v2659 = vadd.f32 %v2329, %v2596
      %v2660 = vadd.f32 %v2330, %v2600
      %v2661 = vadd.f32 %v2331, %v2602
      %2662 = vst [vmem:[#allocation3] sm:$0xff] %v2604
      %2663 = vst [vmem:[#allocation3 + $0x8] sm:$0xff] %v2605
      %2664 = vst [vmem:[#allocation3 + $0x10] sm:$0xff] %v2606
      %2665 = vst [vmem:[#allocation3 + $0x18] sm:$0xff] %v2607
      %2666 = vst [vmem:[#allocation3 + $0x20] sm:$0xff] %v2608
      %2667 = vst [vmem:[#allocation3 + $0x28] sm:$0xff] %v2609
      %2668 = vst [vmem:[#allocation3 + $0x30] sm:$0xff] %v2610
      %2669 = vst [vmem:[#allocation3 + $0x38] sm:$0xff] %v2611
      %2670 = vst [vmem:[#allocation3 + $0x40] sm:$0xff] %v2612
      %2671 = vst [vmem:[#allocation3 + $0x48] sm:$0xff] %v2613
      %2672 = vst [vmem:[#allocation3 + $0x50] sm:$0xff] %v2614
      %2673 = vst [vmem:[#allocation3 + $0x58] sm:$0xff] %v2615
      %2674 = vst [vmem:[#allocation3 + $0x60] sm:$0xff] %v2616
      %2675 = vst [vmem:[#allocation3 + $0x68] sm:$0xff] %v2617
      %2676 = vst [vmem:[#allocation3 + $0x70] sm:$0xff] %v2618
      %2677 = vst [vmem:[#allocation3 + $0x78] sm:$0xff] %v2619
      %2678 = vst [vmem:[#allocation3 + $0x80] sm:$0xff] %v2620
      %2679 = vst [vmem:[#allocation3 + $0x88] sm:$0xff] %v2621
      %2680 = vst [vmem:[#allocation3 + $0x90] sm:$0xff] %v2622
      %2681 = vst [vmem:[#allocation3 + $0x98] sm:$0xff] %v2623
      %2682 = vst [vmem:[#allocation3 + $0xa0] sm:$0xff] %v2624
      %2683 = vst [vmem:[#allocation3 + $0xa8] sm:$0xff] %v2625
      %2684 = vst [vmem:[#allocation3 + $0xb0] sm:$0xff] %v2626
      %2685 = vst [vmem:[#allocation3 + $0xb8] sm:$0xff] %v2627
      %2686 = vst [vmem:[#allocation3 + $0xc0] sm:$0xff] %v2628
      %2687 = vst [vmem:[#allocation3 + $0xc8] sm:$0xff] %v2629
      %2688 = vst [vmem:[#allocation3 + $0xd0] sm:$0xff] %v2630
      %2689 = vst [vmem:[#allocation3 + $0xd8] sm:$0xff] %v2631
      %2690 = vst [vmem:[#allocation3 + $0xe0] sm:$0xff] %v2632
      %2691 = vst [vmem:[#allocation3 + $0xe8] sm:$0xff] %v2633
      %2692 = vst [vmem:[#allocation3 + $0xf0] sm:$0xff] %v2634
      %2693 = vst [vmem:[#allocation3 + $0xf8] sm:$0xff] %v2635
      %2694 = vst [vmem:[#allocation3 + $0x100] sm:$0xff] %v2636
      %2695 = vst [vmem:[#allocation3 + $0x108] sm:$0xff] %v2637
      %2696 = vst [vmem:[#allocation3 + $0x110] sm:$0xff] %v2638
      %2697 = vst [vmem:[#allocation3 + $0x118] sm:$0xff] %v2639
      %2698 = vst [vmem:[#allocation3 + $0x120] sm:$0xff] %v2640
      %2699 = vst [vmem:[#allocation3 + $0x128] sm:$0xff] %v2641
      %2700 = vst [vmem:[#allocation3 + $0x130] sm:$0xff] %v2642
      %2701 = vst [vmem:[#allocation3 + $0x138] sm:$0xff] %v2643
      %2702 = vst [vmem:[#allocation3 + $0x140] sm:$0xff] %v2644
      %2703 = vst [vmem:[#allocation3 + $0x148] sm:$0xff] %v2645
      %2704 = vst [vmem:[#allocation3 + $0x150] sm:$0xff] %v2646
      %2705 = vst [vmem:[#allocation3 + $0x158] sm:$0xff] %v2647
      %2706 = vst [vmem:[#allocation3 + $0x160] sm:$0xff] %v2648
      %2707 = vst [vmem:[#allocation3 + $0x168] sm:$0xff] %v2649
      %2708 = vst [vmem:[#allocation3 + $0x170] sm:$0xff] %v2650
      %2709 = vst [vmem:[#allocation3 + $0x178] sm:$0xff] %v2651
      %2710 = vst [vmem:[#allocation3 + $0x180] sm:$0xff] %v2652
      %2711 = vst [vmem:[#allocation3 + $0x188] sm:$0xff] %v2653
      %2712 = vst [vmem:[#allocation3 + $0x190] sm:$0xff] %v2654
      %2713 = vst [vmem:[#allocation3 + $0x198] sm:$0xff] %v2655
      %2714 = vst [vmem:[#allocation3 + $0x1a0] sm:$0xff] %v2656
      %2715 = vst [vmem:[#allocation3 + $0x1a8] sm:$0xff] %v2657
      %2716 = vst [vmem:[#allocation3 + $0x1b0] sm:$0xff] %v2658
      %2717 = vst [vmem:[#allocation3 + $0x1b8] sm:$0xff] %v2659
      %2718 = vst [vmem:[#allocation3 + $0x1c0] sm:$0x7f] %v2660
      %2719 = vst [vmem:[#allocation3 + $0x1c8] sm:$0x7f] %v2661
      %v2720 = vld [vmem:[#allocation2 + $0x15] sm:$0xff]
      %v2721 = vld [vmem:[#allocation2 + $0x1d] sm:$0xff]
      %v2722 = vld [vmem:[#allocation2 + $0x25] sm:$0xff]
      %v2723 = vld [vmem:[#allocation2 + $0x2d] sm:$0xff]
      %v2724 = vld [vmem:[#allocation2 + $0x35] sm:$0xff]
      %v2725 = vld [vmem:[#allocation2 + $0x3d] sm:$0xff]
      %v2726 = vld [vmem:[#allocation2 + $0x45] sm:$0xff]
      %v2727 = vld [vmem:[#allocation2 + $0x4d] sm:$0xff]
      %v2728 = vld [vmem:[#allocation2 + $0x55] sm:$0xff]
      %v2729 = vld [vmem:[#allocation2 + $0x5d] sm:$0xff]
      %v2730 = vld [vmem:[#allocation2 + $0x65] sm:$0xff]
      %v2731 = vld [vmem:[#allocation2 + $0x6d] sm:$0xff]
      %v2732 = vld [vmem:[#allocation2 + $0x75] sm:$0xff]
      %v2733 = vld [vmem:[#allocation2 + $0x7d] sm:$0xff]
      %v2734 = vld [vmem:[#allocation2 + $0x85] sm:$0xff]
      %v2735 = vld [vmem:[#allocation2 + $0x8d] sm:$0xff]
      %v2736 = vld [vmem:[#allocation2 + $0x95] sm:$0xff]
      %v2737 = vld [vmem:[#allocation2 + $0x9d] sm:$0xff]
      %v2738 = vld [vmem:[#allocation2 + $0xa5] sm:$0xff]
      %v2739 = vld [vmem:[#allocation2 + $0xad] sm:$0xff]
      %v2740 = vld [vmem:[#allocation2 + $0xb5] sm:$0xff]
      %v2741 = vld [vmem:[#allocation2 + $0xbd] sm:$0xff]
      %v2742 = vld [vmem:[#allocation2 + $0xc5] sm:$0xff]
      %v2743 = vld [vmem:[#allocation2 + $0xcd] sm:$0xff]
      %v2744 = vld [vmem:[#allocation2 + $0xd5] sm:$0xff]
      %v2745 = vld [vmem:[#allocation2 + $0xdd] sm:$0xff]
      %v2746 = vld [vmem:[#allocation2 + $0xe5] sm:$0xff]
      %v2747 = vld [vmem:[#allocation2 + $0xed] sm:$0xff]
      %v2748 = vld [vmem:[#allocation2 + $0xf5] sm:$0x7f]
      %v2749 = vld [vmem:[#allocation3] sm:$0xff]
      %v2750 = vld [vmem:[#allocation3 + $0x8] sm:$0xff]
      %v2751 = vld [vmem:[#allocation3 + $0x10] sm:$0xff]
      %v2752 = vld [vmem:[#allocation3 + $0x18] sm:$0xff]
      %v2753 = vld [vmem:[#allocation3 + $0x20] sm:$0xff]
      %v2754 = vld [vmem:[#allocation3 + $0x28] sm:$0xff]
      %v2755 = vld [vmem:[#allocation3 + $0x30] sm:$0xff]
      %v2756 = vld [vmem:[#allocation3 + $0x38] sm:$0xff]
      %v2757 = vld [vmem:[#allocation3 + $0x40] sm:$0xff]
      %v2758 = vld [vmem:[#allocation3 + $0x48] sm:$0xff]
      %v2759 = vld [vmem:[#allocation3 + $0x50] sm:$0xff]
      %v2760 = vld [vmem:[#allocation3 + $0x58] sm:$0xff]
      %v2761 = vld [vmem:[#allocation3 + $0x60] sm:$0xff]
      %v2762 = vld [vmem:[#allocation3 + $0x68] sm:$0xff]
      %v2763 = vld [vmem:[#allocation3 + $0x70] sm:$0xff]
      %v2764 = vld [vmem:[#allocation3 + $0x78] sm:$0xff]
      %v2765 = vld [vmem:[#allocation3 + $0x80] sm:$0xff]
      %v2766 = vld [vmem:[#allocation3 + $0x88] sm:$0xff]
      %v2767 = vld [vmem:[#allocation3 + $0x90] sm:$0xff]
      %v2768 = vld [vmem:[#allocation3 + $0x98] sm:$0xff]
      %v2769 = vld [vmem:[#allocation3 + $0xa0] sm:$0xff]
      %v2770 = vld [vmem:[#allocation3 + $0xa8] sm:$0xff]
      %v2771 = vld [vmem:[#allocation3 + $0xb0] sm:$0xff]
      %v2772 = vld [vmem:[#allocation3 + $0xb8] sm:$0xff]
      %v2773 = vld [vmem:[#allocation3 + $0xc0] sm:$0xff]
      %v2774 = vld [vmem:[#allocation3 + $0xc8] sm:$0xff]
      %v2775 = vld [vmem:[#allocation3 + $0xd0] sm:$0xff]
      %v2776 = vld [vmem:[#allocation3 + $0xd8] sm:$0xff]
      %v2777 = vld [vmem:[#allocation3 + $0xe0] sm:$0xff]
      %v2778 = vld [vmem:[#allocation3 + $0xe8] sm:$0xff]
      %v2779 = vld [vmem:[#allocation3 + $0xf0] sm:$0xff]
      %v2780 = vld [vmem:[#allocation3 + $0xf8] sm:$0xff]
      %v2781 = vld [vmem:[#allocation3 + $0x100] sm:$0xff]
      %v2782 = vld [vmem:[#allocation3 + $0x108] sm:$0xff]
      %v2783 = vld [vmem:[#allocation3 + $0x110] sm:$0xff]
      %v2784 = vld [vmem:[#allocation3 + $0x118] sm:$0xff]
      %v2785 = vld [vmem:[#allocation3 + $0x120] sm:$0xff]
      %v2786 = vld [vmem:[#allocation3 + $0x128] sm:$0xff]
      %v2787 = vld [vmem:[#allocation3 + $0x130] sm:$0xff]
      %v2788 = vld [vmem:[#allocation3 + $0x138] sm:$0xff]
      %v2789 = vld [vmem:[#allocation3 + $0x140] sm:$0xff]
      %v2790 = vld [vmem:[#allocation3 + $0x148] sm:$0xff]
      %v2791 = vld [vmem:[#allocation3 + $0x150] sm:$0xff]
      %v2792 = vld [vmem:[#allocation3 + $0x158] sm:$0xff]
      %v2793 = vld [vmem:[#allocation3 + $0x160] sm:$0xff]
      %v2794 = vld [vmem:[#allocation3 + $0x168] sm:$0xff]
      %v2795 = vld [vmem:[#allocation3 + $0x170] sm:$0xff]
      %v2796 = vld [vmem:[#allocation3 + $0x178] sm:$0xff]
      %v2797 = vld [vmem:[#allocation3 + $0x180] sm:$0xff]
      %v2798 = vld [vmem:[#allocation3 + $0x188] sm:$0xff]
      %v2799 = vld [vmem:[#allocation3 + $0x190] sm:$0xff]
      %v2800 = vld [vmem:[#allocation3 + $0x198] sm:$0xff]
      %v2801 = vld [vmem:[#allocation3 + $0x1a0] sm:$0xff]
      %v2802 = vld [vmem:[#allocation3 + $0x1a8] sm:$0xff]
      %v2803 = vld [vmem:[#allocation3 + $0x1b0] sm:$0xff]
      %v2804 = vld [vmem:[#allocation3 + $0x1b8] sm:$0xff]
      %v2805 = vld [vmem:[#allocation3 + $0x1c0] sm:$0x7f]
      %v2806 = vld [vmem:[#allocation3 + $0x1c8] sm:$0x7f]
      %s2807 = scalar_lea.vmem %s2, 1024
      %v2808 = vld [vmem:[%s2807] sm:$0xff]
      %v2809 = vld [vmem:[%s2807 + $0x8] sm:$0xff]
      %v2810 = vld [vmem:[%s2807 + $0x10] sm:$0xff]
      %v2811 = vld [vmem:[%s2807 + $0x18] sm:$0xff]
      %v2812 = vld [vmem:[%s2807 + $0x20] sm:$0xff]
      %v2813 = vld [vmem:[%s2807 + $0x28] sm:$0xff]
      %v2814 = vld [vmem:[%s2807 + $0x30] sm:$0xff]
      %v2815 = vld [vmem:[%s2807 + $0x38] sm:$0xff]
      %v2816 = vld [vmem:[%s2807 + $0x40] sm:$0xff]
      %v2817 = vld [vmem:[%s2807 + $0x48] sm:$0xff]
      %v2818 = vld [vmem:[%s2807 + $0x50] sm:$0xff]
      %v2819 = vld [vmem:[%s2807 + $0x58] sm:$0xff]
      %v2820 = vld [vmem:[%s2807 + $0x60] sm:$0xff]
      %v2821 = vld [vmem:[%s2807 + $0x68] sm:$0xff]
      %v2822 = vld [vmem:[%s2807 + $0x70] sm:$0xff]
      %v2823 = vld [vmem:[%s2807 + $0x78] sm:$0xff]
      %v2824 = vld [vmem:[%s2807 + $0x80] sm:$0xff]
      %v2825 = vld [vmem:[%s2807 + $0x88] sm:$0xff]
      %v2826 = vld [vmem:[%s2807 + $0x90] sm:$0xff]
      %v2827 = vld [vmem:[%s2807 + $0x98] sm:$0xff]
      %v2828 = vld [vmem:[%s2807 + $0xa0] sm:$0xff]
      %v2829 = vld [vmem:[%s2807 + $0xa8] sm:$0xff]
      %v2830 = vld [vmem:[%s2807 + $0xb0] sm:$0xff]
      %v2831 = vld [vmem:[%s2807 + $0xb8] sm:$0xff]
      %v2832 = vld [vmem:[%s2807 + $0xc0] sm:$0xff]
      %v2833 = vld [vmem:[%s2807 + $0xc8] sm:$0xff]
      %v2834 = vld [vmem:[%s2807 + $0xd0] sm:$0xff]
      %v2835 = vld [vmem:[%s2807 + $0xd8] sm:$0xff]
      %v2836 = vld [vmem:[%s2807 + $0xe0] sm:$0xff]
      %v2837 = vld [vmem:[%s2807 + $0xe8] sm:$0xff]
      %v2838 = vld [vmem:[%s2807 + $0xf0] sm:$0xff]
      %v2839 = vld [vmem:[%s2807 + $0xf8] sm:$0xff]
      %2840 = vmatprep.subr.mxu0 %v2809
      %2841 = vmatpush1.msra.mxu0 %v2808
      %2842 = vmatprep.subr.mxu0 %v2811
      %2843 = vmatpush1.msra.mxu0 %v2810
      %2844 = vmatprep.subr.mxu0 %v2813
      %2845 = vmatpush1.msra.mxu0 %v2812
      %2846 = vmatprep.subr.mxu0 %v2815
      %2847 = vmatpush1.msra.mxu0 %v2814
      %2848 = vmatprep.subr.mxu0 %v2817
      %2849 = vmatpush1.msra.mxu0 %v2816
      %2850 = vmatprep.subr.mxu0 %v2819
      %2851 = vmatpush1.msra.mxu0 %v2818
      %2852 = vmatprep.subr.mxu0 %v2821
      %2853 = vmatpush1.msra.mxu0 %v2820
      %2854 = vmatprep.subr.mxu0 %v2823
      %2855 = vmatpush1.msra.mxu0 %v2822
      %2856 = vmatprep.subr.mxu0 %v2825
      %2857 = vmatpush1.msra.mxu0 %v2824
      %2858 = vmatprep.subr.mxu0 %v2827
      %2859 = vmatpush1.msra.mxu0 %v2826
      %2860 = vmatprep.subr.mxu0 %v2829
      %2861 = vmatpush1.msra.mxu0 %v2828
      %2862 = vmatprep.subr.mxu0 %v2831
      %2863 = vmatpush1.msra.mxu0 %v2830
      %2864 = vmatprep.subr.mxu0 %v2833
      %2865 = vmatpush1.msra.mxu0 %v2832
      %2866 = vmatprep.subr.mxu0 %v2835
      %2867 = vmatpush1.msra.mxu0 %v2834
      %2868 = vmatprep.subr.mxu0 %v2837
      %2869 = vmatpush1.msra.mxu0 %v2836
      %2870 = vmatprep.subr.mxu0 %v2839
      %2871 = vmatpush1.msra.mxu0 %v2838
      %2872 = vmatprep.subr.mxu0 0.0
      %2873 = vmatpush1.msra.mxu0 0.0
      %2874 = vmatprep.subr.mxu0 0.0
      %2875 = vmatpush1.msra.mxu0 0.0
      %2876 = vmatprep.subr.mxu0 0.0
      %2877 = vmatpush1.msra.mxu0 0.0
      %2878 = vmatprep.subr.mxu0 0.0
      %2879 = vmatpush1.msra.mxu0 0.0
      %2880 = vmatprep.subr.mxu0 0.0
      %2881 = vmatpush1.msra.mxu0 0.0
      %2882 = vmatprep.subr.mxu0 0.0
      %2883 = vmatpush1.msra.mxu0 0.0
      %2884 = vmatprep.subr.mxu0 0.0
      %2885 = vmatpush1.msra.mxu0 0.0
      %2886 = vmatprep.subr.mxu0 0.0
      %2887 = vmatpush1.msra.mxu0 0.0
      %2888 = vmatprep.subr.mxu0 0.0
      %2889 = vmatpush1.msra.mxu0 0.0
      %2890 = vmatprep.subr.mxu0 0.0
      %2891 = vmatpush1.msra.mxu0 0.0
      %2892 = vmatprep.subr.mxu0 0.0
      %2893 = vmatpush1.msra.mxu0 0.0
      %2894 = vmatprep.subr.mxu0 0.0
      %2895 = vmatpush1.msra.mxu0 0.0
      %2896 = vmatprep.subr.mxu0 0.0
      %2897 = vmatpush1.msra.mxu0 0.0
      %2898 = vmatprep.subr.mxu0 0.0
      %2899 = vmatpush1.msra.mxu0 0.0
      %2900 = vmatprep.subr.mxu0 0.0
      %2901 = vmatpush1.msra.mxu0 0.0
      %2902 = vmatprep.subr.mxu0 0.0
      %2903 = vmatpush1.msra.mxu0 0.0
      %2904 = vmatprep.mubr.f32.mxu0 0.0
      %2905 = vmatmul.mubr.f32.gmra.mrb[0].mxu0 %v2720
      %v2906 = vpop.f32.mrb[0].mxu0
      %v2907 = vadd.f32 0.0, %v2906
      %v2908 = vpop.f32.mrb[0].mxu0
      %v2909 = vadd.f32 0.0, %v2908
      %2910 = vmatprep.mubr.f32.mxu0 0.0
      %2911 = vmatmul.mubr.f32.gmra.mrb[0].mxu0 %v2721
      %v2912 = vpop.f32.mrb[0].mxu0
      %v2913 = vadd.f32 0.0, %v2912
      %v2914 = vpop.f32.mrb[0].mxu0
      %v2915 = vadd.f32 0.0, %v2914
      %2916 = vmatprep.mubr.f32.mxu0 0.0
      %2917 = vmatmul.mubr.f32.gmra.mrb[0].mxu0 %v2722
      %v2918 = vpop.f32.mrb[0].mxu0
      %v2919 = vadd.f32 0.0, %v2918
      %v2920 = vpop.f32.mrb[0].mxu0
      %v2921 = vadd.f32 0.0, %v2920
      %2922 = vmatprep.mubr.f32.mxu0 0.0
      %2923 = vmatmul.mubr.f32.gmra.mrb[0].mxu0 %v2723
      %v2924 = vpop.f32.mrb[0].mxu0
      %v2925 = vadd.f32 0.0, %v2924
      %v2926 = vpop.f32.mrb[0].mxu0
      %v2927 = vadd.f32 0.0, %v2926
      %2928 = vmatprep.mubr.f32.mxu0 0.0
      %2929 = vmatmul.mubr.f32.gmra.mrb[0].mxu0 %v2724
      %v2930 = vpop.f32.mrb[0].mxu0
      %v2931 = vadd.f32 0.0, %v2930
      %v2932 = vpop.f32.mrb[0].mxu0
      %v2933 = vadd.f32 0.0, %v2932
      %2934 = vmatprep.mubr.f32.mxu0 0.0
      %2935 = vmatmul.mubr.f32.gmra.mrb[0].mxu0 %v2725
      %v2936 = vpop.f32.mrb[0].mxu0
      %v2937 = vadd.f32 0.0, %v2936
      %v2938 = vpop.f32.mrb[0].mxu0
      %v2939 = vadd.f32 0.0, %v2938
      %2940 = vmatprep.mubr.f32.mxu0 0.0
      %2941 = vmatmul.mubr.f32.gmra.mrb[0].mxu0 %v2726
      %v2942 = vpop.f32.mrb[0].mxu0
      %v2943 = vadd.f32 0.0, %v2942
      %v2944 = vpop.f32.mrb[0].mxu0
      %v2945 = vadd.f32 0.0, %v2944
      %2946 = vmatprep.mubr.f32.mxu0 0.0
      %2947 = vmatmul.mubr.f32.gmra.mrb[0].mxu0 %v2727
      %v2948 = vpop.f32.mrb[0].mxu0
      %v2949 = vadd.f32 0.0, %v2948
      %v2950 = vpop.f32.mrb[0].mxu0
      %v2951 = vadd.f32 0.0, %v2950
      %2952 = vmatprep.mubr.f32.mxu0 0.0
      %2953 = vmatmul.mubr.f32.gmra.mrb[0].mxu0 %v2728
      %v2954 = vpop.f32.mrb[0].mxu0
      %v2955 = vadd.f32 0.0, %v2954
      %v2956 = vpop.f32.mrb[0].mxu0
      %v2957 = vadd.f32 0.0, %v2956
      %2958 = vmatprep.mubr.f32.mxu0 0.0
      %2959 = vmatmul.mubr.f32.gmra.mrb[0].mxu0 %v2729
      %v2960 = vpop.f32.mrb[0].mxu0
      %v2961 = vadd.f32 0.0, %v2960
      %v2962 = vpop.f32.mrb[0].mxu0
      %v2963 = vadd.f32 0.0, %v2962
      %2964 = vmatprep.mubr.f32.mxu0 0.0
      %2965 = vmatmul.mubr.f32.gmra.mrb[0].mxu0 %v2730
      %v2966 = vpop.f32.mrb[0].mxu0
      %v2967 = vadd.f32 0.0, %v2966
      %v2968 = vpop.f32.mrb[0].mxu0
      %v2969 = vadd.f32 0.0, %v2968
      %2970 = vmatprep.mubr.f32.mxu0 0.0
      %2971 = vmatmul.mubr.f32.gmra.mrb[0].mxu0 %v2731
      %v2972 = vpop.f32.mrb[0].mxu0
      %v2973 = vadd.f32 0.0, %v2972
      %v2974 = vpop.f32.mrb[0].mxu0
      %v2975 = vadd.f32 0.0, %v2974
      %2976 = vmatprep.mubr.f32.mxu0 0.0
      %2977 = vmatmul.mubr.f32.gmra.mrb[0].mxu0 %v2732
      %v2978 = vpop.f32.mrb[0].mxu0
      %v2979 = vadd.f32 0.0, %v2978
      %v2980 = vpop.f32.mrb[0].mxu0
      %v2981 = vadd.f32 0.0, %v2980
      %2982 = vmatprep.mubr.f32.mxu0 0.0
      %2983 = vmatmul.mubr.f32.gmra.mrb[0].mxu0 %v2733
      %v2984 = vpop.f32.mrb[0].mxu0
      %v2985 = vadd.f32 0.0, %v2984
      %v2986 = vpop.f32.mrb[0].mxu0
      %v2987 = vadd.f32 0.0, %v2986
      %2988 = vmatprep.mubr.f32.mxu0 0.0
      %2989 = vmatmul.mubr.f32.gmra.mrb[0].mxu0 %v2734
      %v2990 = vpop.f32.mrb[0].mxu0
      %v2991 = vadd.f32 0.0, %v2990
      %v2992 = vpop.f32.mrb[0].mxu0
      %v2993 = vadd.f32 0.0, %v2992
      %2994 = vmatprep.mubr.f32.mxu0 0.0
      %2995 = vmatmul.mubr.f32.gmra.mrb[0].mxu0 %v2735
      %v2996 = vpop.f32.mrb[0].mxu0
      %v2997 = vadd.f32 0.0, %v2996
      %v2998 = vpop.f32.mrb[0].mxu0
      %v2999 = vadd.f32 0.0, %v2998
      %3000 = vmatprep.mubr.f32.mxu0 0.0
      %3001 = vmatmul.mubr.f32.gmra.mrb[0].mxu0 %v2736
      %v3002 = vpop.f32.mrb[0].mxu0
      %v3003 = vadd.f32 0.0, %v3002
      %v3004 = vpop.f32.mrb[0].mxu0
      %v3005 = vadd.f32 0.0, %v3004
      %3006 = vmatprep.mubr.f32.mxu0 0.0
      %3007 = vmatmul.mubr.f32.gmra.mrb[0].mxu0 %v2737
      %v3008 = vpop.f32.mrb[0].mxu0
      %v3009 = vadd.f32 0.0, %v3008
      %v3010 = vpop.f32.mrb[0].mxu0
      %v3011 = vadd.f32 0.0, %v3010
      %3012 = vmatprep.mubr.f32.mxu0 0.0
      %3013 = vmatmul.mubr.f32.gmra.mrb[0].mxu0 %v2738
      %v3014 = vpop.f32.mrb[0].mxu0
      %v3015 = vadd.f32 0.0, %v3014
      %v3016 = vpop.f32.mrb[0].mxu0
      %v3017 = vadd.f32 0.0, %v3016
      %3018 = vmatprep.mubr.f32.mxu0 0.0
      %3019 = vmatmul.mubr.f32.gmra.mrb[0].mxu0 %v2739
      %v3020 = vpop.f32.mrb[0].mxu0
      %v3021 = vadd.f32 0.0, %v3020
      %v3022 = vpop.f32.mrb[0].mxu0
      %v3023 = vadd.f32 0.0, %v3022
      %3024 = vmatprep.mubr.f32.mxu0 0.0
      %3025 = vmatmul.mubr.f32.gmra.mrb[0].mxu0 %v2740
      %v3026 = vpop.f32.mrb[0].mxu0
      %v3027 = vadd.f32 0.0, %v3026
      %v3028 = vpop.f32.mrb[0].mxu0
      %v3029 = vadd.f32 0.0, %v3028
      %3030 = vmatprep.mubr.f32.mxu0 0.0
      %3031 = vmatmul.mubr.f32.gmra.mrb[0].mxu0 %v2741
      %v3032 = vpop.f32.mrb[0].mxu0
      %v3033 = vadd.f32 0.0, %v3032
      %v3034 = vpop.f32.mrb[0].mxu0
      %v3035 = vadd.f32 0.0, %v3034
      %3036 = vmatprep.mubr.f32.mxu0 0.0
      %3037 = vmatmul.mubr.f32.gmra.mrb[0].mxu0 %v2742
      %v3038 = vpop.f32.mrb[0].mxu0
      %v3039 = vadd.f32 0.0, %v3038
      %v3040 = vpop.f32.mrb[0].mxu0
      %v3041 = vadd.f32 0.0, %v3040
      %3042 = vmatprep.mubr.f32.mxu0 0.0
      %3043 = vmatmul.mubr.f32.gmra.mrb[0].mxu0 %v2743
      %v3044 = vpop.f32.mrb[0].mxu0
      %v3045 = vadd.f32 0.0, %v3044
      %v3046 = vpop.f32.mrb[0].mxu0
      %v3047 = vadd.f32 0.0, %v3046
      %3048 = vmatprep.mubr.f32.mxu0 0.0
      %3049 = vmatmul.mubr.f32.gmra.mrb[0].mxu0 %v2744
      %v3050 = vpop.f32.mrb[0].mxu0
      %v3051 = vadd.f32 0.0, %v3050
      %v3052 = vpop.f32.mrb[0].mxu0
      %v3053 = vadd.f32 0.0, %v3052
      %3054 = vmatprep.mubr.f32.mxu0 0.0
      %3055 = vmatmul.mubr.f32.gmra.mrb[0].mxu0 %v2745
      %v3056 = vpop.f32.mrb[0].mxu0
      %v3057 = vadd.f32 0.0, %v3056
      %v3058 = vpop.f32.mrb[0].mxu0
      %v3059 = vadd.f32 0.0, %v3058
      %3060 = vmatprep.mubr.f32.mxu0 0.0
      %3061 = vmatmul.mubr.f32.gmra.mrb[0].mxu0 %v2746
      %v3062 = vpop.f32.mrb[0].mxu0
      %v3063 = vadd.f32 0.0, %v3062
      %v3064 = vpop.f32.mrb[0].mxu0
      %v3065 = vadd.f32 0.0, %v3064
      %3066 = vmatprep.mubr.f32.mxu0 0.0
      %3067 = vmatmul.mubr.f32.gmra.mrb[0].mxu0 %v2747
      %v3068 = vpop.f32.mrb[0].mxu0
      %v3069 = vadd.f32 0.0, %v3068
      %v3070 = vpop.f32.mrb[0].mxu0
      %v3071 = vadd.f32 0.0, %v3070
      %3072 = vmatprep.mubr.f32.mxu0 0.0
      %3073 = vmatmul.mubr.f32.gmra.mrb[0].mxu0 %v2748
      %v3074 = vpop.f32.mrb[0].mxu0
      %v3075 = vadd.f32 0.0, %v3074
      %v3076 = vpop.f32.mrb[0].mxu0
      %v3077 = vadd.f32 0.0, %v3076
      %3078 = vdwg.mxu0
      %v3079 = vadd.f32 %v2749, %v2907
      %v3080 = vadd.f32 %v2750, %v2909
      %v3081 = vadd.f32 %v2751, %v2913
      %v3082 = vadd.f32 %v2752, %v2915
      %v3083 = vadd.f32 %v2753, %v2919
      %v3084 = vadd.f32 %v2754, %v2921
      %v3085 = vadd.f32 %v2755, %v2925
      %v3086 = vadd.f32 %v2756, %v2927
      %v3087 = vadd.f32 %v2757, %v2931
      %v3088 = vadd.f32 %v2758, %v2933
      %v3089 = vadd.f32 %v2759, %v2937
      %v3090 = vadd.f32 %v2760, %v2939
      %v3091 = vadd.f32 %v2761, %v2943
      %v3092 = vadd.f32 %v2762, %v2945
      %v3093 = vadd.f32 %v2763, %v2949
      %v3094 = vadd.f32 %v2764, %v2951
      %v3095 = vadd.f32 %v2765, %v2955
      %v3096 = vadd.f32 %v2766, %v2957
      %v3097 = vadd.f32 %v2767, %v2961
      %v3098 = vadd.f32 %v2768, %v2963
      %v3099 = vadd.f32 %v2769, %v2967
      %v3100 = vadd.f32 %v2770, %v2969
      %v3101 = vadd.f32 %v2771, %v2973
      %v3102 = vadd.f32 %v2772, %v2975
      %v3103 = vadd.f32 %v2773, %v2979
      %v3104 = vadd.f32 %v2774, %v2981
      %v3105 = vadd.f32 %v2775, %v2985
      %v3106 = vadd.f32 %v2776, %v2987
      %v3107 = vadd.f32 %v2777, %v2991
      %v3108 = vadd.f32 %v2778, %v2993
      %v3109 = vadd.f32 %v2779, %v2997
      %v3110 = vadd.f32 %v2780, %v2999
      %v3111 = vadd.f32 %v2781, %v3003
      %v3112 = vadd.f32 %v2782, %v3005
      %v3113 = vadd.f32 %v2783, %v3009
      %v3114 = vadd.f32 %v2784, %v3011
      %v3115 = vadd.f32 %v2785, %v3015
      %v3116 = vadd.f32 %v2786, %v3017
      %v3117 = vadd.f32 %v2787, %v3021
      %v3118 = vadd.f32 %v2788, %v3023
      %v3119 = vadd.f32 %v2789, %v3027
      %v3120 = vadd.f32 %v2790, %v3029
      %v3121 = vadd.f32 %v2791, %v3033
      %v3122 = vadd.f32 %v2792, %v3035
      %v3123 = vadd.f32 %v2793, %v3039
      %v3124 = vadd.f32 %v2794, %v3041
      %v3125 = vadd.f32 %v2795, %v3045
      %v3126 = vadd.f32 %v2796, %v3047
      %v3127 = vadd.f32 %v2797, %v3051
      %v3128 = vadd.f32 %v2798, %v3053
      %v3129 = vadd.f32 %v2799, %v3057
      %v3130 = vadd.f32 %v2800, %v3059
      %v3131 = vadd.f32 %v2801, %v3063
      %v3132 = vadd.f32 %v2802, %v3065
      %v3133 = vadd.f32 %v2803, %v3069
      %v3134 = vadd.f32 %v2804, %v3071
      %v3135 = vadd.f32 %v2805, %v3075
      %v3136 = vadd.f32 %v2806, %v3077
      %3137 = vst [vmem:[#allocation3] sm:$0xff] %v3079
      %3138 = vst [vmem:[#allocation3 + $0x8] sm:$0xff] %v3080
      %3139 = vst [vmem:[#allocation3 + $0x10] sm:$0xff] %v3081
      %3140 = vst [vmem:[#allocation3 + $0x18] sm:$0xff] %v3082
      %3141 = vst [vmem:[#allocation3 + $0x20] sm:$0xff] %v3083
      %3142 = vst [vmem:[#allocation3 + $0x28] sm:$0xff] %v3084
      %3143 = vst [vmem:[#allocation3 + $0x30] sm:$0xff] %v3085
      %3144 = vst [vmem:[#allocation3 + $0x38] sm:$0xff] %v3086
      %3145 = vst [vmem:[#allocation3 + $0x40] sm:$0xff] %v3087
      %3146 = vst [vmem:[#allocation3 + $0x48] sm:$0xff] %v3088
      %3147 = vst [vmem:[#allocation3 + $0x50] sm:$0xff] %v3089
      %3148 = vst [vmem:[#allocation3 + $0x58] sm:$0xff] %v3090
      %3149 = vst [vmem:[#allocation3 + $0x60] sm:$0xff] %v3091
      %3150 = vst [vmem:[#allocation3 + $0x68] sm:$0xff] %v3092
      %3151 = vst [vmem:[#allocation3 + $0x70] sm:$0xff] %v3093
      %3152 = vst [vmem:[#allocation3 + $0x78] sm:$0xff] %v3094
      %3153 = vst [vmem:[#allocation3 + $0x80] sm:$0xff] %v3095
      %3154 = vst [vmem:[#allocation3 + $0x88] sm:$0xff] %v3096
      %3155 = vst [vmem:[#allocation3 + $0x90] sm:$0xff] %v3097
      %3156 = vst [vmem:[#allocation3 + $0x98] sm:$0xff] %v3098
      %3157 = vst [vmem:[#allocation3 + $0xa0] sm:$0xff] %v3099
      %3158 = vst [vmem:[#allocation3 + $0xa8] sm:$0xff] %v3100
      %3159 = vst [vmem:[#allocation3 + $0xb0] sm:$0xff] %v3101
      %3160 = vst [vmem:[#allocation3 + $0xb8] sm:$0xff] %v3102
      %3161 = vst [vmem:[#allocation3 + $0xc0] sm:$0xff] %v3103
      %3162 = vst [vmem:[#allocation3 + $0xc8] sm:$0xff] %v3104
      %3163 = vst [vmem:[#allocation3 + $0xd0] sm:$0xff] %v3105
      %3164 = vst [vmem:[#allocation3 + $0xd8] sm:$0xff] %v3106
      %3165 = vst [vmem:[#allocation3 + $0xe0] sm:$0xff] %v3107
      %3166 = vst [vmem:[#allocation3 + $0xe8] sm:$0xff] %v3108
      %3167 = vst [vmem:[#allocation3 + $0xf0] sm:$0xff] %v3109
      %3168 = vst [vmem:[#allocation3 + $0xf8] sm:$0xff] %v3110
      %3169 = vst [vmem:[#allocation3 + $0x100] sm:$0xff] %v3111
      %3170 = vst [vmem:[#allocation3 + $0x108] sm:$0xff] %v3112
      %3171 = vst [vmem:[#allocation3 + $0x110] sm:$0xff] %v3113
      %3172 = vst [vmem:[#allocation3 + $0x118] sm:$0xff] %v3114
      %3173 = vst [vmem:[#allocation3 + $0x120] sm:$0xff] %v3115
      %3174 = vst [vmem:[#allocation3 + $0x128] sm:$0xff] %v3116
      %3175 = vst [vmem:[#allocation3 + $0x130] sm:$0xff] %v3117
      %3176 = vst [vmem:[#allocation3 + $0x138] sm:$0xff] %v3118
      %3177 = vst [vmem:[#allocation3 + $0x140] sm:$0xff] %v3119
      %3178 = vst [vmem:[#allocation3 + $0x148] sm:$0xff] %v3120
      %3179 = vst [vmem:[#allocation3 + $0x150] sm:$0xff] %v3121
      %3180 = vst [vmem:[#allocation3 + $0x158] sm:$0xff] %v3122
      %3181 = vst [vmem:[#allocation3 + $0x160] sm:$0xff] %v3123
      %3182 = vst [vmem:[#allocation3 + $0x168] sm:$0xff] %v3124
      %3183 = vst [vmem:[#allocation3 + $0x170] sm:$0xff] %v3125
      %3184 = vst [vmem:[#allocation3 + $0x178] sm:$0xff] %v3126
      %3185 = vst [vmem:[#allocation3 + $0x180] sm:$0xff] %v3127
      %3186 = vst [vmem:[#allocation3 + $0x188] sm:$0xff] %v3128
      %3187 = vst [vmem:[#allocation3 + $0x190] sm:$0xff] %v3129
      %3188 = vst [vmem:[#allocation3 + $0x198] sm:$0xff] %v3130
      %3189 = vst [vmem:[#allocation3 + $0x1a0] sm:$0xff] %v3131
      %3190 = vst [vmem:[#allocation3 + $0x1a8] sm:$0xff] %v3132
      %3191 = vst [vmem:[#allocation3 + $0x1b0] sm:$0xff] %v3133
      %3192 = vst [vmem:[#allocation3 + $0x1b8] sm:$0xff] %v3134
      %3193 = vst [vmem:[#allocation3 + $0x1c0] sm:$0x7f] %v3135
      %3194 = vst [vmem:[#allocation3 + $0x1c8] sm:$0x7f] %v3136
      %v3195 = vld [vmem:[#allocation2 + $0x16] sm:$0xff]
      %v3196 = vld [vmem:[#allocation2 + $0x1e] sm:$0xff]
      %v3197 = vld [vmem:[#allocation2 + $0x26] sm:$0xff]
      %v3198 = vld [vmem:[#allocation2 + $0x2e] sm:$0xff]
      %v3199 = vld [vmem:[#allocation2 + $0x36] sm:$0xff]
      %v3200 = vld [vmem:[#allocation2 + $0x3e] sm:$0xff]
      %v3201 = vld [vmem:[#allocation2 + $0x46] sm:$0xff]
      %v3202 = vld [vmem:[#allocation2 + $0x4e] sm:$0xff]
      %v3203 = vld [vmem:[#allocation2 + $0x56] sm:$0xff]
      %v3204 = vld [vmem:[#allocation2 + $0x5e] sm:$0xff]
      %v3205 = vld [vmem:[#allocation2 + $0x66] sm:$0xff]
      %v3206 = vld [vmem:[#allocation2 + $0x6e] sm:$0xff]
      %v3207 = vld [vmem:[#allocation2 + $0x76] sm:$0xff]
      %v3208 = vld [vmem:[#allocation2 + $0x7e] sm:$0xff]
      %v3209 = vld [vmem:[#allocation2 + $0x86] sm:$0xff]
      %v3210 = vld [vmem:[#allocation2 + $0x8e] sm:$0xff]
      %v3211 = vld [vmem:[#allocation2 + $0x96] sm:$0xff]
      %v3212 = vld [vmem:[#allocation2 + $0x9e] sm:$0xff]
      %v3213 = vld [vmem:[#allocation2 + $0xa6] sm:$0xff]
      %v3214 = vld [vmem:[#allocation2 + $0xae] sm:$0xff]
      %v3215 = vld [vmem:[#allocation2 + $0xb6] sm:$0xff]
      %v3216 = vld [vmem:[#allocation2 + $0xbe] sm:$0xff]
      %v3217 = vld [vmem:[#allocation2 + $0xc6] sm:$0xff]
      %v3218 = vld [vmem:[#allocation2 + $0xce] sm:$0xff]
      %v3219 = vld [vmem:[#allocation2 + $0xd6] sm:$0xff]
      %v3220 = vld [vmem:[#allocation2 + $0xde] sm:$0xff]
      %v3221 = vld [vmem:[#allocation2 + $0xe6] sm:$0xff]
      %v3222 = vld [vmem:[#allocation2 + $0xee] sm:$0xff]
      %v3223 = vld [vmem:[#allocation2 + $0xf6] sm:$0x7f]
      %v3224 = vld [vmem:[#allocation3] sm:$0xff]
      %v3225 = vld [vmem:[#allocation3 + $0x8] sm:$0xff]
      %v3226 = vld [vmem:[#allocation3 + $0x10] sm:$0xff]
      %v3227 = vld [vmem:[#allocation3 + $0x18] sm:$0xff]
      %v3228 = vld [vmem:[#allocation3 + $0x20] sm:$0xff]
      %v3229 = vld [vmem:[#allocation3 + $0x28] sm:$0xff]
      %v3230 = vld [vmem:[#allocation3 + $0x30] sm:$0xff]
      %v3231 = vld [vmem:[#allocation3 + $0x38] sm:$0xff]
      %v3232 = vld [vmem:[#allocation3 + $0x40] sm:$0xff]
      %v3233 = vld [vmem:[#allocation3 + $0x48] sm:$0xff]
      %v3234 = vld [vmem:[#allocation3 + $0x50] sm:$0xff]
      %v3235 = vld [vmem:[#allocation3 + $0x58] sm:$0xff]
      %v3236 = vld [vmem:[#allocation3 + $0x60] sm:$0xff]
      %v3237 = vld [vmem:[#allocation3 + $0x68] sm:$0xff]
      %v3238 = vld [vmem:[#allocation3 + $0x70] sm:$0xff]
      %v3239 = vld [vmem:[#allocation3 + $0x78] sm:$0xff]
      %v3240 = vld [vmem:[#allocation3 + $0x80] sm:$0xff]
      %v3241 = vld [vmem:[#allocation3 + $0x88] sm:$0xff]
      %v3242 = vld [vmem:[#allocation3 + $0x90] sm:$0xff]
      %v3243 = vld [vmem:[#allocation3 + $0x98] sm:$0xff]
      %v3244 = vld [vmem:[#allocation3 + $0xa0] sm:$0xff]
      %v3245 = vld [vmem:[#allocation3 + $0xa8] sm:$0xff]
      %v3246 = vld [vmem:[#allocation3 + $0xb0] sm:$0xff]
      %v3247 = vld [vmem:[#allocation3 + $0xb8] sm:$0xff]
      %v3248 = vld [vmem:[#allocation3 + $0xc0] sm:$0xff]
      %v3249 = vld [vmem:[#allocation3 + $0xc8] sm:$0xff]
      %v3250 = vld [vmem:[#allocation3 + $0xd0] sm:$0xff]
      %v3251 = vld [vmem:[#allocation3 + $0xd8] sm:$0xff]
      %v3252 = vld [vmem:[#allocation3 + $0xe0] sm:$0xff]
      %v3253 = vld [vmem:[#allocation3 + $0xe8] sm:$0xff]
      %v3254 = vld [vmem:[#allocation3 + $0xf0] sm:$0xff]
      %v3255 = vld [vmem:[#allocation3 + $0xf8] sm:$0xff]
      %v3256 = vld [vmem:[#allocation3 + $0x100] sm:$0xff]
      %v3257 = vld [vmem:[#allocation3 + $0x108] sm:$0xff]
      %v3258 = vld [vmem:[#allocation3 + $0x110] sm:$0xff]
      %v3259 = vld [vmem:[#allocation3 + $0x118] sm:$0xff]
      %v3260 = vld [vmem:[#allocation3 + $0x120] sm:$0xff]
      %v3261 = vld [vmem:[#allocation3 + $0x128] sm:$0xff]
      %v3262 = vld [vmem:[#allocation3 + $0x130] sm:$0xff]
      %v3263 = vld [vmem:[#allocation3 + $0x138] sm:$0xff]
      %v3264 = vld [vmem:[#allocation3 + $0x140] sm:$0xff]
      %v3265 = vld [vmem:[#allocation3 + $0x148] sm:$0xff]
      %v3266 = vld [vmem:[#allocation3 + $0x150] sm:$0xff]
      %v3267 = vld [vmem:[#allocation3 + $0x158] sm:$0xff]
      %v3268 = vld [vmem:[#allocation3 + $0x160] sm:$0xff]
      %v3269 = vld [vmem:[#allocation3 + $0x168] sm:$0xff]
      %v3270 = vld [vmem:[#allocation3 + $0x170] sm:$0xff]
      %v3271 = vld [vmem:[#allocation3 + $0x178] sm:$0xff]
      %v3272 = vld [vmem:[#allocation3 + $0x180] sm:$0xff]
      %v3273 = vld [vmem:[#allocation3 + $0x188] sm:$0xff]
      %v3274 = vld [vmem:[#allocation3 + $0x190] sm:$0xff]
      %v3275 = vld [vmem:[#allocation3 + $0x198] sm:$0xff]
      %v3276 = vld [vmem:[#allocation3 + $0x1a0] sm:$0xff]
      %v3277 = vld [vmem:[#allocation3 + $0x1a8] sm:$0xff]
      %v3278 = vld [vmem:[#allocation3 + $0x1b0] sm:$0xff]
      %v3279 = vld [vmem:[#allocation3 + $0x1b8] sm:$0xff]
      %v3280 = vld [vmem:[#allocation3 + $0x1c0] sm:$0x7f]
      %v3281 = vld [vmem:[#allocation3 + $0x1c8] sm:$0x7f]
      %s3282 = scalar_lea.vmem %s2, 1280
      %v3283 = vld [vmem:[%s3282] sm:$0xff]
      %v3284 = vld [vmem:[%s3282 + $0x8] sm:$0xff]
      %v3285 = vld [vmem:[%s3282 + $0x10] sm:$0xff]
      %v3286 = vld [vmem:[%s3282 + $0x18] sm:$0xff]
      %v3287 = vld [vmem:[%s3282 + $0x20] sm:$0xff]
      %v3288 = vld [vmem:[%s3282 + $0x28] sm:$0xff]
      %v3289 = vld [vmem:[%s3282 + $0x30] sm:$0xff]
      %v3290 = vld [vmem:[%s3282 + $0x38] sm:$0xff]
      %v3291 = vld [vmem:[%s3282 + $0x40] sm:$0xff]
      %v3292 = vld [vmem:[%s3282 + $0x48] sm:$0xff]
      %v3293 = vld [vmem:[%s3282 + $0x50] sm:$0xff]
      %v3294 = vld [vmem:[%s3282 + $0x58] sm:$0xff]
      %v3295 = vld [vmem:[%s3282 + $0x60] sm:$0xff]
      %v3296 = vld [vmem:[%s3282 + $0x68] sm:$0xff]
      %v3297 = vld [vmem:[%s3282 + $0x70] sm:$0xff]
      %v3298 = vld [vmem:[%s3282 + $0x78] sm:$0xff]
      %v3299 = vld [vmem:[%s3282 + $0x80] sm:$0xff]
      %v3300 = vld [vmem:[%s3282 + $0x88] sm:$0xff]
      %v3301 = vld [vmem:[%s3282 + $0x90] sm:$0xff]
      %v3302 = vld [vmem:[%s3282 + $0x98] sm:$0xff]
      %v3303 = vld [vmem:[%s3282 + $0xa0] sm:$0xff]
      %v3304 = vld [vmem:[%s3282 + $0xa8] sm:$0xff]
      %v3305 = vld [vmem:[%s3282 + $0xb0] sm:$0xff]
      %v3306 = vld [vmem:[%s3282 + $0xb8] sm:$0xff]
      %v3307 = vld [vmem:[%s3282 + $0xc0] sm:$0xff]
      %v3308 = vld [vmem:[%s3282 + $0xc8] sm:$0xff]
      %v3309 = vld [vmem:[%s3282 + $0xd0] sm:$0xff]
      %v3310 = vld [vmem:[%s3282 + $0xd8] sm:$0xff]
      %v3311 = vld [vmem:[%s3282 + $0xe0] sm:$0xff]
      %v3312 = vld [vmem:[%s3282 + $0xe8] sm:$0xff]
      %v3313 = vld [vmem:[%s3282 + $0xf0] sm:$0xff]
      %v3314 = vld [vmem:[%s3282 + $0xf8] sm:$0xff]
      %3315 = vmatprep.subr.mxu0 %v3284
      %3316 = vmatpush1.msra.mxu0 %v3283
      %3317 = vmatprep.subr.mxu0 %v3286
      %3318 = vmatpush1.msra.mxu0 %v3285
      %3319 = vmatprep.subr.mxu0 %v3288
      %3320 = vmatpush1.msra.mxu0 %v3287
      %3321 = vmatprep.subr.mxu0 %v3290
      %3322 = vmatpush1.msra.mxu0 %v3289
      %3323 = vmatprep.subr.mxu0 %v3292
      %3324 = vmatpush1.msra.mxu0 %v3291
      %3325 = vmatprep.subr.mxu0 %v3294
      %3326 = vmatpush1.msra.mxu0 %v3293
      %3327 = vmatprep.subr.mxu0 %v3296
      %3328 = vmatpush1.msra.mxu0 %v3295
      %3329 = vmatprep.subr.mxu0 %v3298
      %3330 = vmatpush1.msra.mxu0 %v3297
      %3331 = vmatprep.subr.mxu0 %v3300
      %3332 = vmatpush1.msra.mxu0 %v3299
      %3333 = vmatprep.subr.mxu0 %v3302
      %3334 = vmatpush1.msra.mxu0 %v3301
      %3335 = vmatprep.subr.mxu0 %v3304
      %3336 = vmatpush1.msra.mxu0 %v3303
      %3337 = vmatprep.subr.mxu0 %v3306
      %3338 = vmatpush1.msra.mxu0 %v3305
      %3339 = vmatprep.subr.mxu0 %v3308
      %3340 = vmatpush1.msra.mxu0 %v3307
      %3341 = vmatprep.subr.mxu0 %v3310
      %3342 = vmatpush1.msra.mxu0 %v3309
      %3343 = vmatprep.subr.mxu0 %v3312
      %3344 = vmatpush1.msra.mxu0 %v3311
      %3345 = vmatprep.subr.mxu0 %v3314
      %3346 = vmatpush1.msra.mxu0 %v3313
      %3347 = vmatprep.subr.mxu0 0.0
      %3348 = vmatpush1.msra.mxu0 0.0
      %3349 = vmatprep.subr.mxu0 0.0
      %3350 = vmatpush1.msra.mxu0 0.0
      %3351 = vmatprep.subr.mxu0 0.0
      %3352 = vmatpush1.msra.mxu0 0.0
      %3353 = vmatprep.subr.mxu0 0.0
      %3354 = vmatpush1.msra.mxu0 0.0
      %3355 = vmatprep.subr.mxu0 0.0
      %3356 = vmatpush1.msra.mxu0 0.0
      %3357 = vmatprep.subr.mxu0 0.0
      %3358 = vmatpush1.msra.mxu0 0.0
      %3359 = vmatprep.subr.mxu0 0.0
      %3360 = vmatpush1.msra.mxu0 0.0
      %3361 = vmatprep.subr.mxu0 0.0
      %3362 = vmatpush1.msra.mxu0 0.0
      %3363 = vmatprep.subr.mxu0 0.0
      %3364 = vmatpush1.msra.mxu0 0.0
      %3365 = vmatprep.subr.mxu0 0.0
      %3366 = vmatpush1.msra.mxu0 0.0
      %3367 = vmatprep.subr.mxu0 0.0
      %3368 = vmatpush1.msra.mxu0 0.0
      %3369 = vmatprep.subr.mxu0 0.0
      %3370 = vmatpush1.msra.mxu0 0.0
      %3371 = vmatprep.subr.mxu0 0.0
      %3372 = vmatpush1.msra.mxu0 0.0
      %3373 = vmatprep.subr.mxu0 0.0
      %3374 = vmatpush1.msra.mxu0 0.0
      %3375 = vmatprep.subr.mxu0 0.0
      %3376 = vmatpush1.msra.mxu0 0.0
      %3377 = vmatprep.subr.mxu0 0.0
      %3378 = vmatpush1.msra.mxu0 0.0
      %3379 = vmatprep.mubr.f32.mxu0 0.0
      %3380 = vmatmul.mubr.f32.gmra.mrb[0].mxu0 %v3195
      %v3381 = vpop.f32.mrb[0].mxu0
      %v3382 = vadd.f32 0.0, %v3381
      %v3383 = vpop.f32.mrb[0].mxu0
      %v3384 = vadd.f32 0.0, %v3383
      %3385 = vmatprep.mubr.f32.mxu0 0.0
      %3386 = vmatmul.mubr.f32.gmra.mrb[0].mxu0 %v3196
      %v3387 = vpop.f32.mrb[0].mxu0
      %v3388 = vadd.f32 0.0, %v3387
      %v3389 = vpop.f32.mrb[0].mxu0
      %v3390 = vadd.f32 0.0, %v3389
      %3391 = vmatprep.mubr.f32.mxu0 0.0
      %3392 = vmatmul.mubr.f32.gmra.mrb[0].mxu0 %v3197
      %v3393 = vpop.f32.mrb[0].mxu0
      %v3394 = vadd.f32 0.0, %v3393
      %v3395 = vpop.f32.mrb[0].mxu0
      %v3396 = vadd.f32 0.0, %v3395
      %3397 = vmatprep.mubr.f32.mxu0 0.0
      %3398 = vmatmul.mubr.f32.gmra.mrb[0].mxu0 %v3198
      %v3399 = vpop.f32.mrb[0].mxu0
      %v3400 = vadd.f32 0.0, %v3399
      %v3401 = vpop.f32.mrb[0].mxu0
      %v3402 = vadd.f32 0.0, %v3401
      %3403 = vmatprep.mubr.f32.mxu0 0.0
      %3404 = vmatmul.mubr.f32.gmra.mrb[0].mxu0 %v3199
      %v3405 = vpop.f32.mrb[0].mxu0
      %v3406 = vadd.f32 0.0, %v3405
      %v3407 = vpop.f32.mrb[0].mxu0
      %v3408 = vadd.f32 0.0, %v3407
      %3409 = vmatprep.mubr.f32.mxu0 0.0
      %3410 = vmatmul.mubr.f32.gmra.mrb[0].mxu0 %v3200
      %v3411 = vpop.f32.mrb[0].mxu0
      %v3412 = vadd.f32 0.0, %v3411
      %v3413 = vpop.f32.mrb[0].mxu0
      %v3414 = vadd.f32 0.0, %v3413
      %3415 = vmatprep.mubr.f32.mxu0 0.0
      %3416 = vmatmul.mubr.f32.gmra.mrb[0].mxu0 %v3201
      %v3417 = vpop.f32.mrb[0].mxu0
      %v3418 = vadd.f32 0.0, %v3417
      %v3419 = vpop.f32.mrb[0].mxu0
      %v3420 = vadd.f32 0.0, %v3419
      %3421 = vmatprep.mubr.f32.mxu0 0.0
      %3422 = vmatmul.mubr.f32.gmra.mrb[0].mxu0 %v3202
      %v3423 = vpop.f32.mrb[0].mxu0
      %v3424 = vadd.f32 0.0, %v3423
      %v3425 = vpop.f32.mrb[0].mxu0
      %v3426 = vadd.f32 0.0, %v3425
      %3427 = vmatprep.mubr.f32.mxu0 0.0
      %3428 = vmatmul.mubr.f32.gmra.mrb[0].mxu0 %v3203
      %v3429 = vpop.f32.mrb[0].mxu0
      %v3430 = vadd.f32 0.0, %v3429
      %v3431 = vpop.f32.mrb[0].mxu0
      %v3432 = vadd.f32 0.0, %v3431
      %3433 = vmatprep.mubr.f32.mxu0 0.0
      %3434 = vmatmul.mubr.f32.gmra.mrb[0].mxu0 %v3204
      %v3435 = vpop.f32.mrb[0].mxu0
      %v3436 = vadd.f32 0.0, %v3435
      %v3437 = vpop.f32.mrb[0].mxu0
      %v3438 = vadd.f32 0.0, %v3437
      %3439 = vmatprep.mubr.f32.mxu0 0.0
      %3440 = vmatmul.mubr.f32.gmra.mrb[0].mxu0 %v3205
      %v3441 = vpop.f32.mrb[0].mxu0
      %v3442 = vadd.f32 0.0, %v3441
      %v3443 = vpop.f32.mrb[0].mxu0
      %v3444 = vadd.f32 0.0, %v3443
      %3445 = vmatprep.mubr.f32.mxu0 0.0
      %3446 = vmatmul.mubr.f32.gmra.mrb[0].mxu0 %v3206
      %v3447 = vpop.f32.mrb[0].mxu0
      %v3448 = vadd.f32 0.0, %v3447
      %v3449 = vpop.f32.mrb[0].mxu0
      %v3450 = vadd.f32 0.0, %v3449
      %3451 = vmatprep.mubr.f32.mxu0 0.0
      %3452 = vmatmul.mubr.f32.gmra.mrb[0].mxu0 %v3207
      %v3453 = vpop.f32.mrb[0].mxu0
      %v3454 = vadd.f32 0.0, %v3453
      %v3455 = vpop.f32.mrb[0].mxu0
      %v3456 = vadd.f32 0.0, %v3455
      %3457 = vmatprep.mubr.f32.mxu0 0.0
      %3458 = vmatmul.mubr.f32.gmra.mrb[0].mxu0 %v3208
      %v3459 = vpop.f32.mrb[0].mxu0
      %v3460 = vadd.f32 0.0, %v3459
      %v3461 = vpop.f32.mrb[0].mxu0
      %v3462 = vadd.f32 0.0, %v3461
      %3463 = vmatprep.mubr.f32.mxu0 0.0
      %3464 = vmatmul.mubr.f32.gmra.mrb[0].mxu0 %v3209
      %v3465 = vpop.f32.mrb[0].mxu0
      %v3466 = vadd.f32 0.0, %v3465
      %v3467 = vpop.f32.mrb[0].mxu0
      %v3468 = vadd.f32 0.0, %v3467
      %3469 = vmatprep.mubr.f32.mxu0 0.0
      %3470 = vmatmul.mubr.f32.gmra.mrb[0].mxu0 %v3210
      %v3471 = vpop.f32.mrb[0].mxu0
      %v3472 = vadd.f32 0.0, %v3471
      %v3473 = vpop.f32.mrb[0].mxu0
      %v3474 = vadd.f32 0.0, %v3473
      %3475 = vmatprep.mubr.f32.mxu0 0.0
      %3476 = vmatmul.mubr.f32.gmra.mrb[0].mxu0 %v3211
      %v3477 = vpop.f32.mrb[0].mxu0
      %v3478 = vadd.f32 0.0, %v3477
      %v3479 = vpop.f32.mrb[0].mxu0
      %v3480 = vadd.f32 0.0, %v3479
      %3481 = vmatprep.mubr.f32.mxu0 0.0
      %3482 = vmatmul.mubr.f32.gmra.mrb[0].mxu0 %v3212
      %v3483 = vpop.f32.mrb[0].mxu0
      %v3484 = vadd.f32 0.0, %v3483
      %v3485 = vpop.f32.mrb[0].mxu0
      %v3486 = vadd.f32 0.0, %v3485
      %3487 = vmatprep.mubr.f32.mxu0 0.0
      %3488 = vmatmul.mubr.f32.gmra.mrb[0].mxu0 %v3213
      %v3489 = vpop.f32.mrb[0].mxu0
      %v3490 = vadd.f32 0.0, %v3489
      %v3491 = vpop.f32.mrb[0].mxu0
      %v3492 = vadd.f32 0.0, %v3491
      %3493 = vmatprep.mubr.f32.mxu0 0.0
      %3494 = vmatmul.mubr.f32.gmra.mrb[0].mxu0 %v3214
      %v3495 = vpop.f32.mrb[0].mxu0
      %v3496 = vadd.f32 0.0, %v3495
      %v3497 = vpop.f32.mrb[0].mxu0
      %v3498 = vadd.f32 0.0, %v3497
      %3499 = vmatprep.mubr.f32.mxu0 0.0
      %3500 = vmatmul.mubr.f32.gmra.mrb[0].mxu0 %v3215
      %v3501 = vpop.f32.mrb[0].mxu0
      %v3502 = vadd.f32 0.0, %v3501
      %v3503 = vpop.f32.mrb[0].mxu0
      %v3504 = vadd.f32 0.0, %v3503
      %3505 = vmatprep.mubr.f32.mxu0 0.0
      %3506 = vmatmul.mubr.f32.gmra.mrb[0].mxu0 %v3216
      %v3507 = vpop.f32.mrb[0].mxu0
      %v3508 = vadd.f32 0.0, %v3507
      %v3509 = vpop.f32.mrb[0].mxu0
      %v3510 = vadd.f32 0.0, %v3509
      %3511 = vmatprep.mubr.f32.mxu0 0.0
      %3512 = vmatmul.mubr.f32.gmra.mrb[0].mxu0 %v3217
      %v3513 = vpop.f32.mrb[0].mxu0
      %v3514 = vadd.f32 0.0, %v3513
      %v3515 = vpop.f32.mrb[0].mxu0
      %v3516 = vadd.f32 0.0, %v3515
      %3517 = vmatprep.mubr.f32.mxu0 0.0
      %3518 = vmatmul.mubr.f32.gmra.mrb[0].mxu0 %v3218
      %v3519 = vpop.f32.mrb[0].mxu0
      %v3520 = vadd.f32 0.0, %v3519
      %v3521 = vpop.f32.mrb[0].mxu0
      %v3522 = vadd.f32 0.0, %v3521
      %3523 = vmatprep.mubr.f32.mxu0 0.0
      %3524 = vmatmul.mubr.f32.gmra.mrb[0].mxu0 %v3219
      %v3525 = vpop.f32.mrb[0].mxu0
      %v3526 = vadd.f32 0.0, %v3525
      %v3527 = vpop.f32.mrb[0].mxu0
      %v3528 = vadd.f32 0.0, %v3527
      %3529 = vmatprep.mubr.f32.mxu0 0.0
      %3530 = vmatmul.mubr.f32.gmra.mrb[0].mxu0 %v3220
      %v3531 = vpop.f32.mrb[0].mxu0
      %v3532 = vadd.f32 0.0, %v3531
      %v3533 = vpop.f32.mrb[0].mxu0
      %v3534 = vadd.f32 0.0, %v3533
      %3535 = vmatprep.mubr.f32.mxu0 0.0
      %3536 = vmatmul.mubr.f32.gmra.mrb[0].mxu0 %v3221
      %v3537 = vpop.f32.mrb[0].mxu0
      %v3538 = vadd.f32 0.0, %v3537
      %v3539 = vpop.f32.mrb[0].mxu0
      %v3540 = vadd.f32 0.0, %v3539
      %3541 = vmatprep.mubr.f32.mxu0 0.0
      %3542 = vmatmul.mubr.f32.gmra.mrb[0].mxu0 %v3222
      %v3543 = vpop.f32.mrb[0].mxu0
      %v3544 = vadd.f32 0.0, %v3543
      %v3545 = vpop.f32.mrb[0].mxu0
      %v3546 = vadd.f32 0.0, %v3545
      %3547 = vmatprep.mubr.f32.mxu0 0.0
      %3548 = vmatmul.mubr.f32.gmra.mrb[0].mxu0 %v3223
      %v3549 = vpop.f32.mrb[0].mxu0
      %v3550 = vadd.f32 0.0, %v3549
      %v3551 = vpop.f32.mrb[0].mxu0
      %v3552 = vadd.f32 0.0, %v3551
      %3553 = vdwg.mxu0
      %v3554 = vadd.f32 %v3224, %v3382
      %v3555 = vadd.f32 %v3225, %v3384
      %v3556 = vadd.f32 %v3226, %v3388
      %v3557 = vadd.f32 %v3227, %v3390
      %v3558 = vadd.f32 %v3228, %v3394
      %v3559 = vadd.f32 %v3229, %v3396
      %v3560 = vadd.f32 %v3230, %v3400
      %v3561 = vadd.f32 %v3231, %v3402
      %v3562 = vadd.f32 %v3232, %v3406
      %v3563 = vadd.f32 %v3233, %v3408
      %v3564 = vadd.f32 %v3234, %v3412
      %v3565 = vadd.f32 %v3235, %v3414
      %v3566 = vadd.f32 %v3236, %v3418
      %v3567 = vadd.f32 %v3237, %v3420
      %v3568 = vadd.f32 %v3238, %v3424
      %v3569 = vadd.f32 %v3239, %v3426
      %v3570 = vadd.f32 %v3240, %v3430
      %v3571 = vadd.f32 %v3241, %v3432
      %v3572 = vadd.f32 %v3242, %v3436
      %v3573 = vadd.f32 %v3243, %v3438
      %v3574 = vadd.f32 %v3244, %v3442
      %v3575 = vadd.f32 %v3245, %v3444
      %v3576 = vadd.f32 %v3246, %v3448
      %v3577 = vadd.f32 %v3247, %v3450
      %v3578 = vadd.f32 %v3248, %v3454
      %v3579 = vadd.f32 %v3249, %v3456
      %v3580 = vadd.f32 %v3250, %v3460
      %v3581 = vadd.f32 %v3251, %v3462
      %v3582 = vadd.f32 %v3252, %v3466
      %v3583 = vadd.f32 %v3253, %v3468
      %v3584 = vadd.f32 %v3254, %v3472
      %v3585 = vadd.f32 %v3255, %v3474
      %v3586 = vadd.f32 %v3256, %v3478
      %v3587 = vadd.f32 %v3257, %v3480
      %v3588 = vadd.f32 %v3258, %v3484
      %v3589 = vadd.f32 %v3259, %v3486
      %v3590 = vadd.f32 %v3260, %v3490
      %v3591 = vadd.f32 %v3261, %v3492
      %v3592 = vadd.f32 %v3262, %v3496
      %v3593 = vadd.f32 %v3263, %v3498
      %v3594 = vadd.f32 %v3264, %v3502
      %v3595 = vadd.f32 %v3265, %v3504
      %v3596 = vadd.f32 %v3266, %v3508
      %v3597 = vadd.f32 %v3267, %v3510
      %v3598 = vadd.f32 %v3268, %v3514
      %v3599 = vadd.f32 %v3269, %v3516
      %v3600 = vadd.f32 %v3270, %v3520
      %v3601 = vadd.f32 %v3271, %v3522
      %v3602 = vadd.f32 %v3272, %v3526
      %v3603 = vadd.f32 %v3273, %v3528
      %v3604 = vadd.f32 %v3274, %v3532
      %v3605 = vadd.f32 %v3275, %v3534
      %v3606 = vadd.f32 %v3276, %v3538
      %v3607 = vadd.f32 %v3277, %v3540
      %v3608 = vadd.f32 %v3278, %v3544
      %v3609 = vadd.f32 %v3279, %v3546
      %v3610 = vadd.f32 %v3280, %v3550
      %v3611 = vadd.f32 %v3281, %v3552
      %3612 = vst [vmem:[#allocation3] sm:$0xff] %v3554
      %3613 = vst [vmem:[#allocation3 + $0x8] sm:$0xff] %v3555
      %3614 = vst [vmem:[#allocation3 + $0x10] sm:$0xff] %v3556
      %3615 = vst [vmem:[#allocation3 + $0x18] sm:$0xff] %v3557
      %3616 = vst [vmem:[#allocation3 + $0x20] sm:$0xff] %v3558
      %3617 = vst [vmem:[#allocation3 + $0x28] sm:$0xff] %v3559
      %3618 = vst [vmem:[#allocation3 + $0x30] sm:$0xff] %v3560
      %3619 = vst [vmem:[#allocation3 + $0x38] sm:$0xff] %v3561
      %3620 = vst [vmem:[#allocation3 + $0x40] sm:$0xff] %v3562
      %3621 = vst [vmem:[#allocation3 + $0x48] sm:$0xff] %v3563
      %3622 = vst [vmem:[#allocation3 + $0x50] sm:$0xff] %v3564
      %3623 = vst [vmem:[#allocation3 + $0x58] sm:$0xff] %v3565
      %3624 = vst [vmem:[#allocation3 + $0x60] sm:$0xff] %v3566
      %3625 = vst [vmem:[#allocation3 + $0x68] sm:$0xff] %v3567
      %3626 = vst [vmem:[#allocation3 + $0x70] sm:$0xff] %v3568
      %3627 = vst [vmem:[#allocation3 + $0x78] sm:$0xff] %v3569
      %3628 = vst [vmem:[#allocation3 + $0x80] sm:$0xff] %v3570
      %3629 = vst [vmem:[#allocation3 + $0x88] sm:$0xff] %v3571
      %3630 = vst [vmem:[#allocation3 + $0x90] sm:$0xff] %v3572
      %3631 = vst [vmem:[#allocation3 + $0x98] sm:$0xff] %v3573
      %3632 = vst [vmem:[#allocation3 + $0xa0] sm:$0xff] %v3574
      %3633 = vst [vmem:[#allocation3 + $0xa8] sm:$0xff] %v3575
      %3634 = vst [vmem:[#allocation3 + $0xb0] sm:$0xff] %v3576
      %3635 = vst [vmem:[#allocation3 + $0xb8] sm:$0xff] %v3577
      %3636 = vst [vmem:[#allocation3 + $0xc0] sm:$0xff] %v3578
      %3637 = vst [vmem:[#allocation3 + $0xc8] sm:$0xff] %v3579
      %3638 = vst [vmem:[#allocation3 + $0xd0] sm:$0xff] %v3580
      %3639 = vst [vmem:[#allocation3 + $0xd8] sm:$0xff] %v3581
      %3640 = vst [vmem:[#allocation3 + $0xe0] sm:$0xff] %v3582
      %3641 = vst [vmem:[#allocation3 + $0xe8] sm:$0xff] %v3583
      %3642 = vst [vmem:[#allocation3 + $0xf0] sm:$0xff] %v3584
      %3643 = vst [vmem:[#allocation3 + $0xf8] sm:$0xff] %v3585
      %3644 = vst [vmem:[#allocation3 + $0x100] sm:$0xff] %v3586
      %3645 = vst [vmem:[#allocation3 + $0x108] sm:$0xff] %v3587
      %3646 = vst [vmem:[#allocation3 + $0x110] sm:$0xff] %v3588
      %3647 = vst [vmem:[#allocation3 + $0x118] sm:$0xff] %v3589
      %3648 = vst [vmem:[#allocation3 + $0x120] sm:$0xff] %v3590
      %3649 = vst [vmem:[#allocation3 + $0x128] sm:$0xff] %v3591
      %3650 = vst [vmem:[#allocation3 + $0x130] sm:$0xff] %v3592
      %3651 = vst [vmem:[#allocation3 + $0x138] sm:$0xff] %v3593
      %3652 = vst [vmem:[#allocation3 + $0x140] sm:$0xff] %v3594
      %3653 = vst [vmem:[#allocation3 + $0x148] sm:$0xff] %v3595
      %3654 = vst [vmem:[#allocation3 + $0x150] sm:$0xff] %v3596
      %3655 = vst [vmem:[#allocation3 + $0x158] sm:$0xff] %v3597
      %3656 = vst [vmem:[#allocation3 + $0x160] sm:$0xff] %v3598
      %3657 = vst [vmem:[#allocation3 + $0x168] sm:$0xff] %v3599
      %3658 = vst [vmem:[#allocation3 + $0x170] sm:$0xff] %v3600
      %3659 = vst [vmem:[#allocation3 + $0x178] sm:$0xff] %v3601
      %3660 = vst [vmem:[#allocation3 + $0x180] sm:$0xff] %v3602
      %3661 = vst [vmem:[#allocation3 + $0x188] sm:$0xff] %v3603
      %3662 = vst [vmem:[#allocation3 + $0x190] sm:$0xff] %v3604
      %3663 = vst [vmem:[#allocation3 + $0x198] sm:$0xff] %v3605
      %3664 = vst [vmem:[#allocation3 + $0x1a0] sm:$0xff] %v3606
      %3665 = vst [vmem:[#allocation3 + $0x1a8] sm:$0xff] %v3607
      %3666 = vst [vmem:[#allocation3 + $0x1b0] sm:$0xff] %v3608
      %3667 = vst [vmem:[#allocation3 + $0x1b8] sm:$0xff] %v3609
      %3668 = vst [vmem:[#allocation3 + $0x1c0] sm:$0x7f] %v3610
      %3669 = vst [vmem:[#allocation3 + $0x1c8] sm:$0x7f] %v3611
      %v3670 = vld [vmem:[#allocation2 + $0x17] sm:$0xff]
      %v3671 = vld [vmem:[#allocation2 + $0x1f] sm:$0xff]
      %v3672 = vld [vmem:[#allocation2 + $0x27] sm:$0xff]
      %v3673 = vld [vmem:[#allocation2 + $0x2f] sm:$0xff]
      %v3674 = vld [vmem:[#allocation2 + $0x37] sm:$0xff]
      %v3675 = vld [vmem:[#allocation2 + $0x3f] sm:$0xff]
      %v3676 = vld [vmem:[#allocation2 + $0x47] sm:$0xff]
      %v3677 = vld [vmem:[#allocation2 + $0x4f] sm:$0xff]
      %v3678 = vld [vmem:[#allocation2 + $0x57] sm:$0xff]
      %v3679 = vld [vmem:[#allocation2 + $0x5f] sm:$0xff]
      %v3680 = vld [vmem:[#allocation2 + $0x67] sm:$0xff]
      %v3681 = vld [vmem:[#allocation2 + $0x6f] sm:$0xff]
      %v3682 = vld [vmem:[#allocation2 + $0x77] sm:$0xff]
      %v3683 = vld [vmem:[#allocation2 + $0x7f] sm:$0xff]
      %v3684 = vld [vmem:[#allocation2 + $0x87] sm:$0xff]
      %v3685 = vld [vmem:[#allocation2 + $0x8f] sm:$0xff]
      %v3686 = vld [vmem:[#allocation2 + $0x97] sm:$0xff]
      %v3687 = vld [vmem:[#allocation2 + $0x9f] sm:$0xff]
      %v3688 = vld [vmem:[#allocation2 + $0xa7] sm:$0xff]
      %v3689 = vld [vmem:[#allocation2 + $0xaf] sm:$0xff]
      %v3690 = vld [vmem:[#allocation2 + $0xb7] sm:$0xff]
      %v3691 = vld [vmem:[#allocation2 + $0xbf] sm:$0xff]
      %v3692 = vld [vmem:[#allocation2 + $0xc7] sm:$0xff]
      %v3693 = vld [vmem:[#allocation2 + $0xcf] sm:$0xff]
      %v3694 = vld [vmem:[#allocation2 + $0xd7] sm:$0xff]
      %v3695 = vld [vmem:[#allocation2 + $0xdf] sm:$0xff]
      %v3696 = vld [vmem:[#allocation2 + $0xe7] sm:$0xff]
      %v3697 = vld [vmem:[#allocation2 + $0xef] sm:$0xff]
      %v3698 = vld [vmem:[#allocation2 + $0xf7] sm:$0x7f]
      %v3699 = vld [vmem:[#allocation3] sm:$0xff]
      %v3700 = vld [vmem:[#allocation3 + $0x8] sm:$0xff]
      %v3701 = vld [vmem:[#allocation3 + $0x10] sm:$0xff]
      %v3702 = vld [vmem:[#allocation3 + $0x18] sm:$0xff]
      %v3703 = vld [vmem:[#allocation3 + $0x20] sm:$0xff]
      %v3704 = vld [vmem:[#allocation3 + $0x28] sm:$0xff]
      %v3705 = vld [vmem:[#allocation3 + $0x30] sm:$0xff]
      %v3706 = vld [vmem:[#allocation3 + $0x38] sm:$0xff]
      %v3707 = vld [vmem:[#allocation3 + $0x40] sm:$0xff]
      %v3708 = vld [vmem:[#allocation3 + $0x48] sm:$0xff]
      %v3709 = vld [vmem:[#allocation3 + $0x50] sm:$0xff]
      %v3710 = vld [vmem:[#allocation3 + $0x58] sm:$0xff]
      %v3711 = vld [vmem:[#allocation3 + $0x60] sm:$0xff]
      %v3712 = vld [vmem:[#allocation3 + $0x68] sm:$0xff]
      %v3713 = vld [vmem:[#allocation3 + $0x70] sm:$0xff]
      %v3714 = vld [vmem:[#allocation3 + $0x78] sm:$0xff]
      %v3715 = vld [vmem:[#allocation3 + $0x80] sm:$0xff]
      %v3716 = vld [vmem:[#allocation3 + $0x88] sm:$0xff]
      %v3717 = vld [vmem:[#allocation3 + $0x90] sm:$0xff]
      %v3718 = vld [vmem:[#allocation3 + $0x98] sm:$0xff]
      %v3719 = vld [vmem:[#allocation3 + $0xa0] sm:$0xff]
      %v3720 = vld [vmem:[#allocation3 + $0xa8] sm:$0xff]
      %v3721 = vld [vmem:[#allocation3 + $0xb0] sm:$0xff]
      %v3722 = vld [vmem:[#allocation3 + $0xb8] sm:$0xff]
      %v3723 = vld [vmem:[#allocation3 + $0xc0] sm:$0xff]
      %v3724 = vld [vmem:[#allocation3 + $0xc8] sm:$0xff]
      %v3725 = vld [vmem:[#allocation3 + $0xd0] sm:$0xff]
      %v3726 = vld [vmem:[#allocation3 + $0xd8] sm:$0xff]
      %v3727 = vld [vmem:[#allocation3 + $0xe0] sm:$0xff]
      %v3728 = vld [vmem:[#allocation3 + $0xe8] sm:$0xff]
      %v3729 = vld [vmem:[#allocation3 + $0xf0] sm:$0xff]
      %v3730 = vld [vmem:[#allocation3 + $0xf8] sm:$0xff]
      %v3731 = vld [vmem:[#allocation3 + $0x100] sm:$0xff]
      %v3732 = vld [vmem:[#allocation3 + $0x108] sm:$0xff]
      %v3733 = vld [vmem:[#allocation3 + $0x110] sm:$0xff]
      %v3734 = vld [vmem:[#allocation3 + $0x118] sm:$0xff]
      %v3735 = vld [vmem:[#allocation3 + $0x120] sm:$0xff]
      %v3736 = vld [vmem:[#allocation3 + $0x128] sm:$0xff]
      %v3737 = vld [vmem:[#allocation3 + $0x130] sm:$0xff]
      %v3738 = vld [vmem:[#allocation3 + $0x138] sm:$0xff]
      %v3739 = vld [vmem:[#allocation3 + $0x140] sm:$0xff]
      %v3740 = vld [vmem:[#allocation3 + $0x148] sm:$0xff]
      %v3741 = vld [vmem:[#allocation3 + $0x150] sm:$0xff]
      %v3742 = vld [vmem:[#allocation3 + $0x158] sm:$0xff]
      %v3743 = vld [vmem:[#allocation3 + $0x160] sm:$0xff]
      %v3744 = vld [vmem:[#allocation3 + $0x168] sm:$0xff]
      %v3745 = vld [vmem:[#allocation3 + $0x170] sm:$0xff]
      %v3746 = vld [vmem:[#allocation3 + $0x178] sm:$0xff]
      %v3747 = vld [vmem:[#allocation3 + $0x180] sm:$0xff]
      %v3748 = vld [vmem:[#allocation3 + $0x188] sm:$0xff]
      %v3749 = vld [vmem:[#allocation3 + $0x190] sm:$0xff]
      %v3750 = vld [vmem:[#allocation3 + $0x198] sm:$0xff]
      %v3751 = vld [vmem:[#allocation3 + $0x1a0] sm:$0xff]
      %v3752 = vld [vmem:[#allocation3 + $0x1a8] sm:$0xff]
      %v3753 = vld [vmem:[#allocation3 + $0x1b0] sm:$0xff]
      %v3754 = vld [vmem:[#allocation3 + $0x1b8] sm:$0xff]
      %v3755 = vld [vmem:[#allocation3 + $0x1c0] sm:$0x7f]
      %v3756 = vld [vmem:[#allocation3 + $0x1c8] sm:$0x7f]
      %s3757 = scalar_lea.vmem %s2, 1536
      %v3758 = vld [vmem:[%s3757] sm:$0xff]
      %v3759 = vld [vmem:[%s3757 + $0x8] sm:$0xff]
      %v3760 = vld [vmem:[%s3757 + $0x10] sm:$0xff]
      %v3761 = vld [vmem:[%s3757 + $0x18] sm:$0xff]
      %v3762 = vld [vmem:[%s3757 + $0x20] sm:$0xff]
      %v3763 = vld [vmem:[%s3757 + $0x28] sm:$0xff]
      %v3764 = vld [vmem:[%s3757 + $0x30] sm:$0xff]
      %v3765 = vld [vmem:[%s3757 + $0x38] sm:$0xff]
      %v3766 = vld [vmem:[%s3757 + $0x40] sm:$0xff]
      %v3767 = vld [vmem:[%s3757 + $0x48] sm:$0xff]
      %v3768 = vld [vmem:[%s3757 + $0x50] sm:$0xff]
      %v3769 = vld [vmem:[%s3757 + $0x58] sm:$0xff]
      %v3770 = vld [vmem:[%s3757 + $0x60] sm:$0xff]
      %v3771 = vld [vmem:[%s3757 + $0x68] sm:$0xff]
      %v3772 = vld [vmem:[%s3757 + $0x70] sm:$0xff]
      %v3773 = vld [vmem:[%s3757 + $0x78] sm:$0xff]
      %v3774 = vld [vmem:[%s3757 + $0x80] sm:$0xff]
      %v3775 = vld [vmem:[%s3757 + $0x88] sm:$0xff]
      %v3776 = vld [vmem:[%s3757 + $0x90] sm:$0xff]
      %v3777 = vld [vmem:[%s3757 + $0x98] sm:$0xff]
      %v3778 = vld [vmem:[%s3757 + $0xa0] sm:$0xff]
      %v3779 = vld [vmem:[%s3757 + $0xa8] sm:$0xff]
      %v3780 = vld [vmem:[%s3757 + $0xb0] sm:$0xff]
      %v3781 = vld [vmem:[%s3757 + $0xb8] sm:$0xff]
      %v3782 = vld [vmem:[%s3757 + $0xc0] sm:$0xff]
      %v3783 = vld [vmem:[%s3757 + $0xc8] sm:$0xff]
      %v3784 = vld [vmem:[%s3757 + $0xd0] sm:$0xff]
      %v3785 = vld [vmem:[%s3757 + $0xd8] sm:$0xff]
      %v3786 = vld [vmem:[%s3757 + $0xe0] sm:$0xff]
      %v3787 = vld [vmem:[%s3757 + $0xe8] sm:$0xff]
      %v3788 = vld [vmem:[%s3757 + $0xf0] sm:$0xff]
      %v3789 = vld [vmem:[%s3757 + $0xf8] sm:$0xff]
      %3790 = vmatprep.subr.mxu0 %v3759
      %3791 = vmatpush1.msra.mxu0 %v3758
      %3792 = vmatprep.subr.mxu0 %v3761
      %3793 = vmatpush1.msra.mxu0 %v3760
      %3794 = vmatprep.subr.mxu0 %v3763
      %3795 = vmatpush1.msra.mxu0 %v3762
      %3796 = vmatprep.subr.mxu0 %v3765
      %3797 = vmatpush1.msra.mxu0 %v3764
      %3798 = vmatprep.subr.mxu0 %v3767
      %3799 = vmatpush1.msra.mxu0 %v3766
      %3800 = vmatprep.subr.mxu0 %v3769
      %3801 = vmatpush1.msra.mxu0 %v3768
      %3802 = vmatprep.subr.mxu0 %v3771
      %3803 = vmatpush1.msra.mxu0 %v3770
      %3804 = vmatprep.subr.mxu0 %v3773
      %3805 = vmatpush1.msra.mxu0 %v3772
      %3806 = vmatprep.subr.mxu0 %v3775
      %3807 = vmatpush1.msra.mxu0 %v3774
      %3808 = vmatprep.subr.mxu0 %v3777
      %3809 = vmatpush1.msra.mxu0 %v3776
      %3810 = vmatprep.subr.mxu0 %v3779
      %3811 = vmatpush1.msra.mxu0 %v3778
      %3812 = vmatprep.subr.mxu0 %v3781
      %3813 = vmatpush1.msra.mxu0 %v3780
      %3814 = vmatprep.subr.mxu0 %v3783
      %3815 = vmatpush1.msra.mxu0 %v3782
      %3816 = vmatprep.subr.mxu0 %v3785
      %3817 = vmatpush1.msra.mxu0 %v3784
      %3818 = vmatprep.subr.mxu0 %v3787
      %3819 = vmatpush1.msra.mxu0 %v3786
      %3820 = vmatprep.subr.mxu0 %v3789
      %3821 = vmatpush1.msra.mxu0 %v3788
      %3822 = vmatprep.subr.mxu0 0.0
      %3823 = vmatpush1.msra.mxu0 0.0
      %3824 = vmatprep.subr.mxu0 0.0
      %3825 = vmatpush1.msra.mxu0 0.0
      %3826 = vmatprep.subr.mxu0 0.0
      %3827 = vmatpush1.msra.mxu0 0.0
      %3828 = vmatprep.subr.mxu0 0.0
      %3829 = vmatpush1.msra.mxu0 0.0
      %3830 = vmatprep.subr.mxu0 0.0
      %3831 = vmatpush1.msra.mxu0 0.0
      %3832 = vmatprep.subr.mxu0 0.0
      %3833 = vmatpush1.msra.mxu0 0.0
      %3834 = vmatprep.subr.mxu0 0.0
      %3835 = vmatpush1.msra.mxu0 0.0
      %3836 = vmatprep.subr.mxu0 0.0
      %3837 = vmatpush1.msra.mxu0 0.0
      %3838 = vmatprep.subr.mxu0 0.0
      %3839 = vmatpush1.msra.mxu0 0.0
      %3840 = vmatprep.subr.mxu0 0.0
      %3841 = vmatpush1.msra.mxu0 0.0
      %3842 = vmatprep.subr.mxu0 0.0
      %3843 = vmatpush1.msra.mxu0 0.0
      %3844 = vmatprep.subr.mxu0 0.0
      %3845 = vmatpush1.msra.mxu0 0.0
      %3846 = vmatprep.subr.mxu0 0.0
      %3847 = vmatpush1.msra.mxu0 0.0
      %3848 = vmatprep.subr.mxu0 0.0
      %3849 = vmatpush1.msra.mxu0 0.0
      %3850 = vmatprep.subr.mxu0 0.0
      %3851 = vmatpush1.msra.mxu0 0.0
      %3852 = vmatprep.subr.mxu0 0.0
      %3853 = vmatpush1.msra.mxu0 0.0
      %3854 = vmatprep.mubr.f32.mxu0 0.0
      %3855 = vmatmul.mubr.f32.gmra.mrb[0].mxu0 %v3670
      %v3856 = vpop.f32.mrb[0].mxu0
      %v3857 = vadd.f32 0.0, %v3856
      %v3858 = vpop.f32.mrb[0].mxu0
      %v3859 = vadd.f32 0.0, %v3858
      %3860 = vmatprep.mubr.f32.mxu0 0.0
      %3861 = vmatmul.mubr.f32.gmra.mrb[0].mxu0 %v3671
      %v3862 = vpop.f32.mrb[0].mxu0
      %v3863 = vadd.f32 0.0, %v3862
      %v3864 = vpop.f32.mrb[0].mxu0
      %v3865 = vadd.f32 0.0, %v3864
      %3866 = vmatprep.mubr.f32.mxu0 0.0
      %3867 = vmatmul.mubr.f32.gmra.mrb[0].mxu0 %v3672
      %v3868 = vpop.f32.mrb[0].mxu0
      %v3869 = vadd.f32 0.0, %v3868
      %v3870 = vpop.f32.mrb[0].mxu0
      %v3871 = vadd.f32 0.0, %v3870
      %3872 = vmatprep.mubr.f32.mxu0 0.0
      %3873 = vmatmul.mubr.f32.gmra.mrb[0].mxu0 %v3673
      %v3874 = vpop.f32.mrb[0].mxu0
      %v3875 = vadd.f32 0.0, %v3874
      %v3876 = vpop.f32.mrb[0].mxu0
      %v3877 = vadd.f32 0.0, %v3876
      %3878 = vmatprep.mubr.f32.mxu0 0.0
      %3879 = vmatmul.mubr.f32.gmra.mrb[0].mxu0 %v3674
      %v3880 = vpop.f32.mrb[0].mxu0
      %v3881 = vadd.f32 0.0, %v3880
      %v3882 = vpop.f32.mrb[0].mxu0
      %v3883 = vadd.f32 0.0, %v3882
      %3884 = vmatprep.mubr.f32.mxu0 0.0
      %3885 = vmatmul.mubr.f32.gmra.mrb[0].mxu0 %v3675
      %v3886 = vpop.f32.mrb[0].mxu0
      %v3887 = vadd.f32 0.0, %v3886
      %v3888 = vpop.f32.mrb[0].mxu0
      %v3889 = vadd.f32 0.0, %v3888
      %3890 = vmatprep.mubr.f32.mxu0 0.0
      %3891 = vmatmul.mubr.f32.gmra.mrb[0].mxu0 %v3676
      %v3892 = vpop.f32.mrb[0].mxu0
      %v3893 = vadd.f32 0.0, %v3892
      %v3894 = vpop.f32.mrb[0].mxu0
      %v3895 = vadd.f32 0.0, %v3894
      %3896 = vmatprep.mubr.f32.mxu0 0.0
      %3897 = vmatmul.mubr.f32.gmra.mrb[0].mxu0 %v3677
      %v3898 = vpop.f32.mrb[0].mxu0
      %v3899 = vadd.f32 0.0, %v3898
      %v3900 = vpop.f32.mrb[0].mxu0
      %v3901 = vadd.f32 0.0, %v3900
      %3902 = vmatprep.mubr.f32.mxu0 0.0
      %3903 = vmatmul.mubr.f32.gmra.mrb[0].mxu0 %v3678
      %v3904 = vpop.f32.mrb[0].mxu0
      %v3905 = vadd.f32 0.0, %v3904
      %v3906 = vpop.f32.mrb[0].mxu0
      %v3907 = vadd.f32 0.0, %v3906
      %3908 = vmatprep.mubr.f32.mxu0 0.0
      %3909 = vmatmul.mubr.f32.gmra.mrb[0].mxu0 %v3679
      %v3910 = vpop.f32.mrb[0].mxu0
      %v3911 = vadd.f32 0.0, %v3910
      %v3912 = vpop.f32.mrb[0].mxu0
      %v3913 = vadd.f32 0.0, %v3912
      %3914 = vmatprep.mubr.f32.mxu0 0.0
      %3915 = vmatmul.mubr.f32.gmra.mrb[0].mxu0 %v3680
      %v3916 = vpop.f32.mrb[0].mxu0
      %v3917 = vadd.f32 0.0, %v3916
      %v3918 = vpop.f32.mrb[0].mxu0
      %v3919 = vadd.f32 0.0, %v3918
      %3920 = vmatprep.mubr.f32.mxu0 0.0
      %3921 = vmatmul.mubr.f32.gmra.mrb[0].mxu0 %v3681
      %v3922 = vpop.f32.mrb[0].mxu0
      %v3923 = vadd.f32 0.0, %v3922
      %v3924 = vpop.f32.mrb[0].mxu0
      %v3925 = vadd.f32 0.0, %v3924
      %3926 = vmatprep.mubr.f32.mxu0 0.0
      %3927 = vmatmul.mubr.f32.gmra.mrb[0].mxu0 %v3682
      %v3928 = vpop.f32.mrb[0].mxu0
      %v3929 = vadd.f32 0.0, %v3928
      %v3930 = vpop.f32.mrb[0].mxu0
      %v3931 = vadd.f32 0.0, %v3930
      %3932 = vmatprep.mubr.f32.mxu0 0.0
      %3933 = vmatmul.mubr.f32.gmra.mrb[0].mxu0 %v3683
      %v3934 = vpop.f32.mrb[0].mxu0
      %v3935 = vadd.f32 0.0, %v3934
      %v3936 = vpop.f32.mrb[0].mxu0
      %v3937 = vadd.f32 0.0, %v3936
      %3938 = vmatprep.mubr.f32.mxu0 0.0
      %3939 = vmatmul.mubr.f32.gmra.mrb[0].mxu0 %v3684
      %v3940 = vpop.f32.mrb[0].mxu0
      %v3941 = vadd.f32 0.0, %v3940
      %v3942 = vpop.f32.mrb[0].mxu0
      %v3943 = vadd.f32 0.0, %v3942
      %3944 = vmatprep.mubr.f32.mxu0 0.0
      %3945 = vmatmul.mubr.f32.gmra.mrb[0].mxu0 %v3685
      %v3946 = vpop.f32.mrb[0].mxu0
      %v3947 = vadd.f32 0.0, %v3946
      %v3948 = vpop.f32.mrb[0].mxu0
      %v3949 = vadd.f32 0.0, %v3948
      %3950 = vmatprep.mubr.f32.mxu0 0.0
      %3951 = vmatmul.mubr.f32.gmra.mrb[0].mxu0 %v3686
      %v3952 = vpop.f32.mrb[0].mxu0
      %v3953 = vadd.f32 0.0, %v3952
      %v3954 = vpop.f32.mrb[0].mxu0
      %v3955 = vadd.f32 0.0, %v3954
      %3956 = vmatprep.mubr.f32.mxu0 0.0
      %3957 = vmatmul.mubr.f32.gmra.mrb[0].mxu0 %v3687
      %v3958 = vpop.f32.mrb[0].mxu0
      %v3959 = vadd.f32 0.0, %v3958
      %v3960 = vpop.f32.mrb[0].mxu0
      %v3961 = vadd.f32 0.0, %v3960
      %3962 = vmatprep.mubr.f32.mxu0 0.0
      %3963 = vmatmul.mubr.f32.gmra.mrb[0].mxu0 %v3688
      %v3964 = vpop.f32.mrb[0].mxu0
      %v3965 = vadd.f32 0.0, %v3964
      %v3966 = vpop.f32.mrb[0].mxu0
      %v3967 = vadd.f32 0.0, %v3966
      %3968 = vmatprep.mubr.f32.mxu0 0.0
      %3969 = vmatmul.mubr.f32.gmra.mrb[0].mxu0 %v3689
      %v3970 = vpop.f32.mrb[0].mxu0
      %v3971 = vadd.f32 0.0, %v3970
      %v3972 = vpop.f32.mrb[0].mxu0
      %v3973 = vadd.f32 0.0, %v3972
      %3974 = vmatprep.mubr.f32.mxu0 0.0
      %3975 = vmatmul.mubr.f32.gmra.mrb[0].mxu0 %v3690
      %v3976 = vpop.f32.mrb[0].mxu0
      %v3977 = vadd.f32 0.0, %v3976
      %v3978 = vpop.f32.mrb[0].mxu0
      %v3979 = vadd.f32 0.0, %v3978
      %3980 = vmatprep.mubr.f32.mxu0 0.0
      %3981 = vmatmul.mubr.f32.gmra.mrb[0].mxu0 %v3691
      %v3982 = vpop.f32.mrb[0].mxu0
      %v3983 = vadd.f32 0.0, %v3982
      %v3984 = vpop.f32.mrb[0].mxu0
      %v3985 = vadd.f32 0.0, %v3984
      %3986 = vmatprep.mubr.f32.mxu0 0.0
      %3987 = vmatmul.mubr.f32.gmra.mrb[0].mxu0 %v3692
      %v3988 = vpop.f32.mrb[0].mxu0
      %v3989 = vadd.f32 0.0, %v3988
      %v3990 = vpop.f32.mrb[0].mxu0
      %v3991 = vadd.f32 0.0, %v3990
      %3992 = vmatprep.mubr.f32.mxu0 0.0
      %3993 = vmatmul.mubr.f32.gmra.mrb[0].mxu0 %v3693
      %v3994 = vpop.f32.mrb[0].mxu0
      %v3995 = vadd.f32 0.0, %v3994
      %v3996 = vpop.f32.mrb[0].mxu0
      %v3997 = vadd.f32 0.0, %v3996
      %3998 = vmatprep.mubr.f32.mxu0 0.0
      %3999 = vmatmul.mubr.f32.gmra.mrb[0].mxu0 %v3694
      %v4000 = vpop.f32.mrb[0].mxu0
      %v4001 = vadd.f32 0.0, %v4000
      %v4002 = vpop.f32.mrb[0].mxu0
      %v4003 = vadd.f32 0.0, %v4002
      %4004 = vmatprep.mubr.f32.mxu0 0.0
      %4005 = vmatmul.mubr.f32.gmra.mrb[0].mxu0 %v3695
      %v4006 = vpop.f32.mrb[0].mxu0
      %v4007 = vadd.f32 0.0, %v4006
      %v4008 = vpop.f32.mrb[0].mxu0
      %v4009 = vadd.f32 0.0, %v4008
      %4010 = vmatprep.mubr.f32.mxu0 0.0
      %4011 = vmatmul.mubr.f32.gmra.mrb[0].mxu0 %v3696
      %v4012 = vpop.f32.mrb[0].mxu0
      %v4013 = vadd.f32 0.0, %v4012
      %v4014 = vpop.f32.mrb[0].mxu0
      %v4015 = vadd.f32 0.0, %v4014
      %4016 = vmatprep.mubr.f32.mxu0 0.0
      %4017 = vmatmul.mubr.f32.gmra.mrb[0].mxu0 %v3697
      %v4018 = vpop.f32.mrb[0].mxu0
      %v4019 = vadd.f32 0.0, %v4018
      %v4020 = vpop.f32.mrb[0].mxu0
      %v4021 = vadd.f32 0.0, %v4020
      %4022 = vmatprep.mubr.f32.mxu0 0.0
      %4023 = vmatmul.mubr.f32.gmra.mrb[0].mxu0 %v3698
      %v4024 = vpop.f32.mrb[0].mxu0
      %v4025 = vadd.f32 0.0, %v4024
      %v4026 = vpop.f32.mrb[0].mxu0
      %v4027 = vadd.f32 0.0, %v4026
      %4028 = vdwg.mxu0
      %v4029 = vadd.f32 %v3699, %v3857
      %v4030 = vadd.f32 %v3700, %v3859
      %v4031 = vadd.f32 %v3701, %v3863
      %v4032 = vadd.f32 %v3702, %v3865
      %v4033 = vadd.f32 %v3703, %v3869
      %v4034 = vadd.f32 %v3704, %v3871
      %v4035 = vadd.f32 %v3705, %v3875
      %v4036 = vadd.f32 %v3706, %v3877
      %v4037 = vadd.f32 %v3707, %v3881
      %v4038 = vadd.f32 %v3708, %v3883
      %v4039 = vadd.f32 %v3709, %v3887
      %v4040 = vadd.f32 %v3710, %v3889
      %v4041 = vadd.f32 %v3711, %v3893
      %v4042 = vadd.f32 %v3712, %v3895
      %v4043 = vadd.f32 %v3713, %v3899
      %v4044 = vadd.f32 %v3714, %v3901
      %v4045 = vadd.f32 %v3715, %v3905
      %v4046 = vadd.f32 %v3716, %v3907
      %v4047 = vadd.f32 %v3717, %v3911
      %v4048 = vadd.f32 %v3718, %v3913
      %v4049 = vadd.f32 %v3719, %v3917
      %v4050 = vadd.f32 %v3720, %v3919
      %v4051 = vadd.f32 %v3721, %v3923
      %v4052 = vadd.f32 %v3722, %v3925
      %v4053 = vadd.f32 %v3723, %v3929
      %v4054 = vadd.f32 %v3724, %v3931
      %v4055 = vadd.f32 %v3725, %v3935
      %v4056 = vadd.f32 %v3726, %v3937
      %v4057 = vadd.f32 %v3727, %v3941
      %v4058 = vadd.f32 %v3728, %v3943
      %v4059 = vadd.f32 %v3729, %v3947
      %v4060 = vadd.f32 %v3730, %v3949
      %v4061 = vadd.f32 %v3731, %v3953
      %v4062 = vadd.f32 %v3732, %v3955
      %v4063 = vadd.f32 %v3733, %v3959
      %v4064 = vadd.f32 %v3734, %v3961
      %v4065 = vadd.f32 %v3735, %v3965
      %v4066 = vadd.f32 %v3736, %v3967
      %v4067 = vadd.f32 %v3737, %v3971
      %v4068 = vadd.f32 %v3738, %v3973
      %v4069 = vadd.f32 %v3739, %v3977
      %v4070 = vadd.f32 %v3740, %v3979
      %v4071 = vadd.f32 %v3741, %v3983
      %v4072 = vadd.f32 %v3742, %v3985
      %v4073 = vadd.f32 %v3743, %v3989
      %v4074 = vadd.f32 %v3744, %v3991
      %v4075 = vadd.f32 %v3745, %v3995
      %v4076 = vadd.f32 %v3746, %v3997
      %v4077 = vadd.f32 %v3747, %v4001
      %v4078 = vadd.f32 %v3748, %v4003
      %v4079 = vadd.f32 %v3749, %v4007
      %v4080 = vadd.f32 %v3750, %v4009
      %v4081 = vadd.f32 %v3751, %v4013
      %v4082 = vadd.f32 %v3752, %v4015
      %v4083 = vadd.f32 %v3753, %v4019
      %v4084 = vadd.f32 %v3754, %v4021
      %v4085 = vadd.f32 %v3755, %v4025
      %v4086 = vadd.f32 %v3756, %v4027
      %4087 = vst [vmem:[#allocation3] sm:$0xff] %v4029
      %4088 = vst [vmem:[#allocation3 + $0x8] sm:$0xff] %v4030
      %4089 = vst [vmem:[#allocation3 + $0x10] sm:$0xff] %v4031
      %4090 = vst [vmem:[#allocation3 + $0x18] sm:$0xff] %v4032
      %4091 = vst [vmem:[#allocation3 + $0x20] sm:$0xff] %v4033
      %4092 = vst [vmem:[#allocation3 + $0x28] sm:$0xff] %v4034
      %4093 = vst [vmem:[#allocation3 + $0x30] sm:$0xff] %v4035
      %4094 = vst [vmem:[#allocation3 + $0x38] sm:$0xff] %v4036
      %4095 = vst [vmem:[#allocation3 + $0x40] sm:$0xff] %v4037
      %4096 = vst [vmem:[#allocation3 + $0x48] sm:$0xff] %v4038
      %4097 = vst [vmem:[#allocation3 + $0x50] sm:$0xff] %v4039
      %4098 = vst [vmem:[#allocation3 + $0x58] sm:$0xff] %v4040
      %4099 = vst [vmem:[#allocation3 + $0x60] sm:$0xff] %v4041
      %4100 = vst [vmem:[#allocation3 + $0x68] sm:$0xff] %v4042
      %4101 = vst [vmem:[#allocation3 + $0x70] sm:$0xff] %v4043
      %4102 = vst [vmem:[#allocation3 + $0x78] sm:$0xff] %v4044
      %4103 = vst [vmem:[#allocation3 + $0x80] sm:$0xff] %v4045
      %4104 = vst [vmem:[#allocation3 + $0x88] sm:$0xff] %v4046
      %4105 = vst [vmem:[#allocation3 + $0x90] sm:$0xff] %v4047
      %4106 = vst [vmem:[#allocation3 + $0x98] sm:$0xff] %v4048
      %4107 = vst [vmem:[#allocation3 + $0xa0] sm:$0xff] %v4049
      %4108 = vst [vmem:[#allocation3 + $0xa8] sm:$0xff] %v4050
      %4109 = vst [vmem:[#allocation3 + $0xb0] sm:$0xff] %v4051
      %4110 = vst [vmem:[#allocation3 + $0xb8] sm:$0xff] %v4052
      %4111 = vst [vmem:[#allocation3 + $0xc0] sm:$0xff] %v4053
      %4112 = vst [vmem:[#allocation3 + $0xc8] sm:$0xff] %v4054
      %4113 = vst [vmem:[#allocation3 + $0xd0] sm:$0xff] %v4055
      %4114 = vst [vmem:[#allocation3 + $0xd8] sm:$0xff] %v4056
      %4115 = vst [vmem:[#allocation3 + $0xe0] sm:$0xff] %v4057
      %4116 = vst [vmem:[#allocation3 + $0xe8] sm:$0xff] %v4058
      %4117 = vst [vmem:[#allocation3 + $0xf0] sm:$0xff] %v4059
      %4118 = vst [vmem:[#allocation3 + $0xf8] sm:$0xff] %v4060
      %4119 = vst [vmem:[#allocation3 + $0x100] sm:$0xff] %v4061
      %4120 = vst [vmem:[#allocation3 + $0x108] sm:$0xff] %v4062
      %4121 = vst [vmem:[#allocation3 + $0x110] sm:$0xff] %v4063
      %4122 = vst [vmem:[#allocation3 + $0x118] sm:$0xff] %v4064
      %4123 = vst [vmem:[#allocation3 + $0x120] sm:$0xff] %v4065
      %4124 = vst [vmem:[#allocation3 + $0x128] sm:$0xff] %v4066
      %4125 = vst [vmem:[#allocation3 + $0x130] sm:$0xff] %v4067
      %4126 = vst [vmem:[#allocation3 + $0x138] sm:$0xff] %v4068
      %4127 = vst [vmem:[#allocation3 + $0x140] sm:$0xff] %v4069
      %4128 = vst [vmem:[#allocation3 + $0x148] sm:$0xff] %v4070
      %4129 = vst [vmem:[#allocation3 + $0x150] sm:$0xff] %v4071
      %4130 = vst [vmem:[#allocation3 + $0x158] sm:$0xff] %v4072
      %4131 = vst [vmem:[#allocation3 + $0x160] sm:$0xff] %v4073
      %4132 = vst [vmem:[#allocation3 + $0x168] sm:$0xff] %v4074
      %4133 = vst [vmem:[#allocation3 + $0x170] sm:$0xff] %v4075
      %4134 = vst [vmem:[#allocation3 + $0x178] sm:$0xff] %v4076
      %4135 = vst [vmem:[#allocation3 + $0x180] sm:$0xff] %v4077
      %4136 = vst [vmem:[#allocation3 + $0x188] sm:$0xff] %v4078
      %4137 = vst [vmem:[#allocation3 + $0x190] sm:$0xff] %v4079
      %4138 = vst [vmem:[#allocation3 + $0x198] sm:$0xff] %v4080
      %4139 = vst [vmem:[#allocation3 + $0x1a0] sm:$0xff] %v4081
      %4140 = vst [vmem:[#allocation3 + $0x1a8] sm:$0xff] %v4082
      %4141 = vst [vmem:[#allocation3 + $0x1b0] sm:$0xff] %v4083
      %4142 = vst [vmem:[#allocation3 + $0x1b8] sm:$0xff] %v4084
      %4143 = vst [vmem:[#allocation3 + $0x1c0] sm:$0x7f] %v4085
      %4144 = vst [vmem:[#allocation3 + $0x1c8] sm:$0x7f] %v4086
      %v4145 = vld [vmem:[#allocation2 + $0x18] sm:$0xff]
      %v4146 = vld [vmem:[#allocation2 + $0x20] sm:$0xff]
      %v4147 = vld [vmem:[#allocation2 + $0x28] sm:$0xff]
      %v4148 = vld [vmem:[#allocation2 + $0x30] sm:$0xff]
      %v4149 = vld [vmem:[#allocation2 + $0x38] sm:$0xff]
      %v4150 = vld [vmem:[#allocation2 + $0x40] sm:$0xff]
      %v4151 = vld [vmem:[#allocation2 + $0x48] sm:$0xff]
      %v4152 = vld [vmem:[#allocation2 + $0x50] sm:$0xff]
      %v4153 = vld [vmem:[#allocation2 + $0x58] sm:$0xff]
      %v4154 = vld [vmem:[#allocation2 + $0x60] sm:$0xff]
      %v4155 = vld [vmem:[#allocation2 + $0x68] sm:$0xff]
      %v4156 = vld [vmem:[#allocation2 + $0x70] sm:$0xff]
      %v4157 = vld [vmem:[#allocation2 + $0x78] sm:$0xff]
      %v4158 = vld [vmem:[#allocation2 + $0x80] sm:$0xff]
      %v4159 = vld [vmem:[#allocation2 + $0x88] sm:$0xff]
      %v4160 = vld [vmem:[#allocation2 + $0x90] sm:$0xff]
      %v4161 = vld [vmem:[#allocation2 + $0x98] sm:$0xff]
      %v4162 = vld [vmem:[#allocation2 + $0xa0] sm:$0xff]
      %v4163 = vld [vmem:[#allocation2 + $0xa8] sm:$0xff]
      %v4164 = vld [vmem:[#allocation2 + $0xb0] sm:$0xff]
      %v4165 = vld [vmem:[#allocation2 + $0xb8] sm:$0xff]
      %v4166 = vld [vmem:[#allocation2 + $0xc0] sm:$0xff]
      %v4167 = vld [vmem:[#allocation2 + $0xc8] sm:$0xff]
      %v4168 = vld [vmem:[#allocation2 + $0xd0] sm:$0xff]
      %v4169 = vld [vmem:[#allocation2 + $0xd8] sm:$0xff]
      %v4170 = vld [vmem:[#allocation2 + $0xe0] sm:$0xff]
      %v4171 = vld [vmem:[#allocation2 + $0xe8] sm:$0xff]
      %v4172 = vld [vmem:[#allocation2 + $0xf0] sm:$0xff]
      %v4173 = vld [vmem:[#allocation2 + $0xf8] sm:$0x7f]
      %v4174 = vld [vmem:[#allocation3] sm:$0xff]
      %v4175 = vld [vmem:[#allocation3 + $0x8] sm:$0xff]
      %v4176 = vld [vmem:[#allocation3 + $0x10] sm:$0xff]
      %v4177 = vld [vmem:[#allocation3 + $0x18] sm:$0xff]
      %v4178 = vld [vmem:[#allocation3 + $0x20] sm:$0xff]
      %v4179 = vld [vmem:[#allocation3 + $0x28] sm:$0xff]
      %v4180 = vld [vmem:[#allocation3 + $0x30] sm:$0xff]
      %v4181 = vld [vmem:[#allocation3 + $0x38] sm:$0xff]
      %v4182 = vld [vmem:[#allocation3 + $0x40] sm:$0xff]
      %v4183 = vld [vmem:[#allocation3 + $0x48] sm:$0xff]
      %v4184 = vld [vmem:[#allocation3 + $0x50] sm:$0xff]
      %v4185 = vld [vmem:[#allocation3 + $0x58] sm:$0xff]
      %v4186 = vld [vmem:[#allocation3 + $0x60] sm:$0xff]
      %v4187 = vld [vmem:[#allocation3 + $0x68] sm:$0xff]
      %v4188 = vld [vmem:[#allocation3 + $0x70] sm:$0xff]
      %v4189 = vld [vmem:[#allocation3 + $0x78] sm:$0xff]
      %v4190 = vld [vmem:[#allocation3 + $0x80] sm:$0xff]
      %v4191 = vld [vmem:[#allocation3 + $0x88] sm:$0xff]
      %v4192 = vld [vmem:[#allocation3 + $0x90] sm:$0xff]
      %v4193 = vld [vmem:[#allocation3 + $0x98] sm:$0xff]
      %v4194 = vld [vmem:[#allocation3 + $0xa0] sm:$0xff]
      %v4195 = vld [vmem:[#allocation3 + $0xa8] sm:$0xff]
      %v4196 = vld [vmem:[#allocation3 + $0xb0] sm:$0xff]
      %v4197 = vld [vmem:[#allocation3 + $0xb8] sm:$0xff]
      %v4198 = vld [vmem:[#allocation3 + $0xc0] sm:$0xff]
      %v4199 = vld [vmem:[#allocation3 + $0xc8] sm:$0xff]
      %v4200 = vld [vmem:[#allocation3 + $0xd0] sm:$0xff]
      %v4201 = vld [vmem:[#allocation3 + $0xd8] sm:$0xff]
      %v4202 = vld [vmem:[#allocation3 + $0xe0] sm:$0xff]
      %v4203 = vld [vmem:[#allocation3 + $0xe8] sm:$0xff]
      %v4204 = vld [vmem:[#allocation3 + $0xf0] sm:$0xff]
      %v4205 = vld [vmem:[#allocation3 + $0xf8] sm:$0xff]
      %v4206 = vld [vmem:[#allocation3 + $0x100] sm:$0xff]
      %v4207 = vld [vmem:[#allocation3 + $0x108] sm:$0xff]
      %v4208 = vld [vmem:[#allocation3 + $0x110] sm:$0xff]
      %v4209 = vld [vmem:[#allocation3 + $0x118] sm:$0xff]
      %v4210 = vld [vmem:[#allocation3 + $0x120] sm:$0xff]
      %v4211 = vld [vmem:[#allocation3 + $0x128] sm:$0xff]
      %v4212 = vld [vmem:[#allocation3 + $0x130] sm:$0xff]
      %v4213 = vld [vmem:[#allocation3 + $0x138] sm:$0xff]
      %v4214 = vld [vmem:[#allocation3 + $0x140] sm:$0xff]
      %v4215 = vld [vmem:[#allocation3 + $0x148] sm:$0xff]
      %v4216 = vld [vmem:[#allocation3 + $0x150] sm:$0xff]
      %v4217 = vld [vmem:[#allocation3 + $0x158] sm:$0xff]
      %v4218 = vld [vmem:[#allocation3 + $0x160] sm:$0xff]
      %v4219 = vld [vmem:[#allocation3 + $0x168] sm:$0xff]
      %v4220 = vld [vmem:[#allocation3 + $0x170] sm:$0xff]
      %v4221 = vld [vmem:[#allocation3 + $0x178] sm:$0xff]
      %v4222 = vld [vmem:[#allocation3 + $0x180] sm:$0xff]
      %v4223 = vld [vmem:[#allocation3 + $0x188] sm:$0xff]
      %v4224 = vld [vmem:[#allocation3 + $0x190] sm:$0xff]
      %v4225 = vld [vmem:[#allocation3 + $0x198] sm:$0xff]
      %v4226 = vld [vmem:[#allocation3 + $0x1a0] sm:$0xff]
      %v4227 = vld [vmem:[#allocation3 + $0x1a8] sm:$0xff]
      %v4228 = vld [vmem:[#allocation3 + $0x1b0] sm:$0xff]
      %v4229 = vld [vmem:[#allocation3 + $0x1b8] sm:$0xff]
      %v4230 = vld [vmem:[#allocation3 + $0x1c0] sm:$0x7f]
      %v4231 = vld [vmem:[#allocation3 + $0x1c8] sm:$0x7f]
      %s4232 = scalar_lea.vmem %s2, 1792
      %v4233 = vld [vmem:[%s4232] sm:$0xff]
      %v4234 = vld [vmem:[%s4232 + $0x8] sm:$0xff]
      %v4235 = vld [vmem:[%s4232 + $0x10] sm:$0xff]
      %v4236 = vld [vmem:[%s4232 + $0x18] sm:$0xff]
      %v4237 = vld [vmem:[%s4232 + $0x20] sm:$0xff]
      %v4238 = vld [vmem:[%s4232 + $0x28] sm:$0xff]
      %v4239 = vld [vmem:[%s4232 + $0x30] sm:$0xff]
      %v4240 = vld [vmem:[%s4232 + $0x38] sm:$0xff]
      %v4241 = vld [vmem:[%s4232 + $0x40] sm:$0xff]
      %v4242 = vld [vmem:[%s4232 + $0x48] sm:$0xff]
      %v4243 = vld [vmem:[%s4232 + $0x50] sm:$0xff]
      %v4244 = vld [vmem:[%s4232 + $0x58] sm:$0xff]
      %v4245 = vld [vmem:[%s4232 + $0x60] sm:$0xff]
      %v4246 = vld [vmem:[%s4232 + $0x68] sm:$0xff]
      %v4247 = vld [vmem:[%s4232 + $0x70] sm:$0xff]
      %v4248 = vld [vmem:[%s4232 + $0x78] sm:$0xff]
      %v4249 = vld [vmem:[%s4232 + $0x80] sm:$0xff]
      %v4250 = vld [vmem:[%s4232 + $0x88] sm:$0xff]
      %v4251 = vld [vmem:[%s4232 + $0x90] sm:$0xff]
      %v4252 = vld [vmem:[%s4232 + $0x98] sm:$0xff]
      %v4253 = vld [vmem:[%s4232 + $0xa0] sm:$0xff]
      %v4254 = vld [vmem:[%s4232 + $0xa8] sm:$0xff]
      %v4255 = vld [vmem:[%s4232 + $0xb0] sm:$0xff]
      %v4256 = vld [vmem:[%s4232 + $0xb8] sm:$0xff]
      %v4257 = vld [vmem:[%s4232 + $0xc0] sm:$0xff]
      %v4258 = vld [vmem:[%s4232 + $0xc8] sm:$0xff]
      %v4259 = vld [vmem:[%s4232 + $0xd0] sm:$0xff]
      %v4260 = vld [vmem:[%s4232 + $0xd8] sm:$0xff]
      %v4261 = vld [vmem:[%s4232 + $0xe0] sm:$0xff]
      %v4262 = vld [vmem:[%s4232 + $0xe8] sm:$0xff]
      %v4263 = vld [vmem:[%s4232 + $0xf0] sm:$0xff]
      %v4264 = vld [vmem:[%s4232 + $0xf8] sm:$0xff]
      %4265 = vmatprep.subr.mxu0 %v4234
      %4266 = vmatpush1.msra.mxu0 %v4233
      %4267 = vmatprep.subr.mxu0 %v4236
      %4268 = vmatpush1.msra.mxu0 %v4235
      %4269 = vmatprep.subr.mxu0 %v4238
      %4270 = vmatpush1.msra.mxu0 %v4237
      %4271 = vmatprep.subr.mxu0 %v4240
      %4272 = vmatpush1.msra.mxu0 %v4239
      %4273 = vmatprep.subr.mxu0 %v4242
      %4274 = vmatpush1.msra.mxu0 %v4241
      %4275 = vmatprep.subr.mxu0 %v4244
      %4276 = vmatpush1.msra.mxu0 %v4243
      %4277 = vmatprep.subr.mxu0 %v4246
      %4278 = vmatpush1.msra.mxu0 %v4245
      %4279 = vmatprep.subr.mxu0 %v4248
      %4280 = vmatpush1.msra.mxu0 %v4247
      %4281 = vmatprep.subr.mxu0 %v4250
      %4282 = vmatpush1.msra.mxu0 %v4249
      %4283 = vmatprep.subr.mxu0 %v4252
      %4284 = vmatpush1.msra.mxu0 %v4251
      %4285 = vmatprep.subr.mxu0 %v4254
      %4286 = vmatpush1.msra.mxu0 %v4253
      %4287 = vmatprep.subr.mxu0 %v4256
      %4288 = vmatpush1.msra.mxu0 %v4255
      %4289 = vmatprep.subr.mxu0 %v4258
      %4290 = vmatpush1.msra.mxu0 %v4257
      %4291 = vmatprep.subr.mxu0 %v4260
      %4292 = vmatpush1.msra.mxu0 %v4259
      %4293 = vmatprep.subr.mxu0 %v4262
      %4294 = vmatpush1.msra.mxu0 %v4261
      %4295 = vmatprep.subr.mxu0 %v4264
      %4296 = vmatpush1.msra.mxu0 %v4263
      %4297 = vmatprep.subr.mxu0 0.0
      %4298 = vmatpush1.msra.mxu0 0.0
      %4299 = vmatprep.subr.mxu0 0.0
      %4300 = vmatpush1.msra.mxu0 0.0
      %4301 = vmatprep.subr.mxu0 0.0
      %4302 = vmatpush1.msra.mxu0 0.0
      %4303 = vmatprep.subr.mxu0 0.0
      %4304 = vmatpush1.msra.mxu0 0.0
      %4305 = vmatprep.subr.mxu0 0.0
      %4306 = vmatpush1.msra.mxu0 0.0
      %4307 = vmatprep.subr.mxu0 0.0
      %4308 = vmatpush1.msra.mxu0 0.0
      %4309 = vmatprep.subr.mxu0 0.0
      %4310 = vmatpush1.msra.mxu0 0.0
      %4311 = vmatprep.subr.mxu0 0.0
      %4312 = vmatpush1.msra.mxu0 0.0
      %4313 = vmatprep.subr.mxu0 0.0
      %4314 = vmatpush1.msra.mxu0 0.0
      %4315 = vmatprep.subr.mxu0 0.0
      %4316 = vmatpush1.msra.mxu0 0.0
      %4317 = vmatprep.subr.mxu0 0.0
      %4318 = vmatpush1.msra.mxu0 0.0
      %4319 = vmatprep.subr.mxu0 0.0
      %4320 = vmatpush1.msra.mxu0 0.0
      %4321 = vmatprep.subr.mxu0 0.0
      %4322 = vmatpush1.msra.mxu0 0.0
      %4323 = vmatprep.subr.mxu0 0.0
      %4324 = vmatpush1.msra.mxu0 0.0
      %4325 = vmatprep.subr.mxu0 0.0
      %4326 = vmatpush1.msra.mxu0 0.0
      %4327 = vmatprep.subr.mxu0 0.0
      %4328 = vmatpush1.msra.mxu0 0.0
      %4329 = vmatprep.mubr.f32.mxu0 0.0
      %4330 = vmatmul.mubr.f32.gmra.mrb[0].mxu0 %v4145
      %v4331 = vpop.f32.mrb[0].mxu0
      %v4332 = vadd.f32 0.0, %v4331
      %v4333 = vpop.f32.mrb[0].mxu0
      %v4334 = vadd.f32 0.0, %v4333
      %4335 = vmatprep.mubr.f32.mxu0 0.0
      %4336 = vmatmul.mubr.f32.gmra.mrb[0].mxu0 %v4146
      %v4337 = vpop.f32.mrb[0].mxu0
      %v4338 = vadd.f32 0.0, %v4337
      %v4339 = vpop.f32.mrb[0].mxu0
      %v4340 = vadd.f32 0.0, %v4339
      %4341 = vmatprep.mubr.f32.mxu0 0.0
      %4342 = vmatmul.mubr.f32.gmra.mrb[0].mxu0 %v4147
      %v4343 = vpop.f32.mrb[0].mxu0
      %v4344 = vadd.f32 0.0, %v4343
      %v4345 = vpop.f32.mrb[0].mxu0
      %v4346 = vadd.f32 0.0, %v4345
      %4347 = vmatprep.mubr.f32.mxu0 0.0
      %4348 = vmatmul.mubr.f32.gmra.mrb[0].mxu0 %v4148
      %v4349 = vpop.f32.mrb[0].mxu0
      %v4350 = vadd.f32 0.0, %v4349
      %v4351 = vpop.f32.mrb[0].mxu0
      %v4352 = vadd.f32 0.0, %v4351
      %4353 = vmatprep.mubr.f32.mxu0 0.0
      %4354 = vmatmul.mubr.f32.gmra.mrb[0].mxu0 %v4149
      %v4355 = vpop.f32.mrb[0].mxu0
      %v4356 = vadd.f32 0.0, %v4355
      %v4357 = vpop.f32.mrb[0].mxu0
      %v4358 = vadd.f32 0.0, %v4357
      %4359 = vmatprep.mubr.f32.mxu0 0.0
      %4360 = vmatmul.mubr.f32.gmra.mrb[0].mxu0 %v4150
      %v4361 = vpop.f32.mrb[0].mxu0
      %v4362 = vadd.f32 0.0, %v4361
      %v4363 = vpop.f32.mrb[0].mxu0
      %v4364 = vadd.f32 0.0, %v4363
      %4365 = vmatprep.mubr.f32.mxu0 0.0
      %4366 = vmatmul.mubr.f32.gmra.mrb[0].mxu0 %v4151
      %v4367 = vpop.f32.mrb[0].mxu0
      %v4368 = vadd.f32 0.0, %v4367
      %v4369 = vpop.f32.mrb[0].mxu0
      %v4370 = vadd.f32 0.0, %v4369
      %4371 = vmatprep.mubr.f32.mxu0 0.0
      %4372 = vmatmul.mubr.f32.gmra.mrb[0].mxu0 %v4152
      %v4373 = vpop.f32.mrb[0].mxu0
      %v4374 = vadd.f32 0.0, %v4373
      %v4375 = vpop.f32.mrb[0].mxu0
      %v4376 = vadd.f32 0.0, %v4375
      %4377 = vmatprep.mubr.f32.mxu0 0.0
      %4378 = vmatmul.mubr.f32.gmra.mrb[0].mxu0 %v4153
      %v4379 = vpop.f32.mrb[0].mxu0
      %v4380 = vadd.f32 0.0, %v4379
      %v4381 = vpop.f32.mrb[0].mxu0
      %v4382 = vadd.f32 0.0, %v4381
      %4383 = vmatprep.mubr.f32.mxu0 0.0
      %4384 = vmatmul.mubr.f32.gmra.mrb[0].mxu0 %v4154
      %v4385 = vpop.f32.mrb[0].mxu0
      %v4386 = vadd.f32 0.0, %v4385
      %v4387 = vpop.f32.mrb[0].mxu0
      %v4388 = vadd.f32 0.0, %v4387
      %4389 = vmatprep.mubr.f32.mxu0 0.0
      %4390 = vmatmul.mubr.f32.gmra.mrb[0].mxu0 %v4155
      %v4391 = vpop.f32.mrb[0].mxu0
      %v4392 = vadd.f32 0.0, %v4391
      %v4393 = vpop.f32.mrb[0].mxu0
      %v4394 = vadd.f32 0.0, %v4393
      %4395 = vmatprep.mubr.f32.mxu0 0.0
      %4396 = vmatmul.mubr.f32.gmra.mrb[0].mxu0 %v4156
      %v4397 = vpop.f32.mrb[0].mxu0
      %v4398 = vadd.f32 0.0, %v4397
      %v4399 = vpop.f32.mrb[0].mxu0
      %v4400 = vadd.f32 0.0, %v4399
      %4401 = vmatprep.mubr.f32.mxu0 0.0
      %4402 = vmatmul.mubr.f32.gmra.mrb[0].mxu0 %v4157
      %v4403 = vpop.f32.mrb[0].mxu0
      %v4404 = vadd.f32 0.0, %v4403
      %v4405 = vpop.f32.mrb[0].mxu0
      %v4406 = vadd.f32 0.0, %v4405
      %4407 = vmatprep.mubr.f32.mxu0 0.0
      %4408 = vmatmul.mubr.f32.gmra.mrb[0].mxu0 %v4158
      %v4409 = vpop.f32.mrb[0].mxu0
      %v4410 = vadd.f32 0.0, %v4409
      %v4411 = vpop.f32.mrb[0].mxu0
      %v4412 = vadd.f32 0.0, %v4411
      %4413 = vmatprep.mubr.f32.mxu0 0.0
      %4414 = vmatmul.mubr.f32.gmra.mrb[0].mxu0 %v4159
      %v4415 = vpop.f32.mrb[0].mxu0
      %v4416 = vadd.f32 0.0, %v4415
      %v4417 = vpop.f32.mrb[0].mxu0
      %v4418 = vadd.f32 0.0, %v4417
      %4419 = vmatprep.mubr.f32.mxu0 0.0
      %4420 = vmatmul.mubr.f32.gmra.mrb[0].mxu0 %v4160
      %v4421 = vpop.f32.mrb[0].mxu0
      %v4422 = vadd.f32 0.0, %v4421
      %v4423 = vpop.f32.mrb[0].mxu0
      %v4424 = vadd.f32 0.0, %v4423
      %4425 = vmatprep.mubr.f32.mxu0 0.0
      %4426 = vmatmul.mubr.f32.gmra.mrb[0].mxu0 %v4161
      %v4427 = vpop.f32.mrb[0].mxu0
      %v4428 = vadd.f32 0.0, %v4427
      %v4429 = vpop.f32.mrb[0].mxu0
      %v4430 = vadd.f32 0.0, %v4429
      %4431 = vmatprep.mubr.f32.mxu0 0.0
      %4432 = vmatmul.mubr.f32.gmra.mrb[0].mxu0 %v4162
      %v4433 = vpop.f32.mrb[0].mxu0
      %v4434 = vadd.f32 0.0, %v4433
      %v4435 = vpop.f32.mrb[0].mxu0
      %v4436 = vadd.f32 0.0, %v4435
      %4437 = vmatprep.mubr.f32.mxu0 0.0
      %4438 = vmatmul.mubr.f32.gmra.mrb[0].mxu0 %v4163
      %v4439 = vpop.f32.mrb[0].mxu0
      %v4440 = vadd.f32 0.0, %v4439
      %v4441 = vpop.f32.mrb[0].mxu0
      %v4442 = vadd.f32 0.0, %v4441
      %4443 = vmatprep.mubr.f32.mxu0 0.0
      %4444 = vmatmul.mubr.f32.gmra.mrb[0].mxu0 %v4164
      %v4445 = vpop.f32.mrb[0].mxu0
      %v4446 = vadd.f32 0.0, %v4445
      %v4447 = vpop.f32.mrb[0].mxu0
      %v4448 = vadd.f32 0.0, %v4447
      %4449 = vmatprep.mubr.f32.mxu0 0.0
      %4450 = vmatmul.mubr.f32.gmra.mrb[0].mxu0 %v4165
      %v4451 = vpop.f32.mrb[0].mxu0
      %v4452 = vadd.f32 0.0, %v4451
      %v4453 = vpop.f32.mrb[0].mxu0
      %v4454 = vadd.f32 0.0, %v4453
      %4455 = vmatprep.mubr.f32.mxu0 0.0
      %4456 = vmatmul.mubr.f32.gmra.mrb[0].mxu0 %v4166
      %v4457 = vpop.f32.mrb[0].mxu0
      %v4458 = vadd.f32 0.0, %v4457
      %v4459 = vpop.f32.mrb[0].mxu0
      %v4460 = vadd.f32 0.0, %v4459
      %4461 = vmatprep.mubr.f32.mxu0 0.0
      %4462 = vmatmul.mubr.f32.gmra.mrb[0].mxu0 %v4167
      %v4463 = vpop.f32.mrb[0].mxu0
      %v4464 = vadd.f32 0.0, %v4463
      %v4465 = vpop.f32.mrb[0].mxu0
      %v4466 = vadd.f32 0.0, %v4465
      %4467 = vmatprep.mubr.f32.mxu0 0.0
      %4468 = vmatmul.mubr.f32.gmra.mrb[0].mxu0 %v4168
      %v4469 = vpop.f32.mrb[0].mxu0
      %v4470 = vadd.f32 0.0, %v4469
      %v4471 = vpop.f32.mrb[0].mxu0
      %v4472 = vadd.f32 0.0, %v4471
      %4473 = vmatprep.mubr.f32.mxu0 0.0
      %4474 = vmatmul.mubr.f32.gmra.mrb[0].mxu0 %v4169
      %v4475 = vpop.f32.mrb[0].mxu0
      %v4476 = vadd.f32 0.0, %v4475
      %v4477 = vpop.f32.mrb[0].mxu0
      %v4478 = vadd.f32 0.0, %v4477
      %4479 = vmatprep.mubr.f32.mxu0 0.0
      %4480 = vmatmul.mubr.f32.gmra.mrb[0].mxu0 %v4170
      %v4481 = vpop.f32.mrb[0].mxu0
      %v4482 = vadd.f32 0.0, %v4481
      %v4483 = vpop.f32.mrb[0].mxu0
      %v4484 = vadd.f32 0.0, %v4483
      %4485 = vmatprep.mubr.f32.mxu0 0.0
      %4486 = vmatmul.mubr.f32.gmra.mrb[0].mxu0 %v4171
      %v4487 = vpop.f32.mrb[0].mxu0
      %v4488 = vadd.f32 0.0, %v4487
      %v4489 = vpop.f32.mrb[0].mxu0
      %v4490 = vadd.f32 0.0, %v4489
      %4491 = vmatprep.mubr.f32.mxu0 0.0
      %4492 = vmatmul.mubr.f32.gmra.mrb[0].mxu0 %v4172
      %v4493 = vpop.f32.mrb[0].mxu0
      %v4494 = vadd.f32 0.0, %v4493
      %v4495 = vpop.f32.mrb[0].mxu0
      %v4496 = vadd.f32 0.0, %v4495
      %4497 = vmatprep.mubr.f32.mxu0 0.0
      %4498 = vmatmul.mubr.f32.gmra.mrb[0].mxu0 %v4173
      %v4499 = vpop.f32.mrb[0].mxu0
      %v4500 = vadd.f32 0.0, %v4499
      %v4501 = vpop.f32.mrb[0].mxu0
      %v4502 = vadd.f32 0.0, %v4501
      %4503 = vdwg.mxu0
      %v4504 = vadd.f32 %v4174, %v4332
      %v4505 = vadd.f32 %v4175, %v4334
      %v4506 = vadd.f32 %v4176, %v4338
      %v4507 = vadd.f32 %v4177, %v4340
      %v4508 = vadd.f32 %v4178, %v4344
      %v4509 = vadd.f32 %v4179, %v4346
      %v4510 = vadd.f32 %v4180, %v4350
      %v4511 = vadd.f32 %v4181, %v4352
      %v4512 = vadd.f32 %v4182, %v4356
      %v4513 = vadd.f32 %v4183, %v4358
      %v4514 = vadd.f32 %v4184, %v4362
      %v4515 = vadd.f32 %v4185, %v4364
      %v4516 = vadd.f32 %v4186, %v4368
      %v4517 = vadd.f32 %v4187, %v4370
      %v4518 = vadd.f32 %v4188, %v4374
      %v4519 = vadd.f32 %v4189, %v4376
      %v4520 = vadd.f32 %v4190, %v4380
      %v4521 = vadd.f32 %v4191, %v4382
      %v4522 = vadd.f32 %v4192, %v4386
      %v4523 = vadd.f32 %v4193, %v4388
      %v4524 = vadd.f32 %v4194, %v4392
      %v4525 = vadd.f32 %v4195, %v4394
      %v4526 = vadd.f32 %v4196, %v4398
      %v4527 = vadd.f32 %v4197, %v4400
      %v4528 = vadd.f32 %v4198, %v4404
      %v4529 = vadd.f32 %v4199, %v4406
      %v4530 = vadd.f32 %v4200, %v4410
      %v4531 = vadd.f32 %v4201, %v4412
      %v4532 = vadd.f32 %v4202, %v4416
      %v4533 = vadd.f32 %v4203, %v4418
      %v4534 = vadd.f32 %v4204, %v4422
      %v4535 = vadd.f32 %v4205, %v4424
      %v4536 = vadd.f32 %v4206, %v4428
      %v4537 = vadd.f32 %v4207, %v4430
      %v4538 = vadd.f32 %v4208, %v4434
      %v4539 = vadd.f32 %v4209, %v4436
      %v4540 = vadd.f32 %v4210, %v4440
      %v4541 = vadd.f32 %v4211, %v4442
      %v4542 = vadd.f32 %v4212, %v4446
      %v4543 = vadd.f32 %v4213, %v4448
      %v4544 = vadd.f32 %v4214, %v4452
      %v4545 = vadd.f32 %v4215, %v4454
      %v4546 = vadd.f32 %v4216, %v4458
      %v4547 = vadd.f32 %v4217, %v4460
      %v4548 = vadd.f32 %v4218, %v4464
      %v4549 = vadd.f32 %v4219, %v4466
      %v4550 = vadd.f32 %v4220, %v4470
      %v4551 = vadd.f32 %v4221, %v4472
      %v4552 = vadd.f32 %v4222, %v4476
      %v4553 = vadd.f32 %v4223, %v4478
      %v4554 = vadd.f32 %v4224, %v4482
      %v4555 = vadd.f32 %v4225, %v4484
      %v4556 = vadd.f32 %v4226, %v4488
      %v4557 = vadd.f32 %v4227, %v4490
      %v4558 = vadd.f32 %v4228, %v4494
      %v4559 = vadd.f32 %v4229, %v4496
      %v4560 = vadd.f32 %v4230, %v4500
      %v4561 = vadd.f32 %v4231, %v4502
      %4562 = vst [vmem:[#allocation3] sm:$0xff] %v4504
      %4563 = vst [vmem:[#allocation3 + $0x8] sm:$0xff] %v4505
      %4564 = vst [vmem:[#allocation3 + $0x10] sm:$0xff] %v4506
      %4565 = vst [vmem:[#allocation3 + $0x18] sm:$0xff] %v4507
      %4566 = vst [vmem:[#allocation3 + $0x20] sm:$0xff] %v4508
      %4567 = vst [vmem:[#allocation3 + $0x28] sm:$0xff] %v4509
      %4568 = vst [vmem:[#allocation3 + $0x30] sm:$0xff] %v4510
      %4569 = vst [vmem:[#allocation3 + $0x38] sm:$0xff] %v4511
      %4570 = vst [vmem:[#allocation3 + $0x40] sm:$0xff] %v4512
      %4571 = vst [vmem:[#allocation3 + $0x48] sm:$0xff] %v4513
      %4572 = vst [vmem:[#allocation3 + $0x50] sm:$0xff] %v4514
      %4573 = vst [vmem:[#allocation3 + $0x58] sm:$0xff] %v4515
      %4574 = vst [vmem:[#allocation3 + $0x60] sm:$0xff] %v4516
      %4575 = vst [vmem:[#allocation3 + $0x68] sm:$0xff] %v4517
      %4576 = vst [vmem:[#allocation3 + $0x70] sm:$0xff] %v4518
      %4577 = vst [vmem:[#allocation3 + $0x78] sm:$0xff] %v4519
      %4578 = vst [vmem:[#allocation3 + $0x80] sm:$0xff] %v4520
      %4579 = vst [vmem:[#allocation3 + $0x88] sm:$0xff] %v4521
      %4580 = vst [vmem:[#allocation3 + $0x90] sm:$0xff] %v4522
      %4581 = vst [vmem:[#allocation3 + $0x98] sm:$0xff] %v4523
      %4582 = vst [vmem:[#allocation3 + $0xa0] sm:$0xff] %v4524
      %4583 = vst [vmem:[#allocation3 + $0xa8] sm:$0xff] %v4525
      %4584 = vst [vmem:[#allocation3 + $0xb0] sm:$0xff] %v4526
      %4585 = vst [vmem:[#allocation3 + $0xb8] sm:$0xff] %v4527
      %4586 = vst [vmem:[#allocation3 + $0xc0] sm:$0xff] %v4528
      %4587 = vst [vmem:[#allocation3 + $0xc8] sm:$0xff] %v4529
      %4588 = vst [vmem:[#allocation3 + $0xd0] sm:$0xff] %v4530
      %4589 = vst [vmem:[#allocation3 + $0xd8] sm:$0xff] %v4531
      %4590 = vst [vmem:[#allocation3 + $0xe0] sm:$0xff] %v4532
      %4591 = vst [vmem:[#allocation3 + $0xe8] sm:$0xff] %v4533
      %4592 = vst [vmem:[#allocation3 + $0xf0] sm:$0xff] %v4534
      %4593 = vst [vmem:[#allocation3 + $0xf8] sm:$0xff] %v4535
      %4594 = vst [vmem:[#allocation3 + $0x100] sm:$0xff] %v4536
      %4595 = vst [vmem:[#allocation3 + $0x108] sm:$0xff] %v4537
      %4596 = vst [vmem:[#allocation3 + $0x110] sm:$0xff] %v4538
      %4597 = vst [vmem:[#allocation3 + $0x118] sm:$0xff] %v4539
      %4598 = vst [vmem:[#allocation3 + $0x120] sm:$0xff] %v4540
      %4599 = vst [vmem:[#allocation3 + $0x128] sm:$0xff] %v4541
      %4600 = vst [vmem:[#allocation3 + $0x130] sm:$0xff] %v4542
      %4601 = vst [vmem:[#allocation3 + $0x138] sm:$0xff] %v4543
      %4602 = vst [vmem:[#allocation3 + $0x140] sm:$0xff] %v4544
      %4603 = vst [vmem:[#allocation3 + $0x148] sm:$0xff] %v4545
      %4604 = vst [vmem:[#allocation3 + $0x150] sm:$0xff] %v4546
      %4605 = vst [vmem:[#allocation3 + $0x158] sm:$0xff] %v4547
      %4606 = vst [vmem:[#allocation3 + $0x160] sm:$0xff] %v4548
      %4607 = vst [vmem:[#allocation3 + $0x168] sm:$0xff] %v4549
      %4608 = vst [vmem:[#allocation3 + $0x170] sm:$0xff] %v4550
      %4609 = vst [vmem:[#allocation3 + $0x178] sm:$0xff] %v4551
      %4610 = vst [vmem:[#allocation3 + $0x180] sm:$0xff] %v4552
      %4611 = vst [vmem:[#allocation3 + $0x188] sm:$0xff] %v4553
      %4612 = vst [vmem:[#allocation3 + $0x190] sm:$0xff] %v4554
      %4613 = vst [vmem:[#allocation3 + $0x198] sm:$0xff] %v4555
      %4614 = vst [vmem:[#allocation3 + $0x1a0] sm:$0xff] %v4556
      %4615 = vst [vmem:[#allocation3 + $0x1a8] sm:$0xff] %v4557
      %4616 = vst [vmem:[#allocation3 + $0x1b0] sm:$0xff] %v4558
      %4617 = vst [vmem:[#allocation3 + $0x1b8] sm:$0xff] %v4559
      %4618 = vst [vmem:[#allocation3 + $0x1c0] sm:$0x7f] %v4560
      %4619 = vst [vmem:[#allocation3 + $0x1c8] sm:$0x7f] %v4561
      %v4620 = vld [vmem:[#allocation2 + $0x2a] sm:$0xff]
      %v4621 = vld [vmem:[#allocation2 + $0x32] sm:$0xff]
      %v4622 = vld [vmem:[#allocation2 + $0x3a] sm:$0xff]
      %v4623 = vld [vmem:[#allocation2 + $0x42] sm:$0xff]
      %v4624 = vld [vmem:[#allocation2 + $0x4a] sm:$0xff]
      %v4625 = vld [vmem:[#allocation2 + $0x52] sm:$0xff]
      %v4626 = vld [vmem:[#allocation2 + $0x5a] sm:$0xff]
      %v4627 = vld [vmem:[#allocation2 + $0x62] sm:$0xff]
      %v4628 = vld [vmem:[#allocation2 + $0x6a] sm:$0xff]
      %v4629 = vld [vmem:[#allocation2 + $0x72] sm:$0xff]
      %v4630 = vld [vmem:[#allocation2 + $0x7a] sm:$0xff]
      %v4631 = vld [vmem:[#allocation2 + $0x82] sm:$0xff]
      %v4632 = vld [vmem:[#allocation2 + $0x8a] sm:$0xff]
      %v4633 = vld [vmem:[#allocation2 + $0x92] sm:$0xff]
      %v4634 = vld [vmem:[#allocation2 + $0x9a] sm:$0xff]
      %v4635 = vld [vmem:[#allocation2 + $0xa2] sm:$0xff]
      %v4636 = vld [vmem:[#allocation2 + $0xaa] sm:$0xff]
      %v4637 = vld [vmem:[#allocation2 + $0xb2] sm:$0xff]
      %v4638 = vld [vmem:[#allocation2 + $0xba] sm:$0xff]
      %v4639 = vld [vmem:[#allocation2 + $0xc2] sm:$0xff]
      %v4640 = vld [vmem:[#allocation2 + $0xca] sm:$0xff]
      %v4641 = vld [vmem:[#allocation2 + $0xd2] sm:$0xff]
      %v4642 = vld [vmem:[#allocation2 + $0xda] sm:$0xff]
      %v4643 = vld [vmem:[#allocation2 + $0xe2] sm:$0xff]
      %v4644 = vld [vmem:[#allocation2 + $0xea] sm:$0xff]
      %v4645 = vld [vmem:[#allocation2 + $0xf2] sm:$0xff]
      %v4646 = vld [vmem:[#allocation2 + $0xfa] sm:$0xff]
      %v4647 = vld [vmem:[#allocation2 + $0x102] sm:$0xff]
      %v4648 = vld [vmem:[#allocation2 + $0x10a] sm:$0x7f]
      %v4649 = vld [vmem:[#allocation3] sm:$0xff]
      %v4650 = vld [vmem:[#allocation3 + $0x8] sm:$0xff]
      %v4651 = vld [vmem:[#allocation3 + $0x10] sm:$0xff]
      %v4652 = vld [vmem:[#allocation3 + $0x18] sm:$0xff]
      %v4653 = vld [vmem:[#allocation3 + $0x20] sm:$0xff]
      %v4654 = vld [vmem:[#allocation3 + $0x28] sm:$0xff]
      %v4655 = vld [vmem:[#allocation3 + $0x30] sm:$0xff]
      %v4656 = vld [vmem:[#allocation3 + $0x38] sm:$0xff]
      %v4657 = vld [vmem:[#allocation3 + $0x40] sm:$0xff]
      %v4658 = vld [vmem:[#allocation3 + $0x48] sm:$0xff]
      %v4659 = vld [vmem:[#allocation3 + $0x50] sm:$0xff]
      %v4660 = vld [vmem:[#allocation3 + $0x58] sm:$0xff]
      %v4661 = vld [vmem:[#allocation3 + $0x60] sm:$0xff]
      %v4662 = vld [vmem:[#allocation3 + $0x68] sm:$0xff]
      %v4663 = vld [vmem:[#allocation3 + $0x70] sm:$0xff]
      %v4664 = vld [vmem:[#allocation3 + $0x78] sm:$0xff]
      %v4665 = vld [vmem:[#allocation3 + $0x80] sm:$0xff]
      %v4666 = vld [vmem:[#allocation3 + $0x88] sm:$0xff]
      %v4667 = vld [vmem:[#allocation3 + $0x90] sm:$0xff]
      %v4668 = vld [vmem:[#allocation3 + $0x98] sm:$0xff]
      %v4669 = vld [vmem:[#allocation3 + $0xa0] sm:$0xff]
      %v4670 = vld [vmem:[#allocation3 + $0xa8] sm:$0xff]
      %v4671 = vld [vmem:[#allocation3 + $0xb0] sm:$0xff]
      %v4672 = vld [vmem:[#allocation3 + $0xb8] sm:$0xff]
      %v4673 = vld [vmem:[#allocation3 + $0xc0] sm:$0xff]
      %v4674 = vld [vmem:[#allocation3 + $0xc8] sm:$0xff]
      %v4675 = vld [vmem:[#allocation3 + $0xd0] sm:$0xff]
      %v4676 = vld [vmem:[#allocation3 + $0xd8] sm:$0xff]
      %v4677 = vld [vmem:[#allocation3 + $0xe0] sm:$0xff]
      %v4678 = vld [vmem:[#allocation3 + $0xe8] sm:$0xff]
      %v4679 = vld [vmem:[#allocation3 + $0xf0] sm:$0xff]
      %v4680 = vld [vmem:[#allocation3 + $0xf8] sm:$0xff]
      %v4681 = vld [vmem:[#allocation3 + $0x100] sm:$0xff]
      %v4682 = vld [vmem:[#allocation3 + $0x108] sm:$0xff]
      %v4683 = vld [vmem:[#allocation3 + $0x110] sm:$0xff]
      %v4684 = vld [vmem:[#allocation3 + $0x118] sm:$0xff]
      %v4685 = vld [vmem:[#allocation3 + $0x120] sm:$0xff]
      %v4686 = vld [vmem:[#allocation3 + $0x128] sm:$0xff]
      %v4687 = vld [vmem:[#allocation3 + $0x130] sm:$0xff]
      %v4688 = vld [vmem:[#allocation3 + $0x138] sm:$0xff]
      %v4689 = vld [vmem:[#allocation3 + $0x140] sm:$0xff]
      %v4690 = vld [vmem:[#allocation3 + $0x148] sm:$0xff]
      %v4691 = vld [vmem:[#allocation3 + $0x150] sm:$0xff]
      %v4692 = vld [vmem:[#allocation3 + $0x158] sm:$0xff]
      %v4693 = vld [vmem:[#allocation3 + $0x160] sm:$0xff]
      %v4694 = vld [vmem:[#allocation3 + $0x168] sm:$0xff]
      %v4695 = vld [vmem:[#allocation3 + $0x170] sm:$0xff]
      %v4696 = vld [vmem:[#allocation3 + $0x178] sm:$0xff]
      %v4697 = vld [vmem:[#allocation3 + $0x180] sm:$0xff]
      %v4698 = vld [vmem:[#allocation3 + $0x188] sm:$0xff]
      %v4699 = vld [vmem:[#allocation3 + $0x190] sm:$0xff]
      %v4700 = vld [vmem:[#allocation3 + $0x198] sm:$0xff]
      %v4701 = vld [vmem:[#allocation3 + $0x1a0] sm:$0xff]
      %v4702 = vld [vmem:[#allocation3 + $0x1a8] sm:$0xff]
      %v4703 = vld [vmem:[#allocation3 + $0x1b0] sm:$0xff]
      %v4704 = vld [vmem:[#allocation3 + $0x1b8] sm:$0xff]
      %v4705 = vld [vmem:[#allocation3 + $0x1c0] sm:$0x7f]
      %v4706 = vld [vmem:[#allocation3 + $0x1c8] sm:$0x7f]
      %s4707 = scalar_lea.vmem %s2, 2048
      %v4708 = vld [vmem:[%s4707] sm:$0xff]
      %v4709 = vld [vmem:[%s4707 + $0x8] sm:$0xff]
      %v4710 = vld [vmem:[%s4707 + $0x10] sm:$0xff]
      %v4711 = vld [vmem:[%s4707 + $0x18] sm:$0xff]
      %v4712 = vld [vmem:[%s4707 + $0x20] sm:$0xff]
      %v4713 = vld [vmem:[%s4707 + $0x28] sm:$0xff]
      %v4714 = vld [vmem:[%s4707 + $0x30] sm:$0xff]
      %v4715 = vld [vmem:[%s4707 + $0x38] sm:$0xff]
      %v4716 = vld [vmem:[%s4707 + $0x40] sm:$0xff]
      %v4717 = vld [vmem:[%s4707 + $0x48] sm:$0xff]
      %v4718 = vld [vmem:[%s4707 + $0x50] sm:$0xff]
      %v4719 = vld [vmem:[%s4707 + $0x58] sm:$0xff]
      %v4720 = vld [vmem:[%s4707 + $0x60] sm:$0xff]
      %v4721 = vld [vmem:[%s4707 + $0x68] sm:$0xff]
      %v4722 = vld [vmem:[%s4707 + $0x70] sm:$0xff]
      %v4723 = vld [vmem:[%s4707 + $0x78] sm:$0xff]
      %v4724 = vld [vmem:[%s4707 + $0x80] sm:$0xff]
      %v4725 = vld [vmem:[%s4707 + $0x88] sm:$0xff]
      %v4726 = vld [vmem:[%s4707 + $0x90] sm:$0xff]
      %v4727 = vld [vmem:[%s4707 + $0x98] sm:$0xff]
      %v4728 = vld [vmem:[%s4707 + $0xa0] sm:$0xff]
      %v4729 = vld [vmem:[%s4707 + $0xa8] sm:$0xff]
      %v4730 = vld [vmem:[%s4707 + $0xb0] sm:$0xff]
      %v4731 = vld [vmem:[%s4707 + $0xb8] sm:$0xff]
      %v4732 = vld [vmem:[%s4707 + $0xc0] sm:$0xff]
      %v4733 = vld [vmem:[%s4707 + $0xc8] sm:$0xff]
      %v4734 = vld [vmem:[%s4707 + $0xd0] sm:$0xff]
      %v4735 = vld [vmem:[%s4707 + $0xd8] sm:$0xff]
      %v4736 = vld [vmem:[%s4707 + $0xe0] sm:$0xff]
      %v4737 = vld [vmem:[%s4707 + $0xe8] sm:$0xff]
      %v4738 = vld [vmem:[%s4707 + $0xf0] sm:$0xff]
      %v4739 = vld [vmem:[%s4707 + $0xf8] sm:$0xff]
      %4740 = vmatprep.subr.mxu0 %v4709
      %4741 = vmatpush1.msra.mxu0 %v4708
      %4742 = vmatprep.subr.mxu0 %v4711
      %4743 = vmatpush1.msra.mxu0 %v4710
      %4744 = vmatprep.subr.mxu0 %v4713
      %4745 = vmatpush1.msra.mxu0 %v4712
      %4746 = vmatprep.subr.mxu0 %v4715
      %4747 = vmatpush1.msra.mxu0 %v4714
      %4748 = vmatprep.subr.mxu0 %v4717
      %4749 = vmatpush1.msra.mxu0 %v4716
      %4750 = vmatprep.subr.mxu0 %v4719
      %4751 = vmatpush1.msra.mxu0 %v4718
      %4752 = vmatprep.subr.mxu0 %v4721
      %4753 = vmatpush1.msra.mxu0 %v4720
      %4754 = vmatprep.subr.mxu0 %v4723
      %4755 = vmatpush1.msra.mxu0 %v4722
      %4756 = vmatprep.subr.mxu0 %v4725
      %4757 = vmatpush1.msra.mxu0 %v4724
      %4758 = vmatprep.subr.mxu0 %v4727
      %4759 = vmatpush1.msra.mxu0 %v4726
      %4760 = vmatprep.subr.mxu0 %v4729
      %4761 = vmatpush1.msra.mxu0 %v4728
      %4762 = vmatprep.subr.mxu0 %v4731
      %4763 = vmatpush1.msra.mxu0 %v4730
      %4764 = vmatprep.subr.mxu0 %v4733
      %4765 = vmatpush1.msra.mxu0 %v4732
      %4766 = vmatprep.subr.mxu0 %v4735
      %4767 = vmatpush1.msra.mxu0 %v4734
      %4768 = vmatprep.subr.mxu0 %v4737
      %4769 = vmatpush1.msra.mxu0 %v4736
      %4770 = vmatprep.subr.mxu0 %v4739
      %4771 = vmatpush1.msra.mxu0 %v4738
      %4772 = vmatprep.subr.mxu0 0.0
      %4773 = vmatpush1.msra.mxu0 0.0
      %4774 = vmatprep.subr.mxu0 0.0
      %4775 = vmatpush1.msra.mxu0 0.0
      %4776 = vmatprep.subr.mxu0 0.0
      %4777 = vmatpush1.msra.mxu0 0.0
      %4778 = vmatprep.subr.mxu0 0.0
      %4779 = vmatpush1.msra.mxu0 0.0
      %4780 = vmatprep.subr.mxu0 0.0
      %4781 = vmatpush1.msra.mxu0 0.0
      %4782 = vmatprep.subr.mxu0 0.0
      %4783 = vmatpush1.msra.mxu0 0.0
      %4784 = vmatprep.subr.mxu0 0.0
      %4785 = vmatpush1.msra.mxu0 0.0
      %4786 = vmatprep.subr.mxu0 0.0
      %4787 = vmatpush1.msra.mxu0 0.0
      %4788 = vmatprep.subr.mxu0 0.0
      %4789 = vmatpush1.msra.mxu0 0.0
      %4790 = vmatprep.subr.mxu0 0.0
      %4791 = vmatpush1.msra.mxu0 0.0
      %4792 = vmatprep.subr.mxu0 0.0
      %4793 = vmatpush1.msra.mxu0 0.0
      %4794 = vmatprep.subr.mxu0 0.0
      %4795 = vmatpush1.msra.mxu0 0.0
      %4796 = vmatprep.subr.mxu0 0.0
      %4797 = vmatpush1.msra.mxu0 0.0
      %4798 = vmatprep.subr.mxu0 0.0
      %4799 = vmatpush1.msra.mxu0 0.0
      %4800 = vmatprep.subr.mxu0 0.0
      %4801 = vmatpush1.msra.mxu0 0.0
      %4802 = vmatprep.subr.mxu0 0.0
      %4803 = vmatpush1.msra.mxu0 0.0
      %4804 = vmatprep.mubr.f32.mxu0 0.0
      %4805 = vmatmul.mubr.f32.gmra.mrb[0].mxu0 %v4620
      %v4806 = vpop.f32.mrb[0].mxu0
      %v4807 = vadd.f32 0.0, %v4806
      %v4808 = vpop.f32.mrb[0].mxu0
      %v4809 = vadd.f32 0.0, %v4808
      %4810 = vmatprep.mubr.f32.mxu0 0.0
      %4811 = vmatmul.mubr.f32.gmra.mrb[0].mxu0 %v4621
      %v4812 = vpop.f32.mrb[0].mxu0
      %v4813 = vadd.f32 0.0, %v4812
      %v4814 = vpop.f32.mrb[0].mxu0
      %v4815 = vadd.f32 0.0, %v4814
      %4816 = vmatprep.mubr.f32.mxu0 0.0
      %4817 = vmatmul.mubr.f32.gmra.mrb[0].mxu0 %v4622
      %v4818 = vpop.f32.mrb[0].mxu0
      %v4819 = vadd.f32 0.0, %v4818
      %v4820 = vpop.f32.mrb[0].mxu0
      %v4821 = vadd.f32 0.0, %v4820
      %4822 = vmatprep.mubr.f32.mxu0 0.0
      %4823 = vmatmul.mubr.f32.gmra.mrb[0].mxu0 %v4623
      %v4824 = vpop.f32.mrb[0].mxu0
      %v4825 = vadd.f32 0.0, %v4824
      %v4826 = vpop.f32.mrb[0].mxu0
      %v4827 = vadd.f32 0.0, %v4826
      %4828 = vmatprep.mubr.f32.mxu0 0.0
      %4829 = vmatmul.mubr.f32.gmra.mrb[0].mxu0 %v4624
      %v4830 = vpop.f32.mrb[0].mxu0
      %v4831 = vadd.f32 0.0, %v4830
      %v4832 = vpop.f32.mrb[0].mxu0
      %v4833 = vadd.f32 0.0, %v4832
      %4834 = vmatprep.mubr.f32.mxu0 0.0
      %4835 = vmatmul.mubr.f32.gmra.mrb[0].mxu0 %v4625
      %v4836 = vpop.f32.mrb[0].mxu0
      %v4837 = vadd.f32 0.0, %v4836
      %v4838 = vpop.f32.mrb[0].mxu0
      %v4839 = vadd.f32 0.0, %v4838
      %4840 = vmatprep.mubr.f32.mxu0 0.0
      %4841 = vmatmul.mubr.f32.gmra.mrb[0].mxu0 %v4626
      %v4842 = vpop.f32.mrb[0].mxu0
      %v4843 = vadd.f32 0.0, %v4842
      %v4844 = vpop.f32.mrb[0].mxu0
      %v4845 = vadd.f32 0.0, %v4844
      %4846 = vmatprep.mubr.f32.mxu0 0.0
      %4847 = vmatmul.mubr.f32.gmra.mrb[0].mxu0 %v4627
      %v4848 = vpop.f32.mrb[0].mxu0
      %v4849 = vadd.f32 0.0, %v4848
      %v4850 = vpop.f32.mrb[0].mxu0
      %v4851 = vadd.f32 0.0, %v4850
      %4852 = vmatprep.mubr.f32.mxu0 0.0
      %4853 = vmatmul.mubr.f32.gmra.mrb[0].mxu0 %v4628
      %v4854 = vpop.f32.mrb[0].mxu0
      %v4855 = vadd.f32 0.0, %v4854
      %v4856 = vpop.f32.mrb[0].mxu0
      %v4857 = vadd.f32 0.0, %v4856
      %4858 = vmatprep.mubr.f32.mxu0 0.0
      %4859 = vmatmul.mubr.f32.gmra.mrb[0].mxu0 %v4629
      %v4860 = vpop.f32.mrb[0].mxu0
      %v4861 = vadd.f32 0.0, %v4860
      %v4862 = vpop.f32.mrb[0].mxu0
      %v4863 = vadd.f32 0.0, %v4862
      %4864 = vmatprep.mubr.f32.mxu0 0.0
      %4865 = vmatmul.mubr.f32.gmra.mrb[0].mxu0 %v4630
      %v4866 = vpop.f32.mrb[0].mxu0
      %v4867 = vadd.f32 0.0, %v4866
      %v4868 = vpop.f32.mrb[0].mxu0
      %v4869 = vadd.f32 0.0, %v4868
      %4870 = vmatprep.mubr.f32.mxu0 0.0
      %4871 = vmatmul.mubr.f32.gmra.mrb[0].mxu0 %v4631
      %v4872 = vpop.f32.mrb[0].mxu0
      %v4873 = vadd.f32 0.0, %v4872
      %v4874 = vpop.f32.mrb[0].mxu0
      %v4875 = vadd.f32 0.0, %v4874
      %4876 = vmatprep.mubr.f32.mxu0 0.0
      %4877 = vmatmul.mubr.f32.gmra.mrb[0].mxu0 %v4632
      %v4878 = vpop.f32.mrb[0].mxu0
      %v4879 = vadd.f32 0.0, %v4878
      %v4880 = vpop.f32.mrb[0].mxu0
      %v4881 = vadd.f32 0.0, %v4880
      %4882 = vmatprep.mubr.f32.mxu0 0.0
      %4883 = vmatmul.mubr.f32.gmra.mrb[0].mxu0 %v4633
      %v4884 = vpop.f32.mrb[0].mxu0
      %v4885 = vadd.f32 0.0, %v4884
      %v4886 = vpop.f32.mrb[0].mxu0
      %v4887 = vadd.f32 0.0, %v4886
      %4888 = vmatprep.mubr.f32.mxu0 0.0
      %4889 = vmatmul.mubr.f32.gmra.mrb[0].mxu0 %v4634
      %v4890 = vpop.f32.mrb[0].mxu0
      %v4891 = vadd.f32 0.0, %v4890
      %v4892 = vpop.f32.mrb[0].mxu0
      %v4893 = vadd.f32 0.0, %v4892
      %4894 = vmatprep.mubr.f32.mxu0 0.0
      %4895 = vmatmul.mubr.f32.gmra.mrb[0].mxu0 %v4635
      %v4896 = vpop.f32.mrb[0].mxu0
      %v4897 = vadd.f32 0.0, %v4896
      %v4898 = vpop.f32.mrb[0].mxu0
      %v4899 = vadd.f32 0.0, %v4898
      %4900 = vmatprep.mubr.f32.mxu0 0.0
      %4901 = vmatmul.mubr.f32.gmra.mrb[0].mxu0 %v4636
      %v4902 = vpop.f32.mrb[0].mxu0
      %v4903 = vadd.f32 0.0, %v4902
      %v4904 = vpop.f32.mrb[0].mxu0
      %v4905 = vadd.f32 0.0, %v4904
      %4906 = vmatprep.mubr.f32.mxu0 0.0
      %4907 = vmatmul.mubr.f32.gmra.mrb[0].mxu0 %v4637
      %v4908 = vpop.f32.mrb[0].mxu0
      %v4909 = vadd.f32 0.0, %v4908
      %v4910 = vpop.f32.mrb[0].mxu0
      %v4911 = vadd.f32 0.0, %v4910
      %4912 = vmatprep.mubr.f32.mxu0 0.0
      %4913 = vmatmul.mubr.f32.gmra.mrb[0].mxu0 %v4638
      %v4914 = vpop.f32.mrb[0].mxu0
      %v4915 = vadd.f32 0.0, %v4914
      %v4916 = vpop.f32.mrb[0].mxu0
      %v4917 = vadd.f32 0.0, %v4916
      %4918 = vmatprep.mubr.f32.mxu0 0.0
      %4919 = vmatmul.mubr.f32.gmra.mrb[0].mxu0 %v4639
      %v4920 = vpop.f32.mrb[0].mxu0
      %v4921 = vadd.f32 0.0, %v4920
      %v4922 = vpop.f32.mrb[0].mxu0
      %v4923 = vadd.f32 0.0, %v4922
      %4924 = vmatprep.mubr.f32.mxu0 0.0
      %4925 = vmatmul.mubr.f32.gmra.mrb[0].mxu0 %v4640
      %v4926 = vpop.f32.mrb[0].mxu0
      %v4927 = vadd.f32 0.0, %v4926
      %v4928 = vpop.f32.mrb[0].mxu0
      %v4929 = vadd.f32 0.0, %v4928
      %4930 = vmatprep.mubr.f32.mxu0 0.0
      %4931 = vmatmul.mubr.f32.gmra.mrb[0].mxu0 %v4641
      %v4932 = vpop.f32.mrb[0].mxu0
      %v4933 = vadd.f32 0.0, %v4932
      %v4934 = vpop.f32.mrb[0].mxu0
      %v4935 = vadd.f32 0.0, %v4934
      %4936 = vmatprep.mubr.f32.mxu0 0.0
      %4937 = vmatmul.mubr.f32.gmra.mrb[0].mxu0 %v4642
      %v4938 = vpop.f32.mrb[0].mxu0
      %v4939 = vadd.f32 0.0, %v4938
      %v4940 = vpop.f32.mrb[0].mxu0
      %v4941 = vadd.f32 0.0, %v4940
      %4942 = vmatprep.mubr.f32.mxu0 0.0
      %4943 = vmatmul.mubr.f32.gmra.mrb[0].mxu0 %v4643
      %v4944 = vpop.f32.mrb[0].mxu0
      %v4945 = vadd.f32 0.0, %v4944
      %v4946 = vpop.f32.mrb[0].mxu0
      %v4947 = vadd.f32 0.0, %v4946
      %4948 = vmatprep.mubr.f32.mxu0 0.0
      %4949 = vmatmul.mubr.f32.gmra.mrb[0].mxu0 %v4644
      %v4950 = vpop.f32.mrb[0].mxu0
      %v4951 = vadd.f32 0.0, %v4950
      %v4952 = vpop.f32.mrb[0].mxu0
      %v4953 = vadd.f32 0.0, %v4952
      %4954 = vmatprep.mubr.f32.mxu0 0.0
      %4955 = vmatmul.mubr.f32.gmra.mrb[0].mxu0 %v4645
      %v4956 = vpop.f32.mrb[0].mxu0
      %v4957 = vadd.f32 0.0, %v4956
      %v4958 = vpop.f32.mrb[0].mxu0
      %v4959 = vadd.f32 0.0, %v4958
      %4960 = vmatprep.mubr.f32.mxu0 0.0
      %4961 = vmatmul.mubr.f32.gmra.mrb[0].mxu0 %v4646
      %v4962 = vpop.f32.mrb[0].mxu0
      %v4963 = vadd.f32 0.0, %v4962
      %v4964 = vpop.f32.mrb[0].mxu0
      %v4965 = vadd.f32 0.0, %v4964
      %4966 = vmatprep.mubr.f32.mxu0 0.0
      %4967 = vmatmul.mubr.f32.gmra.mrb[0].mxu0 %v4647
      %v4968 = vpop.f32.mrb[0].mxu0
      %v4969 = vadd.f32 0.0, %v4968
      %v4970 = vpop.f32.mrb[0].mxu0
      %v4971 = vadd.f32 0.0, %v4970
      %4972 = vmatprep.mubr.f32.mxu0 0.0
      %4973 = vmatmul.mubr.f32.gmra.mrb[0].mxu0 %v4648
      %v4974 = vpop.f32.mrb[0].mxu0
      %v4975 = vadd.f32 0.0, %v4974
      %v4976 = vpop.f32.mrb[0].mxu0
      %v4977 = vadd.f32 0.0, %v4976
      %4978 = vdwg.mxu0
      %v4979 = vadd.f32 %v4649, %v4807
      %v4980 = vadd.f32 %v4650, %v4809
      %v4981 = vadd.f32 %v4651, %v4813
      %v4982 = vadd.f32 %v4652, %v4815
      %v4983 = vadd.f32 %v4653, %v4819
      %v4984 = vadd.f32 %v4654, %v4821
      %v4985 = vadd.f32 %v4655, %v4825
      %v4986 = vadd.f32 %v4656, %v4827
      %v4987 = vadd.f32 %v4657, %v4831
      %v4988 = vadd.f32 %v4658, %v4833
      %v4989 = vadd.f32 %v4659, %v4837
      %v4990 = vadd.f32 %v4660, %v4839
      %v4991 = vadd.f32 %v4661, %v4843
      %v4992 = vadd.f32 %v4662, %v4845
      %v4993 = vadd.f32 %v4663, %v4849
      %v4994 = vadd.f32 %v4664, %v4851
      %v4995 = vadd.f32 %v4665, %v4855
      %v4996 = vadd.f32 %v4666, %v4857
      %v4997 = vadd.f32 %v4667, %v4861
      %v4998 = vadd.f32 %v4668, %v4863
      %v4999 = vadd.f32 %v4669, %v4867
      %v5000 = vadd.f32 %v4670, %v4869
      %v5001 = vadd.f32 %v4671, %v4873
      %v5002 = vadd.f32 %v4672, %v4875
      %v5003 = vadd.f32 %v4673, %v4879
      %v5004 = vadd.f32 %v4674, %v4881
      %v5005 = vadd.f32 %v4675, %v4885
      %v5006 = vadd.f32 %v4676, %v4887
      %v5007 = vadd.f32 %v4677, %v4891
      %v5008 = vadd.f32 %v4678, %v4893
      %v5009 = vadd.f32 %v4679, %v4897
      %v5010 = vadd.f32 %v4680, %v4899
      %v5011 = vadd.f32 %v4681, %v4903
      %v5012 = vadd.f32 %v4682, %v4905
      %v5013 = vadd.f32 %v4683, %v4909
      %v5014 = vadd.f32 %v4684, %v4911
      %v5015 = vadd.f32 %v4685, %v4915
      %v5016 = vadd.f32 %v4686, %v4917
      %v5017 = vadd.f32 %v4687, %v4921
      %v5018 = vadd.f32 %v4688, %v4923
      %v5019 = vadd.f32 %v4689, %v4927
      %v5020 = vadd.f32 %v4690, %v4929
      %v5021 = vadd.f32 %v4691, %v4933
      %v5022 = vadd.f32 %v4692, %v4935
      %v5023 = vadd.f32 %v4693, %v4939
      %v5024 = vadd.f32 %v4694, %v4941
      %v5025 = vadd.f32 %v4695, %v4945
      %v5026 = vadd.f32 %v4696, %v4947
      %v5027 = vadd.f32 %v4697, %v4951
      %v5028 = vadd.f32 %v4698, %v4953
      %v5029 = vadd.f32 %v4699, %v4957
      %v5030 = vadd.f32 %v4700, %v4959
      %v5031 = vadd.f32 %v4701, %v4963
      %v5032 = vadd.f32 %v4702, %v4965
      %v5033 = vadd.f32 %v4703, %v4969
      %v5034 = vadd.f32 %v4704, %v4971
      %v5035 = vadd.f32 %v4705, %v4975
      %v5036 = vadd.f32 %v4706, %v4977
      %5037 = vst [vmem:[#allocation3] sm:$0xff] %v4979
      %5038 = vst [vmem:[#allocation3 + $0x8] sm:$0xff] %v4980
      %5039 = vst [vmem:[#allocation3 + $0x10] sm:$0xff] %v4981
      %5040 = vst [vmem:[#allocation3 + $0x18] sm:$0xff] %v4982
      %5041 = vst [vmem:[#allocation3 + $0x20] sm:$0xff] %v4983
      %5042 = vst [vmem:[#allocation3 + $0x28] sm:$0xff] %v4984
      %5043 = vst [vmem:[#allocation3 + $0x30] sm:$0xff] %v4985
      %5044 = vst [vmem:[#allocation3 + $0x38] sm:$0xff] %v4986
      %5045 = vst [vmem:[#allocation3 + $0x40] sm:$0xff] %v4987
      %5046 = vst [vmem:[#allocation3 + $0x48] sm:$0xff] %v4988
      %5047 = vst [vmem:[#allocation3 + $0x50] sm:$0xff] %v4989
      %5048 = vst [vmem:[#allocation3 + $0x58] sm:$0xff] %v4990
      %5049 = vst [vmem:[#allocation3 + $0x60] sm:$0xff] %v4991
      %5050 = vst [vmem:[#allocation3 + $0x68] sm:$0xff] %v4992
      %5051 = vst [vmem:[#allocation3 + $0x70] sm:$0xff] %v4993
      %5052 = vst [vmem:[#allocation3 + $0x78] sm:$0xff] %v4994
      %5053 = vst [vmem:[#allocation3 + $0x80] sm:$0xff] %v4995
      %5054 = vst [vmem:[#allocation3 + $0x88] sm:$0xff] %v4996
      %5055 = vst [vmem:[#allocation3 + $0x90] sm:$0xff] %v4997
      %5056 = vst [vmem:[#allocation3 + $0x98] sm:$0xff] %v4998
      %5057 = vst [vmem:[#allocation3 + $0xa0] sm:$0xff] %v4999
      %5058 = vst [vmem:[#allocation3 + $0xa8] sm:$0xff] %v5000
      %5059 = vst [vmem:[#allocation3 + $0xb0] sm:$0xff] %v5001
      %5060 = vst [vmem:[#allocation3 + $0xb8] sm:$0xff] %v5002
      %5061 = vst [vmem:[#allocation3 + $0xc0] sm:$0xff] %v5003
      %5062 = vst [vmem:[#allocation3 + $0xc8] sm:$0xff] %v5004
      %5063 = vst [vmem:[#allocation3 + $0xd0] sm:$0xff] %v5005
      %5064 = vst [vmem:[#allocation3 + $0xd8] sm:$0xff] %v5006
      %5065 = vst [vmem:[#allocation3 + $0xe0] sm:$0xff] %v5007
      %5066 = vst [vmem:[#allocation3 + $0xe8] sm:$0xff] %v5008
      %5067 = vst [vmem:[#allocation3 + $0xf0] sm:$0xff] %v5009
      %5068 = vst [vmem:[#allocation3 + $0xf8] sm:$0xff] %v5010
      %5069 = vst [vmem:[#allocation3 + $0x100] sm:$0xff] %v5011
      %5070 = vst [vmem:[#allocation3 + $0x108] sm:$0xff] %v5012
      %5071 = vst [vmem:[#allocation3 + $0x110] sm:$0xff] %v5013
      %5072 = vst [vmem:[#allocation3 + $0x118] sm:$0xff] %v5014
      %5073 = vst [vmem:[#allocation3 + $0x120] sm:$0xff] %v5015
      %5074 = vst [vmem:[#allocation3 + $0x128] sm:$0xff] %v5016
      %5075 = vst [vmem:[#allocation3 + $0x130] sm:$0xff] %v5017
      %5076 = vst [vmem:[#allocation3 + $0x138] sm:$0xff] %v5018
      %5077 = vst [vmem:[#allocation3 + $0x140] sm:$0xff] %v5019
      %5078 = vst [vmem:[#allocation3 + $0x148] sm:$0xff] %v5020
      %5079 = vst [vmem:[#allocation3 + $0x150] sm:$0xff] %v5021
      %5080 = vst [vmem:[#allocation3 + $0x158] sm:$0xff] %v5022
      %5081 = vst [vmem:[#allocation3 + $0x160] sm:$0xff] %v5023
      %5082 = vst [vmem:[#allocation3 + $0x168] sm:$0xff] %v5024
      %5083 = vst [vmem:[#allocation3 + $0x170] sm:$0xff] %v5025
      %5084 = vst [vmem:[#allocation3 + $0x178] sm:$0xff] %v5026
      %5085 = vst [vmem:[#allocation3 + $0x180] sm:$0xff] %v5027
      %5086 = vst [vmem:[#allocation3 + $0x188] sm:$0xff] %v5028
      %5087 = vst [vmem:[#allocation3 + $0x190] sm:$0xff] %v5029
      %5088 = vst [vmem:[#allocation3 + $0x198] sm:$0xff] %v5030
      %5089 = vst [vmem:[#allocation3 + $0x1a0] sm:$0xff] %v5031
      %5090 = vst [vmem:[#allocation3 + $0x1a8] sm:$0xff] %v5032
      %5091 = vst [vmem:[#allocation3 + $0x1b0] sm:$0xff] %v5033
      %5092 = vst [vmem:[#allocation3 + $0x1b8] sm:$0xff] %v5034
      %5093 = vst [vmem:[#allocation3 + $0x1c0] sm:$0x7f] %v5035
      %5094 = vst [vmem:[#allocation3 + $0x1c8] sm:$0x7f] %v5036
      %v5095 = vld [vmem:[#allocation2 + $0x2b] sm:$0xff]
      %v5096 = vld [vmem:[#allocation2 + $0x33] sm:$0xff]
      %v5097 = vld [vmem:[#allocation2 + $0x3b] sm:$0xff]
      %v5098 = vld [vmem:[#allocation2 + $0x43] sm:$0xff]
      %v5099 = vld [vmem:[#allocation2 + $0x4b] sm:$0xff]
      %v5100 = vld [vmem:[#allocation2 + $0x53] sm:$0xff]
      %v5101 = vld [vmem:[#allocation2 + $0x5b] sm:$0xff]
      %v5102 = vld [vmem:[#allocation2 + $0x63] sm:$0xff]
      %v5103 = vld [vmem:[#allocation2 + $0x6b] sm:$0xff]
      %v5104 = vld [vmem:[#allocation2 + $0x73] sm:$0xff]
      %v5105 = vld [vmem:[#allocation2 + $0x7b] sm:$0xff]
      %v5106 = vld [vmem:[#allocation2 + $0x83] sm:$0xff]
      %v5107 = vld [vmem:[#allocation2 + $0x8b] sm:$0xff]
      %v5108 = vld [vmem:[#allocation2 + $0x93] sm:$0xff]
      %v5109 = vld [vmem:[#allocation2 + $0x9b] sm:$0xff]
      %v5110 = vld [vmem:[#allocation2 + $0xa3] sm:$0xff]
      %v5111 = vld [vmem:[#allocation2 + $0xab] sm:$0xff]
      %v5112 = vld [vmem:[#allocation2 + $0xb3] sm:$0xff]
      %v5113 = vld [vmem:[#allocation2 + $0xbb] sm:$0xff]
      %v5114 = vld [vmem:[#allocation2 + $0xc3] sm:$0xff]
      %v5115 = vld [vmem:[#allocation2 + $0xcb] sm:$0xff]
      %v5116 = vld [vmem:[#allocation2 + $0xd3] sm:$0xff]
      %v5117 = vld [vmem:[#allocation2 + $0xdb] sm:$0xff]
      %v5118 = vld [vmem:[#allocation2 + $0xe3] sm:$0xff]
      %v5119 = vld [vmem:[#allocation2 + $0xeb] sm:$0xff]
      %v5120 = vld [vmem:[#allocation2 + $0xf3] sm:$0xff]
      %v5121 = vld [vmem:[#allocation2 + $0xfb] sm:$0xff]
      %v5122 = vld [vmem:[#allocation2 + $0x103] sm:$0xff]
      %v5123 = vld [vmem:[#allocation2 + $0x10b] sm:$0x7f]
      %v5124 = vld [vmem:[#allocation3] sm:$0xff]
      %v5125 = vld [vmem:[#allocation3 + $0x8] sm:$0xff]
      %v5126 = vld [vmem:[#allocation3 + $0x10] sm:$0xff]
      %v5127 = vld [vmem:[#allocation3 + $0x18] sm:$0xff]
      %v5128 = vld [vmem:[#allocation3 + $0x20] sm:$0xff]
      %v5129 = vld [vmem:[#allocation3 + $0x28] sm:$0xff]
      %v5130 = vld [vmem:[#allocation3 + $0x30] sm:$0xff]
      %v5131 = vld [vmem:[#allocation3 + $0x38] sm:$0xff]
      %v5132 = vld [vmem:[#allocation3 + $0x40] sm:$0xff]
      %v5133 = vld [vmem:[#allocation3 + $0x48] sm:$0xff]
      %v5134 = vld [vmem:[#allocation3 + $0x50] sm:$0xff]
      %v5135 = vld [vmem:[#allocation3 + $0x58] sm:$0xff]
      %v5136 = vld [vmem:[#allocation3 + $0x60] sm:$0xff]
      %v5137 = vld [vmem:[#allocation3 + $0x68] sm:$0xff]
      %v5138 = vld [vmem:[#allocation3 + $0x70] sm:$0xff]
      %v5139 = vld [vmem:[#allocation3 + $0x78] sm:$0xff]
      %v5140 = vld [vmem:[#allocation3 + $0x80] sm:$0xff]
      %v5141 = vld [vmem:[#allocation3 + $0x88] sm:$0xff]
      %v5142 = vld [vmem:[#allocation3 + $0x90] sm:$0xff]
      %v5143 = vld [vmem:[#allocation3 + $0x98] sm:$0xff]
      %v5144 = vld [vmem:[#allocation3 + $0xa0] sm:$0xff]
      %v5145 = vld [vmem:[#allocation3 + $0xa8] sm:$0xff]
      %v5146 = vld [vmem:[#allocation3 + $0xb0] sm:$0xff]
      %v5147 = vld [vmem:[#allocation3 + $0xb8] sm:$0xff]
      %v5148 = vld [vmem:[#allocation3 + $0xc0] sm:$0xff]
      %v5149 = vld [vmem:[#allocation3 + $0xc8] sm:$0xff]
      %v5150 = vld [vmem:[#allocation3 + $0xd0] sm:$0xff]
      %v5151 = vld [vmem:[#allocation3 + $0xd8] sm:$0xff]
      %v5152 = vld [vmem:[#allocation3 + $0xe0] sm:$0xff]
      %v5153 = vld [vmem:[#allocation3 + $0xe8] sm:$0xff]
      %v5154 = vld [vmem:[#allocation3 + $0xf0] sm:$0xff]
      %v5155 = vld [vmem:[#allocation3 + $0xf8] sm:$0xff]
      %v5156 = vld [vmem:[#allocation3 + $0x100] sm:$0xff]
      %v5157 = vld [vmem:[#allocation3 + $0x108] sm:$0xff]
      %v5158 = vld [vmem:[#allocation3 + $0x110] sm:$0xff]
      %v5159 = vld [vmem:[#allocation3 + $0x118] sm:$0xff]
      %v5160 = vld [vmem:[#allocation3 + $0x120] sm:$0xff]
      %v5161 = vld [vmem:[#allocation3 + $0x128] sm:$0xff]
      %v5162 = vld [vmem:[#allocation3 + $0x130] sm:$0xff]
      %v5163 = vld [vmem:[#allocation3 + $0x138] sm:$0xff]
      %v5164 = vld [vmem:[#allocation3 + $0x140] sm:$0xff]
      %v5165 = vld [vmem:[#allocation3 + $0x148] sm:$0xff]
      %v5166 = vld [vmem:[#allocation3 + $0x150] sm:$0xff]
      %v5167 = vld [vmem:[#allocation3 + $0x158] sm:$0xff]
      %v5168 = vld [vmem:[#allocation3 + $0x160] sm:$0xff]
      %v5169 = vld [vmem:[#allocation3 + $0x168] sm:$0xff]
      %v5170 = vld [vmem:[#allocation3 + $0x170] sm:$0xff]
      %v5171 = vld [vmem:[#allocation3 + $0x178] sm:$0xff]
      %v5172 = vld [vmem:[#allocation3 + $0x180] sm:$0xff]
      %v5173 = vld [vmem:[#allocation3 + $0x188] sm:$0xff]
      %v5174 = vld [vmem:[#allocation3 + $0x190] sm:$0xff]
      %v5175 = vld [vmem:[#allocation3 + $0x198] sm:$0xff]
      %v5176 = vld [vmem:[#allocation3 + $0x1a0] sm:$0xff]
      %v5177 = vld [vmem:[#allocation3 + $0x1a8] sm:$0xff]
      %v5178 = vld [vmem:[#allocation3 + $0x1b0] sm:$0xff]
      %v5179 = vld [vmem:[#allocation3 + $0x1b8] sm:$0xff]
      %v5180 = vld [vmem:[#allocation3 + $0x1c0] sm:$0x7f]
      %v5181 = vld [vmem:[#allocation3 + $0x1c8] sm:$0x7f]
      %s5182 = scalar_lea.vmem %s2, 2304
      %v5183 = vld [vmem:[%s5182] sm:$0xff]
      %v5184 = vld [vmem:[%s5182 + $0x8] sm:$0xff]
      %v5185 = vld [vmem:[%s5182 + $0x10] sm:$0xff]
      %v5186 = vld [vmem:[%s5182 + $0x18] sm:$0xff]
      %v5187 = vld [vmem:[%s5182 + $0x20] sm:$0xff]
      %v5188 = vld [vmem:[%s5182 + $0x28] sm:$0xff]
      %v5189 = vld [vmem:[%s5182 + $0x30] sm:$0xff]
      %v5190 = vld [vmem:[%s5182 + $0x38] sm:$0xff]
      %v5191 = vld [vmem:[%s5182 + $0x40] sm:$0xff]
      %v5192 = vld [vmem:[%s5182 + $0x48] sm:$0xff]
      %v5193 = vld [vmem:[%s5182 + $0x50] sm:$0xff]
      %v5194 = vld [vmem:[%s5182 + $0x58] sm:$0xff]
      %v5195 = vld [vmem:[%s5182 + $0x60] sm:$0xff]
      %v5196 = vld [vmem:[%s5182 + $0x68] sm:$0xff]
      %v5197 = vld [vmem:[%s5182 + $0x70] sm:$0xff]
      %v5198 = vld [vmem:[%s5182 + $0x78] sm:$0xff]
      %v5199 = vld [vmem:[%s5182 + $0x80] sm:$0xff]
      %v5200 = vld [vmem:[%s5182 + $0x88] sm:$0xff]
      %v5201 = vld [vmem:[%s5182 + $0x90] sm:$0xff]
      %v5202 = vld [vmem:[%s5182 + $0x98] sm:$0xff]
      %v5203 = vld [vmem:[%s5182 + $0xa0] sm:$0xff]
      %v5204 = vld [vmem:[%s5182 + $0xa8] sm:$0xff]
      %v5205 = vld [vmem:[%s5182 + $0xb0] sm:$0xff]
      %v5206 = vld [vmem:[%s5182 + $0xb8] sm:$0xff]
      %v5207 = vld [vmem:[%s5182 + $0xc0] sm:$0xff]
      %v5208 = vld [vmem:[%s5182 + $0xc8] sm:$0xff]
      %v5209 = vld [vmem:[%s5182 + $0xd0] sm:$0xff]
      %v5210 = vld [vmem:[%s5182 + $0xd8] sm:$0xff]
      %v5211 = vld [vmem:[%s5182 + $0xe0] sm:$0xff]
      %v5212 = vld [vmem:[%s5182 + $0xe8] sm:$0xff]
      %v5213 = vld [vmem:[%s5182 + $0xf0] sm:$0xff]
      %v5214 = vld [vmem:[%s5182 + $0xf8] sm:$0xff]
      %5215 = vmatprep.subr.mxu0 %v5184
      %5216 = vmatpush1.msra.mxu0 %v5183
      %5217 = vmatprep.subr.mxu0 %v5186
      %5218 = vmatpush1.msra.mxu0 %v5185
      %5219 = vmatprep.subr.mxu0 %v5188
      %5220 = vmatpush1.msra.mxu0 %v5187
      %5221 = vmatprep.subr.mxu0 %v5190
      %5222 = vmatpush1.msra.mxu0 %v5189
      %5223 = vmatprep.subr.mxu0 %v5192
      %5224 = vmatpush1.msra.mxu0 %v5191
      %5225 = vmatprep.subr.mxu0 %v5194
      %5226 = vmatpush1.msra.mxu0 %v5193
      %5227 = vmatprep.subr.mxu0 %v5196
      %5228 = vmatpush1.msra.mxu0 %v5195
      %5229 = vmatprep.subr.mxu0 %v5198
      %5230 = vmatpush1.msra.mxu0 %v5197
      %5231 = vmatprep.subr.mxu0 %v5200
      %5232 = vmatpush1.msra.mxu0 %v5199
      %5233 = vmatprep.subr.mxu0 %v5202
      %5234 = vmatpush1.msra.mxu0 %v5201
      %5235 = vmatprep.subr.mxu0 %v5204
      %5236 = vmatpush1.msra.mxu0 %v5203
      %5237 = vmatprep.subr.mxu0 %v5206
      %5238 = vmatpush1.msra.mxu0 %v5205
      %5239 = vmatprep.subr.mxu0 %v5208
      %5240 = vmatpush1.msra.mxu0 %v5207
      %5241 = vmatprep.subr.mxu0 %v5210
      %5242 = vmatpush1.msra.mxu0 %v5209
      %5243 = vmatprep.subr.mxu0 %v5212
      %5244 = vmatpush1.msra.mxu0 %v5211
      %5245 = vmatprep.subr.mxu0 %v5214
      %5246 = vmatpush1.msra.mxu0 %v5213
      %5247 = vmatprep.subr.mxu0 0.0
      %5248 = vmatpush1.msra.mxu0 0.0
      %5249 = vmatprep.subr.mxu0 0.0
      %5250 = vmatpush1.msra.mxu0 0.0
      %5251 = vmatprep.subr.mxu0 0.0
      %5252 = vmatpush1.msra.mxu0 0.0
      %5253 = vmatprep.subr.mxu0 0.0
      %5254 = vmatpush1.msra.mxu0 0.0
      %5255 = vmatprep.subr.mxu0 0.0
      %5256 = vmatpush1.msra.mxu0 0.0
      %5257 = vmatprep.subr.mxu0 0.0
      %5258 = vmatpush1.msra.mxu0 0.0
      %5259 = vmatprep.subr.mxu0 0.0
      %5260 = vmatpush1.msra.mxu0 0.0
      %5261 = vmatprep.subr.mxu0 0.0
      %5262 = vmatpush1.msra.mxu0 0.0
      %5263 = vmatprep.subr.mxu0 0.0
      %5264 = vmatpush1.msra.mxu0 0.0
      %5265 = vmatprep.subr.mxu0 0.0
      %5266 = vmatpush1.msra.mxu0 0.0
      %5267 = vmatprep.subr.mxu0 0.0
      %5268 = vmatpush1.msra.mxu0 0.0
      %5269 = vmatprep.subr.mxu0 0.0
      %5270 = vmatpush1.msra.mxu0 0.0
      %5271 = vmatprep.subr.mxu0 0.0
      %5272 = vmatpush1.msra.mxu0 0.0
      %5273 = vmatprep.subr.mxu0 0.0
      %5274 = vmatpush1.msra.mxu0 0.0
      %5275 = vmatprep.subr.mxu0 0.0
      %5276 = vmatpush1.msra.mxu0 0.0
      %5277 = vmatprep.subr.mxu0 0.0
      %5278 = vmatpush1.msra.mxu0 0.0
      %5279 = vmatprep.mubr.f32.mxu0 0.0
      %5280 = vmatmul.mubr.f32.gmra.mrb[0].mxu0 %v5095
      %v5281 = vpop.f32.mrb[0].mxu0
      %v5282 = vadd.f32 0.0, %v5281
      %v5283 = vpop.f32.mrb[0].mxu0
      %v5284 = vadd.f32 0.0, %v5283
      %5285 = vmatprep.mubr.f32.mxu0 0.0
      %5286 = vmatmul.mubr.f32.gmra.mrb[0].mxu0 %v5096
      %v5287 = vpop.f32.mrb[0].mxu0
      %v5288 = vadd.f32 0.0, %v5287
      %v5289 = vpop.f32.mrb[0].mxu0
      %v5290 = vadd.f32 0.0, %v5289
      %5291 = vmatprep.mubr.f32.mxu0 0.0
      %5292 = vmatmul.mubr.f32.gmra.mrb[0].mxu0 %v5097
      %v5293 = vpop.f32.mrb[0].mxu0
      %v5294 = vadd.f32 0.0, %v5293
      %v5295 = vpop.f32.mrb[0].mxu0
      %v5296 = vadd.f32 0.0, %v5295
      %5297 = vmatprep.mubr.f32.mxu0 0.0
      %5298 = vmatmul.mubr.f32.gmra.mrb[0].mxu0 %v5098
      %v5299 = vpop.f32.mrb[0].mxu0
      %v5300 = vadd.f32 0.0, %v5299
      %v5301 = vpop.f32.mrb[0].mxu0
      %v5302 = vadd.f32 0.0, %v5301
      %5303 = vmatprep.mubr.f32.mxu0 0.0
      %5304 = vmatmul.mubr.f32.gmra.mrb[0].mxu0 %v5099
      %v5305 = vpop.f32.mrb[0].mxu0
      %v5306 = vadd.f32 0.0, %v5305
      %v5307 = vpop.f32.mrb[0].mxu0
      %v5308 = vadd.f32 0.0, %v5307
      %5309 = vmatprep.mubr.f32.mxu0 0.0
      %5310 = vmatmul.mubr.f32.gmra.mrb[0].mxu0 %v5100
      %v5311 = vpop.f32.mrb[0].mxu0
      %v5312 = vadd.f32 0.0, %v5311
      %v5313 = vpop.f32.mrb[0].mxu0
      %v5314 = vadd.f32 0.0, %v5313
      %5315 = vmatprep.mubr.f32.mxu0 0.0
      %5316 = vmatmul.mubr.f32.gmra.mrb[0].mxu0 %v5101
      %v5317 = vpop.f32.mrb[0].mxu0
      %v5318 = vadd.f32 0.0, %v5317
      %v5319 = vpop.f32.mrb[0].mxu0
      %v5320 = vadd.f32 0.0, %v5319
      %5321 = vmatprep.mubr.f32.mxu0 0.0
      %5322 = vmatmul.mubr.f32.gmra.mrb[0].mxu0 %v5102
      %v5323 = vpop.f32.mrb[0].mxu0
      %v5324 = vadd.f32 0.0, %v5323
      %v5325 = vpop.f32.mrb[0].mxu0
      %v5326 = vadd.f32 0.0, %v5325
      %5327 = vmatprep.mubr.f32.mxu0 0.0
      %5328 = vmatmul.mubr.f32.gmra.mrb[0].mxu0 %v5103
      %v5329 = vpop.f32.mrb[0].mxu0
      %v5330 = vadd.f32 0.0, %v5329
      %v5331 = vpop.f32.mrb[0].mxu0
      %v5332 = vadd.f32 0.0, %v5331
      %5333 = vmatprep.mubr.f32.mxu0 0.0
      %5334 = vmatmul.mubr.f32.gmra.mrb[0].mxu0 %v5104
      %v5335 = vpop.f32.mrb[0].mxu0
      %v5336 = vadd.f32 0.0, %v5335
      %v5337 = vpop.f32.mrb[0].mxu0
      %v5338 = vadd.f32 0.0, %v5337
      %5339 = vmatprep.mubr.f32.mxu0 0.0
      %5340 = vmatmul.mubr.f32.gmra.mrb[0].mxu0 %v5105
      %v5341 = vpop.f32.mrb[0].mxu0
      %v5342 = vadd.f32 0.0, %v5341
      %v5343 = vpop.f32.mrb[0].mxu0
      %v5344 = vadd.f32 0.0, %v5343
      %5345 = vmatprep.mubr.f32.mxu0 0.0
      %5346 = vmatmul.mubr.f32.gmra.mrb[0].mxu0 %v5106
      %v5347 = vpop.f32.mrb[0].mxu0
      %v5348 = vadd.f32 0.0, %v5347
      %v5349 = vpop.f32.mrb[0].mxu0
      %v5350 = vadd.f32 0.0, %v5349
      %5351 = vmatprep.mubr.f32.mxu0 0.0
      %5352 = vmatmul.mubr.f32.gmra.mrb[0].mxu0 %v5107
      %v5353 = vpop.f32.mrb[0].mxu0
      %v5354 = vadd.f32 0.0, %v5353
      %v5355 = vpop.f32.mrb[0].mxu0
      %v5356 = vadd.f32 0.0, %v5355
      %5357 = vmatprep.mubr.f32.mxu0 0.0
      %5358 = vmatmul.mubr.f32.gmra.mrb[0].mxu0 %v5108
      %v5359 = vpop.f32.mrb[0].mxu0
      %v5360 = vadd.f32 0.0, %v5359
      %v5361 = vpop.f32.mrb[0].mxu0
      %v5362 = vadd.f32 0.0, %v5361
      %5363 = vmatprep.mubr.f32.mxu0 0.0
      %5364 = vmatmul.mubr.f32.gmra.mrb[0].mxu0 %v5109
      %v5365 = vpop.f32.mrb[0].mxu0
      %v5366 = vadd.f32 0.0, %v5365
      %v5367 = vpop.f32.mrb[0].mxu0
      %v5368 = vadd.f32 0.0, %v5367
      %5369 = vmatprep.mubr.f32.mxu0 0.0
      %5370 = vmatmul.mubr.f32.gmra.mrb[0].mxu0 %v5110
      %v5371 = vpop.f32.mrb[0].mxu0
      %v5372 = vadd.f32 0.0, %v5371
      %v5373 = vpop.f32.mrb[0].mxu0
      %v5374 = vadd.f32 0.0, %v5373
      %5375 = vmatprep.mubr.f32.mxu0 0.0
      %5376 = vmatmul.mubr.f32.gmra.mrb[0].mxu0 %v5111
      %v5377 = vpop.f32.mrb[0].mxu0
      %v5378 = vadd.f32 0.0, %v5377
      %v5379 = vpop.f32.mrb[0].mxu0
      %v5380 = vadd.f32 0.0, %v5379
      %5381 = vmatprep.mubr.f32.mxu0 0.0
      %5382 = vmatmul.mubr.f32.gmra.mrb[0].mxu0 %v5112
      %v5383 = vpop.f32.mrb[0].mxu0
      %v5384 = vadd.f32 0.0, %v5383
      %v5385 = vpop.f32.mrb[0].mxu0
      %v5386 = vadd.f32 0.0, %v5385
      %5387 = vmatprep.mubr.f32.mxu0 0.0
      %5388 = vmatmul.mubr.f32.gmra.mrb[0].mxu0 %v5113
      %v5389 = vpop.f32.mrb[0].mxu0
      %v5390 = vadd.f32 0.0, %v5389
      %v5391 = vpop.f32.mrb[0].mxu0
      %v5392 = vadd.f32 0.0, %v5391
      %5393 = vmatprep.mubr.f32.mxu0 0.0
      %5394 = vmatmul.mubr.f32.gmra.mrb[0].mxu0 %v5114
      %v5395 = vpop.f32.mrb[0].mxu0
      %v5396 = vadd.f32 0.0, %v5395
      %v5397 = vpop.f32.mrb[0].mxu0
      %v5398 = vadd.f32 0.0, %v5397
      %5399 = vmatprep.mubr.f32.mxu0 0.0
      %5400 = vmatmul.mubr.f32.gmra.mrb[0].mxu0 %v5115
      %v5401 = vpop.f32.mrb[0].mxu0
      %v5402 = vadd.f32 0.0, %v5401
      %v5403 = vpop.f32.mrb[0].mxu0
      %v5404 = vadd.f32 0.0, %v5403
      %5405 = vmatprep.mubr.f32.mxu0 0.0
      %5406 = vmatmul.mubr.f32.gmra.mrb[0].mxu0 %v5116
      %v5407 = vpop.f32.mrb[0].mxu0
      %v5408 = vadd.f32 0.0, %v5407
      %v5409 = vpop.f32.mrb[0].mxu0
      %v5410 = vadd.f32 0.0, %v5409
      %5411 = vmatprep.mubr.f32.mxu0 0.0
      %5412 = vmatmul.mubr.f32.gmra.mrb[0].mxu0 %v5117
      %v5413 = vpop.f32.mrb[0].mxu0
      %v5414 = vadd.f32 0.0, %v5413
      %v5415 = vpop.f32.mrb[0].mxu0
      %v5416 = vadd.f32 0.0, %v5415
      %5417 = vmatprep.mubr.f32.mxu0 0.0
      %5418 = vmatmul.mubr.f32.gmra.mrb[0].mxu0 %v5118
      %v5419 = vpop.f32.mrb[0].mxu0
      %v5420 = vadd.f32 0.0, %v5419
      %v5421 = vpop.f32.mrb[0].mxu0
      %v5422 = vadd.f32 0.0, %v5421
      %5423 = vmatprep.mubr.f32.mxu0 0.0
      %5424 = vmatmul.mubr.f32.gmra.mrb[0].mxu0 %v5119
      %v5425 = vpop.f32.mrb[0].mxu0
      %v5426 = vadd.f32 0.0, %v5425
      %v5427 = vpop.f32.mrb[0].mxu0
      %v5428 = vadd.f32 0.0, %v5427
      %5429 = vmatprep.mubr.f32.mxu0 0.0
      %5430 = vmatmul.mubr.f32.gmra.mrb[0].mxu0 %v5120
      %v5431 = vpop.f32.mrb[0].mxu0
      %v5432 = vadd.f32 0.0, %v5431
      %v5433 = vpop.f32.mrb[0].mxu0
      %v5434 = vadd.f32 0.0, %v5433
      %5435 = vmatprep.mubr.f32.mxu0 0.0
      %5436 = vmatmul.mubr.f32.gmra.mrb[0].mxu0 %v5121
      %v5437 = vpop.f32.mrb[0].mxu0
      %v5438 = vadd.f32 0.0, %v5437
      %v5439 = vpop.f32.mrb[0].mxu0
      %v5440 = vadd.f32 0.0, %v5439
      %5441 = vmatprep.mubr.f32.mxu0 0.0
      %5442 = vmatmul.mubr.f32.gmra.mrb[0].mxu0 %v5122
      %v5443 = vpop.f32.mrb[0].mxu0
      %v5444 = vadd.f32 0.0, %v5443
      %v5445 = vpop.f32.mrb[0].mxu0
      %v5446 = vadd.f32 0.0, %v5445
      %5447 = vmatprep.mubr.f32.mxu0 0.0
      %5448 = vmatmul.mubr.f32.gmra.mrb[0].mxu0 %v5123
      %v5449 = vpop.f32.mrb[0].mxu0
      %v5450 = vadd.f32 0.0, %v5449
      %v5451 = vpop.f32.mrb[0].mxu0
      %v5452 = vadd.f32 0.0, %v5451
      %5453 = vdwg.mxu0
      %v5454 = vadd.f32 %v5124, %v5282
      %v5455 = vadd.f32 %v5125, %v5284
      %v5456 = vadd.f32 %v5126, %v5288
      %v5457 = vadd.f32 %v5127, %v5290
      %v5458 = vadd.f32 %v5128, %v5294
      %v5459 = vadd.f32 %v5129, %v5296
      %v5460 = vadd.f32 %v5130, %v5300
      %v5461 = vadd.f32 %v5131, %v5302
      %v5462 = vadd.f32 %v5132, %v5306
      %v5463 = vadd.f32 %v5133, %v5308
      %v5464 = vadd.f32 %v5134, %v5312
      %v5465 = vadd.f32 %v5135, %v5314
      %v5466 = vadd.f32 %v5136, %v5318
      %v5467 = vadd.f32 %v5137, %v5320
      %v5468 = vadd.f32 %v5138, %v5324
      %v5469 = vadd.f32 %v5139, %v5326
      %v5470 = vadd.f32 %v5140, %v5330
      %v5471 = vadd.f32 %v5141, %v5332
      %v5472 = vadd.f32 %v5142, %v5336
      %v5473 = vadd.f32 %v5143, %v5338
      %v5474 = vadd.f32 %v5144, %v5342
      %v5475 = vadd.f32 %v5145, %v5344
      %v5476 = vadd.f32 %v5146, %v5348
      %v5477 = vadd.f32 %v5147, %v5350
      %v5478 = vadd.f32 %v5148, %v5354
      %v5479 = vadd.f32 %v5149, %v5356
      %v5480 = vadd.f32 %v5150, %v5360
      %v5481 = vadd.f32 %v5151, %v5362
      %v5482 = vadd.f32 %v5152, %v5366
      %v5483 = vadd.f32 %v5153, %v5368
      %v5484 = vadd.f32 %v5154, %v5372
      %v5485 = vadd.f32 %v5155, %v5374
      %v5486 = vadd.f32 %v5156, %v5378
      %v5487 = vadd.f32 %v5157, %v5380
      %v5488 = vadd.f32 %v5158, %v5384
      %v5489 = vadd.f32 %v5159, %v5386
      %v5490 = vadd.f32 %v5160, %v5390
      %v5491 = vadd.f32 %v5161, %v5392
      %v5492 = vadd.f32 %v5162, %v5396
      %v5493 = vadd.f32 %v5163, %v5398
      %v5494 = vadd.f32 %v5164, %v5402
      %v5495 = vadd.f32 %v5165, %v5404
      %v5496 = vadd.f32 %v5166, %v5408
      %v5497 = vadd.f32 %v5167, %v5410
      %v5498 = vadd.f32 %v5168, %v5414
      %v5499 = vadd.f32 %v5169, %v5416
      %v5500 = vadd.f32 %v5170, %v5420
      %v5501 = vadd.f32 %v5171, %v5422
      %v5502 = vadd.f32 %v5172, %v5426
      %v5503 = vadd.f32 %v5173, %v5428
      %v5504 = vadd.f32 %v5174, %v5432
      %v5505 = vadd.f32 %v5175, %v5434
      %v5506 = vadd.f32 %v5176, %v5438
      %v5507 = vadd.f32 %v5177, %v5440
      %v5508 = vadd.f32 %v5178, %v5444
      %v5509 = vadd.f32 %v5179, %v5446
      %v5510 = vadd.f32 %v5180, %v5450
      %v5511 = vadd.f32 %v5181, %v5452
      %5512 = vst [vmem:[#allocation3] sm:$0xff] %v5454
      %5513 = vst [vmem:[#allocation3 + $0x8] sm:$0xff] %v5455
      %5514 = vst [vmem:[#allocation3 + $0x10] sm:$0xff] %v5456
      %5515 = vst [vmem:[#allocation3 + $0x18] sm:$0xff] %v5457
      %5516 = vst [vmem:[#allocation3 + $0x20] sm:$0xff] %v5458
      %5517 = vst [vmem:[#allocation3 + $0x28] sm:$0xff] %v5459
      %5518 = vst [vmem:[#allocation3 + $0x30] sm:$0xff] %v5460
      %5519 = vst [vmem:[#allocation3 + $0x38] sm:$0xff] %v5461
      %5520 = vst [vmem:[#allocation3 + $0x40] sm:$0xff] %v5462
      %5521 = vst [vmem:[#allocation3 + $0x48] sm:$0xff] %v5463
      %5522 = vst [vmem:[#allocation3 + $0x50] sm:$0xff] %v5464
      %5523 = vst [vmem:[#allocation3 + $0x58] sm:$0xff] %v5465
      %5524 = vst [vmem:[#allocation3 + $0x60] sm:$0xff] %v5466
      %5525 = vst [vmem:[#allocation3 + $0x68] sm:$0xff] %v5467
      %5526 = vst [vmem:[#allocation3 + $0x70] sm:$0xff] %v5468
      %5527 = vst [vmem:[#allocation3 + $0x78] sm:$0xff] %v5469
      %5528 = vst [vmem:[#allocation3 + $0x80] sm:$0xff] %v5470
      %5529 = vst [vmem:[#allocation3 + $0x88] sm:$0xff] %v5471
      %5530 = vst [vmem:[#allocation3 + $0x90] sm:$0xff] %v5472
      %5531 = vst [vmem:[#allocation3 + $0x98] sm:$0xff] %v5473
      %5532 = vst [vmem:[#allocation3 + $0xa0] sm:$0xff] %v5474
      %5533 = vst [vmem:[#allocation3 + $0xa8] sm:$0xff] %v5475
      %5534 = vst [vmem:[#allocation3 + $0xb0] sm:$0xff] %v5476
      %5535 = vst [vmem:[#allocation3 + $0xb8] sm:$0xff] %v5477
      %5536 = vst [vmem:[#allocation3 + $0xc0] sm:$0xff] %v5478
      %5537 = vst [vmem:[#allocation3 + $0xc8] sm:$0xff] %v5479
      %5538 = vst [vmem:[#allocation3 + $0xd0] sm:$0xff] %v5480
      %5539 = vst [vmem:[#allocation3 + $0xd8] sm:$0xff] %v5481
      %5540 = vst [vmem:[#allocation3 + $0xe0] sm:$0xff] %v5482
      %5541 = vst [vmem:[#allocation3 + $0xe8] sm:$0xff] %v5483
      %5542 = vst [vmem:[#allocation3 + $0xf0] sm:$0xff] %v5484
      %5543 = vst [vmem:[#allocation3 + $0xf8] sm:$0xff] %v5485
      %5544 = vst [vmem:[#allocation3 + $0x100] sm:$0xff] %v5486
      %5545 = vst [vmem:[#allocation3 + $0x108] sm:$0xff] %v5487
      %5546 = vst [vmem:[#allocation3 + $0x110] sm:$0xff] %v5488
      %5547 = vst [vmem:[#allocation3 + $0x118] sm:$0xff] %v5489
      %5548 = vst [vmem:[#allocation3 + $0x120] sm:$0xff] %v5490
      %5549 = vst [vmem:[#allocation3 + $0x128] sm:$0xff] %v5491
      %5550 = vst [vmem:[#allocation3 + $0x130] sm:$0xff] %v5492
      %5551 = vst [vmem:[#allocation3 + $0x138] sm:$0xff] %v5493
      %5552 = vst [vmem:[#allocation3 + $0x140] sm:$0xff] %v5494
      %5553 = vst [vmem:[#allocation3 + $0x148] sm:$0xff] %v5495
      %5554 = vst [vmem:[#allocation3 + $0x150] sm:$0xff] %v5496
      %5555 = vst [vmem:[#allocation3 + $0x158] sm:$0xff] %v5497
      %5556 = vst [vmem:[#allocation3 + $0x160] sm:$0xff] %v5498
      %5557 = vst [vmem:[#allocation3 + $0x168] sm:$0xff] %v5499
      %5558 = vst [vmem:[#allocation3 + $0x170] sm:$0xff] %v5500
      %5559 = vst [vmem:[#allocation3 + $0x178] sm:$0xff] %v5501
      %5560 = vst [vmem:[#allocation3 + $0x180] sm:$0xff] %v5502
      %5561 = vst [vmem:[#allocation3 + $0x188] sm:$0xff] %v5503
      %5562 = vst [vmem:[#allocation3 + $0x190] sm:$0xff] %v5504
      %5563 = vst [vmem:[#allocation3 + $0x198] sm:$0xff] %v5505
      %5564 = vst [vmem:[#allocation3 + $0x1a0] sm:$0xff] %v5506
      %5565 = vst [vmem:[#allocation3 + $0x1a8] sm:$0xff] %v5507
      %5566 = vst [vmem:[#allocation3 + $0x1b0] sm:$0xff] %v5508
      %5567 = vst [vmem:[#allocation3 + $0x1b8] sm:$0xff] %v5509
      %5568 = vst [vmem:[#allocation3 + $0x1c0] sm:$0x7f] %v5510
      %5569 = vst [vmem:[#allocation3 + $0x1c8] sm:$0x7f] %v5511
      %v5570 = vld [vmem:[#allocation2 + $0x2c] sm:$0xff]
      %v5571 = vld [vmem:[#allocation2 + $0x34] sm:$0xff]
      %v5572 = vld [vmem:[#allocation2 + $0x3c] sm:$0xff]
      %v5573 = vld [vmem:[#allocation2 + $0x44] sm:$0xff]
      %v5574 = vld [vmem:[#allocation2 + $0x4c] sm:$0xff]
      %v5575 = vld [vmem:[#allocation2 + $0x54] sm:$0xff]
      %v5576 = vld [vmem:[#allocation2 + $0x5c] sm:$0xff]
      %v5577 = vld [vmem:[#allocation2 + $0x64] sm:$0xff]
      %v5578 = vld [vmem:[#allocation2 + $0x6c] sm:$0xff]
      %v5579 = vld [vmem:[#allocation2 + $0x74] sm:$0xff]
      %v5580 = vld [vmem:[#allocation2 + $0x7c] sm:$0xff]
      %v5581 = vld [vmem:[#allocation2 + $0x84] sm:$0xff]
      %v5582 = vld [vmem:[#allocation2 + $0x8c] sm:$0xff]
      %v5583 = vld [vmem:[#allocation2 + $0x94] sm:$0xff]
      %v5584 = vld [vmem:[#allocation2 + $0x9c] sm:$0xff]
      %v5585 = vld [vmem:[#allocation2 + $0xa4] sm:$0xff]
      %v5586 = vld [vmem:[#allocation2 + $0xac] sm:$0xff]
      %v5587 = vld [vmem:[#allocation2 + $0xb4] sm:$0xff]
      %v5588 = vld [vmem:[#allocation2 + $0xbc] sm:$0xff]
      %v5589 = vld [vmem:[#allocation2 + $0xc4] sm:$0xff]
      %v5590 = vld [vmem:[#allocation2 + $0xcc] sm:$0xff]
      %v5591 = vld [vmem:[#allocation2 + $0xd4] sm:$0xff]
      %v5592 = vld [vmem:[#allocation2 + $0xdc] sm:$0xff]
      %v5593 = vld [vmem:[#allocation2 + $0xe4] sm:$0xff]
      %v5594 = vld [vmem:[#allocation2 + $0xec] sm:$0xff]
      %v5595 = vld [vmem:[#allocation2 + $0xf4] sm:$0xff]
      %v5596 = vld [vmem:[#allocation2 + $0xfc] sm:$0xff]
      %v5597 = vld [vmem:[#allocation2 + $0x104] sm:$0xff]
      %v5598 = vld [vmem:[#allocation2 + $0x10c] sm:$0x7f]
      %v5599 = vld [vmem:[#allocation3] sm:$0xff]
      %v5600 = vld [vmem:[#allocation3 + $0x8] sm:$0xff]
      %v5601 = vld [vmem:[#allocation3 + $0x10] sm:$0xff]
      %v5602 = vld [vmem:[#allocation3 + $0x18] sm:$0xff]
      %v5603 = vld [vmem:[#allocation3 + $0x20] sm:$0xff]
      %v5604 = vld [vmem:[#allocation3 + $0x28] sm:$0xff]
      %v5605 = vld [vmem:[#allocation3 + $0x30] sm:$0xff]
      %v5606 = vld [vmem:[#allocation3 + $0x38] sm:$0xff]
      %v5607 = vld [vmem:[#allocation3 + $0x40] sm:$0xff]
      %v5608 = vld [vmem:[#allocation3 + $0x48] sm:$0xff]
      %v5609 = vld [vmem:[#allocation3 + $0x50] sm:$0xff]
      %v5610 = vld [vmem:[#allocation3 + $0x58] sm:$0xff]
      %v5611 = vld [vmem:[#allocation3 + $0x60] sm:$0xff]
      %v5612 = vld [vmem:[#allocation3 + $0x68] sm:$0xff]
      %v5613 = vld [vmem:[#allocation3 + $0x70] sm:$0xff]
      %v5614 = vld [vmem:[#allocation3 + $0x78] sm:$0xff]
      %v5615 = vld [vmem:[#allocation3 + $0x80] sm:$0xff]
      %v5616 = vld [vmem:[#allocation3 + $0x88] sm:$0xff]
      %v5617 = vld [vmem:[#allocation3 + $0x90] sm:$0xff]
      %v5618 = vld [vmem:[#allocation3 + $0x98] sm:$0xff]
      %v5619 = vld [vmem:[#allocation3 + $0xa0] sm:$0xff]
      %v5620 = vld [vmem:[#allocation3 + $0xa8] sm:$0xff]
      %v5621 = vld [vmem:[#allocation3 + $0xb0] sm:$0xff]
      %v5622 = vld [vmem:[#allocation3 + $0xb8] sm:$0xff]
      %v5623 = vld [vmem:[#allocation3 + $0xc0] sm:$0xff]
      %v5624 = vld [vmem:[#allocation3 + $0xc8] sm:$0xff]
      %v5625 = vld [vmem:[#allocation3 + $0xd0] sm:$0xff]
      %v5626 = vld [vmem:[#allocation3 + $0xd8] sm:$0xff]
      %v5627 = vld [vmem:[#allocation3 + $0xe0] sm:$0xff]
      %v5628 = vld [vmem:[#allocation3 + $0xe8] sm:$0xff]
      %v5629 = vld [vmem:[#allocation3 + $0xf0] sm:$0xff]
      %v5630 = vld [vmem:[#allocation3 + $0xf8] sm:$0xff]
      %v5631 = vld [vmem:[#allocation3 + $0x100] sm:$0xff]
      %v5632 = vld [vmem:[#allocation3 + $0x108] sm:$0xff]
      %v5633 = vld [vmem:[#allocation3 + $0x110] sm:$0xff]
      %v5634 = vld [vmem:[#allocation3 + $0x118] sm:$0xff]
      %v5635 = vld [vmem:[#allocation3 + $0x120] sm:$0xff]
      %v5636 = vld [vmem:[#allocation3 + $0x128] sm:$0xff]
      %v5637 = vld [vmem:[#allocation3 + $0x130] sm:$0xff]
      %v5638 = vld [vmem:[#allocation3 + $0x138] sm:$0xff]
      %v5639 = vld [vmem:[#allocation3 + $0x140] sm:$0xff]
      %v5640 = vld [vmem:[#allocation3 + $0x148] sm:$0xff]
      %v5641 = vld [vmem:[#allocation3 + $0x150] sm:$0xff]
      %v5642 = vld [vmem:[#allocation3 + $0x158] sm:$0xff]
      %v5643 = vld [vmem:[#allocation3 + $0x160] sm:$0xff]
      %v5644 = vld [vmem:[#allocation3 + $0x168] sm:$0xff]
      %v5645 = vld [vmem:[#allocation3 + $0x170] sm:$0xff]
      %v5646 = vld [vmem:[#allocation3 + $0x178] sm:$0xff]
      %v5647 = vld [vmem:[#allocation3 + $0x180] sm:$0xff]
      %v5648 = vld [vmem:[#allocation3 + $0x188] sm:$0xff]
      %v5649 = vld [vmem:[#allocation3 + $0x190] sm:$0xff]
      %v5650 = vld [vmem:[#allocation3 + $0x198] sm:$0xff]
      %v5651 = vld [vmem:[#allocation3 + $0x1a0] sm:$0xff]
      %v5652 = vld [vmem:[#allocation3 + $0x1a8] sm:$0xff]
      %v5653 = vld [vmem:[#allocation3 + $0x1b0] sm:$0xff]
      %v5654 = vld [vmem:[#allocation3 + $0x1b8] sm:$0xff]
      %v5655 = vld [vmem:[#allocation3 + $0x1c0] sm:$0x7f]
      %v5656 = vld [vmem:[#allocation3 + $0x1c8] sm:$0x7f]
      %s5657 = scalar_lea.vmem %s2, 2560
      %v5658 = vld [vmem:[%s5657] sm:$0xff]
      %v5659 = vld [vmem:[%s5657 + $0x8] sm:$0xff]
      %v5660 = vld [vmem:[%s5657 + $0x10] sm:$0xff]
      %v5661 = vld [vmem:[%s5657 + $0x18] sm:$0xff]
      %v5662 = vld [vmem:[%s5657 + $0x20] sm:$0xff]
      %v5663 = vld [vmem:[%s5657 + $0x28] sm:$0xff]
      %v5664 = vld [vmem:[%s5657 + $0x30] sm:$0xff]
      %v5665 = vld [vmem:[%s5657 + $0x38] sm:$0xff]
      %v5666 = vld [vmem:[%s5657 + $0x40] sm:$0xff]
      %v5667 = vld [vmem:[%s5657 + $0x48] sm:$0xff]
      %v5668 = vld [vmem:[%s5657 + $0x50] sm:$0xff]
      %v5669 = vld [vmem:[%s5657 + $0x58] sm:$0xff]
      %v5670 = vld [vmem:[%s5657 + $0x60] sm:$0xff]
      %v5671 = vld [vmem:[%s5657 + $0x68] sm:$0xff]
      %v5672 = vld [vmem:[%s5657 + $0x70] sm:$0xff]
      %v5673 = vld [vmem:[%s5657 + $0x78] sm:$0xff]
      %v5674 = vld [vmem:[%s5657 + $0x80] sm:$0xff]
      %v5675 = vld [vmem:[%s5657 + $0x88] sm:$0xff]
      %v5676 = vld [vmem:[%s5657 + $0x90] sm:$0xff]
      %v5677 = vld [vmem:[%s5657 + $0x98] sm:$0xff]
      %v5678 = vld [vmem:[%s5657 + $0xa0] sm:$0xff]
      %v5679 = vld [vmem:[%s5657 + $0xa8] sm:$0xff]
      %v5680 = vld [vmem:[%s5657 + $0xb0] sm:$0xff]
      %v5681 = vld [vmem:[%s5657 + $0xb8] sm:$0xff]
      %v5682 = vld [vmem:[%s5657 + $0xc0] sm:$0xff]
      %v5683 = vld [vmem:[%s5657 + $0xc8] sm:$0xff]
      %v5684 = vld [vmem:[%s5657 + $0xd0] sm:$0xff]
      %v5685 = vld [vmem:[%s5657 + $0xd8] sm:$0xff]
      %v5686 = vld [vmem:[%s5657 + $0xe0] sm:$0xff]
      %v5687 = vld [vmem:[%s5657 + $0xe8] sm:$0xff]
      %v5688 = vld [vmem:[%s5657 + $0xf0] sm:$0xff]
      %v5689 = vld [vmem:[%s5657 + $0xf8] sm:$0xff]
      %5690 = vmatprep.subr.mxu0 %v5659
      %5691 = vmatpush1.msra.mxu0 %v5658
      %5692 = vmatprep.subr.mxu0 %v5661
      %5693 = vmatpush1.msra.mxu0 %v5660
      %5694 = vmatprep.subr.mxu0 %v5663
      %5695 = vmatpush1.msra.mxu0 %v5662
      %5696 = vmatprep.subr.mxu0 %v5665
      %5697 = vmatpush1.msra.mxu0 %v5664
      %5698 = vmatprep.subr.mxu0 %v5667
      %5699 = vmatpush1.msra.mxu0 %v5666
      %5700 = vmatprep.subr.mxu0 %v5669
      %5701 = vmatpush1.msra.mxu0 %v5668
      %5702 = vmatprep.subr.mxu0 %v5671
      %5703 = vmatpush1.msra.mxu0 %v5670
      %5704 = vmatprep.subr.mxu0 %v5673
      %5705 = vmatpush1.msra.mxu0 %v5672
      %5706 = vmatprep.subr.mxu0 %v5675
      %5707 = vmatpush1.msra.mxu0 %v5674
      %5708 = vmatprep.subr.mxu0 %v5677
      %5709 = vmatpush1.msra.mxu0 %v5676
      %5710 = vmatprep.subr.mxu0 %v5679
      %5711 = vmatpush1.msra.mxu0 %v5678
      %5712 = vmatprep.subr.mxu0 %v5681
      %5713 = vmatpush1.msra.mxu0 %v5680
      %5714 = vmatprep.subr.mxu0 %v5683
      %5715 = vmatpush1.msra.mxu0 %v5682
      %5716 = vmatprep.subr.mxu0 %v5685
      %5717 = vmatpush1.msra.mxu0 %v5684
      %5718 = vmatprep.subr.mxu0 %v5687
      %5719 = vmatpush1.msra.mxu0 %v5686
      %5720 = vmatprep.subr.mxu0 %v5689
      %5721 = vmatpush1.msra.mxu0 %v5688
      %5722 = vmatprep.subr.mxu0 0.0
      %5723 = vmatpush1.msra.mxu0 0.0
      %5724 = vmatprep.subr.mxu0 0.0
      %5725 = vmatpush1.msra.mxu0 0.0
      %5726 = vmatprep.subr.mxu0 0.0
      %5727 = vmatpush1.msra.mxu0 0.0
      %5728 = vmatprep.subr.mxu0 0.0
      %5729 = vmatpush1.msra.mxu0 0.0
      %5730 = vmatprep.subr.mxu0 0.0
      %5731 = vmatpush1.msra.mxu0 0.0
      %5732 = vmatprep.subr.mxu0 0.0
      %5733 = vmatpush1.msra.mxu0 0.0
      %5734 = vmatprep.subr.mxu0 0.0
      %5735 = vmatpush1.msra.mxu0 0.0
      %5736 = vmatprep.subr.mxu0 0.0
      %5737 = vmatpush1.msra.mxu0 0.0
      %5738 = vmatprep.subr.mxu0 0.0
      %5739 = vmatpush1.msra.mxu0 0.0
      %5740 = vmatprep.subr.mxu0 0.0
      %5741 = vmatpush1.msra.mxu0 0.0
      %5742 = vmatprep.subr.mxu0 0.0
      %5743 = vmatpush1.msra.mxu0 0.0
      %5744 = vmatprep.subr.mxu0 0.0
      %5745 = vmatpush1.msra.mxu0 0.0
      %5746 = vmatprep.subr.mxu0 0.0
      %5747 = vmatpush1.msra.mxu0 0.0
      %5748 = vmatprep.subr.mxu0 0.0
      %5749 = vmatpush1.msra.mxu0 0.0
      %5750 = vmatprep.subr.mxu0 0.0
      %5751 = vmatpush1.msra.mxu0 0.0
      %5752 = vmatprep.subr.mxu0 0.0
      %5753 = vmatpush1.msra.mxu0 0.0
      %5754 = vmatprep.mubr.f32.mxu0 0.0
      %5755 = vmatmul.mubr.f32.gmra.mrb[0].mxu0 %v5570
      %v5756 = vpop.f32.mrb[0].mxu0
      %v5757 = vadd.f32 0.0, %v5756
      %v5758 = vpop.f32.mrb[0].mxu0
      %v5759 = vadd.f32 0.0, %v5758
      %5760 = vmatprep.mubr.f32.mxu0 0.0
      %5761 = vmatmul.mubr.f32.gmra.mrb[0].mxu0 %v5571
      %v5762 = vpop.f32.mrb[0].mxu0
      %v5763 = vadd.f32 0.0, %v5762
      %v5764 = vpop.f32.mrb[0].mxu0
      %v5765 = vadd.f32 0.0, %v5764
      %5766 = vmatprep.mubr.f32.mxu0 0.0
      %5767 = vmatmul.mubr.f32.gmra.mrb[0].mxu0 %v5572
      %v5768 = vpop.f32.mrb[0].mxu0
      %v5769 = vadd.f32 0.0, %v5768
      %v5770 = vpop.f32.mrb[0].mxu0
      %v5771 = vadd.f32 0.0, %v5770
      %5772 = vmatprep.mubr.f32.mxu0 0.0
      %5773 = vmatmul.mubr.f32.gmra.mrb[0].mxu0 %v5573
      %v5774 = vpop.f32.mrb[0].mxu0
      %v5775 = vadd.f32 0.0, %v5774
      %v5776 = vpop.f32.mrb[0].mxu0
      %v5777 = vadd.f32 0.0, %v5776
      %5778 = vmatprep.mubr.f32.mxu0 0.0
      %5779 = vmatmul.mubr.f32.gmra.mrb[0].mxu0 %v5574
      %v5780 = vpop.f32.mrb[0].mxu0
      %v5781 = vadd.f32 0.0, %v5780
      %v5782 = vpop.f32.mrb[0].mxu0
      %v5783 = vadd.f32 0.0, %v5782
      %5784 = vmatprep.mubr.f32.mxu0 0.0
      %5785 = vmatmul.mubr.f32.gmra.mrb[0].mxu0 %v5575
      %v5786 = vpop.f32.mrb[0].mxu0
      %v5787 = vadd.f32 0.0, %v5786
      %v5788 = vpop.f32.mrb[0].mxu0
      %v5789 = vadd.f32 0.0, %v5788
      %5790 = vmatprep.mubr.f32.mxu0 0.0
      %5791 = vmatmul.mubr.f32.gmra.mrb[0].mxu0 %v5576
      %v5792 = vpop.f32.mrb[0].mxu0
      %v5793 = vadd.f32 0.0, %v5792
      %v5794 = vpop.f32.mrb[0].mxu0
      %v5795 = vadd.f32 0.0, %v5794
      %5796 = vmatprep.mubr.f32.mxu0 0.0
      %5797 = vmatmul.mubr.f32.gmra.mrb[0].mxu0 %v5577
      %v5798 = vpop.f32.mrb[0].mxu0
      %v5799 = vadd.f32 0.0, %v5798
      %v5800 = vpop.f32.mrb[0].mxu0
      %v5801 = vadd.f32 0.0, %v5800
      %5802 = vmatprep.mubr.f32.mxu0 0.0
      %5803 = vmatmul.mubr.f32.gmra.mrb[0].mxu0 %v5578
      %v5804 = vpop.f32.mrb[0].mxu0
      %v5805 = vadd.f32 0.0, %v5804
      %v5806 = vpop.f32.mrb[0].mxu0
      %v5807 = vadd.f32 0.0, %v5806
      %5808 = vmatprep.mubr.f32.mxu0 0.0
      %5809 = vmatmul.mubr.f32.gmra.mrb[0].mxu0 %v5579
      %v5810 = vpop.f32.mrb[0].mxu0
      %v5811 = vadd.f32 0.0, %v5810
      %v5812 = vpop.f32.mrb[0].mxu0
      %v5813 = vadd.f32 0.0, %v5812
      %5814 = vmatprep.mubr.f32.mxu0 0.0
      %5815 = vmatmul.mubr.f32.gmra.mrb[0].mxu0 %v5580
      %v5816 = vpop.f32.mrb[0].mxu0
      %v5817 = vadd.f32 0.0, %v5816
      %v5818 = vpop.f32.mrb[0].mxu0
      %v5819 = vadd.f32 0.0, %v5818
      %5820 = vmatprep.mubr.f32.mxu0 0.0
      %5821 = vmatmul.mubr.f32.gmra.mrb[0].mxu0 %v5581
      %v5822 = vpop.f32.mrb[0].mxu0
      %v5823 = vadd.f32 0.0, %v5822
      %v5824 = vpop.f32.mrb[0].mxu0
      %v5825 = vadd.f32 0.0, %v5824
      %5826 = vmatprep.mubr.f32.mxu0 0.0
      %5827 = vmatmul.mubr.f32.gmra.mrb[0].mxu0 %v5582
      %v5828 = vpop.f32.mrb[0].mxu0
      %v5829 = vadd.f32 0.0, %v5828
      %v5830 = vpop.f32.mrb[0].mxu0
      %v5831 = vadd.f32 0.0, %v5830
      %5832 = vmatprep.mubr.f32.mxu0 0.0
      %5833 = vmatmul.mubr.f32.gmra.mrb[0].mxu0 %v5583
      %v5834 = vpop.f32.mrb[0].mxu0
      %v5835 = vadd.f32 0.0, %v5834
      %v5836 = vpop.f32.mrb[0].mxu0
      %v5837 = vadd.f32 0.0, %v5836
      %5838 = vmatprep.mubr.f32.mxu0 0.0
      %5839 = vmatmul.mubr.f32.gmra.mrb[0].mxu0 %v5584
      %v5840 = vpop.f32.mrb[0].mxu0
      %v5841 = vadd.f32 0.0, %v5840
      %v5842 = vpop.f32.mrb[0].mxu0
      %v5843 = vadd.f32 0.0, %v5842
      %5844 = vmatprep.mubr.f32.mxu0 0.0
      %5845 = vmatmul.mubr.f32.gmra.mrb[0].mxu0 %v5585
      %v5846 = vpop.f32.mrb[0].mxu0
      %v5847 = vadd.f32 0.0, %v5846
      %v5848 = vpop.f32.mrb[0].mxu0
      %v5849 = vadd.f32 0.0, %v5848
      %5850 = vmatprep.mubr.f32.mxu0 0.0
      %5851 = vmatmul.mubr.f32.gmra.mrb[0].mxu0 %v5586
      %v5852 = vpop.f32.mrb[0].mxu0
      %v5853 = vadd.f32 0.0, %v5852
      %v5854 = vpop.f32.mrb[0].mxu0
      %v5855 = vadd.f32 0.0, %v5854
      %5856 = vmatprep.mubr.f32.mxu0 0.0
      %5857 = vmatmul.mubr.f32.gmra.mrb[0].mxu0 %v5587
      %v5858 = vpop.f32.mrb[0].mxu0
      %v5859 = vadd.f32 0.0, %v5858
      %v5860 = vpop.f32.mrb[0].mxu0
      %v5861 = vadd.f32 0.0, %v5860
      %5862 = vmatprep.mubr.f32.mxu0 0.0
      %5863 = vmatmul.mubr.f32.gmra.mrb[0].mxu0 %v5588
      %v5864 = vpop.f32.mrb[0].mxu0
      %v5865 = vadd.f32 0.0, %v5864
      %v5866 = vpop.f32.mrb[0].mxu0
      %v5867 = vadd.f32 0.0, %v5866
      %5868 = vmatprep.mubr.f32.mxu0 0.0
      %5869 = vmatmul.mubr.f32.gmra.mrb[0].mxu0 %v5589
      %v5870 = vpop.f32.mrb[0].mxu0
      %v5871 = vadd.f32 0.0, %v5870
      %v5872 = vpop.f32.mrb[0].mxu0
      %v5873 = vadd.f32 0.0, %v5872
      %5874 = vmatprep.mubr.f32.mxu0 0.0
      %5875 = vmatmul.mubr.f32.gmra.mrb[0].mxu0 %v5590
      %v5876 = vpop.f32.mrb[0].mxu0
      %v5877 = vadd.f32 0.0, %v5876
      %v5878 = vpop.f32.mrb[0].mxu0
      %v5879 = vadd.f32 0.0, %v5878
      %5880 = vmatprep.mubr.f32.mxu0 0.0
      %5881 = vmatmul.mubr.f32.gmra.mrb[0].mxu0 %v5591
      %v5882 = vpop.f32.mrb[0].mxu0
      %v5883 = vadd.f32 0.0, %v5882
      %v5884 = vpop.f32.mrb[0].mxu0
      %v5885 = vadd.f32 0.0, %v5884
      %5886 = vmatprep.mubr.f32.mxu0 0.0
      %5887 = vmatmul.mubr.f32.gmra.mrb[0].mxu0 %v5592
      %v5888 = vpop.f32.mrb[0].mxu0
      %v5889 = vadd.f32 0.0, %v5888
      %v5890 = vpop.f32.mrb[0].mxu0
      %v5891 = vadd.f32 0.0, %v5890
      %5892 = vmatprep.mubr.f32.mxu0 0.0
      %5893 = vmatmul.mubr.f32.gmra.mrb[0].mxu0 %v5593
      %v5894 = vpop.f32.mrb[0].mxu0
      %v5895 = vadd.f32 0.0, %v5894
      %v5896 = vpop.f32.mrb[0].mxu0
      %v5897 = vadd.f32 0.0, %v5896
      %5898 = vmatprep.mubr.f32.mxu0 0.0
      %5899 = vmatmul.mubr.f32.gmra.mrb[0].mxu0 %v5594
      %v5900 = vpop.f32.mrb[0].mxu0
      %v5901 = vadd.f32 0.0, %v5900
      %v5902 = vpop.f32.mrb[0].mxu0
      %v5903 = vadd.f32 0.0, %v5902
      %5904 = vmatprep.mubr.f32.mxu0 0.0
      %5905 = vmatmul.mubr.f32.gmra.mrb[0].mxu0 %v5595
      %v5906 = vpop.f32.mrb[0].mxu0
      %v5907 = vadd.f32 0.0, %v5906
      %v5908 = vpop.f32.mrb[0].mxu0
      %v5909 = vadd.f32 0.0, %v5908
      %5910 = vmatprep.mubr.f32.mxu0 0.0
      %5911 = vmatmul.mubr.f32.gmra.mrb[0].mxu0 %v5596
      %v5912 = vpop.f32.mrb[0].mxu0
      %v5913 = vadd.f32 0.0, %v5912
      %v5914 = vpop.f32.mrb[0].mxu0
      %v5915 = vadd.f32 0.0, %v5914
      %5916 = vmatprep.mubr.f32.mxu0 0.0
      %5917 = vmatmul.mubr.f32.gmra.mrb[0].mxu0 %v5597
      %v5918 = vpop.f32.mrb[0].mxu0
      %v5919 = vadd.f32 0.0, %v5918
      %v5920 = vpop.f32.mrb[0].mxu0
      %v5921 = vadd.f32 0.0, %v5920
      %5922 = vmatprep.mubr.f32.mxu0 0.0
      %5923 = vmatmul.mubr.f32.gmra.mrb[0].mxu0 %v5598
      %v5924 = vpop.f32.mrb[0].mxu0
      %v5925 = vadd.f32 0.0, %v5924
      %v5926 = vpop.f32.mrb[0].mxu0
      %v5927 = vadd.f32 0.0, %v5926
      %5928 = vdwg.mxu0
      %v5929 = vadd.f32 %v5599, %v5757
      %v5930 = vadd.f32 %v5600, %v5759
      %v5931 = vadd.f32 %v5601, %v5763
      %v5932 = vadd.f32 %v5602, %v5765
      %v5933 = vadd.f32 %v5603, %v5769
      %v5934 = vadd.f32 %v5604, %v5771
      %v5935 = vadd.f32 %v5605, %v5775
      %v5936 = vadd.f32 %v5606, %v5777
      %v5937 = vadd.f32 %v5607, %v5781
      %v5938 = vadd.f32 %v5608, %v5783
      %v5939 = vadd.f32 %v5609, %v5787
      %v5940 = vadd.f32 %v5610, %v5789
      %v5941 = vadd.f32 %v5611, %v5793
      %v5942 = vadd.f32 %v5612, %v5795
      %v5943 = vadd.f32 %v5613, %v5799
      %v5944 = vadd.f32 %v5614, %v5801
      %v5945 = vadd.f32 %v5615, %v5805
      %v5946 = vadd.f32 %v5616, %v5807
      %v5947 = vadd.f32 %v5617, %v5811
      %v5948 = vadd.f32 %v5618, %v5813
      %v5949 = vadd.f32 %v5619, %v5817
      %v5950 = vadd.f32 %v5620, %v5819
      %v5951 = vadd.f32 %v5621, %v5823
      %v5952 = vadd.f32 %v5622, %v5825
      %v5953 = vadd.f32 %v5623, %v5829
      %v5954 = vadd.f32 %v5624, %v5831
      %v5955 = vadd.f32 %v5625, %v5835
      %v5956 = vadd.f32 %v5626, %v5837
      %v5957 = vadd.f32 %v5627, %v5841
      %v5958 = vadd.f32 %v5628, %v5843
      %v5959 = vadd.f32 %v5629, %v5847
      %v5960 = vadd.f32 %v5630, %v5849
      %v5961 = vadd.f32 %v5631, %v5853
      %v5962 = vadd.f32 %v5632, %v5855
      %v5963 = vadd.f32 %v5633, %v5859
      %v5964 = vadd.f32 %v5634, %v5861
      %v5965 = vadd.f32 %v5635, %v5865
      %v5966 = vadd.f32 %v5636, %v5867
      %v5967 = vadd.f32 %v5637, %v5871
      %v5968 = vadd.f32 %v5638, %v5873
      %v5969 = vadd.f32 %v5639, %v5877
      %v5970 = vadd.f32 %v5640, %v5879
      %v5971 = vadd.f32 %v5641, %v5883
      %v5972 = vadd.f32 %v5642, %v5885
      %v5973 = vadd.f32 %v5643, %v5889
      %v5974 = vadd.f32 %v5644, %v5891
      %v5975 = vadd.f32 %v5645, %v5895
      %v5976 = vadd.f32 %v5646, %v5897
      %v5977 = vadd.f32 %v5647, %v5901
      %v5978 = vadd.f32 %v5648, %v5903
      %v5979 = vadd.f32 %v5649, %v5907
      %v5980 = vadd.f32 %v5650, %v5909
      %v5981 = vadd.f32 %v5651, %v5913
      %v5982 = vadd.f32 %v5652, %v5915
      %v5983 = vadd.f32 %v5653, %v5919
      %v5984 = vadd.f32 %v5654, %v5921
      %v5985 = vadd.f32 %v5655, %v5925
      %v5986 = vadd.f32 %v5656, %v5927
      %5987 = vst [vmem:[#allocation3] sm:$0xff] %v5929
      %5988 = vst [vmem:[#allocation3 + $0x8] sm:$0xff] %v5930
      %5989 = vst [vmem:[#allocation3 + $0x10] sm:$0xff] %v5931
      %5990 = vst [vmem:[#allocation3 + $0x18] sm:$0xff] %v5932
      %5991 = vst [vmem:[#allocation3 + $0x20] sm:$0xff] %v5933
      %5992 = vst [vmem:[#allocation3 + $0x28] sm:$0xff] %v5934
      %5993 = vst [vmem:[#allocation3 + $0x30] sm:$0xff] %v5935
      %5994 = vst [vmem:[#allocation3 + $0x38] sm:$0xff] %v5936
      %5995 = vst [vmem:[#allocation3 + $0x40] sm:$0xff] %v5937
      %5996 = vst [vmem:[#allocation3 + $0x48] sm:$0xff] %v5938
      %5997 = vst [vmem:[#allocation3 + $0x50] sm:$0xff] %v5939
      %5998 = vst [vmem:[#allocation3 + $0x58] sm:$0xff] %v5940
      %5999 = vst [vmem:[#allocation3 + $0x60] sm:$0xff] %v5941
      %6000 = vst [vmem:[#allocation3 + $0x68] sm:$0xff] %v5942
      %6001 = vst [vmem:[#allocation3 + $0x70] sm:$0xff] %v5943
      %6002 = vst [vmem:[#allocation3 + $0x78] sm:$0xff] %v5944
      %6003 = vst [vmem:[#allocation3 + $0x80] sm:$0xff] %v5945
      %6004 = vst [vmem:[#allocation3 + $0x88] sm:$0xff] %v5946
      %6005 = vst [vmem:[#allocation3 + $0x90] sm:$0xff] %v5947
      %6006 = vst [vmem:[#allocation3 + $0x98] sm:$0xff] %v5948
      %6007 = vst [vmem:[#allocation3 + $0xa0] sm:$0xff] %v5949
      %6008 = vst [vmem:[#allocation3 + $0xa8] sm:$0xff] %v5950
      %6009 = vst [vmem:[#allocation3 + $0xb0] sm:$0xff] %v5951
      %6010 = vst [vmem:[#allocation3 + $0xb8] sm:$0xff] %v5952
      %6011 = vst [vmem:[#allocation3 + $0xc0] sm:$0xff] %v5953
      %6012 = vst [vmem:[#allocation3 + $0xc8] sm:$0xff] %v5954
      %6013 = vst [vmem:[#allocation3 + $0xd0] sm:$0xff] %v5955
      %6014 = vst [vmem:[#allocation3 + $0xd8] sm:$0xff] %v5956
      %6015 = vst [vmem:[#allocation3 + $0xe0] sm:$0xff] %v5957
      %6016 = vst [vmem:[#allocation3 + $0xe8] sm:$0xff] %v5958
      %6017 = vst [vmem:[#allocation3 + $0xf0] sm:$0xff] %v5959
      %6018 = vst [vmem:[#allocation3 + $0xf8] sm:$0xff] %v5960
      %6019 = vst [vmem:[#allocation3 + $0x100] sm:$0xff] %v5961
      %6020 = vst [vmem:[#allocation3 + $0x108] sm:$0xff] %v5962
      %6021 = vst [vmem:[#allocation3 + $0x110] sm:$0xff] %v5963
      %6022 = vst [vmem:[#allocation3 + $0x118] sm:$0xff] %v5964
      %6023 = vst [vmem:[#allocation3 + $0x120] sm:$0xff] %v5965
      %6024 = vst [vmem:[#allocation3 + $0x128] sm:$0xff] %v5966
      %6025 = vst [vmem:[#allocation3 + $0x130] sm:$0xff] %v5967
      %6026 = vst [vmem:[#allocation3 + $0x138] sm:$0xff] %v5968
      %6027 = vst [vmem:[#allocation3 + $0x140] sm:$0xff] %v5969
      %6028 = vst [vmem:[#allocation3 + $0x148] sm:$0xff] %v5970
      %6029 = vst [vmem:[#allocation3 + $0x150] sm:$0xff] %v5971
      %6030 = vst [vmem:[#allocation3 + $0x158] sm:$0xff] %v5972
      %6031 = vst [vmem:[#allocation3 + $0x160] sm:$0xff] %v5973
      %6032 = vst [vmem:[#allocation3 + $0x168] sm:$0xff] %v5974
      %6033 = vst [vmem:[#allocation3 + $0x170] sm:$0xff] %v5975
      %6034 = vst [vmem:[#allocation3 + $0x178] sm:$0xff] %v5976
      %6035 = vst [vmem:[#allocation3 + $0x180] sm:$0xff] %v5977
      %6036 = vst [vmem:[#allocation3 + $0x188] sm:$0xff] %v5978
      %6037 = vst [vmem:[#allocation3 + $0x190] sm:$0xff] %v5979
      %6038 = vst [vmem:[#allocation3 + $0x198] sm:$0xff] %v5980
      %6039 = vst [vmem:[#allocation3 + $0x1a0] sm:$0xff] %v5981
      %6040 = vst [vmem:[#allocation3 + $0x1a8] sm:$0xff] %v5982
      %6041 = vst [vmem:[#allocation3 + $0x1b0] sm:$0xff] %v5983
      %6042 = vst [vmem:[#allocation3 + $0x1b8] sm:$0xff] %v5984
      %6043 = vst [vmem:[#allocation3 + $0x1c0] sm:$0x7f] %v5985
      %6044 = vst [vmem:[#allocation3 + $0x1c8] sm:$0x7f] %v5986
      %v6045 = vld [vmem:[#allocation2 + $0x2d] sm:$0xff]
      %v6046 = vld [vmem:[#allocation2 + $0x35] sm:$0xff]
      %v6047 = vld [vmem:[#allocation2 + $0x3d] sm:$0xff]
      %v6048 = vld [vmem:[#allocation2 + $0x45] sm:$0xff]
      %v6049 = vld [vmem:[#allocation2 + $0x4d] sm:$0xff]
      %v6050 = vld [vmem:[#allocation2 + $0x55] sm:$0xff]
      %v6051 = vld [vmem:[#allocation2 + $0x5d] sm:$0xff]
      %v6052 = vld [vmem:[#allocation2 + $0x65] sm:$0xff]
      %v6053 = vld [vmem:[#allocation2 + $0x6d] sm:$0xff]
      %v6054 = vld [vmem:[#allocation2 + $0x75] sm:$0xff]
      %v6055 = vld [vmem:[#allocation2 + $0x7d] sm:$0xff]
      %v6056 = vld [vmem:[#allocation2 + $0x85] sm:$0xff]
      %v6057 = vld [vmem:[#allocation2 + $0x8d] sm:$0xff]
      %v6058 = vld [vmem:[#allocation2 + $0x95] sm:$0xff]
      %v6059 = vld [vmem:[#allocation2 + $0x9d] sm:$0xff]
      %v6060 = vld [vmem:[#allocation2 + $0xa5] sm:$0xff]
      %v6061 = vld [vmem:[#allocation2 + $0xad] sm:$0xff]
      %v6062 = vld [vmem:[#allocation2 + $0xb5] sm:$0xff]
      %v6063 = vld [vmem:[#allocation2 + $0xbd] sm:$0xff]
      %v6064 = vld [vmem:[#allocation2 + $0xc5] sm:$0xff]
      %v6065 = vld [vmem:[#allocation2 + $0xcd] sm:$0xff]
      %v6066 = vld [vmem:[#allocation2 + $0xd5] sm:$0xff]
      %v6067 = vld [vmem:[#allocation2 + $0xdd] sm:$0xff]
      %v6068 = vld [vmem:[#allocation2 + $0xe5] sm:$0xff]
      %v6069 = vld [vmem:[#allocation2 + $0xed] sm:$0xff]
      %v6070 = vld [vmem:[#allocation2 + $0xf5] sm:$0xff]
      %v6071 = vld [vmem:[#allocation2 + $0xfd] sm:$0xff]
      %v6072 = vld [vmem:[#allocation2 + $0x105] sm:$0xff]
      %v6073 = vld [vmem:[#allocation2 + $0x10d] sm:$0x7f]
      %v6074 = vld [vmem:[#allocation3] sm:$0xff]
      %v6075 = vld [vmem:[#allocation3 + $0x8] sm:$0xff]
      %v6076 = vld [vmem:[#allocation3 + $0x10] sm:$0xff]
      %v6077 = vld [vmem:[#allocation3 + $0x18] sm:$0xff]
      %v6078 = vld [vmem:[#allocation3 + $0x20] sm:$0xff]
      %v6079 = vld [vmem:[#allocation3 + $0x28] sm:$0xff]
      %v6080 = vld [vmem:[#allocation3 + $0x30] sm:$0xff]
      %v6081 = vld [vmem:[#allocation3 + $0x38] sm:$0xff]
      %v6082 = vld [vmem:[#allocation3 + $0x40] sm:$0xff]
      %v6083 = vld [vmem:[#allocation3 + $0x48] sm:$0xff]
      %v6084 = vld [vmem:[#allocation3 + $0x50] sm:$0xff]
      %v6085 = vld [vmem:[#allocation3 + $0x58] sm:$0xff]
      %v6086 = vld [vmem:[#allocation3 + $0x60] sm:$0xff]
      %v6087 = vld [vmem:[#allocation3 + $0x68] sm:$0xff]
      %v6088 = vld [vmem:[#allocation3 + $0x70] sm:$0xff]
      %v6089 = vld [vmem:[#allocation3 + $0x78] sm:$0xff]
      %v6090 = vld [vmem:[#allocation3 + $0x80] sm:$0xff]
      %v6091 = vld [vmem:[#allocation3 + $0x88] sm:$0xff]
      %v6092 = vld [vmem:[#allocation3 + $0x90] sm:$0xff]
      %v6093 = vld [vmem:[#allocation3 + $0x98] sm:$0xff]
      %v6094 = vld [vmem:[#allocation3 + $0xa0] sm:$0xff]
      %v6095 = vld [vmem:[#allocation3 + $0xa8] sm:$0xff]
      %v6096 = vld [vmem:[#allocation3 + $0xb0] sm:$0xff]
      %v6097 = vld [vmem:[#allocation3 + $0xb8] sm:$0xff]
      %v6098 = vld [vmem:[#allocation3 + $0xc0] sm:$0xff]
      %v6099 = vld [vmem:[#allocation3 + $0xc8] sm:$0xff]
      %v6100 = vld [vmem:[#allocation3 + $0xd0] sm:$0xff]
      %v6101 = vld [vmem:[#allocation3 + $0xd8] sm:$0xff]
      %v6102 = vld [vmem:[#allocation3 + $0xe0] sm:$0xff]
      %v6103 = vld [vmem:[#allocation3 + $0xe8] sm:$0xff]
      %v6104 = vld [vmem:[#allocation3 + $0xf0] sm:$0xff]
      %v6105 = vld [vmem:[#allocation3 + $0xf8] sm:$0xff]
      %v6106 = vld [vmem:[#allocation3 + $0x100] sm:$0xff]
      %v6107 = vld [vmem:[#allocation3 + $0x108] sm:$0xff]
      %v6108 = vld [vmem:[#allocation3 + $0x110] sm:$0xff]
      %v6109 = vld [vmem:[#allocation3 + $0x118] sm:$0xff]
      %v6110 = vld [vmem:[#allocation3 + $0x120] sm:$0xff]
      %v6111 = vld [vmem:[#allocation3 + $0x128] sm:$0xff]
      %v6112 = vld [vmem:[#allocation3 + $0x130] sm:$0xff]
      %v6113 = vld [vmem:[#allocation3 + $0x138] sm:$0xff]
      %v6114 = vld [vmem:[#allocation3 + $0x140] sm:$0xff]
      %v6115 = vld [vmem:[#allocation3 + $0x148] sm:$0xff]
      %v6116 = vld [vmem:[#allocation3 + $0x150] sm:$0xff]
      %v6117 = vld [vmem:[#allocation3 + $0x158] sm:$0xff]
      %v6118 = vld [vmem:[#allocation3 + $0x160] sm:$0xff]
      %v6119 = vld [vmem:[#allocation3 + $0x168] sm:$0xff]
      %v6120 = vld [vmem:[#allocation3 + $0x170] sm:$0xff]
      %v6121 = vld [vmem:[#allocation3 + $0x178] sm:$0xff]
      %v6122 = vld [vmem:[#allocation3 + $0x180] sm:$0xff]
      %v6123 = vld [vmem:[#allocation3 + $0x188] sm:$0xff]
      %v6124 = vld [vmem:[#allocation3 + $0x190] sm:$0xff]
      %v6125 = vld [vmem:[#allocation3 + $0x198] sm:$0xff]
      %v6126 = vld [vmem:[#allocation3 + $0x1a0] sm:$0xff]
      %v6127 = vld [vmem:[#allocation3 + $0x1a8] sm:$0xff]
      %v6128 = vld [vmem:[#allocation3 + $0x1b0] sm:$0xff]
      %v6129 = vld [vmem:[#allocation3 + $0x1b8] sm:$0xff]
      %v6130 = vld [vmem:[#allocation3 + $0x1c0] sm:$0x7f]
      %v6131 = vld [vmem:[#allocation3 + $0x1c8] sm:$0x7f]
      %s6132 = scalar_lea.vmem %s2, 2816
      %v6133 = vld [vmem:[%s6132] sm:$0xff]
      %v6134 = vld [vmem:[%s6132 + $0x8] sm:$0xff]
      %v6135 = vld [vmem:[%s6132 + $0x10] sm:$0xff]
      %v6136 = vld [vmem:[%s6132 + $0x18] sm:$0xff]
      %v6137 = vld [vmem:[%s6132 + $0x20] sm:$0xff]
      %v6138 = vld [vmem:[%s6132 + $0x28] sm:$0xff]
      %v6139 = vld [vmem:[%s6132 + $0x30] sm:$0xff]
      %v6140 = vld [vmem:[%s6132 + $0x38] sm:$0xff]
      %v6141 = vld [vmem:[%s6132 + $0x40] sm:$0xff]
      %v6142 = vld [vmem:[%s6132 + $0x48] sm:$0xff]
      %v6143 = vld [vmem:[%s6132 + $0x50] sm:$0xff]
      %v6144 = vld [vmem:[%s6132 + $0x58] sm:$0xff]
      %v6145 = vld [vmem:[%s6132 + $0x60] sm:$0xff]
      %v6146 = vld [vmem:[%s6132 + $0x68] sm:$0xff]
      %v6147 = vld [vmem:[%s6132 + $0x70] sm:$0xff]
      %v6148 = vld [vmem:[%s6132 + $0x78] sm:$0xff]
      %v6149 = vld [vmem:[%s6132 + $0x80] sm:$0xff]
      %v6150 = vld [vmem:[%s6132 + $0x88] sm:$0xff]
      %v6151 = vld [vmem:[%s6132 + $0x90] sm:$0xff]
      %v6152 = vld [vmem:[%s6132 + $0x98] sm:$0xff]
      %v6153 = vld [vmem:[%s6132 + $0xa0] sm:$0xff]
      %v6154 = vld [vmem:[%s6132 + $0xa8] sm:$0xff]
      %v6155 = vld [vmem:[%s6132 + $0xb0] sm:$0xff]
      %v6156 = vld [vmem:[%s6132 + $0xb8] sm:$0xff]
      %v6157 = vld [vmem:[%s6132 + $0xc0] sm:$0xff]
      %v6158 = vld [vmem:[%s6132 + $0xc8] sm:$0xff]
      %v6159 = vld [vmem:[%s6132 + $0xd0] sm:$0xff]
      %v6160 = vld [vmem:[%s6132 + $0xd8] sm:$0xff]
      %v6161 = vld [vmem:[%s6132 + $0xe0] sm:$0xff]
      %v6162 = vld [vmem:[%s6132 + $0xe8] sm:$0xff]
      %v6163 = vld [vmem:[%s6132 + $0xf0] sm:$0xff]
      %v6164 = vld [vmem:[%s6132 + $0xf8] sm:$0xff]
      %6165 = vmatprep.subr.mxu0 %v6134
      %6166 = vmatpush1.msra.mxu0 %v6133
      %6167 = vmatprep.subr.mxu0 %v6136
      %6168 = vmatpush1.msra.mxu0 %v6135
      %6169 = vmatprep.subr.mxu0 %v6138
      %6170 = vmatpush1.msra.mxu0 %v6137
      %6171 = vmatprep.subr.mxu0 %v6140
      %6172 = vmatpush1.msra.mxu0 %v6139
      %6173 = vmatprep.subr.mxu0 %v6142
      %6174 = vmatpush1.msra.mxu0 %v6141
      %6175 = vmatprep.subr.mxu0 %v6144
      %6176 = vmatpush1.msra.mxu0 %v6143
      %6177 = vmatprep.subr.mxu0 %v6146
      %6178 = vmatpush1.msra.mxu0 %v6145
      %6179 = vmatprep.subr.mxu0 %v6148
      %6180 = vmatpush1.msra.mxu0 %v6147
      %6181 = vmatprep.subr.mxu0 %v6150
      %6182 = vmatpush1.msra.mxu0 %v6149
      %6183 = vmatprep.subr.mxu0 %v6152
      %6184 = vmatpush1.msra.mxu0 %v6151
      %6185 = vmatprep.subr.mxu0 %v6154
      %6186 = vmatpush1.msra.mxu0 %v6153
      %6187 = vmatprep.subr.mxu0 %v6156
      %6188 = vmatpush1.msra.mxu0 %v6155
      %6189 = vmatprep.subr.mxu0 %v6158
      %6190 = vmatpush1.msra.mxu0 %v6157
      %6191 = vmatprep.subr.mxu0 %v6160
      %6192 = vmatpush1.msra.mxu0 %v6159
      %6193 = vmatprep.subr.mxu0 %v6162
      %6194 = vmatpush1.msra.mxu0 %v6161
      %6195 = vmatprep.subr.mxu0 %v6164
      %6196 = vmatpush1.msra.mxu0 %v6163
      %6197 = vmatprep.subr.mxu0 0.0
      %6198 = vmatpush1.msra.mxu0 0.0
      %6199 = vmatprep.subr.mxu0 0.0
      %6200 = vmatpush1.msra.mxu0 0.0
      %6201 = vmatprep.subr.mxu0 0.0
      %6202 = vmatpush1.msra.mxu0 0.0
      %6203 = vmatprep.subr.mxu0 0.0
      %6204 = vmatpush1.msra.mxu0 0.0
      %6205 = vmatprep.subr.mxu0 0.0
      %6206 = vmatpush1.msra.mxu0 0.0
      %6207 = vmatprep.subr.mxu0 0.0
      %6208 = vmatpush1.msra.mxu0 0.0
      %6209 = vmatprep.subr.mxu0 0.0
      %6210 = vmatpush1.msra.mxu0 0.0
      %6211 = vmatprep.subr.mxu0 0.0
      %6212 = vmatpush1.msra.mxu0 0.0
      %6213 = vmatprep.subr.mxu0 0.0
      %6214 = vmatpush1.msra.mxu0 0.0
      %6215 = vmatprep.subr.mxu0 0.0
      %6216 = vmatpush1.msra.mxu0 0.0
      %6217 = vmatprep.subr.mxu0 0.0
      %6218 = vmatpush1.msra.mxu0 0.0
      %6219 = vmatprep.subr.mxu0 0.0
      %6220 = vmatpush1.msra.mxu0 0.0
      %6221 = vmatprep.subr.mxu0 0.0
      %6222 = vmatpush1.msra.mxu0 0.0
      %6223 = vmatprep.subr.mxu0 0.0
      %6224 = vmatpush1.msra.mxu0 0.0
      %6225 = vmatprep.subr.mxu0 0.0
      %6226 = vmatpush1.msra.mxu0 0.0
      %6227 = vmatprep.subr.mxu0 0.0
      %6228 = vmatpush1.msra.mxu0 0.0
      %6229 = vmatprep.mubr.f32.mxu0 0.0
      %6230 = vmatmul.mubr.f32.gmra.mrb[0].mxu0 %v6045
      %v6231 = vpop.f32.mrb[0].mxu0
      %v6232 = vadd.f32 0.0, %v6231
      %v6233 = vpop.f32.mrb[0].mxu0
      %v6234 = vadd.f32 0.0, %v6233
      %6235 = vmatprep.mubr.f32.mxu0 0.0
      %6236 = vmatmul.mubr.f32.gmra.mrb[0].mxu0 %v6046
      %v6237 = vpop.f32.mrb[0].mxu0
      %v6238 = vadd.f32 0.0, %v6237
      %v6239 = vpop.f32.mrb[0].mxu0
      %v6240 = vadd.f32 0.0, %v6239
      %6241 = vmatprep.mubr.f32.mxu0 0.0
      %6242 = vmatmul.mubr.f32.gmra.mrb[0].mxu0 %v6047
      %v6243 = vpop.f32.mrb[0].mxu0
      %v6244 = vadd.f32 0.0, %v6243
      %v6245 = vpop.f32.mrb[0].mxu0
      %v6246 = vadd.f32 0.0, %v6245
      %6247 = vmatprep.mubr.f32.mxu0 0.0
      %6248 = vmatmul.mubr.f32.gmra.mrb[0].mxu0 %v6048
      %v6249 = vpop.f32.mrb[0].mxu0
      %v6250 = vadd.f32 0.0, %v6249
      %v6251 = vpop.f32.mrb[0].mxu0
      %v6252 = vadd.f32 0.0, %v6251
      %6253 = vmatprep.mubr.f32.mxu0 0.0
      %6254 = vmatmul.mubr.f32.gmra.mrb[0].mxu0 %v6049
      %v6255 = vpop.f32.mrb[0].mxu0
      %v6256 = vadd.f32 0.0, %v6255
      %v6257 = vpop.f32.mrb[0].mxu0
      %v6258 = vadd.f32 0.0, %v6257
      %6259 = vmatprep.mubr.f32.mxu0 0.0
      %6260 = vmatmul.mubr.f32.gmra.mrb[0].mxu0 %v6050
      %v6261 = vpop.f32.mrb[0].mxu0
      %v6262 = vadd.f32 0.0, %v6261
      %v6263 = vpop.f32.mrb[0].mxu0
      %v6264 = vadd.f32 0.0, %v6263
      %6265 = vmatprep.mubr.f32.mxu0 0.0
      %6266 = vmatmul.mubr.f32.gmra.mrb[0].mxu0 %v6051
      %v6267 = vpop.f32.mrb[0].mxu0
      %v6268 = vadd.f32 0.0, %v6267
      %v6269 = vpop.f32.mrb[0].mxu0
      %v6270 = vadd.f32 0.0, %v6269
      %6271 = vmatprep.mubr.f32.mxu0 0.0
      %6272 = vmatmul.mubr.f32.gmra.mrb[0].mxu0 %v6052
      %v6273 = vpop.f32.mrb[0].mxu0
      %v6274 = vadd.f32 0.0, %v6273
      %v6275 = vpop.f32.mrb[0].mxu0
      %v6276 = vadd.f32 0.0, %v6275
      %6277 = vmatprep.mubr.f32.mxu0 0.0
      %6278 = vmatmul.mubr.f32.gmra.mrb[0].mxu0 %v6053
      %v6279 = vpop.f32.mrb[0].mxu0
      %v6280 = vadd.f32 0.0, %v6279
      %v6281 = vpop.f32.mrb[0].mxu0
      %v6282 = vadd.f32 0.0, %v6281
      %6283 = vmatprep.mubr.f32.mxu0 0.0
      %6284 = vmatmul.mubr.f32.gmra.mrb[0].mxu0 %v6054
      %v6285 = vpop.f32.mrb[0].mxu0
      %v6286 = vadd.f32 0.0, %v6285
      %v6287 = vpop.f32.mrb[0].mxu0
      %v6288 = vadd.f32 0.0, %v6287
      %6289 = vmatprep.mubr.f32.mxu0 0.0
      %6290 = vmatmul.mubr.f32.gmra.mrb[0].mxu0 %v6055
      %v6291 = vpop.f32.mrb[0].mxu0
      %v6292 = vadd.f32 0.0, %v6291
      %v6293 = vpop.f32.mrb[0].mxu0
      %v6294 = vadd.f32 0.0, %v6293
      %6295 = vmatprep.mubr.f32.mxu0 0.0
      %6296 = vmatmul.mubr.f32.gmra.mrb[0].mxu0 %v6056
      %v6297 = vpop.f32.mrb[0].mxu0
      %v6298 = vadd.f32 0.0, %v6297
      %v6299 = vpop.f32.mrb[0].mxu0
      %v6300 = vadd.f32 0.0, %v6299
      %6301 = vmatprep.mubr.f32.mxu0 0.0
      %6302 = vmatmul.mubr.f32.gmra.mrb[0].mxu0 %v6057
      %v6303 = vpop.f32.mrb[0].mxu0
      %v6304 = vadd.f32 0.0, %v6303
      %v6305 = vpop.f32.mrb[0].mxu0
      %v6306 = vadd.f32 0.0, %v6305
      %6307 = vmatprep.mubr.f32.mxu0 0.0
      %6308 = vmatmul.mubr.f32.gmra.mrb[0].mxu0 %v6058
      %v6309 = vpop.f32.mrb[0].mxu0
      %v6310 = vadd.f32 0.0, %v6309
      %v6311 = vpop.f32.mrb[0].mxu0
      %v6312 = vadd.f32 0.0, %v6311
      %6313 = vmatprep.mubr.f32.mxu0 0.0
      %6314 = vmatmul.mubr.f32.gmra.mrb[0].mxu0 %v6059
      %v6315 = vpop.f32.mrb[0].mxu0
      %v6316 = vadd.f32 0.0, %v6315
      %v6317 = vpop.f32.mrb[0].mxu0
      %v6318 = vadd.f32 0.0, %v6317
      %6319 = vmatprep.mubr.f32.mxu0 0.0
      %6320 = vmatmul.mubr.f32.gmra.mrb[0].mxu0 %v6060
      %v6321 = vpop.f32.mrb[0].mxu0
      %v6322 = vadd.f32 0.0, %v6321
      %v6323 = vpop.f32.mrb[0].mxu0
      %v6324 = vadd.f32 0.0, %v6323
      %6325 = vmatprep.mubr.f32.mxu0 0.0
      %6326 = vmatmul.mubr.f32.gmra.mrb[0].mxu0 %v6061
      %v6327 = vpop.f32.mrb[0].mxu0
      %v6328 = vadd.f32 0.0, %v6327
      %v6329 = vpop.f32.mrb[0].mxu0
      %v6330 = vadd.f32 0.0, %v6329
      %6331 = vmatprep.mubr.f32.mxu0 0.0
      %6332 = vmatmul.mubr.f32.gmra.mrb[0].mxu0 %v6062
      %v6333 = vpop.f32.mrb[0].mxu0
      %v6334 = vadd.f32 0.0, %v6333
      %v6335 = vpop.f32.mrb[0].mxu0
      %v6336 = vadd.f32 0.0, %v6335
      %6337 = vmatprep.mubr.f32.mxu0 0.0
      %6338 = vmatmul.mubr.f32.gmra.mrb[0].mxu0 %v6063
      %v6339 = vpop.f32.mrb[0].mxu0
      %v6340 = vadd.f32 0.0, %v6339
      %v6341 = vpop.f32.mrb[0].mxu0
      %v6342 = vadd.f32 0.0, %v6341
      %6343 = vmatprep.mubr.f32.mxu0 0.0
      %6344 = vmatmul.mubr.f32.gmra.mrb[0].mxu0 %v6064
      %v6345 = vpop.f32.mrb[0].mxu0
      %v6346 = vadd.f32 0.0, %v6345
      %v6347 = vpop.f32.mrb[0].mxu0
      %v6348 = vadd.f32 0.0, %v6347
      %6349 = vmatprep.mubr.f32.mxu0 0.0
      %6350 = vmatmul.mubr.f32.gmra.mrb[0].mxu0 %v6065
      %v6351 = vpop.f32.mrb[0].mxu0
      %v6352 = vadd.f32 0.0, %v6351
      %v6353 = vpop.f32.mrb[0].mxu0
      %v6354 = vadd.f32 0.0, %v6353
      %6355 = vmatprep.mubr.f32.mxu0 0.0
      %6356 = vmatmul.mubr.f32.gmra.mrb[0].mxu0 %v6066
      %v6357 = vpop.f32.mrb[0].mxu0
      %v6358 = vadd.f32 0.0, %v6357
      %v6359 = vpop.f32.mrb[0].mxu0
      %v6360 = vadd.f32 0.0, %v6359
      %6361 = vmatprep.mubr.f32.mxu0 0.0
      %6362 = vmatmul.mubr.f32.gmra.mrb[0].mxu0 %v6067
      %v6363 = vpop.f32.mrb[0].mxu0
      %v6364 = vadd.f32 0.0, %v6363
      %v6365 = vpop.f32.mrb[0].mxu0
      %v6366 = vadd.f32 0.0, %v6365
      %6367 = vmatprep.mubr.f32.mxu0 0.0
      %6368 = vmatmul.mubr.f32.gmra.mrb[0].mxu0 %v6068
      %v6369 = vpop.f32.mrb[0].mxu0
      %v6370 = vadd.f32 0.0, %v6369
      %v6371 = vpop.f32.mrb[0].mxu0
      %v6372 = vadd.f32 0.0, %v6371
      %6373 = vmatprep.mubr.f32.mxu0 0.0
      %6374 = vmatmul.mubr.f32.gmra.mrb[0].mxu0 %v6069
      %v6375 = vpop.f32.mrb[0].mxu0
      %v6376 = vadd.f32 0.0, %v6375
      %v6377 = vpop.f32.mrb[0].mxu0
      %v6378 = vadd.f32 0.0, %v6377
      %6379 = vmatprep.mubr.f32.mxu0 0.0
      %6380 = vmatmul.mubr.f32.gmra.mrb[0].mxu0 %v6070
      %v6381 = vpop.f32.mrb[0].mxu0
      %v6382 = vadd.f32 0.0, %v6381
      %v6383 = vpop.f32.mrb[0].mxu0
      %v6384 = vadd.f32 0.0, %v6383
      %6385 = vmatprep.mubr.f32.mxu0 0.0
      %6386 = vmatmul.mubr.f32.gmra.mrb[0].mxu0 %v6071
      %v6387 = vpop.f32.mrb[0].mxu0
      %v6388 = vadd.f32 0.0, %v6387
      %v6389 = vpop.f32.mrb[0].mxu0
      %v6390 = vadd.f32 0.0, %v6389
      %6391 = vmatprep.mubr.f32.mxu0 0.0
      %6392 = vmatmul.mubr.f32.gmra.mrb[0].mxu0 %v6072
      %v6393 = vpop.f32.mrb[0].mxu0
      %v6394 = vadd.f32 0.0, %v6393
      %v6395 = vpop.f32.mrb[0].mxu0
      %v6396 = vadd.f32 0.0, %v6395
      %6397 = vmatprep.mubr.f32.mxu0 0.0
      %6398 = vmatmul.mubr.f32.gmra.mrb[0].mxu0 %v6073
      %v6399 = vpop.f32.mrb[0].mxu0
      %v6400 = vadd.f32 0.0, %v6399
      %v6401 = vpop.f32.mrb[0].mxu0
      %v6402 = vadd.f32 0.0, %v6401
      %6403 = vdwg.mxu0
      %v6404 = vadd.f32 %v6074, %v6232
      %v6405 = vadd.f32 %v6075, %v6234
      %v6406 = vadd.f32 %v6076, %v6238
      %v6407 = vadd.f32 %v6077, %v6240
      %v6408 = vadd.f32 %v6078, %v6244
      %v6409 = vadd.f32 %v6079, %v6246
      %v6410 = vadd.f32 %v6080, %v6250
      %v6411 = vadd.f32 %v6081, %v6252
      %v6412 = vadd.f32 %v6082, %v6256
      %v6413 = vadd.f32 %v6083, %v6258
      %v6414 = vadd.f32 %v6084, %v6262
      %v6415 = vadd.f32 %v6085, %v6264
      %v6416 = vadd.f32 %v6086, %v6268
      %v6417 = vadd.f32 %v6087, %v6270
      %v6418 = vadd.f32 %v6088, %v6274
      %v6419 = vadd.f32 %v6089, %v6276
      %v6420 = vadd.f32 %v6090, %v6280
      %v6421 = vadd.f32 %v6091, %v6282
      %v6422 = vadd.f32 %v6092, %v6286
      %v6423 = vadd.f32 %v6093, %v6288
      %v6424 = vadd.f32 %v6094, %v6292
      %v6425 = vadd.f32 %v6095, %v6294
      %v6426 = vadd.f32 %v6096, %v6298
      %v6427 = vadd.f32 %v6097, %v6300
      %v6428 = vadd.f32 %v6098, %v6304
      %v6429 = vadd.f32 %v6099, %v6306
      %v6430 = vadd.f32 %v6100, %v6310
      %v6431 = vadd.f32 %v6101, %v6312
      %v6432 = vadd.f32 %v6102, %v6316
      %v6433 = vadd.f32 %v6103, %v6318
      %v6434 = vadd.f32 %v6104, %v6322
      %v6435 = vadd.f32 %v6105, %v6324
      %v6436 = vadd.f32 %v6106, %v6328
      %v6437 = vadd.f32 %v6107, %v6330
      %v6438 = vadd.f32 %v6108, %v6334
      %v6439 = vadd.f32 %v6109, %v6336
      %v6440 = vadd.f32 %v6110, %v6340
      %v6441 = vadd.f32 %v6111, %v6342
      %v6442 = vadd.f32 %v6112, %v6346
      %v6443 = vadd.f32 %v6113, %v6348
      %v6444 = vadd.f32 %v6114, %v6352
      %v6445 = vadd.f32 %v6115, %v6354
      %v6446 = vadd.f32 %v6116, %v6358
      %v6447 = vadd.f32 %v6117, %v6360
      %v6448 = vadd.f32 %v6118, %v6364
      %v6449 = vadd.f32 %v6119, %v6366
      %v6450 = vadd.f32 %v6120, %v6370
      %v6451 = vadd.f32 %v6121, %v6372
      %v6452 = vadd.f32 %v6122, %v6376
      %v6453 = vadd.f32 %v6123, %v6378
      %v6454 = vadd.f32 %v6124, %v6382
      %v6455 = vadd.f32 %v6125, %v6384
      %v6456 = vadd.f32 %v6126, %v6388
      %v6457 = vadd.f32 %v6127, %v6390
      %v6458 = vadd.f32 %v6128, %v6394
      %v6459 = vadd.f32 %v6129, %v6396
      %v6460 = vadd.f32 %v6130, %v6400
      %v6461 = vadd.f32 %v6131, %v6402
      %6462 = vst [vmem:[#allocation3] sm:$0xff] %v6404
      %6463 = vst [vmem:[#allocation3 + $0x8] sm:$0xff] %v6405
      %6464 = vst [vmem:[#allocation3 + $0x10] sm:$0xff] %v6406
      %6465 = vst [vmem:[#allocation3 + $0x18] sm:$0xff] %v6407
      %6466 = vst [vmem:[#allocation3 + $0x20] sm:$0xff] %v6408
      %6467 = vst [vmem:[#allocation3 + $0x28] sm:$0xff] %v6409
      %6468 = vst [vmem:[#allocation3 + $0x30] sm:$0xff] %v6410
      %6469 = vst [vmem:[#allocation3 + $0x38] sm:$0xff] %v6411
      %6470 = vst [vmem:[#allocation3 + $0x40] sm:$0xff] %v6412
      %6471 = vst [vmem:[#allocation3 + $0x48] sm:$0xff] %v6413
      %6472 = vst [vmem:[#allocation3 + $0x50] sm:$0xff] %v6414
      %6473 = vst [vmem:[#allocation3 + $0x58] sm:$0xff] %v6415
      %6474 = vst [vmem:[#allocation3 + $0x60] sm:$0xff] %v6416
      %6475 = vst [vmem:[#allocation3 + $0x68] sm:$0xff] %v6417
      %6476 = vst [vmem:[#allocation3 + $0x70] sm:$0xff] %v6418
      %6477 = vst [vmem:[#allocation3 + $0x78] sm:$0xff] %v6419
      %6478 = vst [vmem:[#allocation3 + $0x80] sm:$0xff] %v6420
      %6479 = vst [vmem:[#allocation3 + $0x88] sm:$0xff] %v6421
      %6480 = vst [vmem:[#allocation3 + $0x90] sm:$0xff] %v6422
      %6481 = vst [vmem:[#allocation3 + $0x98] sm:$0xff] %v6423
      %6482 = vst [vmem:[#allocation3 + $0xa0] sm:$0xff] %v6424
      %6483 = vst [vmem:[#allocation3 + $0xa8] sm:$0xff] %v6425
      %6484 = vst [vmem:[#allocation3 + $0xb0] sm:$0xff] %v6426
      %6485 = vst [vmem:[#allocation3 + $0xb8] sm:$0xff] %v6427
      %6486 = vst [vmem:[#allocation3 + $0xc0] sm:$0xff] %v6428
      %6487 = vst [vmem:[#allocation3 + $0xc8] sm:$0xff] %v6429
      %6488 = vst [vmem:[#allocation3 + $0xd0] sm:$0xff] %v6430
      %6489 = vst [vmem:[#allocation3 + $0xd8] sm:$0xff] %v6431
      %6490 = vst [vmem:[#allocation3 + $0xe0] sm:$0xff] %v6432
      %6491 = vst [vmem:[#allocation3 + $0xe8] sm:$0xff] %v6433
      %6492 = vst [vmem:[#allocation3 + $0xf0] sm:$0xff] %v6434
      %6493 = vst [vmem:[#allocation3 + $0xf8] sm:$0xff] %v6435
      %6494 = vst [vmem:[#allocation3 + $0x100] sm:$0xff] %v6436
      %6495 = vst [vmem:[#allocation3 + $0x108] sm:$0xff] %v6437
      %6496 = vst [vmem:[#allocation3 + $0x110] sm:$0xff] %v6438
      %6497 = vst [vmem:[#allocation3 + $0x118] sm:$0xff] %v6439
      %6498 = vst [vmem:[#allocation3 + $0x120] sm:$0xff] %v6440
      %6499 = vst [vmem:[#allocation3 + $0x128] sm:$0xff] %v6441
      %6500 = vst [vmem:[#allocation3 + $0x130] sm:$0xff] %v6442
      %6501 = vst [vmem:[#allocation3 + $0x138] sm:$0xff] %v6443
      %6502 = vst [vmem:[#allocation3 + $0x140] sm:$0xff] %v6444
      %6503 = vst [vmem:[#allocation3 + $0x148] sm:$0xff] %v6445
      %6504 = vst [vmem:[#allocation3 + $0x150] sm:$0xff] %v6446
      %6505 = vst [vmem:[#allocation3 + $0x158] sm:$0xff] %v6447
      %6506 = vst [vmem:[#allocation3 + $0x160] sm:$0xff] %v6448
      %6507 = vst [vmem:[#allocation3 + $0x168] sm:$0xff] %v6449
      %6508 = vst [vmem:[#allocation3 + $0x170] sm:$0xff] %v6450
      %6509 = vst [vmem:[#allocation3 + $0x178] sm:$0xff] %v6451
      %6510 = vst [vmem:[#allocation3 + $0x180] sm:$0xff] %v6452
      %6511 = vst [vmem:[#allocation3 + $0x188] sm:$0xff] %v6453
      %6512 = vst [vmem:[#allocation3 + $0x190] sm:$0xff] %v6454
      %6513 = vst [vmem:[#allocation3 + $0x198] sm:$0xff] %v6455
      %6514 = vst [vmem:[#allocation3 + $0x1a0] sm:$0xff] %v6456
      %6515 = vst [vmem:[#allocation3 + $0x1a8] sm:$0xff] %v6457
      %6516 = vst [vmem:[#allocation3 + $0x1b0] sm:$0xff] %v6458
      %6517 = vst [vmem:[#allocation3 + $0x1b8] sm:$0xff] %v6459
      %6518 = vst [vmem:[#allocation3 + $0x1c0] sm:$0x7f] %v6460
      %6519 = vst [vmem:[#allocation3 + $0x1c8] sm:$0x7f] %v6461
      %v6520 = vld [vmem:[#allocation2 + $0x3f] sm:$0xff]
      %v6521 = vld [vmem:[#allocation2 + $0x47] sm:$0xff]
      %v6522 = vld [vmem:[#allocation2 + $0x4f] sm:$0xff]
      %v6523 = vld [vmem:[#allocation2 + $0x57] sm:$0xff]
      %v6524 = vld [vmem:[#allocation2 + $0x5f] sm:$0xff]
      %v6525 = vld [vmem:[#allocation2 + $0x67] sm:$0xff]
      %v6526 = vld [vmem:[#allocation2 + $0x6f] sm:$0xff]
      %v6527 = vld [vmem:[#allocation2 + $0x77] sm:$0xff]
      %v6528 = vld [vmem:[#allocation2 + $0x7f] sm:$0xff]
      %v6529 = vld [vmem:[#allocation2 + $0x87] sm:$0xff]
      %v6530 = vld [vmem:[#allocation2 + $0x8f] sm:$0xff]
      %v6531 = vld [vmem:[#allocation2 + $0x97] sm:$0xff]
      %v6532 = vld [vmem:[#allocation2 + $0x9f] sm:$0xff]
      %v6533 = vld [vmem:[#allocation2 + $0xa7] sm:$0xff]
      %v6534 = vld [vmem:[#allocation2 + $0xaf] sm:$0xff]
      %v6535 = vld [vmem:[#allocation2 + $0xb7] sm:$0xff]
      %v6536 = vld [vmem:[#allocation2 + $0xbf] sm:$0xff]
      %v6537 = vld [vmem:[#allocation2 + $0xc7] sm:$0xff]
      %v6538 = vld [vmem:[#allocation2 + $0xcf] sm:$0xff]
      %v6539 = vld [vmem:[#allocation2 + $0xd7] sm:$0xff]
      %v6540 = vld [vmem:[#allocation2 + $0xdf] sm:$0xff]
      %v6541 = vld [vmem:[#allocation2 + $0xe7] sm:$0xff]
      %v6542 = vld [vmem:[#allocation2 + $0xef] sm:$0xff]
      %v6543 = vld [vmem:[#allocation2 + $0xf7] sm:$0xff]
      %v6544 = vld [vmem:[#allocation2 + $0xff] sm:$0xff]
      %v6545 = vld [vmem:[#allocation2 + $0x107] sm:$0xff]
      %v6546 = vld [vmem:[#allocation2 + $0x10f] sm:$0xff]
      %v6547 = vld [vmem:[#allocation2 + $0x117] sm:$0xff]
      %v6548 = vld [vmem:[#allocation2 + $0x11f] sm:$0x7f]
      %v6549 = vld [vmem:[#allocation3] sm:$0xff]
      %v6550 = vld [vmem:[#allocation3 + $0x8] sm:$0xff]
      %v6551 = vld [vmem:[#allocation3 + $0x10] sm:$0xff]
      %v6552 = vld [vmem:[#allocation3 + $0x18] sm:$0xff]
      %v6553 = vld [vmem:[#allocation3 + $0x20] sm:$0xff]
      %v6554 = vld [vmem:[#allocation3 + $0x28] sm:$0xff]
      %v6555 = vld [vmem:[#allocation3 + $0x30] sm:$0xff]
      %v6556 = vld [vmem:[#allocation3 + $0x38] sm:$0xff]
      %v6557 = vld [vmem:[#allocation3 + $0x40] sm:$0xff]
      %v6558 = vld [vmem:[#allocation3 + $0x48] sm:$0xff]
      %v6559 = vld [vmem:[#allocation3 + $0x50] sm:$0xff]
      %v6560 = vld [vmem:[#allocation3 + $0x58] sm:$0xff]
      %v6561 = vld [vmem:[#allocation3 + $0x60] sm:$0xff]
      %v6562 = vld [vmem:[#allocation3 + $0x68] sm:$0xff]
      %v6563 = vld [vmem:[#allocation3 + $0x70] sm:$0xff]
      %v6564 = vld [vmem:[#allocation3 + $0x78] sm:$0xff]
      %v6565 = vld [vmem:[#allocation3 + $0x80] sm:$0xff]
      %v6566 = vld [vmem:[#allocation3 + $0x88] sm:$0xff]
      %v6567 = vld [vmem:[#allocation3 + $0x90] sm:$0xff]
      %v6568 = vld [vmem:[#allocation3 + $0x98] sm:$0xff]
      %v6569 = vld [vmem:[#allocation3 + $0xa0] sm:$0xff]
      %v6570 = vld [vmem:[#allocation3 + $0xa8] sm:$0xff]
      %v6571 = vld [vmem:[#allocation3 + $0xb0] sm:$0xff]
      %v6572 = vld [vmem:[#allocation3 + $0xb8] sm:$0xff]
      %v6573 = vld [vmem:[#allocation3 + $0xc0] sm:$0xff]
      %v6574 = vld [vmem:[#allocation3 + $0xc8] sm:$0xff]
      %v6575 = vld [vmem:[#allocation3 + $0xd0] sm:$0xff]
      %v6576 = vld [vmem:[#allocation3 + $0xd8] sm:$0xff]
      %v6577 = vld [vmem:[#allocation3 + $0xe0] sm:$0xff]
      %v6578 = vld [vmem:[#allocation3 + $0xe8] sm:$0xff]
      %v6579 = vld [vmem:[#allocation3 + $0xf0] sm:$0xff]
      %v6580 = vld [vmem:[#allocation3 + $0xf8] sm:$0xff]
      %v6581 = vld [vmem:[#allocation3 + $0x100] sm:$0xff]
      %v6582 = vld [vmem:[#allocation3 + $0x108] sm:$0xff]
      %v6583 = vld [vmem:[#allocation3 + $0x110] sm:$0xff]
      %v6584 = vld [vmem:[#allocation3 + $0x118] sm:$0xff]
      %v6585 = vld [vmem:[#allocation3 + $0x120] sm:$0xff]
      %v6586 = vld [vmem:[#allocation3 + $0x128] sm:$0xff]
      %v6587 = vld [vmem:[#allocation3 + $0x130] sm:$0xff]
      %v6588 = vld [vmem:[#allocation3 + $0x138] sm:$0xff]
      %v6589 = vld [vmem:[#allocation3 + $0x140] sm:$0xff]
      %v6590 = vld [vmem:[#allocation3 + $0x148] sm:$0xff]
      %v6591 = vld [vmem:[#allocation3 + $0x150] sm:$0xff]
      %v6592 = vld [vmem:[#allocation3 + $0x158] sm:$0xff]
      %v6593 = vld [vmem:[#allocation3 + $0x160] sm:$0xff]
      %v6594 = vld [vmem:[#allocation3 + $0x168] sm:$0xff]
      %v6595 = vld [vmem:[#allocation3 + $0x170] sm:$0xff]
      %v6596 = vld [vmem:[#allocation3 + $0x178] sm:$0xff]
      %v6597 = vld [vmem:[#allocation3 + $0x180] sm:$0xff]
      %v6598 = vld [vmem:[#allocation3 + $0x188] sm:$0xff]
      %v6599 = vld [vmem:[#allocation3 + $0x190] sm:$0xff]
      %v6600 = vld [vmem:[#allocation3 + $0x198] sm:$0xff]
      %v6601 = vld [vmem:[#allocation3 + $0x1a0] sm:$0xff]
      %v6602 = vld [vmem:[#allocation3 + $0x1a8] sm:$0xff]
      %v6603 = vld [vmem:[#allocation3 + $0x1b0] sm:$0xff]
      %v6604 = vld [vmem:[#allocation3 + $0x1b8] sm:$0xff]
      %v6605 = vld [vmem:[#allocation3 + $0x1c0] sm:$0x7f]
      %v6606 = vld [vmem:[#allocation3 + $0x1c8] sm:$0x7f]
      %s6607 = scalar_lea.vmem %s2, 3072
      %v6608 = vld [vmem:[%s6607] sm:$0xff]
      %v6609 = vld [vmem:[%s6607 + $0x8] sm:$0xff]
      %v6610 = vld [vmem:[%s6607 + $0x10] sm:$0xff]
      %v6611 = vld [vmem:[%s6607 + $0x18] sm:$0xff]
      %v6612 = vld [vmem:[%s6607 + $0x20] sm:$0xff]
      %v6613 = vld [vmem:[%s6607 + $0x28] sm:$0xff]
      %v6614 = vld [vmem:[%s6607 + $0x30] sm:$0xff]
      %v6615 = vld [vmem:[%s6607 + $0x38] sm:$0xff]
      %v6616 = vld [vmem:[%s6607 + $0x40] sm:$0xff]
      %v6617 = vld [vmem:[%s6607 + $0x48] sm:$0xff]
      %v6618 = vld [vmem:[%s6607 + $0x50] sm:$0xff]
      %v6619 = vld [vmem:[%s6607 + $0x58] sm:$0xff]
      %v6620 = vld [vmem:[%s6607 + $0x60] sm:$0xff]
      %v6621 = vld [vmem:[%s6607 + $0x68] sm:$0xff]
      %v6622 = vld [vmem:[%s6607 + $0x70] sm:$0xff]
      %v6623 = vld [vmem:[%s6607 + $0x78] sm:$0xff]
      %v6624 = vld [vmem:[%s6607 + $0x80] sm:$0xff]
      %v6625 = vld [vmem:[%s6607 + $0x88] sm:$0xff]
      %v6626 = vld [vmem:[%s6607 + $0x90] sm:$0xff]
      %v6627 = vld [vmem:[%s6607 + $0x98] sm:$0xff]
      %v6628 = vld [vmem:[%s6607 + $0xa0] sm:$0xff]
      %v6629 = vld [vmem:[%s6607 + $0xa8] sm:$0xff]
      %v6630 = vld [vmem:[%s6607 + $0xb0] sm:$0xff]
      %v6631 = vld [vmem:[%s6607 + $0xb8] sm:$0xff]
      %v6632 = vld [vmem:[%s6607 + $0xc0] sm:$0xff]
      %v6633 = vld [vmem:[%s6607 + $0xc8] sm:$0xff]
      %v6634 = vld [vmem:[%s6607 + $0xd0] sm:$0xff]
      %v6635 = vld [vmem:[%s6607 + $0xd8] sm:$0xff]
      %v6636 = vld [vmem:[%s6607 + $0xe0] sm:$0xff]
      %v6637 = vld [vmem:[%s6607 + $0xe8] sm:$0xff]
      %v6638 = vld [vmem:[%s6607 + $0xf0] sm:$0xff]
      %v6639 = vld [vmem:[%s6607 + $0xf8] sm:$0xff]
      %6640 = vmatprep.subr.mxu0 %v6609
      %6641 = vmatpush1.msra.mxu0 %v6608
      %6642 = vmatprep.subr.mxu0 %v6611
      %6643 = vmatpush1.msra.mxu0 %v6610
      %6644 = vmatprep.subr.mxu0 %v6613
      %6645 = vmatpush1.msra.mxu0 %v6612
      %6646 = vmatprep.subr.mxu0 %v6615
      %6647 = vmatpush1.msra.mxu0 %v6614
      %6648 = vmatprep.subr.mxu0 %v6617
      %6649 = vmatpush1.msra.mxu0 %v6616
      %6650 = vmatprep.subr.mxu0 %v6619
      %6651 = vmatpush1.msra.mxu0 %v6618
      %6652 = vmatprep.subr.mxu0 %v6621
      %6653 = vmatpush1.msra.mxu0 %v6620
      %6654 = vmatprep.subr.mxu0 %v6623
      %6655 = vmatpush1.msra.mxu0 %v6622
      %6656 = vmatprep.subr.mxu0 %v6625
      %6657 = vmatpush1.msra.mxu0 %v6624
      %6658 = vmatprep.subr.mxu0 %v6627
      %6659 = vmatpush1.msra.mxu0 %v6626
      %6660 = vmatprep.subr.mxu0 %v6629
      %6661 = vmatpush1.msra.mxu0 %v6628
      %6662 = vmatprep.subr.mxu0 %v6631
      %6663 = vmatpush1.msra.mxu0 %v6630
      %6664 = vmatprep.subr.mxu0 %v6633
      %6665 = vmatpush1.msra.mxu0 %v6632
      %6666 = vmatprep.subr.mxu0 %v6635
      %6667 = vmatpush1.msra.mxu0 %v6634
      %6668 = vmatprep.subr.mxu0 %v6637
      %6669 = vmatpush1.msra.mxu0 %v6636
      %6670 = vmatprep.subr.mxu0 %v6639
      %6671 = vmatpush1.msra.mxu0 %v6638
      %6672 = vmatprep.subr.mxu0 0.0
      %6673 = vmatpush1.msra.mxu0 0.0
      %6674 = vmatprep.subr.mxu0 0.0
      %6675 = vmatpush1.msra.mxu0 0.0
      %6676 = vmatprep.subr.mxu0 0.0
      %6677 = vmatpush1.msra.mxu0 0.0
      %6678 = vmatprep.subr.mxu0 0.0
      %6679 = vmatpush1.msra.mxu0 0.0
      %6680 = vmatprep.subr.mxu0 0.0
      %6681 = vmatpush1.msra.mxu0 0.0
      %6682 = vmatprep.subr.mxu0 0.0
      %6683 = vmatpush1.msra.mxu0 0.0
      %6684 = vmatprep.subr.mxu0 0.0
      %6685 = vmatpush1.msra.mxu0 0.0
      %6686 = vmatprep.subr.mxu0 0.0
      %6687 = vmatpush1.msra.mxu0 0.0
      %6688 = vmatprep.subr.mxu0 0.0
      %6689 = vmatpush1.msra.mxu0 0.0
      %6690 = vmatprep.subr.mxu0 0.0
      %6691 = vmatpush1.msra.mxu0 0.0
      %6692 = vmatprep.subr.mxu0 0.0
      %6693 = vmatpush1.msra.mxu0 0.0
      %6694 = vmatprep.subr.mxu0 0.0
      %6695 = vmatpush1.msra.mxu0 0.0
      %6696 = vmatprep.subr.mxu0 0.0
      %6697 = vmatpush1.msra.mxu0 0.0
      %6698 = vmatprep.subr.mxu0 0.0
      %6699 = vmatpush1.msra.mxu0 0.0
      %6700 = vmatprep.subr.mxu0 0.0
      %6701 = vmatpush1.msra.mxu0 0.0
      %6702 = vmatprep.subr.mxu0 0.0
      %6703 = vmatpush1.msra.mxu0 0.0
      %6704 = vmatprep.mubr.f32.mxu0 0.0
      %6705 = vmatmul.mubr.f32.gmra.mrb[0].mxu0 %v6520
      %v6706 = vpop.f32.mrb[0].mxu0
      %v6707 = vadd.f32 0.0, %v6706
      %v6708 = vpop.f32.mrb[0].mxu0
      %v6709 = vadd.f32 0.0, %v6708
      %6710 = vmatprep.mubr.f32.mxu0 0.0
      %6711 = vmatmul.mubr.f32.gmra.mrb[0].mxu0 %v6521
      %v6712 = vpop.f32.mrb[0].mxu0
      %v6713 = vadd.f32 0.0, %v6712
      %v6714 = vpop.f32.mrb[0].mxu0
      %v6715 = vadd.f32 0.0, %v6714
      %6716 = vmatprep.mubr.f32.mxu0 0.0
      %6717 = vmatmul.mubr.f32.gmra.mrb[0].mxu0 %v6522
      %v6718 = vpop.f32.mrb[0].mxu0
      %v6719 = vadd.f32 0.0, %v6718
      %v6720 = vpop.f32.mrb[0].mxu0
      %v6721 = vadd.f32 0.0, %v6720
      %6722 = vmatprep.mubr.f32.mxu0 0.0
      %6723 = vmatmul.mubr.f32.gmra.mrb[0].mxu0 %v6523
      %v6724 = vpop.f32.mrb[0].mxu0
      %v6725 = vadd.f32 0.0, %v6724
      %v6726 = vpop.f32.mrb[0].mxu0
      %v6727 = vadd.f32 0.0, %v6726
      %6728 = vmatprep.mubr.f32.mxu0 0.0
      %6729 = vmatmul.mubr.f32.gmra.mrb[0].mxu0 %v6524
      %v6730 = vpop.f32.mrb[0].mxu0
      %v6731 = vadd.f32 0.0, %v6730
      %v6732 = vpop.f32.mrb[0].mxu0
      %v6733 = vadd.f32 0.0, %v6732
      %6734 = vmatprep.mubr.f32.mxu0 0.0
      %6735 = vmatmul.mubr.f32.gmra.mrb[0].mxu0 %v6525
      %v6736 = vpop.f32.mrb[0].mxu0
      %v6737 = vadd.f32 0.0, %v6736
      %v6738 = vpop.f32.mrb[0].mxu0
      %v6739 = vadd.f32 0.0, %v6738
      %6740 = vmatprep.mubr.f32.mxu0 0.0
      %6741 = vmatmul.mubr.f32.gmra.mrb[0].mxu0 %v6526
      %v6742 = vpop.f32.mrb[0].mxu0
      %v6743 = vadd.f32 0.0, %v6742
      %v6744 = vpop.f32.mrb[0].mxu0
      %v6745 = vadd.f32 0.0, %v6744
      %6746 = vmatprep.mubr.f32.mxu0 0.0
      %6747 = vmatmul.mubr.f32.gmra.mrb[0].mxu0 %v6527
      %v6748 = vpop.f32.mrb[0].mxu0
      %v6749 = vadd.f32 0.0, %v6748
      %v6750 = vpop.f32.mrb[0].mxu0
      %v6751 = vadd.f32 0.0, %v6750
      %6752 = vmatprep.mubr.f32.mxu0 0.0
      %6753 = vmatmul.mubr.f32.gmra.mrb[0].mxu0 %v6528
      %v6754 = vpop.f32.mrb[0].mxu0
      %v6755 = vadd.f32 0.0, %v6754
      %v6756 = vpop.f32.mrb[0].mxu0
      %v6757 = vadd.f32 0.0, %v6756
      %6758 = vmatprep.mubr.f32.mxu0 0.0
      %6759 = vmatmul.mubr.f32.gmra.mrb[0].mxu0 %v6529
      %v6760 = vpop.f32.mrb[0].mxu0
      %v6761 = vadd.f32 0.0, %v6760
      %v6762 = vpop.f32.mrb[0].mxu0
      %v6763 = vadd.f32 0.0, %v6762
      %6764 = vmatprep.mubr.f32.mxu0 0.0
      %6765 = vmatmul.mubr.f32.gmra.mrb[0].mxu0 %v6530
      %v6766 = vpop.f32.mrb[0].mxu0
      %v6767 = vadd.f32 0.0, %v6766
      %v6768 = vpop.f32.mrb[0].mxu0
      %v6769 = vadd.f32 0.0, %v6768
      %6770 = vmatprep.mubr.f32.mxu0 0.0
      %6771 = vmatmul.mubr.f32.gmra.mrb[0].mxu0 %v6531
      %v6772 = vpop.f32.mrb[0].mxu0
      %v6773 = vadd.f32 0.0, %v6772
      %v6774 = vpop.f32.mrb[0].mxu0
      %v6775 = vadd.f32 0.0, %v6774
      %6776 = vmatprep.mubr.f32.mxu0 0.0
      %6777 = vmatmul.mubr.f32.gmra.mrb[0].mxu0 %v6532
      %v6778 = vpop.f32.mrb[0].mxu0
      %v6779 = vadd.f32 0.0, %v6778
      %v6780 = vpop.f32.mrb[0].mxu0
      %v6781 = vadd.f32 0.0, %v6780
      %6782 = vmatprep.mubr.f32.mxu0 0.0
      %6783 = vmatmul.mubr.f32.gmra.mrb[0].mxu0 %v6533
      %v6784 = vpop.f32.mrb[0].mxu0
      %v6785 = vadd.f32 0.0, %v6784
      %v6786 = vpop.f32.mrb[0].mxu0
      %v6787 = vadd.f32 0.0, %v6786
      %6788 = vmatprep.mubr.f32.mxu0 0.0
      %6789 = vmatmul.mubr.f32.gmra.mrb[0].mxu0 %v6534
      %v6790 = vpop.f32.mrb[0].mxu0
      %v6791 = vadd.f32 0.0, %v6790
      %v6792 = vpop.f32.mrb[0].mxu0
      %v6793 = vadd.f32 0.0, %v6792
      %6794 = vmatprep.mubr.f32.mxu0 0.0
      %6795 = vmatmul.mubr.f32.gmra.mrb[0].mxu0 %v6535
      %v6796 = vpop.f32.mrb[0].mxu0
      %v6797 = vadd.f32 0.0, %v6796
      %v6798 = vpop.f32.mrb[0].mxu0
      %v6799 = vadd.f32 0.0, %v6798
      %6800 = vmatprep.mubr.f32.mxu0 0.0
      %6801 = vmatmul.mubr.f32.gmra.mrb[0].mxu0 %v6536
      %v6802 = vpop.f32.mrb[0].mxu0
      %v6803 = vadd.f32 0.0, %v6802
      %v6804 = vpop.f32.mrb[0].mxu0
      %v6805 = vadd.f32 0.0, %v6804
      %6806 = vmatprep.mubr.f32.mxu0 0.0
      %6807 = vmatmul.mubr.f32.gmra.mrb[0].mxu0 %v6537
      %v6808 = vpop.f32.mrb[0].mxu0
      %v6809 = vadd.f32 0.0, %v6808
      %v6810 = vpop.f32.mrb[0].mxu0
      %v6811 = vadd.f32 0.0, %v6810
      %6812 = vmatprep.mubr.f32.mxu0 0.0
      %6813 = vmatmul.mubr.f32.gmra.mrb[0].mxu0 %v6538
      %v6814 = vpop.f32.mrb[0].mxu0
      %v6815 = vadd.f32 0.0, %v6814
      %v6816 = vpop.f32.mrb[0].mxu0
      %v6817 = vadd.f32 0.0, %v6816
      %6818 = vmatprep.mubr.f32.mxu0 0.0
      %6819 = vmatmul.mubr.f32.gmra.mrb[0].mxu0 %v6539
      %v6820 = vpop.f32.mrb[0].mxu0
      %v6821 = vadd.f32 0.0, %v6820
      %v6822 = vpop.f32.mrb[0].mxu0
      %v6823 = vadd.f32 0.0, %v6822
      %6824 = vmatprep.mubr.f32.mxu0 0.0
      %6825 = vmatmul.mubr.f32.gmra.mrb[0].mxu0 %v6540
      %v6826 = vpop.f32.mrb[0].mxu0
      %v6827 = vadd.f32 0.0, %v6826
      %v6828 = vpop.f32.mrb[0].mxu0
      %v6829 = vadd.f32 0.0, %v6828
      %6830 = vmatprep.mubr.f32.mxu0 0.0
      %6831 = vmatmul.mubr.f32.gmra.mrb[0].mxu0 %v6541
      %v6832 = vpop.f32.mrb[0].mxu0
      %v6833 = vadd.f32 0.0, %v6832
      %v6834 = vpop.f32.mrb[0].mxu0
      %v6835 = vadd.f32 0.0, %v6834
      %6836 = vmatprep.mubr.f32.mxu0 0.0
      %6837 = vmatmul.mubr.f32.gmra.mrb[0].mxu0 %v6542
      %v6838 = vpop.f32.mrb[0].mxu0
      %v6839 = vadd.f32 0.0, %v6838
      %v6840 = vpop.f32.mrb[0].mxu0
      %v6841 = vadd.f32 0.0, %v6840
      %6842 = vmatprep.mubr.f32.mxu0 0.0
      %6843 = vmatmul.mubr.f32.gmra.mrb[0].mxu0 %v6543
      %v6844 = vpop.f32.mrb[0].mxu0
      %v6845 = vadd.f32 0.0, %v6844
      %v6846 = vpop.f32.mrb[0].mxu0
      %v6847 = vadd.f32 0.0, %v6846
      %6848 = vmatprep.mubr.f32.mxu0 0.0
      %6849 = vmatmul.mubr.f32.gmra.mrb[0].mxu0 %v6544
      %v6850 = vpop.f32.mrb[0].mxu0
      %v6851 = vadd.f32 0.0, %v6850
      %v6852 = vpop.f32.mrb[0].mxu0
      %v6853 = vadd.f32 0.0, %v6852
      %6854 = vmatprep.mubr.f32.mxu0 0.0
      %6855 = vmatmul.mubr.f32.gmra.mrb[0].mxu0 %v6545
      %v6856 = vpop.f32.mrb[0].mxu0
      %v6857 = vadd.f32 0.0, %v6856
      %v6858 = vpop.f32.mrb[0].mxu0
      %v6859 = vadd.f32 0.0, %v6858
      %6860 = vmatprep.mubr.f32.mxu0 0.0
      %6861 = vmatmul.mubr.f32.gmra.mrb[0].mxu0 %v6546
      %v6862 = vpop.f32.mrb[0].mxu0
      %v6863 = vadd.f32 0.0, %v6862
      %v6864 = vpop.f32.mrb[0].mxu0
      %v6865 = vadd.f32 0.0, %v6864
      %6866 = vmatprep.mubr.f32.mxu0 0.0
      %6867 = vmatmul.mubr.f32.gmra.mrb[0].mxu0 %v6547
      %v6868 = vpop.f32.mrb[0].mxu0
      %v6869 = vadd.f32 0.0, %v6868
      %v6870 = vpop.f32.mrb[0].mxu0
      %v6871 = vadd.f32 0.0, %v6870
      %6872 = vmatprep.mubr.f32.mxu0 0.0
      %6873 = vmatmul.mubr.f32.gmra.mrb[0].mxu0 %v6548
      %v6874 = vpop.f32.mrb[0].mxu0
      %v6875 = vadd.f32 0.0, %v6874
      %v6876 = vpop.f32.mrb[0].mxu0
      %v6877 = vadd.f32 0.0, %v6876
      %6878 = vdwg.mxu0
      %v6879 = vadd.f32 %v6549, %v6707
      %v6880 = vadd.f32 %v6550, %v6709
      %v6881 = vadd.f32 %v6551, %v6713
      %v6882 = vadd.f32 %v6552, %v6715
      %v6883 = vadd.f32 %v6553, %v6719
      %v6884 = vadd.f32 %v6554, %v6721
      %v6885 = vadd.f32 %v6555, %v6725
      %v6886 = vadd.f32 %v6556, %v6727
      %v6887 = vadd.f32 %v6557, %v6731
      %v6888 = vadd.f32 %v6558, %v6733
      %v6889 = vadd.f32 %v6559, %v6737
      %v6890 = vadd.f32 %v6560, %v6739
      %v6891 = vadd.f32 %v6561, %v6743
      %v6892 = vadd.f32 %v6562, %v6745
      %v6893 = vadd.f32 %v6563, %v6749
      %v6894 = vadd.f32 %v6564, %v6751
      %v6895 = vadd.f32 %v6565, %v6755
      %v6896 = vadd.f32 %v6566, %v6757
      %v6897 = vadd.f32 %v6567, %v6761
      %v6898 = vadd.f32 %v6568, %v6763
      %v6899 = vadd.f32 %v6569, %v6767
      %v6900 = vadd.f32 %v6570, %v6769
      %v6901 = vadd.f32 %v6571, %v6773
      %v6902 = vadd.f32 %v6572, %v6775
      %v6903 = vadd.f32 %v6573, %v6779
      %v6904 = vadd.f32 %v6574, %v6781
      %v6905 = vadd.f32 %v6575, %v6785
      %v6906 = vadd.f32 %v6576, %v6787
      %v6907 = vadd.f32 %v6577, %v6791
      %v6908 = vadd.f32 %v6578, %v6793
      %v6909 = vadd.f32 %v6579, %v6797
      %v6910 = vadd.f32 %v6580, %v6799
      %v6911 = vadd.f32 %v6581, %v6803
      %v6912 = vadd.f32 %v6582, %v6805
      %v6913 = vadd.f32 %v6583, %v6809
      %v6914 = vadd.f32 %v6584, %v6811
      %v6915 = vadd.f32 %v6585, %v6815
      %v6916 = vadd.f32 %v6586, %v6817
      %v6917 = vadd.f32 %v6587, %v6821
      %v6918 = vadd.f32 %v6588, %v6823
      %v6919 = vadd.f32 %v6589, %v6827
      %v6920 = vadd.f32 %v6590, %v6829
      %v6921 = vadd.f32 %v6591, %v6833
      %v6922 = vadd.f32 %v6592, %v6835
      %v6923 = vadd.f32 %v6593, %v6839
      %v6924 = vadd.f32 %v6594, %v6841
      %v6925 = vadd.f32 %v6595, %v6845
      %v6926 = vadd.f32 %v6596, %v6847
      %v6927 = vadd.f32 %v6597, %v6851
      %v6928 = vadd.f32 %v6598, %v6853
      %v6929 = vadd.f32 %v6599, %v6857
      %v6930 = vadd.f32 %v6600, %v6859
      %v6931 = vadd.f32 %v6601, %v6863
      %v6932 = vadd.f32 %v6602, %v6865
      %v6933 = vadd.f32 %v6603, %v6869
      %v6934 = vadd.f32 %v6604, %v6871
      %v6935 = vadd.f32 %v6605, %v6875
      %v6936 = vadd.f32 %v6606, %v6877
      %6937 = vst [vmem:[#allocation3] sm:$0xff] %v6879
      %6938 = vst [vmem:[#allocation3 + $0x8] sm:$0xff] %v6880
      %6939 = vst [vmem:[#allocation3 + $0x10] sm:$0xff] %v6881
      %6940 = vst [vmem:[#allocation3 + $0x18] sm:$0xff] %v6882
      %6941 = vst [vmem:[#allocation3 + $0x20] sm:$0xff] %v6883
      %6942 = vst [vmem:[#allocation3 + $0x28] sm:$0xff] %v6884
      %6943 = vst [vmem:[#allocation3 + $0x30] sm:$0xff] %v6885
      %6944 = vst [vmem:[#allocation3 + $0x38] sm:$0xff] %v6886
      %6945 = vst [vmem:[#allocation3 + $0x40] sm:$0xff] %v6887
      %6946 = vst [vmem:[#allocation3 + $0x48] sm:$0xff] %v6888
      %6947 = vst [vmem:[#allocation3 + $0x50] sm:$0xff] %v6889
      %6948 = vst [vmem:[#allocation3 + $0x58] sm:$0xff] %v6890
      %6949 = vst [vmem:[#allocation3 + $0x60] sm:$0xff] %v6891
      %6950 = vst [vmem:[#allocation3 + $0x68] sm:$0xff] %v6892
      %6951 = vst [vmem:[#allocation3 + $0x70] sm:$0xff] %v6893
      %6952 = vst [vmem:[#allocation3 + $0x78] sm:$0xff] %v6894
      %6953 = vst [vmem:[#allocation3 + $0x80] sm:$0xff] %v6895
      %6954 = vst [vmem:[#allocation3 + $0x88] sm:$0xff] %v6896
      %6955 = vst [vmem:[#allocation3 + $0x90] sm:$0xff] %v6897
      %6956 = vst [vmem:[#allocation3 + $0x98] sm:$0xff] %v6898
      %6957 = vst [vmem:[#allocation3 + $0xa0] sm:$0xff] %v6899
      %6958 = vst [vmem:[#allocation3 + $0xa8] sm:$0xff] %v6900
      %6959 = vst [vmem:[#allocation3 + $0xb0] sm:$0xff] %v6901
      %6960 = vst [vmem:[#allocation3 + $0xb8] sm:$0xff] %v6902
      %6961 = vst [vmem:[#allocation3 + $0xc0] sm:$0xff] %v6903
      %6962 = vst [vmem:[#allocation3 + $0xc8] sm:$0xff] %v6904
      %6963 = vst [vmem:[#allocation3 + $0xd0] sm:$0xff] %v6905
      %6964 = vst [vmem:[#allocation3 + $0xd8] sm:$0xff] %v6906
      %6965 = vst [vmem:[#allocation3 + $0xe0] sm:$0xff] %v6907
      %6966 = vst [vmem:[#allocation3 + $0xe8] sm:$0xff] %v6908
      %6967 = vst [vmem:[#allocation3 + $0xf0] sm:$0xff] %v6909
      %6968 = vst [vmem:[#allocation3 + $0xf8] sm:$0xff] %v6910
      %6969 = vst [vmem:[#allocation3 + $0x100] sm:$0xff] %v6911
      %6970 = vst [vmem:[#allocation3 + $0x108] sm:$0xff] %v6912
      %6971 = vst [vmem:[#allocation3 + $0x110] sm:$0xff] %v6913
      %6972 = vst [vmem:[#allocation3 + $0x118] sm:$0xff] %v6914
      %6973 = vst [vmem:[#allocation3 + $0x120] sm:$0xff] %v6915
      %6974 = vst [vmem:[#allocation3 + $0x128] sm:$0xff] %v6916
      %6975 = vst [vmem:[#allocation3 + $0x130] sm:$0xff] %v6917
      %6976 = vst [vmem:[#allocation3 + $0x138] sm:$0xff] %v6918
      %6977 = vst [vmem:[#allocation3 + $0x140] sm:$0xff] %v6919
      %6978 = vst [vmem:[#allocation3 + $0x148] sm:$0xff] %v6920
      %6979 = vst [vmem:[#allocation3 + $0x150] sm:$0xff] %v6921
      %6980 = vst [vmem:[#allocation3 + $0x158] sm:$0xff] %v6922
      %6981 = vst [vmem:[#allocation3 + $0x160] sm:$0xff] %v6923
      %6982 = vst [vmem:[#allocation3 + $0x168] sm:$0xff] %v6924
      %6983 = vst [vmem:[#allocation3 + $0x170] sm:$0xff] %v6925
      %6984 = vst [vmem:[#allocation3 + $0x178] sm:$0xff] %v6926
      %6985 = vst [vmem:[#allocation3 + $0x180] sm:$0xff] %v6927
      %6986 = vst [vmem:[#allocation3 + $0x188] sm:$0xff] %v6928
      %6987 = vst [vmem:[#allocation3 + $0x190] sm:$0xff] %v6929
      %6988 = vst [vmem:[#allocation3 + $0x198] sm:$0xff] %v6930
      %6989 = vst [vmem:[#allocation3 + $0x1a0] sm:$0xff] %v6931
      %6990 = vst [vmem:[#allocation3 + $0x1a8] sm:$0xff] %v6932
      %6991 = vst [vmem:[#allocation3 + $0x1b0] sm:$0xff] %v6933
      %6992 = vst [vmem:[#allocation3 + $0x1b8] sm:$0xff] %v6934
      %6993 = vst [vmem:[#allocation3 + $0x1c0] sm:$0x7f] %v6935
      %6994 = vst [vmem:[#allocation3 + $0x1c8] sm:$0x7f] %v6936
      %v6995 = vld [vmem:[#allocation2 + $0x40] sm:$0xff]
      %v6996 = vld [vmem:[#allocation2 + $0x48] sm:$0xff]
      %v6997 = vld [vmem:[#allocation2 + $0x50] sm:$0xff]
      %v6998 = vld [vmem:[#allocation2 + $0x58] sm:$0xff]
      %v6999 = vld [vmem:[#allocation2 + $0x60] sm:$0xff]
      %v7000 = vld [vmem:[#allocation2 + $0x68] sm:$0xff]
      %v7001 = vld [vmem:[#allocation2 + $0x70] sm:$0xff]
      %v7002 = vld [vmem:[#allocation2 + $0x78] sm:$0xff]
      %v7003 = vld [vmem:[#allocation2 + $0x80] sm:$0xff]
      %v7004 = vld [vmem:[#allocation2 + $0x88] sm:$0xff]
      %v7005 = vld [vmem:[#allocation2 + $0x90] sm:$0xff]
      %v7006 = vld [vmem:[#allocation2 + $0x98] sm:$0xff]
      %v7007 = vld [vmem:[#allocation2 + $0xa0] sm:$0xff]
      %v7008 = vld [vmem:[#allocation2 + $0xa8] sm:$0xff]
      %v7009 = vld [vmem:[#allocation2 + $0xb0] sm:$0xff]
      %v7010 = vld [vmem:[#allocation2 + $0xb8] sm:$0xff]
      %v7011 = vld [vmem:[#allocation2 + $0xc0] sm:$0xff]
      %v7012 = vld [vmem:[#allocation2 + $0xc8] sm:$0xff]
      %v7013 = vld [vmem:[#allocation2 + $0xd0] sm:$0xff]
      %v7014 = vld [vmem:[#allocation2 + $0xd8] sm:$0xff]
      %v7015 = vld [vmem:[#allocation2 + $0xe0] sm:$0xff]
      %v7016 = vld [vmem:[#allocation2 + $0xe8] sm:$0xff]
      %v7017 = vld [vmem:[#allocation2 + $0xf0] sm:$0xff]
      %v7018 = vld [vmem:[#allocation2 + $0xf8] sm:$0xff]
      %v7019 = vld [vmem:[#allocation2 + $0x100] sm:$0xff]
      %v7020 = vld [vmem:[#allocation2 + $0x108] sm:$0xff]
      %v7021 = vld [vmem:[#allocation2 + $0x110] sm:$0xff]
      %v7022 = vld [vmem:[#allocation2 + $0x118] sm:$0xff]
      %v7023 = vld [vmem:[#allocation2 + $0x120] sm:$0x7f]
      %v7024 = vld [vmem:[#allocation3] sm:$0xff]
      %v7025 = vld [vmem:[#allocation3 + $0x8] sm:$0xff]
      %v7026 = vld [vmem:[#allocation3 + $0x10] sm:$0xff]
      %v7027 = vld [vmem:[#allocation3 + $0x18] sm:$0xff]
      %v7028 = vld [vmem:[#allocation3 + $0x20] sm:$0xff]
      %v7029 = vld [vmem:[#allocation3 + $0x28] sm:$0xff]
      %v7030 = vld [vmem:[#allocation3 + $0x30] sm:$0xff]
      %v7031 = vld [vmem:[#allocation3 + $0x38] sm:$0xff]
      %v7032 = vld [vmem:[#allocation3 + $0x40] sm:$0xff]
      %v7033 = vld [vmem:[#allocation3 + $0x48] sm:$0xff]
      %v7034 = vld [vmem:[#allocation3 + $0x50] sm:$0xff]
      %v7035 = vld [vmem:[#allocation3 + $0x58] sm:$0xff]
      %v7036 = vld [vmem:[#allocation3 + $0x60] sm:$0xff]
      %v7037 = vld [vmem:[#allocation3 + $0x68] sm:$0xff]
      %v7038 = vld [vmem:[#allocation3 + $0x70] sm:$0xff]
      %v7039 = vld [vmem:[#allocation3 + $0x78] sm:$0xff]
      %v7040 = vld [vmem:[#allocation3 + $0x80] sm:$0xff]
      %v7041 = vld [vmem:[#allocation3 + $0x88] sm:$0xff]
      %v7042 = vld [vmem:[#allocation3 + $0x90] sm:$0xff]
      %v7043 = vld [vmem:[#allocation3 + $0x98] sm:$0xff]
      %v7044 = vld [vmem:[#allocation3 + $0xa0] sm:$0xff]
      %v7045 = vld [vmem:[#allocation3 + $0xa8] sm:$0xff]
      %v7046 = vld [vmem:[#allocation3 + $0xb0] sm:$0xff]
      %v7047 = vld [vmem:[#allocation3 + $0xb8] sm:$0xff]
      %v7048 = vld [vmem:[#allocation3 + $0xc0] sm:$0xff]
      %v7049 = vld [vmem:[#allocation3 + $0xc8] sm:$0xff]
      %v7050 = vld [vmem:[#allocation3 + $0xd0] sm:$0xff]
      %v7051 = vld [vmem:[#allocation3 + $0xd8] sm:$0xff]
      %v7052 = vld [vmem:[#allocation3 + $0xe0] sm:$0xff]
      %v7053 = vld [vmem:[#allocation3 + $0xe8] sm:$0xff]
      %v7054 = vld [vmem:[#allocation3 + $0xf0] sm:$0xff]
      %v7055 = vld [vmem:[#allocation3 + $0xf8] sm:$0xff]
      %v7056 = vld [vmem:[#allocation3 + $0x100] sm:$0xff]
      %v7057 = vld [vmem:[#allocation3 + $0x108] sm:$0xff]
      %v7058 = vld [vmem:[#allocation3 + $0x110] sm:$0xff]
      %v7059 = vld [vmem:[#allocation3 + $0x118] sm:$0xff]
      %v7060 = vld [vmem:[#allocation3 + $0x120] sm:$0xff]
      %v7061 = vld [vmem:[#allocation3 + $0x128] sm:$0xff]
      %v7062 = vld [vmem:[#allocation3 + $0x130] sm:$0xff]
      %v7063 = vld [vmem:[#allocation3 + $0x138] sm:$0xff]
      %v7064 = vld [vmem:[#allocation3 + $0x140] sm:$0xff]
      %v7065 = vld [vmem:[#allocation3 + $0x148] sm:$0xff]
      %v7066 = vld [vmem:[#allocation3 + $0x150] sm:$0xff]
      %v7067 = vld [vmem:[#allocation3 + $0x158] sm:$0xff]
      %v7068 = vld [vmem:[#allocation3 + $0x160] sm:$0xff]
      %v7069 = vld [vmem:[#allocation3 + $0x168] sm:$0xff]
      %v7070 = vld [vmem:[#allocation3 + $0x170] sm:$0xff]
      %v7071 = vld [vmem:[#allocation3 + $0x178] sm:$0xff]
      %v7072 = vld [vmem:[#allocation3 + $0x180] sm:$0xff]
      %v7073 = vld [vmem:[#allocation3 + $0x188] sm:$0xff]
      %v7074 = vld [vmem:[#allocation3 + $0x190] sm:$0xff]
      %v7075 = vld [vmem:[#allocation3 + $0x198] sm:$0xff]
      %v7076 = vld [vmem:[#allocation3 + $0x1a0] sm:$0xff]
      %v7077 = vld [vmem:[#allocation3 + $0x1a8] sm:$0xff]
      %v7078 = vld [vmem:[#allocation3 + $0x1b0] sm:$0xff]
      %v7079 = vld [vmem:[#allocation3 + $0x1b8] sm:$0xff]
      %v7080 = vld [vmem:[#allocation3 + $0x1c0] sm:$0x7f]
      %v7081 = vld [vmem:[#allocation3 + $0x1c8] sm:$0x7f]
      %s7082 = scalar_lea.vmem %s2, 3328
      %v7083 = vld [vmem:[%s7082] sm:$0xff]
      %v7084 = vld [vmem:[%s7082 + $0x8] sm:$0xff]
      %v7085 = vld [vmem:[%s7082 + $0x10] sm:$0xff]
      %v7086 = vld [vmem:[%s7082 + $0x18] sm:$0xff]
      %v7087 = vld [vmem:[%s7082 + $0x20] sm:$0xff]
      %v7088 = vld [vmem:[%s7082 + $0x28] sm:$0xff]
      %v7089 = vld [vmem:[%s7082 + $0x30] sm:$0xff]
      %v7090 = vld [vmem:[%s7082 + $0x38] sm:$0xff]
      %v7091 = vld [vmem:[%s7082 + $0x40] sm:$0xff]
      %v7092 = vld [vmem:[%s7082 + $0x48] sm:$0xff]
      %v7093 = vld [vmem:[%s7082 + $0x50] sm:$0xff]
      %v7094 = vld [vmem:[%s7082 + $0x58] sm:$0xff]
      %v7095 = vld [vmem:[%s7082 + $0x60] sm:$0xff]
      %v7096 = vld [vmem:[%s7082 + $0x68] sm:$0xff]
      %v7097 = vld [vmem:[%s7082 + $0x70] sm:$0xff]
      %v7098 = vld [vmem:[%s7082 + $0x78] sm:$0xff]
      %v7099 = vld [vmem:[%s7082 + $0x80] sm:$0xff]
      %v7100 = vld [vmem:[%s7082 + $0x88] sm:$0xff]
      %v7101 = vld [vmem:[%s7082 + $0x90] sm:$0xff]
      %v7102 = vld [vmem:[%s7082 + $0x98] sm:$0xff]
      %v7103 = vld [vmem:[%s7082 + $0xa0] sm:$0xff]
      %v7104 = vld [vmem:[%s7082 + $0xa8] sm:$0xff]
      %v7105 = vld [vmem:[%s7082 + $0xb0] sm:$0xff]
      %v7106 = vld [vmem:[%s7082 + $0xb8] sm:$0xff]
      %v7107 = vld [vmem:[%s7082 + $0xc0] sm:$0xff]
      %v7108 = vld [vmem:[%s7082 + $0xc8] sm:$0xff]
      %v7109 = vld [vmem:[%s7082 + $0xd0] sm:$0xff]
      %v7110 = vld [vmem:[%s7082 + $0xd8] sm:$0xff]
      %v7111 = vld [vmem:[%s7082 + $0xe0] sm:$0xff]
      %v7112 = vld [vmem:[%s7082 + $0xe8] sm:$0xff]
      %v7113 = vld [vmem:[%s7082 + $0xf0] sm:$0xff]
      %v7114 = vld [vmem:[%s7082 + $0xf8] sm:$0xff]
      %7115 = vmatprep.subr.mxu0 %v7084
      %7116 = vmatpush1.msra.mxu0 %v7083
      %7117 = vmatprep.subr.mxu0 %v7086
      %7118 = vmatpush1.msra.mxu0 %v7085
      %7119 = vmatprep.subr.mxu0 %v7088
      %7120 = vmatpush1.msra.mxu0 %v7087
      %7121 = vmatprep.subr.mxu0 %v7090
      %7122 = vmatpush1.msra.mxu0 %v7089
      %7123 = vmatprep.subr.mxu0 %v7092
      %7124 = vmatpush1.msra.mxu0 %v7091
      %7125 = vmatprep.subr.mxu0 %v7094
      %7126 = vmatpush1.msra.mxu0 %v7093
      %7127 = vmatprep.subr.mxu0 %v7096
      %7128 = vmatpush1.msra.mxu0 %v7095
      %7129 = vmatprep.subr.mxu0 %v7098
      %7130 = vmatpush1.msra.mxu0 %v7097
      %7131 = vmatprep.subr.mxu0 %v7100
      %7132 = vmatpush1.msra.mxu0 %v7099
      %7133 = vmatprep.subr.mxu0 %v7102
      %7134 = vmatpush1.msra.mxu0 %v7101
      %7135 = vmatprep.subr.mxu0 %v7104
      %7136 = vmatpush1.msra.mxu0 %v7103
      %7137 = vmatprep.subr.mxu0 %v7106
      %7138 = vmatpush1.msra.mxu0 %v7105
      %7139 = vmatprep.subr.mxu0 %v7108
      %7140 = vmatpush1.msra.mxu0 %v7107
      %7141 = vmatprep.subr.mxu0 %v7110
      %7142 = vmatpush1.msra.mxu0 %v7109
      %7143 = vmatprep.subr.mxu0 %v7112
      %7144 = vmatpush1.msra.mxu0 %v7111
      %7145 = vmatprep.subr.mxu0 %v7114
      %7146 = vmatpush1.msra.mxu0 %v7113
      %7147 = vmatprep.subr.mxu0 0.0
      %7148 = vmatpush1.msra.mxu0 0.0
      %7149 = vmatprep.subr.mxu0 0.0
      %7150 = vmatpush1.msra.mxu0 0.0
      %7151 = vmatprep.subr.mxu0 0.0
      %7152 = vmatpush1.msra.mxu0 0.0
      %7153 = vmatprep.subr.mxu0 0.0
      %7154 = vmatpush1.msra.mxu0 0.0
      %7155 = vmatprep.subr.mxu0 0.0
      %7156 = vmatpush1.msra.mxu0 0.0
      %7157 = vmatprep.subr.mxu0 0.0
      %7158 = vmatpush1.msra.mxu0 0.0
      %7159 = vmatprep.subr.mxu0 0.0
      %7160 = vmatpush1.msra.mxu0 0.0
      %7161 = vmatprep.subr.mxu0 0.0
      %7162 = vmatpush1.msra.mxu0 0.0
      %7163 = vmatprep.subr.mxu0 0.0
      %7164 = vmatpush1.msra.mxu0 0.0
      %7165 = vmatprep.subr.mxu0 0.0
      %7166 = vmatpush1.msra.mxu0 0.0
      %7167 = vmatprep.subr.mxu0 0.0
      %7168 = vmatpush1.msra.mxu0 0.0
      %7169 = vmatprep.subr.mxu0 0.0
      %7170 = vmatpush1.msra.mxu0 0.0
      %7171 = vmatprep.subr.mxu0 0.0
      %7172 = vmatpush1.msra.mxu0 0.0
      %7173 = vmatprep.subr.mxu0 0.0
      %7174 = vmatpush1.msra.mxu0 0.0
      %7175 = vmatprep.subr.mxu0 0.0
      %7176 = vmatpush1.msra.mxu0 0.0
      %7177 = vmatprep.subr.mxu0 0.0
      %7178 = vmatpush1.msra.mxu0 0.0
      %7179 = vmatprep.mubr.f32.mxu0 0.0
      %7180 = vmatmul.mubr.f32.gmra.mrb[0].mxu0 %v6995
      %v7181 = vpop.f32.mrb[0].mxu0
      %v7182 = vadd.f32 0.0, %v7181
      %v7183 = vpop.f32.mrb[0].mxu0
      %v7184 = vadd.f32 0.0, %v7183
      %7185 = vmatprep.mubr.f32.mxu0 0.0
      %7186 = vmatmul.mubr.f32.gmra.mrb[0].mxu0 %v6996
      %v7187 = vpop.f32.mrb[0].mxu0
      %v7188 = vadd.f32 0.0, %v7187
      %v7189 = vpop.f32.mrb[0].mxu0
      %v7190 = vadd.f32 0.0, %v7189
      %7191 = vmatprep.mubr.f32.mxu0 0.0
      %7192 = vmatmul.mubr.f32.gmra.mrb[0].mxu0 %v6997
      %v7193 = vpop.f32.mrb[0].mxu0
      %v7194 = vadd.f32 0.0, %v7193
      %v7195 = vpop.f32.mrb[0].mxu0
      %v7196 = vadd.f32 0.0, %v7195
      %7197 = vmatprep.mubr.f32.mxu0 0.0
      %7198 = vmatmul.mubr.f32.gmra.mrb[0].mxu0 %v6998
      %v7199 = vpop.f32.mrb[0].mxu0
      %v7200 = vadd.f32 0.0, %v7199
      %v7201 = vpop.f32.mrb[0].mxu0
      %v7202 = vadd.f32 0.0, %v7201
      %7203 = vmatprep.mubr.f32.mxu0 0.0
      %7204 = vmatmul.mubr.f32.gmra.mrb[0].mxu0 %v6999
      %v7205 = vpop.f32.mrb[0].mxu0
      %v7206 = vadd.f32 0.0, %v7205
      %v7207 = vpop.f32.mrb[0].mxu0
      %v7208 = vadd.f32 0.0, %v7207
      %7209 = vmatprep.mubr.f32.mxu0 0.0
      %7210 = vmatmul.mubr.f32.gmra.mrb[0].mxu0 %v7000
      %v7211 = vpop.f32.mrb[0].mxu0
      %v7212 = vadd.f32 0.0, %v7211
      %v7213 = vpop.f32.mrb[0].mxu0
      %v7214 = vadd.f32 0.0, %v7213
      %7215 = vmatprep.mubr.f32.mxu0 0.0
      %7216 = vmatmul.mubr.f32.gmra.mrb[0].mxu0 %v7001
      %v7217 = vpop.f32.mrb[0].mxu0
      %v7218 = vadd.f32 0.0, %v7217
      %v7219 = vpop.f32.mrb[0].mxu0
      %v7220 = vadd.f32 0.0, %v7219
      %7221 = vmatprep.mubr.f32.mxu0 0.0
      %7222 = vmatmul.mubr.f32.gmra.mrb[0].mxu0 %v7002
      %v7223 = vpop.f32.mrb[0].mxu0
      %v7224 = vadd.f32 0.0, %v7223
      %v7225 = vpop.f32.mrb[0].mxu0
      %v7226 = vadd.f32 0.0, %v7225
      %7227 = vmatprep.mubr.f32.mxu0 0.0
      %7228 = vmatmul.mubr.f32.gmra.mrb[0].mxu0 %v7003
      %v7229 = vpop.f32.mrb[0].mxu0
      %v7230 = vadd.f32 0.0, %v7229
      %v7231 = vpop.f32.mrb[0].mxu0
      %v7232 = vadd.f32 0.0, %v7231
      %7233 = vmatprep.mubr.f32.mxu0 0.0
      %7234 = vmatmul.mubr.f32.gmra.mrb[0].mxu0 %v7004
      %v7235 = vpop.f32.mrb[0].mxu0
      %v7236 = vadd.f32 0.0, %v7235
      %v7237 = vpop.f32.mrb[0].mxu0
      %v7238 = vadd.f32 0.0, %v7237
      %7239 = vmatprep.mubr.f32.mxu0 0.0
      %7240 = vmatmul.mubr.f32.gmra.mrb[0].mxu0 %v7005
      %v7241 = vpop.f32.mrb[0].mxu0
      %v7242 = vadd.f32 0.0, %v7241
      %v7243 = vpop.f32.mrb[0].mxu0
      %v7244 = vadd.f32 0.0, %v7243
      %7245 = vmatprep.mubr.f32.mxu0 0.0
      %7246 = vmatmul.mubr.f32.gmra.mrb[0].mxu0 %v7006
      %v7247 = vpop.f32.mrb[0].mxu0
      %v7248 = vadd.f32 0.0, %v7247
      %v7249 = vpop.f32.mrb[0].mxu0
      %v7250 = vadd.f32 0.0, %v7249
      %7251 = vmatprep.mubr.f32.mxu0 0.0
      %7252 = vmatmul.mubr.f32.gmra.mrb[0].mxu0 %v7007
      %v7253 = vpop.f32.mrb[0].mxu0
      %v7254 = vadd.f32 0.0, %v7253
      %v7255 = vpop.f32.mrb[0].mxu0
      %v7256 = vadd.f32 0.0, %v7255
      %7257 = vmatprep.mubr.f32.mxu0 0.0
      %7258 = vmatmul.mubr.f32.gmra.mrb[0].mxu0 %v7008
      %v7259 = vpop.f32.mrb[0].mxu0
      %v7260 = vadd.f32 0.0, %v7259
      %v7261 = vpop.f32.mrb[0].mxu0
      %v7262 = vadd.f32 0.0, %v7261
      %7263 = vmatprep.mubr.f32.mxu0 0.0
      %7264 = vmatmul.mubr.f32.gmra.mrb[0].mxu0 %v7009
      %v7265 = vpop.f32.mrb[0].mxu0
      %v7266 = vadd.f32 0.0, %v7265
      %v7267 = vpop.f32.mrb[0].mxu0
      %v7268 = vadd.f32 0.0, %v7267
      %7269 = vmatprep.mubr.f32.mxu0 0.0
      %7270 = vmatmul.mubr.f32.gmra.mrb[0].mxu0 %v7010
      %v7271 = vpop.f32.mrb[0].mxu0
      %v7272 = vadd.f32 0.0, %v7271
      %v7273 = vpop.f32.mrb[0].mxu0
      %v7274 = vadd.f32 0.0, %v7273
      %7275 = vmatprep.mubr.f32.mxu0 0.0
      %7276 = vmatmul.mubr.f32.gmra.mrb[0].mxu0 %v7011
      %v7277 = vpop.f32.mrb[0].mxu0
      %v7278 = vadd.f32 0.0, %v7277
      %v7279 = vpop.f32.mrb[0].mxu0
      %v7280 = vadd.f32 0.0, %v7279
      %7281 = vmatprep.mubr.f32.mxu0 0.0
      %7282 = vmatmul.mubr.f32.gmra.mrb[0].mxu0 %v7012
      %v7283 = vpop.f32.mrb[0].mxu0
      %v7284 = vadd.f32 0.0, %v7283
      %v7285 = vpop.f32.mrb[0].mxu0
      %v7286 = vadd.f32 0.0, %v7285
      %7287 = vmatprep.mubr.f32.mxu0 0.0
      %7288 = vmatmul.mubr.f32.gmra.mrb[0].mxu0 %v7013
      %v7289 = vpop.f32.mrb[0].mxu0
      %v7290 = vadd.f32 0.0, %v7289
      %v7291 = vpop.f32.mrb[0].mxu0
      %v7292 = vadd.f32 0.0, %v7291
      %7293 = vmatprep.mubr.f32.mxu0 0.0
      %7294 = vmatmul.mubr.f32.gmra.mrb[0].mxu0 %v7014
      %v7295 = vpop.f32.mrb[0].mxu0
      %v7296 = vadd.f32 0.0, %v7295
      %v7297 = vpop.f32.mrb[0].mxu0
      %v7298 = vadd.f32 0.0, %v7297
      %7299 = vmatprep.mubr.f32.mxu0 0.0
      %7300 = vmatmul.mubr.f32.gmra.mrb[0].mxu0 %v7015
      %v7301 = vpop.f32.mrb[0].mxu0
      %v7302 = vadd.f32 0.0, %v7301
      %v7303 = vpop.f32.mrb[0].mxu0
      %v7304 = vadd.f32 0.0, %v7303
      %7305 = vmatprep.mubr.f32.mxu0 0.0
      %7306 = vmatmul.mubr.f32.gmra.mrb[0].mxu0 %v7016
      %v7307 = vpop.f32.mrb[0].mxu0
      %v7308 = vadd.f32 0.0, %v7307
      %v7309 = vpop.f32.mrb[0].mxu0
      %v7310 = vadd.f32 0.0, %v7309
      %7311 = vmatprep.mubr.f32.mxu0 0.0
      %7312 = vmatmul.mubr.f32.gmra.mrb[0].mxu0 %v7017
      %v7313 = vpop.f32.mrb[0].mxu0
      %v7314 = vadd.f32 0.0, %v7313
      %v7315 = vpop.f32.mrb[0].mxu0
      %v7316 = vadd.f32 0.0, %v7315
      %7317 = vmatprep.mubr.f32.mxu0 0.0
      %7318 = vmatmul.mubr.f32.gmra.mrb[0].mxu0 %v7018
      %v7319 = vpop.f32.mrb[0].mxu0
      %v7320 = vadd.f32 0.0, %v7319
      %v7321 = vpop.f32.mrb[0].mxu0
      %v7322 = vadd.f32 0.0, %v7321
      %7323 = vmatprep.mubr.f32.mxu0 0.0
      %7324 = vmatmul.mubr.f32.gmra.mrb[0].mxu0 %v7019
      %v7325 = vpop.f32.mrb[0].mxu0
      %v7326 = vadd.f32 0.0, %v7325
      %v7327 = vpop.f32.mrb[0].mxu0
      %v7328 = vadd.f32 0.0, %v7327
      %7329 = vmatprep.mubr.f32.mxu0 0.0
      %7330 = vmatmul.mubr.f32.gmra.mrb[0].mxu0 %v7020
      %v7331 = vpop.f32.mrb[0].mxu0
      %v7332 = vadd.f32 0.0, %v7331
      %v7333 = vpop.f32.mrb[0].mxu0
      %v7334 = vadd.f32 0.0, %v7333
      %7335 = vmatprep.mubr.f32.mxu0 0.0
      %7336 = vmatmul.mubr.f32.gmra.mrb[0].mxu0 %v7021
      %v7337 = vpop.f32.mrb[0].mxu0
      %v7338 = vadd.f32 0.0, %v7337
      %v7339 = vpop.f32.mrb[0].mxu0
      %v7340 = vadd.f32 0.0, %v7339
      %7341 = vmatprep.mubr.f32.mxu0 0.0
      %7342 = vmatmul.mubr.f32.gmra.mrb[0].mxu0 %v7022
      %v7343 = vpop.f32.mrb[0].mxu0
      %v7344 = vadd.f32 0.0, %v7343
      %v7345 = vpop.f32.mrb[0].mxu0
      %v7346 = vadd.f32 0.0, %v7345
      %7347 = vmatprep.mubr.f32.mxu0 0.0
      %7348 = vmatmul.mubr.f32.gmra.mrb[0].mxu0 %v7023
      %v7349 = vpop.f32.mrb[0].mxu0
      %v7350 = vadd.f32 0.0, %v7349
      %v7351 = vpop.f32.mrb[0].mxu0
      %v7352 = vadd.f32 0.0, %v7351
      %7353 = vdwg.mxu0
      %v7354 = vadd.f32 %v7024, %v7182
      %v7355 = vadd.f32 %v7025, %v7184
      %v7356 = vadd.f32 %v7026, %v7188
      %v7357 = vadd.f32 %v7027, %v7190
      %v7358 = vadd.f32 %v7028, %v7194
      %v7359 = vadd.f32 %v7029, %v7196
      %v7360 = vadd.f32 %v7030, %v7200
      %v7361 = vadd.f32 %v7031, %v7202
      %v7362 = vadd.f32 %v7032, %v7206
      %v7363 = vadd.f32 %v7033, %v7208
      %v7364 = vadd.f32 %v7034, %v7212
      %v7365 = vadd.f32 %v7035, %v7214
      %v7366 = vadd.f32 %v7036, %v7218
      %v7367 = vadd.f32 %v7037, %v7220
      %v7368 = vadd.f32 %v7038, %v7224
      %v7369 = vadd.f32 %v7039, %v7226
      %v7370 = vadd.f32 %v7040, %v7230
      %v7371 = vadd.f32 %v7041, %v7232
      %v7372 = vadd.f32 %v7042, %v7236
      %v7373 = vadd.f32 %v7043, %v7238
      %v7374 = vadd.f32 %v7044, %v7242
      %v7375 = vadd.f32 %v7045, %v7244
      %v7376 = vadd.f32 %v7046, %v7248
      %v7377 = vadd.f32 %v7047, %v7250
      %v7378 = vadd.f32 %v7048, %v7254
      %v7379 = vadd.f32 %v7049, %v7256
      %v7380 = vadd.f32 %v7050, %v7260
      %v7381 = vadd.f32 %v7051, %v7262
      %v7382 = vadd.f32 %v7052, %v7266
      %v7383 = vadd.f32 %v7053, %v7268
      %v7384 = vadd.f32 %v7054, %v7272
      %v7385 = vadd.f32 %v7055, %v7274
      %v7386 = vadd.f32 %v7056, %v7278
      %v7387 = vadd.f32 %v7057, %v7280
      %v7388 = vadd.f32 %v7058, %v7284
      %v7389 = vadd.f32 %v7059, %v7286
      %v7390 = vadd.f32 %v7060, %v7290
      %v7391 = vadd.f32 %v7061, %v7292
      %v7392 = vadd.f32 %v7062, %v7296
      %v7393 = vadd.f32 %v7063, %v7298
      %v7394 = vadd.f32 %v7064, %v7302
      %v7395 = vadd.f32 %v7065, %v7304
      %v7396 = vadd.f32 %v7066, %v7308
      %v7397 = vadd.f32 %v7067, %v7310
      %v7398 = vadd.f32 %v7068, %v7314
      %v7399 = vadd.f32 %v7069, %v7316
      %v7400 = vadd.f32 %v7070, %v7320
      %v7401 = vadd.f32 %v7071, %v7322
      %v7402 = vadd.f32 %v7072, %v7326
      %v7403 = vadd.f32 %v7073, %v7328
      %v7404 = vadd.f32 %v7074, %v7332
      %v7405 = vadd.f32 %v7075, %v7334
      %v7406 = vadd.f32 %v7076, %v7338
      %v7407 = vadd.f32 %v7077, %v7340
      %v7408 = vadd.f32 %v7078, %v7344
      %v7409 = vadd.f32 %v7079, %v7346
      %v7410 = vadd.f32 %v7080, %v7350
      %v7411 = vadd.f32 %v7081, %v7352
      %7412 = vst [vmem:[#allocation3] sm:$0xff] %v7354
      %7413 = vst [vmem:[#allocation3 + $0x8] sm:$0xff] %v7355
      %7414 = vst [vmem:[#allocation3 + $0x10] sm:$0xff] %v7356
      %7415 = vst [vmem:[#allocation3 + $0x18] sm:$0xff] %v7357
      %7416 = vst [vmem:[#allocation3 + $0x20] sm:$0xff] %v7358
      %7417 = vst [vmem:[#allocation3 + $0x28] sm:$0xff] %v7359
      %7418 = vst [vmem:[#allocation3 + $0x30] sm:$0xff] %v7360
      %7419 = vst [vmem:[#allocation3 + $0x38] sm:$0xff] %v7361
      %7420 = vst [vmem:[#allocation3 + $0x40] sm:$0xff] %v7362
      %7421 = vst [vmem:[#allocation3 + $0x48] sm:$0xff] %v7363
      %7422 = vst [vmem:[#allocation3 + $0x50] sm:$0xff] %v7364
      %7423 = vst [vmem:[#allocation3 + $0x58] sm:$0xff] %v7365
      %7424 = vst [vmem:[#allocation3 + $0x60] sm:$0xff] %v7366
      %7425 = vst [vmem:[#allocation3 + $0x68] sm:$0xff] %v7367
      %7426 = vst [vmem:[#allocation3 + $0x70] sm:$0xff] %v7368
      %7427 = vst [vmem:[#allocation3 + $0x78] sm:$0xff] %v7369
      %7428 = vst [vmem:[#allocation3 + $0x80] sm:$0xff] %v7370
      %7429 = vst [vmem:[#allocation3 + $0x88] sm:$0xff] %v7371
      %7430 = vst [vmem:[#allocation3 + $0x90] sm:$0xff] %v7372
      %7431 = vst [vmem:[#allocation3 + $0x98] sm:$0xff] %v7373
      %7432 = vst [vmem:[#allocation3 + $0xa0] sm:$0xff] %v7374
      %7433 = vst [vmem:[#allocation3 + $0xa8] sm:$0xff] %v7375
      %7434 = vst [vmem:[#allocation3 + $0xb0] sm:$0xff] %v7376
      %7435 = vst [vmem:[#allocation3 + $0xb8] sm:$0xff] %v7377
      %7436 = vst [vmem:[#allocation3 + $0xc0] sm:$0xff] %v7378
      %7437 = vst [vmem:[#allocation3 + $0xc8] sm:$0xff] %v7379
      %7438 = vst [vmem:[#allocation3 + $0xd0] sm:$0xff] %v7380
      %7439 = vst [vmem:[#allocation3 + $0xd8] sm:$0xff] %v7381
      %7440 = vst [vmem:[#allocation3 + $0xe0] sm:$0xff] %v7382
      %7441 = vst [vmem:[#allocation3 + $0xe8] sm:$0xff] %v7383
      %7442 = vst [vmem:[#allocation3 + $0xf0] sm:$0xff] %v7384
      %7443 = vst [vmem:[#allocation3 + $0xf8] sm:$0xff] %v7385
      %7444 = vst [vmem:[#allocation3 + $0x100] sm:$0xff] %v7386
      %7445 = vst [vmem:[#allocation3 + $0x108] sm:$0xff] %v7387
      %7446 = vst [vmem:[#allocation3 + $0x110] sm:$0xff] %v7388
      %7447 = vst [vmem:[#allocation3 + $0x118] sm:$0xff] %v7389
      %7448 = vst [vmem:[#allocation3 + $0x120] sm:$0xff] %v7390
      %7449 = vst [vmem:[#allocation3 + $0x128] sm:$0xff] %v7391
      %7450 = vst [vmem:[#allocation3 + $0x130] sm:$0xff] %v7392
      %7451 = vst [vmem:[#allocation3 + $0x138] sm:$0xff] %v7393
      %7452 = vst [vmem:[#allocation3 + $0x140] sm:$0xff] %v7394
      %7453 = vst [vmem:[#allocation3 + $0x148] sm:$0xff] %v7395
      %7454 = vst [vmem:[#allocation3 + $0x150] sm:$0xff] %v7396
      %7455 = vst [vmem:[#allocation3 + $0x158] sm:$0xff] %v7397
      %7456 = vst [vmem:[#allocation3 + $0x160] sm:$0xff] %v7398
      %7457 = vst [vmem:[#allocation3 + $0x168] sm:$0xff] %v7399
      %7458 = vst [vmem:[#allocation3 + $0x170] sm:$0xff] %v7400
      %7459 = vst [vmem:[#allocation3 + $0x178] sm:$0xff] %v7401
      %7460 = vst [vmem:[#allocation3 + $0x180] sm:$0xff] %v7402
      %7461 = vst [vmem:[#allocation3 + $0x188] sm:$0xff] %v7403
      %7462 = vst [vmem:[#allocation3 + $0x190] sm:$0xff] %v7404
      %7463 = vst [vmem:[#allocation3 + $0x198] sm:$0xff] %v7405
      %7464 = vst [vmem:[#allocation3 + $0x1a0] sm:$0xff] %v7406
      %7465 = vst [vmem:[#allocation3 + $0x1a8] sm:$0xff] %v7407
      %7466 = vst [vmem:[#allocation3 + $0x1b0] sm:$0xff] %v7408
      %7467 = vst [vmem:[#allocation3 + $0x1b8] sm:$0xff] %v7409
      %7468 = vst [vmem:[#allocation3 + $0x1c0] sm:$0x7f] %v7410
      %7469 = vst [vmem:[#allocation3 + $0x1c8] sm:$0x7f] %v7411
      %v7470 = vld [vmem:[#allocation2 + $0x41] sm:$0xff]
      %v7471 = vld [vmem:[#allocation2 + $0x49] sm:$0xff]
      %v7472 = vld [vmem:[#allocation2 + $0x51] sm:$0xff]
      %v7473 = vld [vmem:[#allocation2 + $0x59] sm:$0xff]
      %v7474 = vld [vmem:[#allocation2 + $0x61] sm:$0xff]
      %v7475 = vld [vmem:[#allocation2 + $0x69] sm:$0xff]
      %v7476 = vld [vmem:[#allocation2 + $0x71] sm:$0xff]
      %v7477 = vld [vmem:[#allocation2 + $0x79] sm:$0xff]
      %v7478 = vld [vmem:[#allocation2 + $0x81] sm:$0xff]
      %v7479 = vld [vmem:[#allocation2 + $0x89] sm:$0xff]
      %v7480 = vld [vmem:[#allocation2 + $0x91] sm:$0xff]
      %v7481 = vld [vmem:[#allocation2 + $0x99] sm:$0xff]
      %v7482 = vld [vmem:[#allocation2 + $0xa1] sm:$0xff]
      %v7483 = vld [vmem:[#allocation2 + $0xa9] sm:$0xff]
      %v7484 = vld [vmem:[#allocation2 + $0xb1] sm:$0xff]
      %v7485 = vld [vmem:[#allocation2 + $0xb9] sm:$0xff]
      %v7486 = vld [vmem:[#allocation2 + $0xc1] sm:$0xff]
      %v7487 = vld [vmem:[#allocation2 + $0xc9] sm:$0xff]
      %v7488 = vld [vmem:[#allocation2 + $0xd1] sm:$0xff]
      %v7489 = vld [vmem:[#allocation2 + $0xd9] sm:$0xff]
      %v7490 = vld [vmem:[#allocation2 + $0xe1] sm:$0xff]
      %v7491 = vld [vmem:[#allocation2 + $0xe9] sm:$0xff]
      %v7492 = vld [vmem:[#allocation2 + $0xf1] sm:$0xff]
      %v7493 = vld [vmem:[#allocation2 + $0xf9] sm:$0xff]
      %v7494 = vld [vmem:[#allocation2 + $0x101] sm:$0xff]
      %v7495 = vld [vmem:[#allocation2 + $0x109] sm:$0xff]
      %v7496 = vld [vmem:[#allocation2 + $0x111] sm:$0xff]
      %v7497 = vld [vmem:[#allocation2 + $0x119] sm:$0xff]
      %v7498 = vld [vmem:[#allocation2 + $0x121] sm:$0x7f]
      %v7499 = vld [vmem:[#allocation3] sm:$0xff]
      %v7500 = vld [vmem:[#allocation3 + $0x8] sm:$0xff]
      %v7501 = vld [vmem:[#allocation3 + $0x10] sm:$0xff]
      %v7502 = vld [vmem:[#allocation3 + $0x18] sm:$0xff]
      %v7503 = vld [vmem:[#allocation3 + $0x20] sm:$0xff]
      %v7504 = vld [vmem:[#allocation3 + $0x28] sm:$0xff]
      %v7505 = vld [vmem:[#allocation3 + $0x30] sm:$0xff]
      %v7506 = vld [vmem:[#allocation3 + $0x38] sm:$0xff]
      %v7507 = vld [vmem:[#allocation3 + $0x40] sm:$0xff]
      %v7508 = vld [vmem:[#allocation3 + $0x48] sm:$0xff]
      %v7509 = vld [vmem:[#allocation3 + $0x50] sm:$0xff]
      %v7510 = vld [vmem:[#allocation3 + $0x58] sm:$0xff]
      %v7511 = vld [vmem:[#allocation3 + $0x60] sm:$0xff]
      %v7512 = vld [vmem:[#allocation3 + $0x68] sm:$0xff]
      %v7513 = vld [vmem:[#allocation3 + $0x70] sm:$0xff]
      %v7514 = vld [vmem:[#allocation3 + $0x78] sm:$0xff]
      %v7515 = vld [vmem:[#allocation3 + $0x80] sm:$0xff]
      %v7516 = vld [vmem:[#allocation3 + $0x88] sm:$0xff]
      %v7517 = vld [vmem:[#allocation3 + $0x90] sm:$0xff]
      %v7518 = vld [vmem:[#allocation3 + $0x98] sm:$0xff]
      %v7519 = vld [vmem:[#allocation3 + $0xa0] sm:$0xff]
      %v7520 = vld [vmem:[#allocation3 + $0xa8] sm:$0xff]
      %v7521 = vld [vmem:[#allocation3 + $0xb0] sm:$0xff]
      %v7522 = vld [vmem:[#allocation3 + $0xb8] sm:$0xff]
      %v7523 = vld [vmem:[#allocation3 + $0xc0] sm:$0xff]
      %v7524 = vld [vmem:[#allocation3 + $0xc8] sm:$0xff]
      %v7525 = vld [vmem:[#allocation3 + $0xd0] sm:$0xff]
      %v7526 = vld [vmem:[#allocation3 + $0xd8] sm:$0xff]
      %v7527 = vld [vmem:[#allocation3 + $0xe0] sm:$0xff]
      %v7528 = vld [vmem:[#allocation3 + $0xe8] sm:$0xff]
      %v7529 = vld [vmem:[#allocation3 + $0xf0] sm:$0xff]
      %v7530 = vld [vmem:[#allocation3 + $0xf8] sm:$0xff]
      %v7531 = vld [vmem:[#allocation3 + $0x100] sm:$0xff]
      %v7532 = vld [vmem:[#allocation3 + $0x108] sm:$0xff]
      %v7533 = vld [vmem:[#allocation3 + $0x110] sm:$0xff]
      %v7534 = vld [vmem:[#allocation3 + $0x118] sm:$0xff]
      %v7535 = vld [vmem:[#allocation3 + $0x120] sm:$0xff]
      %v7536 = vld [vmem:[#allocation3 + $0x128] sm:$0xff]
      %v7537 = vld [vmem:[#allocation3 + $0x130] sm:$0xff]
      %v7538 = vld [vmem:[#allocation3 + $0x138] sm:$0xff]
      %v7539 = vld [vmem:[#allocation3 + $0x140] sm:$0xff]
      %v7540 = vld [vmem:[#allocation3 + $0x148] sm:$0xff]
      %v7541 = vld [vmem:[#allocation3 + $0x150] sm:$0xff]
      %v7542 = vld [vmem:[#allocation3 + $0x158] sm:$0xff]
      %v7543 = vld [vmem:[#allocation3 + $0x160] sm:$0xff]
      %v7544 = vld [vmem:[#allocation3 + $0x168] sm:$0xff]
      %v7545 = vld [vmem:[#allocation3 + $0x170] sm:$0xff]
      %v7546 = vld [vmem:[#allocation3 + $0x178] sm:$0xff]
      %v7547 = vld [vmem:[#allocation3 + $0x180] sm:$0xff]
      %v7548 = vld [vmem:[#allocation3 + $0x188] sm:$0xff]
      %v7549 = vld [vmem:[#allocation3 + $0x190] sm:$0xff]
      %v7550 = vld [vmem:[#allocation3 + $0x198] sm:$0xff]
      %v7551 = vld [vmem:[#allocation3 + $0x1a0] sm:$0xff]
      %v7552 = vld [vmem:[#allocation3 + $0x1a8] sm:$0xff]
      %v7553 = vld [vmem:[#allocation3 + $0x1b0] sm:$0xff]
      %v7554 = vld [vmem:[#allocation3 + $0x1b8] sm:$0xff]
      %v7555 = vld [vmem:[#allocation3 + $0x1c0] sm:$0x7f]
      %v7556 = vld [vmem:[#allocation3 + $0x1c8] sm:$0x7f]
      %s7557 = scalar_lea.vmem %s2, 3584
      %v7558 = vld [vmem:[%s7557] sm:$0xff]
      %v7559 = vld [vmem:[%s7557 + $0x8] sm:$0xff]
      %v7560 = vld [vmem:[%s7557 + $0x10] sm:$0xff]
      %v7561 = vld [vmem:[%s7557 + $0x18] sm:$0xff]
      %v7562 = vld [vmem:[%s7557 + $0x20] sm:$0xff]
      %v7563 = vld [vmem:[%s7557 + $0x28] sm:$0xff]
      %v7564 = vld [vmem:[%s7557 + $0x30] sm:$0xff]
      %v7565 = vld [vmem:[%s7557 + $0x38] sm:$0xff]
      %v7566 = vld [vmem:[%s7557 + $0x40] sm:$0xff]
      %v7567 = vld [vmem:[%s7557 + $0x48] sm:$0xff]
      %v7568 = vld [vmem:[%s7557 + $0x50] sm:$0xff]
      %v7569 = vld [vmem:[%s7557 + $0x58] sm:$0xff]
      %v7570 = vld [vmem:[%s7557 + $0x60] sm:$0xff]
      %v7571 = vld [vmem:[%s7557 + $0x68] sm:$0xff]
      %v7572 = vld [vmem:[%s7557 + $0x70] sm:$0xff]
      %v7573 = vld [vmem:[%s7557 + $0x78] sm:$0xff]
      %v7574 = vld [vmem:[%s7557 + $0x80] sm:$0xff]
      %v7575 = vld [vmem:[%s7557 + $0x88] sm:$0xff]
      %v7576 = vld [vmem:[%s7557 + $0x90] sm:$0xff]
      %v7577 = vld [vmem:[%s7557 + $0x98] sm:$0xff]
      %v7578 = vld [vmem:[%s7557 + $0xa0] sm:$0xff]
      %v7579 = vld [vmem:[%s7557 + $0xa8] sm:$0xff]
      %v7580 = vld [vmem:[%s7557 + $0xb0] sm:$0xff]
      %v7581 = vld [vmem:[%s7557 + $0xb8] sm:$0xff]
      %v7582 = vld [vmem:[%s7557 + $0xc0] sm:$0xff]
      %v7583 = vld [vmem:[%s7557 + $0xc8] sm:$0xff]
      %v7584 = vld [vmem:[%s7557 + $0xd0] sm:$0xff]
      %v7585 = vld [vmem:[%s7557 + $0xd8] sm:$0xff]
      %v7586 = vld [vmem:[%s7557 + $0xe0] sm:$0xff]
      %v7587 = vld [vmem:[%s7557 + $0xe8] sm:$0xff]
      %v7588 = vld [vmem:[%s7557 + $0xf0] sm:$0xff]
      %v7589 = vld [vmem:[%s7557 + $0xf8] sm:$0xff]
      %7590 = vmatprep.subr.mxu0 %v7559
      %7591 = vmatpush1.msra.mxu0 %v7558
      %7592 = vmatprep.subr.mxu0 %v7561
      %7593 = vmatpush1.msra.mxu0 %v7560
      %7594 = vmatprep.subr.mxu0 %v7563
      %7595 = vmatpush1.msra.mxu0 %v7562
      %7596 = vmatprep.subr.mxu0 %v7565
      %7597 = vmatpush1.msra.mxu0 %v7564
      %7598 = vmatprep.subr.mxu0 %v7567
      %7599 = vmatpush1.msra.mxu0 %v7566
      %7600 = vmatprep.subr.mxu0 %v7569
      %7601 = vmatpush1.msra.mxu0 %v7568
      %7602 = vmatprep.subr.mxu0 %v7571
      %7603 = vmatpush1.msra.mxu0 %v7570
      %7604 = vmatprep.subr.mxu0 %v7573
      %7605 = vmatpush1.msra.mxu0 %v7572
      %7606 = vmatprep.subr.mxu0 %v7575
      %7607 = vmatpush1.msra.mxu0 %v7574
      %7608 = vmatprep.subr.mxu0 %v7577
      %7609 = vmatpush1.msra.mxu0 %v7576
      %7610 = vmatprep.subr.mxu0 %v7579
      %7611 = vmatpush1.msra.mxu0 %v7578
      %7612 = vmatprep.subr.mxu0 %v7581
      %7613 = vmatpush1.msra.mxu0 %v7580
      %7614 = vmatprep.subr.mxu0 %v7583
      %7615 = vmatpush1.msra.mxu0 %v7582
      %7616 = vmatprep.subr.mxu0 %v7585
      %7617 = vmatpush1.msra.mxu0 %v7584
      %7618 = vmatprep.subr.mxu0 %v7587
      %7619 = vmatpush1.msra.mxu0 %v7586
      %7620 = vmatprep.subr.mxu0 %v7589
      %7621 = vmatpush1.msra.mxu0 %v7588
      %7622 = vmatprep.subr.mxu0 0.0
      %7623 = vmatpush1.msra.mxu0 0.0
      %7624 = vmatprep.subr.mxu0 0.0
      %7625 = vmatpush1.msra.mxu0 0.0
      %7626 = vmatprep.subr.mxu0 0.0
      %7627 = vmatpush1.msra.mxu0 0.0
      %7628 = vmatprep.subr.mxu0 0.0
      %7629 = vmatpush1.msra.mxu0 0.0
      %7630 = vmatprep.subr.mxu0 0.0
      %7631 = vmatpush1.msra.mxu0 0.0
      %7632 = vmatprep.subr.mxu0 0.0
      %7633 = vmatpush1.msra.mxu0 0.0
      %7634 = vmatprep.subr.mxu0 0.0
      %7635 = vmatpush1.msra.mxu0 0.0
      %7636 = vmatprep.subr.mxu0 0.0
      %7637 = vmatpush1.msra.mxu0 0.0
      %7638 = vmatprep.subr.mxu0 0.0
      %7639 = vmatpush1.msra.mxu0 0.0
      %7640 = vmatprep.subr.mxu0 0.0
      %7641 = vmatpush1.msra.mxu0 0.0
      %7642 = vmatprep.subr.mxu0 0.0
      %7643 = vmatpush1.msra.mxu0 0.0
      %7644 = vmatprep.subr.mxu0 0.0
      %7645 = vmatpush1.msra.mxu0 0.0
      %7646 = vmatprep.subr.mxu0 0.0
      %7647 = vmatpush1.msra.mxu0 0.0
      %7648 = vmatprep.subr.mxu0 0.0
      %7649 = vmatpush1.msra.mxu0 0.0
      %7650 = vmatprep.subr.mxu0 0.0
      %7651 = vmatpush1.msra.mxu0 0.0
      %7652 = vmatprep.subr.mxu0 0.0
      %7653 = vmatpush1.msra.mxu0 0.0
      %7654 = vmatprep.mubr.f32.mxu0 0.0
      %7655 = vmatmul.mubr.f32.gmra.mrb[0].mxu0 %v7470
      %v7656 = vpop.f32.mrb[0].mxu0
      %v7657 = vadd.f32 0.0, %v7656
      %v7658 = vpop.f32.mrb[0].mxu0
      %v7659 = vadd.f32 0.0, %v7658
      %7660 = vmatprep.mubr.f32.mxu0 0.0
      %7661 = vmatmul.mubr.f32.gmra.mrb[0].mxu0 %v7471
      %v7662 = vpop.f32.mrb[0].mxu0
      %v7663 = vadd.f32 0.0, %v7662
      %v7664 = vpop.f32.mrb[0].mxu0
      %v7665 = vadd.f32 0.0, %v7664
      %7666 = vmatprep.mubr.f32.mxu0 0.0
      %7667 = vmatmul.mubr.f32.gmra.mrb[0].mxu0 %v7472
      %v7668 = vpop.f32.mrb[0].mxu0
      %v7669 = vadd.f32 0.0, %v7668
      %v7670 = vpop.f32.mrb[0].mxu0
      %v7671 = vadd.f32 0.0, %v7670
      %7672 = vmatprep.mubr.f32.mxu0 0.0
      %7673 = vmatmul.mubr.f32.gmra.mrb[0].mxu0 %v7473
      %v7674 = vpop.f32.mrb[0].mxu0
      %v7675 = vadd.f32 0.0, %v7674
      %v7676 = vpop.f32.mrb[0].mxu0
      %v7677 = vadd.f32 0.0, %v7676
      %7678 = vmatprep.mubr.f32.mxu0 0.0
      %7679 = vmatmul.mubr.f32.gmra.mrb[0].mxu0 %v7474
      %v7680 = vpop.f32.mrb[0].mxu0
      %v7681 = vadd.f32 0.0, %v7680
      %v7682 = vpop.f32.mrb[0].mxu0
      %v7683 = vadd.f32 0.0, %v7682
      %7684 = vmatprep.mubr.f32.mxu0 0.0
      %7685 = vmatmul.mubr.f32.gmra.mrb[0].mxu0 %v7475
      %v7686 = vpop.f32.mrb[0].mxu0
      %v7687 = vadd.f32 0.0, %v7686
      %v7688 = vpop.f32.mrb[0].mxu0
      %v7689 = vadd.f32 0.0, %v7688
      %7690 = vmatprep.mubr.f32.mxu0 0.0
      %7691 = vmatmul.mubr.f32.gmra.mrb[0].mxu0 %v7476
      %v7692 = vpop.f32.mrb[0].mxu0
      %v7693 = vadd.f32 0.0, %v7692
      %v7694 = vpop.f32.mrb[0].mxu0
      %v7695 = vadd.f32 0.0, %v7694
      %7696 = vmatprep.mubr.f32.mxu0 0.0
      %7697 = vmatmul.mubr.f32.gmra.mrb[0].mxu0 %v7477
      %v7698 = vpop.f32.mrb[0].mxu0
      %v7699 = vadd.f32 0.0, %v7698
      %v7700 = vpop.f32.mrb[0].mxu0
      %v7701 = vadd.f32 0.0, %v7700
      %7702 = vmatprep.mubr.f32.mxu0 0.0
      %7703 = vmatmul.mubr.f32.gmra.mrb[0].mxu0 %v7478
      %v7704 = vpop.f32.mrb[0].mxu0
      %v7705 = vadd.f32 0.0, %v7704
      %v7706 = vpop.f32.mrb[0].mxu0
      %v7707 = vadd.f32 0.0, %v7706
      %7708 = vmatprep.mubr.f32.mxu0 0.0
      %7709 = vmatmul.mubr.f32.gmra.mrb[0].mxu0 %v7479
      %v7710 = vpop.f32.mrb[0].mxu0
      %v7711 = vadd.f32 0.0, %v7710
      %v7712 = vpop.f32.mrb[0].mxu0
      %v7713 = vadd.f32 0.0, %v7712
      %7714 = vmatprep.mubr.f32.mxu0 0.0
      %7715 = vmatmul.mubr.f32.gmra.mrb[0].mxu0 %v7480
      %v7716 = vpop.f32.mrb[0].mxu0
      %v7717 = vadd.f32 0.0, %v7716
      %v7718 = vpop.f32.mrb[0].mxu0
      %v7719 = vadd.f32 0.0, %v7718
      %7720 = vmatprep.mubr.f32.mxu0 0.0
      %7721 = vmatmul.mubr.f32.gmra.mrb[0].mxu0 %v7481
      %v7722 = vpop.f32.mrb[0].mxu0
      %v7723 = vadd.f32 0.0, %v7722
      %v7724 = vpop.f32.mrb[0].mxu0
      %v7725 = vadd.f32 0.0, %v7724
      %7726 = vmatprep.mubr.f32.mxu0 0.0
      %7727 = vmatmul.mubr.f32.gmra.mrb[0].mxu0 %v7482
      %v7728 = vpop.f32.mrb[0].mxu0
      %v7729 = vadd.f32 0.0, %v7728
      %v7730 = vpop.f32.mrb[0].mxu0
      %v7731 = vadd.f32 0.0, %v7730
      %7732 = vmatprep.mubr.f32.mxu0 0.0
      %7733 = vmatmul.mubr.f32.gmra.mrb[0].mxu0 %v7483
      %v7734 = vpop.f32.mrb[0].mxu0
      %v7735 = vadd.f32 0.0, %v7734
      %v7736 = vpop.f32.mrb[0].mxu0
      %v7737 = vadd.f32 0.0, %v7736
      %7738 = vmatprep.mubr.f32.mxu0 0.0
      %7739 = vmatmul.mubr.f32.gmra.mrb[0].mxu0 %v7484
      %v7740 = vpop.f32.mrb[0].mxu0
      %v7741 = vadd.f32 0.0, %v7740
      %v7742 = vpop.f32.mrb[0].mxu0
      %v7743 = vadd.f32 0.0, %v7742
      %7744 = vmatprep.mubr.f32.mxu0 0.0
      %7745 = vmatmul.mubr.f32.gmra.mrb[0].mxu0 %v7485
      %v7746 = vpop.f32.mrb[0].mxu0
      %v7747 = vadd.f32 0.0, %v7746
      %v7748 = vpop.f32.mrb[0].mxu0
      %v7749 = vadd.f32 0.0, %v7748
      %7750 = vmatprep.mubr.f32.mxu0 0.0
      %7751 = vmatmul.mubr.f32.gmra.mrb[0].mxu0 %v7486
      %v7752 = vpop.f32.mrb[0].mxu0
      %v7753 = vadd.f32 0.0, %v7752
      %v7754 = vpop.f32.mrb[0].mxu0
      %v7755 = vadd.f32 0.0, %v7754
      %7756 = vmatprep.mubr.f32.mxu0 0.0
      %7757 = vmatmul.mubr.f32.gmra.mrb[0].mxu0 %v7487
      %v7758 = vpop.f32.mrb[0].mxu0
      %v7759 = vadd.f32 0.0, %v7758
      %v7760 = vpop.f32.mrb[0].mxu0
      %v7761 = vadd.f32 0.0, %v7760
      %7762 = vmatprep.mubr.f32.mxu0 0.0
      %7763 = vmatmul.mubr.f32.gmra.mrb[0].mxu0 %v7488
      %v7764 = vpop.f32.mrb[0].mxu0
      %v7765 = vadd.f32 0.0, %v7764
      %v7766 = vpop.f32.mrb[0].mxu0
      %v7767 = vadd.f32 0.0, %v7766
      %7768 = vmatprep.mubr.f32.mxu0 0.0
      %7769 = vmatmul.mubr.f32.gmra.mrb[0].mxu0 %v7489
      %v7770 = vpop.f32.mrb[0].mxu0
      %v7771 = vadd.f32 0.0, %v7770
      %v7772 = vpop.f32.mrb[0].mxu0
      %v7773 = vadd.f32 0.0, %v7772
      %7774 = vmatprep.mubr.f32.mxu0 0.0
      %7775 = vmatmul.mubr.f32.gmra.mrb[0].mxu0 %v7490
      %v7776 = vpop.f32.mrb[0].mxu0
      %v7777 = vadd.f32 0.0, %v7776
      %v7778 = vpop.f32.mrb[0].mxu0
      %v7779 = vadd.f32 0.0, %v7778
      %7780 = vmatprep.mubr.f32.mxu0 0.0
      %7781 = vmatmul.mubr.f32.gmra.mrb[0].mxu0 %v7491
      %v7782 = vpop.f32.mrb[0].mxu0
      %v7783 = vadd.f32 0.0, %v7782
      %v7784 = vpop.f32.mrb[0].mxu0
      %v7785 = vadd.f32 0.0, %v7784
      %7786 = vmatprep.mubr.f32.mxu0 0.0
      %7787 = vmatmul.mubr.f32.gmra.mrb[0].mxu0 %v7492
      %v7788 = vpop.f32.mrb[0].mxu0
      %v7789 = vadd.f32 0.0, %v7788
      %v7790 = vpop.f32.mrb[0].mxu0
      %v7791 = vadd.f32 0.0, %v7790
      %7792 = vmatprep.mubr.f32.mxu0 0.0
      %7793 = vmatmul.mubr.f32.gmra.mrb[0].mxu0 %v7493
      %v7794 = vpop.f32.mrb[0].mxu0
      %v7795 = vadd.f32 0.0, %v7794
      %v7796 = vpop.f32.mrb[0].mxu0
      %v7797 = vadd.f32 0.0, %v7796
      %7798 = vmatprep.mubr.f32.mxu0 0.0
      %7799 = vmatmul.mubr.f32.gmra.mrb[0].mxu0 %v7494
      %v7800 = vpop.f32.mrb[0].mxu0
      %v7801 = vadd.f32 0.0, %v7800
      %v7802 = vpop.f32.mrb[0].mxu0
      %v7803 = vadd.f32 0.0, %v7802
      %7804 = vmatprep.mubr.f32.mxu0 0.0
      %7805 = vmatmul.mubr.f32.gmra.mrb[0].mxu0 %v7495
      %v7806 = vpop.f32.mrb[0].mxu0
      %v7807 = vadd.f32 0.0, %v7806
      %v7808 = vpop.f32.mrb[0].mxu0
      %v7809 = vadd.f32 0.0, %v7808
      %7810 = vmatprep.mubr.f32.mxu0 0.0
      %7811 = vmatmul.mubr.f32.gmra.mrb[0].mxu0 %v7496
      %v7812 = vpop.f32.mrb[0].mxu0
      %v7813 = vadd.f32 0.0, %v7812
      %v7814 = vpop.f32.mrb[0].mxu0
      %v7815 = vadd.f32 0.0, %v7814
      %7816 = vmatprep.mubr.f32.mxu0 0.0
      %7817 = vmatmul.mubr.f32.gmra.mrb[0].mxu0 %v7497
      %v7818 = vpop.f32.mrb[0].mxu0
      %v7819 = vadd.f32 0.0, %v7818
      %v7820 = vpop.f32.mrb[0].mxu0
      %v7821 = vadd.f32 0.0, %v7820
      %7822 = vmatprep.mubr.f32.mxu0 0.0
      %7823 = vmatmul.mubr.f32.gmra.mrb[0].mxu0 %v7498
      %v7824 = vpop.f32.mrb[0].mxu0
      %v7825 = vadd.f32 0.0, %v7824
      %v7826 = vpop.f32.mrb[0].mxu0
      %v7827 = vadd.f32 0.0, %v7826
      %7828 = vdwg.mxu0
      %v7829 = vadd.f32 %v7499, %v7657
      %v7830 = vadd.f32 %v7500, %v7659
      %v7831 = vadd.f32 %v7501, %v7663
      %v7832 = vadd.f32 %v7502, %v7665
      %v7833 = vadd.f32 %v7503, %v7669
      %v7834 = vadd.f32 %v7504, %v7671
      %v7835 = vadd.f32 %v7505, %v7675
      %v7836 = vadd.f32 %v7506, %v7677
      %v7837 = vadd.f32 %v7507, %v7681
      %v7838 = vadd.f32 %v7508, %v7683
      %v7839 = vadd.f32 %v7509, %v7687
      %v7840 = vadd.f32 %v7510, %v7689
      %v7841 = vadd.f32 %v7511, %v7693
      %v7842 = vadd.f32 %v7512, %v7695
      %v7843 = vadd.f32 %v7513, %v7699
      %v7844 = vadd.f32 %v7514, %v7701
      %v7845 = vadd.f32 %v7515, %v7705
      %v7846 = vadd.f32 %v7516, %v7707
      %v7847 = vadd.f32 %v7517, %v7711
      %v7848 = vadd.f32 %v7518, %v7713
      %v7849 = vadd.f32 %v7519, %v7717
      %v7850 = vadd.f32 %v7520, %v7719
      %v7851 = vadd.f32 %v7521, %v7723
      %v7852 = vadd.f32 %v7522, %v7725
      %v7853 = vadd.f32 %v7523, %v7729
      %v7854 = vadd.f32 %v7524, %v7731
      %v7855 = vadd.f32 %v7525, %v7735
      %v7856 = vadd.f32 %v7526, %v7737
      %v7857 = vadd.f32 %v7527, %v7741
      %v7858 = vadd.f32 %v7528, %v7743
      %v7859 = vadd.f32 %v7529, %v7747
      %v7860 = vadd.f32 %v7530, %v7749
      %v7861 = vadd.f32 %v7531, %v7753
      %v7862 = vadd.f32 %v7532, %v7755
      %v7863 = vadd.f32 %v7533, %v7759
      %v7864 = vadd.f32 %v7534, %v7761
      %v7865 = vadd.f32 %v7535, %v7765
      %v7866 = vadd.f32 %v7536, %v7767
      %v7867 = vadd.f32 %v7537, %v7771
      %v7868 = vadd.f32 %v7538, %v7773
      %v7869 = vadd.f32 %v7539, %v7777
      %v7870 = vadd.f32 %v7540, %v7779
      %v7871 = vadd.f32 %v7541, %v7783
      %v7872 = vadd.f32 %v7542, %v7785
      %v7873 = vadd.f32 %v7543, %v7789
      %v7874 = vadd.f32 %v7544, %v7791
      %v7875 = vadd.f32 %v7545, %v7795
      %v7876 = vadd.f32 %v7546, %v7797
      %v7877 = vadd.f32 %v7547, %v7801
      %v7878 = vadd.f32 %v7548, %v7803
      %v7879 = vadd.f32 %v7549, %v7807
      %v7880 = vadd.f32 %v7550, %v7809
      %v7881 = vadd.f32 %v7551, %v7813
      %v7882 = vadd.f32 %v7552, %v7815
      %v7883 = vadd.f32 %v7553, %v7819
      %v7884 = vadd.f32 %v7554, %v7821
      %v7885 = vadd.f32 %v7555, %v7825
      %v7886 = vadd.f32 %v7556, %v7827
      %7887 = vst [vmem:[#allocation3] sm:$0xff] %v7829
      %7888 = vst [vmem:[#allocation3 + $0x8] sm:$0xff] %v7830
      %7889 = vst [vmem:[#allocation3 + $0x10] sm:$0xff] %v7831
      %7890 = vst [vmem:[#allocation3 + $0x18] sm:$0xff] %v7832
      %7891 = vst [vmem:[#allocation3 + $0x20] sm:$0xff] %v7833
      %7892 = vst [vmem:[#allocation3 + $0x28] sm:$0xff] %v7834
      %7893 = vst [vmem:[#allocation3 + $0x30] sm:$0xff] %v7835
      %7894 = vst [vmem:[#allocation3 + $0x38] sm:$0xff] %v7836
      %7895 = vst [vmem:[#allocation3 + $0x40] sm:$0xff] %v7837
      %7896 = vst [vmem:[#allocation3 + $0x48] sm:$0xff] %v7838
      %7897 = vst [vmem:[#allocation3 + $0x50] sm:$0xff] %v7839
      %7898 = vst [vmem:[#allocation3 + $0x58] sm:$0xff] %v7840
      %7899 = vst [vmem:[#allocation3 + $0x60] sm:$0xff] %v7841
      %7900 = vst [vmem:[#allocation3 + $0x68] sm:$0xff] %v7842
      %7901 = vst [vmem:[#allocation3 + $0x70] sm:$0xff] %v7843
      %7902 = vst [vmem:[#allocation3 + $0x78] sm:$0xff] %v7844
      %7903 = vst [vmem:[#allocation3 + $0x80] sm:$0xff] %v7845
      %7904 = vst [vmem:[#allocation3 + $0x88] sm:$0xff] %v7846
      %7905 = vst [vmem:[#allocation3 + $0x90] sm:$0xff] %v7847
      %7906 = vst [vmem:[#allocation3 + $0x98] sm:$0xff] %v7848
      %7907 = vst [vmem:[#allocation3 + $0xa0] sm:$0xff] %v7849
      %7908 = vst [vmem:[#allocation3 + $0xa8] sm:$0xff] %v7850
      %7909 = vst [vmem:[#allocation3 + $0xb0] sm:$0xff] %v7851
      %7910 = vst [vmem:[#allocation3 + $0xb8] sm:$0xff] %v7852
      %7911 = vst [vmem:[#allocation3 + $0xc0] sm:$0xff] %v7853
      %7912 = vst [vmem:[#allocation3 + $0xc8] sm:$0xff] %v7854
      %7913 = vst [vmem:[#allocation3 + $0xd0] sm:$0xff] %v7855
      %7914 = vst [vmem:[#allocation3 + $0xd8] sm:$0xff] %v7856
      %7915 = vst [vmem:[#allocation3 + $0xe0] sm:$0xff] %v7857
      %7916 = vst [vmem:[#allocation3 + $0xe8] sm:$0xff] %v7858
      %7917 = vst [vmem:[#allocation3 + $0xf0] sm:$0xff] %v7859
      %7918 = vst [vmem:[#allocation3 + $0xf8] sm:$0xff] %v7860
      %7919 = vst [vmem:[#allocation3 + $0x100] sm:$0xff] %v7861
      %7920 = vst [vmem:[#allocation3 + $0x108] sm:$0xff] %v7862
      %7921 = vst [vmem:[#allocation3 + $0x110] sm:$0xff] %v7863
      %7922 = vst [vmem:[#allocation3 + $0x118] sm:$0xff] %v7864
      %7923 = vst [vmem:[#allocation3 + $0x120] sm:$0xff] %v7865
      %7924 = vst [vmem:[#allocation3 + $0x128] sm:$0xff] %v7866
      %7925 = vst [vmem:[#allocation3 + $0x130] sm:$0xff] %v7867
      %7926 = vst [vmem:[#allocation3 + $0x138] sm:$0xff] %v7868
      %7927 = vst [vmem:[#allocation3 + $0x140] sm:$0xff] %v7869
      %7928 = vst [vmem:[#allocation3 + $0x148] sm:$0xff] %v7870
      %7929 = vst [vmem:[#allocation3 + $0x150] sm:$0xff] %v7871
      %7930 = vst [vmem:[#allocation3 + $0x158] sm:$0xff] %v7872
      %7931 = vst [vmem:[#allocation3 + $0x160] sm:$0xff] %v7873
      %7932 = vst [vmem:[#allocation3 + $0x168] sm:$0xff] %v7874
      %7933 = vst [vmem:[#allocation3 + $0x170] sm:$0xff] %v7875
      %7934 = vst [vmem:[#allocation3 + $0x178] sm:$0xff] %v7876
      %7935 = vst [vmem:[#allocation3 + $0x180] sm:$0xff] %v7877
      %7936 = vst [vmem:[#allocation3 + $0x188] sm:$0xff] %v7878
      %7937 = vst [vmem:[#allocation3 + $0x190] sm:$0xff] %v7879
      %7938 = vst [vmem:[#allocation3 + $0x198] sm:$0xff] %v7880
      %7939 = vst [vmem:[#allocation3 + $0x1a0] sm:$0xff] %v7881
      %7940 = vst [vmem:[#allocation3 + $0x1a8] sm:$0xff] %v7882
      %7941 = vst [vmem:[#allocation3 + $0x1b0] sm:$0xff] %v7883
      %7942 = vst [vmem:[#allocation3 + $0x1b8] sm:$0xff] %v7884
      %7943 = vst [vmem:[#allocation3 + $0x1c0] sm:$0x7f] %v7885
      %7944 = vst [vmem:[#allocation3 + $0x1c8] sm:$0x7f] %v7886
      %v7945 = vld [vmem:[#allocation2 + $0x42] sm:$0xff]
      %v7946 = vld [vmem:[#allocation2 + $0x4a] sm:$0xff]
      %v7947 = vld [vmem:[#allocation2 + $0x52] sm:$0xff]
      %v7948 = vld [vmem:[#allocation2 + $0x5a] sm:$0xff]
      %v7949 = vld [vmem:[#allocation2 + $0x62] sm:$0xff]
      %v7950 = vld [vmem:[#allocation2 + $0x6a] sm:$0xff]
      %v7951 = vld [vmem:[#allocation2 + $0x72] sm:$0xff]
      %v7952 = vld [vmem:[#allocation2 + $0x7a] sm:$0xff]
      %v7953 = vld [vmem:[#allocation2 + $0x82] sm:$0xff]
      %v7954 = vld [vmem:[#allocation2 + $0x8a] sm:$0xff]
      %v7955 = vld [vmem:[#allocation2 + $0x92] sm:$0xff]
      %v7956 = vld [vmem:[#allocation2 + $0x9a] sm:$0xff]
      %v7957 = vld [vmem:[#allocation2 + $0xa2] sm:$0xff]
      %v7958 = vld [vmem:[#allocation2 + $0xaa] sm:$0xff]
      %v7959 = vld [vmem:[#allocation2 + $0xb2] sm:$0xff]
      %v7960 = vld [vmem:[#allocation2 + $0xba] sm:$0xff]
      %v7961 = vld [vmem:[#allocation2 + $0xc2] sm:$0xff]
      %v7962 = vld [vmem:[#allocation2 + $0xca] sm:$0xff]
      %v7963 = vld [vmem:[#allocation2 + $0xd2] sm:$0xff]
      %v7964 = vld [vmem:[#allocation2 + $0xda] sm:$0xff]
      %v7965 = vld [vmem:[#allocation2 + $0xe2] sm:$0xff]
      %v7966 = vld [vmem:[#allocation2 + $0xea] sm:$0xff]
      %v7967 = vld [vmem:[#allocation2 + $0xf2] sm:$0xff]
      %v7968 = vld [vmem:[#allocation2 + $0xfa] sm:$0xff]
      %v7969 = vld [vmem:[#allocation2 + $0x102] sm:$0xff]
      %v7970 = vld [vmem:[#allocation2 + $0x10a] sm:$0xff]
      %v7971 = vld [vmem:[#allocation2 + $0x112] sm:$0xff]
      %v7972 = vld [vmem:[#allocation2 + $0x11a] sm:$0xff]
      %v7973 = vld [vmem:[#allocation2 + $0x122] sm:$0x7f]
      %v7974 = vld [vmem:[#allocation3] sm:$0xff]
      %v7975 = vld [vmem:[#allocation3 + $0x8] sm:$0xff]
      %v7976 = vld [vmem:[#allocation3 + $0x10] sm:$0xff]
      %v7977 = vld [vmem:[#allocation3 + $0x18] sm:$0xff]
      %v7978 = vld [vmem:[#allocation3 + $0x20] sm:$0xff]
      %v7979 = vld [vmem:[#allocation3 + $0x28] sm:$0xff]
      %v7980 = vld [vmem:[#allocation3 + $0x30] sm:$0xff]
      %v7981 = vld [vmem:[#allocation3 + $0x38] sm:$0xff]
      %v7982 = vld [vmem:[#allocation3 + $0x40] sm:$0xff]
      %v7983 = vld [vmem:[#allocation3 + $0x48] sm:$0xff]
      %v7984 = vld [vmem:[#allocation3 + $0x50] sm:$0xff]
      %v7985 = vld [vmem:[#allocation3 + $0x58] sm:$0xff]
      %v7986 = vld [vmem:[#allocation3 + $0x60] sm:$0xff]
      %v7987 = vld [vmem:[#allocation3 + $0x68] sm:$0xff]
      %v7988 = vld [vmem:[#allocation3 + $0x70] sm:$0xff]
      %v7989 = vld [vmem:[#allocation3 + $0x78] sm:$0xff]
      %v7990 = vld [vmem:[#allocation3 + $0x80] sm:$0xff]
      %v7991 = vld [vmem:[#allocation3 + $0x88] sm:$0xff]
      %v7992 = vld [vmem:[#allocation3 + $0x90] sm:$0xff]
      %v7993 = vld [vmem:[#allocation3 + $0x98] sm:$0xff]
      %v7994 = vld [vmem:[#allocation3 + $0xa0] sm:$0xff]
      %v7995 = vld [vmem:[#allocation3 + $0xa8] sm:$0xff]
      %v7996 = vld [vmem:[#allocation3 + $0xb0] sm:$0xff]
      %v7997 = vld [vmem:[#allocation3 + $0xb8] sm:$0xff]
      %v7998 = vld [vmem:[#allocation3 + $0xc0] sm:$0xff]
      %v7999 = vld [vmem:[#allocation3 + $0xc8] sm:$0xff]
      %v8000 = vld [vmem:[#allocation3 + $0xd0] sm:$0xff]
      %v8001 = vld [vmem:[#allocation3 + $0xd8] sm:$0xff]
      %v8002 = vld [vmem:[#allocation3 + $0xe0] sm:$0xff]
      %v8003 = vld [vmem:[#allocation3 + $0xe8] sm:$0xff]
      %v8004 = vld [vmem:[#allocation3 + $0xf0] sm:$0xff]
      %v8005 = vld [vmem:[#allocation3 + $0xf8] sm:$0xff]
      %v8006 = vld [vmem:[#allocation3 + $0x100] sm:$0xff]
      %v8007 = vld [vmem:[#allocation3 + $0x108] sm:$0xff]
      %v8008 = vld [vmem:[#allocation3 + $0x110] sm:$0xff]
      %v8009 = vld [vmem:[#allocation3 + $0x118] sm:$0xff]
      %v8010 = vld [vmem:[#allocation3 + $0x120] sm:$0xff]
      %v8011 = vld [vmem:[#allocation3 + $0x128] sm:$0xff]
      %v8012 = vld [vmem:[#allocation3 + $0x130] sm:$0xff]
      %v8013 = vld [vmem:[#allocation3 + $0x138] sm:$0xff]
      %v8014 = vld [vmem:[#allocation3 + $0x140] sm:$0xff]
      %v8015 = vld [vmem:[#allocation3 + $0x148] sm:$0xff]
      %v8016 = vld [vmem:[#allocation3 + $0x150] sm:$0xff]
      %v8017 = vld [vmem:[#allocation3 + $0x158] sm:$0xff]
      %v8018 = vld [vmem:[#allocation3 + $0x160] sm:$0xff]
      %v8019 = vld [vmem:[#allocation3 + $0x168] sm:$0xff]
      %v8020 = vld [vmem:[#allocation3 + $0x170] sm:$0xff]
      %v8021 = vld [vmem:[#allocation3 + $0x178] sm:$0xff]
      %v8022 = vld [vmem:[#allocation3 + $0x180] sm:$0xff]
      %v8023 = vld [vmem:[#allocation3 + $0x188] sm:$0xff]
      %v8024 = vld [vmem:[#allocation3 + $0x190] sm:$0xff]
      %v8025 = vld [vmem:[#allocation3 + $0x198] sm:$0xff]
      %v8026 = vld [vmem:[#allocation3 + $0x1a0] sm:$0xff]
      %v8027 = vld [vmem:[#allocation3 + $0x1a8] sm:$0xff]
      %v8028 = vld [vmem:[#allocation3 + $0x1b0] sm:$0xff]
      %v8029 = vld [vmem:[#allocation3 + $0x1b8] sm:$0xff]
      %v8030 = vld [vmem:[#allocation3 + $0x1c0] sm:$0x7f]
      %v8031 = vld [vmem:[#allocation3 + $0x1c8] sm:$0x7f]
      %s8032 = scalar_lea.vmem %s2, 3840
      %v8033 = vld [vmem:[%s8032] sm:$0xff]
      %v8034 = vld [vmem:[%s8032 + $0x8] sm:$0xff]
      %v8035 = vld [vmem:[%s8032 + $0x10] sm:$0xff]
      %v8036 = vld [vmem:[%s8032 + $0x18] sm:$0xff]
      %v8037 = vld [vmem:[%s8032 + $0x20] sm:$0xff]
      %v8038 = vld [vmem:[%s8032 + $0x28] sm:$0xff]
      %v8039 = vld [vmem:[%s8032 + $0x30] sm:$0xff]
      %v8040 = vld [vmem:[%s8032 + $0x38] sm:$0xff]
      %v8041 = vld [vmem:[%s8032 + $0x40] sm:$0xff]
      %v8042 = vld [vmem:[%s8032 + $0x48] sm:$0xff]
      %v8043 = vld [vmem:[%s8032 + $0x50] sm:$0xff]
      %v8044 = vld [vmem:[%s8032 + $0x58] sm:$0xff]
      %v8045 = vld [vmem:[%s8032 + $0x60] sm:$0xff]
      %v8046 = vld [vmem:[%s8032 + $0x68] sm:$0xff]
      %v8047 = vld [vmem:[%s8032 + $0x70] sm:$0xff]
      %v8048 = vld [vmem:[%s8032 + $0x78] sm:$0xff]
      %v8049 = vld [vmem:[%s8032 + $0x80] sm:$0xff]
      %v8050 = vld [vmem:[%s8032 + $0x88] sm:$0xff]
      %v8051 = vld [vmem:[%s8032 + $0x90] sm:$0xff]
      %v8052 = vld [vmem:[%s8032 + $0x98] sm:$0xff]
      %v8053 = vld [vmem:[%s8032 + $0xa0] sm:$0xff]
      %v8054 = vld [vmem:[%s8032 + $0xa8] sm:$0xff]
      %v8055 = vld [vmem:[%s8032 + $0xb0] sm:$0xff]
      %v8056 = vld [vmem:[%s8032 + $0xb8] sm:$0xff]
      %v8057 = vld [vmem:[%s8032 + $0xc0] sm:$0xff]
      %v8058 = vld [vmem:[%s8032 + $0xc8] sm:$0xff]
      %v8059 = vld [vmem:[%s8032 + $0xd0] sm:$0xff]
      %v8060 = vld [vmem:[%s8032 + $0xd8] sm:$0xff]
      %v8061 = vld [vmem:[%s8032 + $0xe0] sm:$0xff]
      %v8062 = vld [vmem:[%s8032 + $0xe8] sm:$0xff]
      %v8063 = vld [vmem:[%s8032 + $0xf0] sm:$0xff]
      %v8064 = vld [vmem:[%s8032 + $0xf8] sm:$0xff]
      %8065 = vmatprep.subr.mxu0 %v8034
      %8066 = vmatpush1.msra.mxu0 %v8033
      %8067 = vmatprep.subr.mxu0 %v8036
      %8068 = vmatpush1.msra.mxu0 %v8035
      %8069 = vmatprep.subr.mxu0 %v8038
      %8070 = vmatpush1.msra.mxu0 %v8037
      %8071 = vmatprep.subr.mxu0 %v8040
      %8072 = vmatpush1.msra.mxu0 %v8039
      %8073 = vmatprep.subr.mxu0 %v8042
      %8074 = vmatpush1.msra.mxu0 %v8041
      %8075 = vmatprep.subr.mxu0 %v8044
      %8076 = vmatpush1.msra.mxu0 %v8043
      %8077 = vmatprep.subr.mxu0 %v8046
      %8078 = vmatpush1.msra.mxu0 %v8045
      %8079 = vmatprep.subr.mxu0 %v8048
      %8080 = vmatpush1.msra.mxu0 %v8047
      %8081 = vmatprep.subr.mxu0 %v8050
      %8082 = vmatpush1.msra.mxu0 %v8049
      %8083 = vmatprep.subr.mxu0 %v8052
      %8084 = vmatpush1.msra.mxu0 %v8051
      %8085 = vmatprep.subr.mxu0 %v8054
      %8086 = vmatpush1.msra.mxu0 %v8053
      %8087 = vmatprep.subr.mxu0 %v8056
      %8088 = vmatpush1.msra.mxu0 %v8055
      %8089 = vmatprep.subr.mxu0 %v8058
      %8090 = vmatpush1.msra.mxu0 %v8057
      %8091 = vmatprep.subr.mxu0 %v8060
      %8092 = vmatpush1.msra.mxu0 %v8059
      %8093 = vmatprep.subr.mxu0 %v8062
      %8094 = vmatpush1.msra.mxu0 %v8061
      %8095 = vmatprep.subr.mxu0 %v8064
      %8096 = vmatpush1.msra.mxu0 %v8063
      %8097 = vmatprep.subr.mxu0 0.0
      %8098 = vmatpush1.msra.mxu0 0.0
      %8099 = vmatprep.subr.mxu0 0.0
      %8100 = vmatpush1.msra.mxu0 0.0
      %8101 = vmatprep.subr.mxu0 0.0
      %8102 = vmatpush1.msra.mxu0 0.0
      %8103 = vmatprep.subr.mxu0 0.0
      %8104 = vmatpush1.msra.mxu0 0.0
      %8105 = vmatprep.subr.mxu0 0.0
      %8106 = vmatpush1.msra.mxu0 0.0
      %8107 = vmatprep.subr.mxu0 0.0
      %8108 = vmatpush1.msra.mxu0 0.0
      %8109 = vmatprep.subr.mxu0 0.0
      %8110 = vmatpush1.msra.mxu0 0.0
      %8111 = vmatprep.subr.mxu0 0.0
      %8112 = vmatpush1.msra.mxu0 0.0
      %8113 = vmatprep.subr.mxu0 0.0
      %8114 = vmatpush1.msra.mxu0 0.0
      %8115 = vmatprep.subr.mxu0 0.0
      %8116 = vmatpush1.msra.mxu0 0.0
      %8117 = vmatprep.subr.mxu0 0.0
      %8118 = vmatpush1.msra.mxu0 0.0
      %8119 = vmatprep.subr.mxu0 0.0
      %8120 = vmatpush1.msra.mxu0 0.0
      %8121 = vmatprep.subr.mxu0 0.0
      %8122 = vmatpush1.msra.mxu0 0.0
      %8123 = vmatprep.subr.mxu0 0.0
      %8124 = vmatpush1.msra.mxu0 0.0
      %8125 = vmatprep.subr.mxu0 0.0
      %8126 = vmatpush1.msra.mxu0 0.0
      %8127 = vmatprep.subr.mxu0 0.0
      %8128 = vmatpush1.msra.mxu0 0.0
      %8129 = vmatprep.mubr.f32.mxu0 0.0
      %8130 = vmatmul.mubr.f32.gmra.mrb[0].mxu0 %v7945
      %v8131 = vpop.f32.mrb[0].mxu0
      %v8132 = vadd.f32 0.0, %v8131
      %v8133 = vpop.f32.mrb[0].mxu0
      %v8134 = vadd.f32 0.0, %v8133
      %8135 = vmatprep.mubr.f32.mxu0 0.0
      %8136 = vmatmul.mubr.f32.gmra.mrb[0].mxu0 %v7946
      %v8137 = vpop.f32.mrb[0].mxu0
      %v8138 = vadd.f32 0.0, %v8137
      %v8139 = vpop.f32.mrb[0].mxu0
      %v8140 = vadd.f32 0.0, %v8139
      %8141 = vmatprep.mubr.f32.mxu0 0.0
      %8142 = vmatmul.mubr.f32.gmra.mrb[0].mxu0 %v7947
      %v8143 = vpop.f32.mrb[0].mxu0
      %v8144 = vadd.f32 0.0, %v8143
      %v8145 = vpop.f32.mrb[0].mxu0
      %v8146 = vadd.f32 0.0, %v8145
      %8147 = vmatprep.mubr.f32.mxu0 0.0
      %8148 = vmatmul.mubr.f32.gmra.mrb[0].mxu0 %v7948
      %v8149 = vpop.f32.mrb[0].mxu0
      %v8150 = vadd.f32 0.0, %v8149
      %v8151 = vpop.f32.mrb[0].mxu0
      %v8152 = vadd.f32 0.0, %v8151
      %8153 = vmatprep.mubr.f32.mxu0 0.0
      %8154 = vmatmul.mubr.f32.gmra.mrb[0].mxu0 %v7949
      %v8155 = vpop.f32.mrb[0].mxu0
      %v8156 = vadd.f32 0.0, %v8155
      %v8157 = vpop.f32.mrb[0].mxu0
      %v8158 = vadd.f32 0.0, %v8157
      %8159 = vmatprep.mubr.f32.mxu0 0.0
      %8160 = vmatmul.mubr.f32.gmra.mrb[0].mxu0 %v7950
      %v8161 = vpop.f32.mrb[0].mxu0
      %v8162 = vadd.f32 0.0, %v8161
      %v8163 = vpop.f32.mrb[0].mxu0
      %v8164 = vadd.f32 0.0, %v8163
      %8165 = vmatprep.mubr.f32.mxu0 0.0
      %8166 = vmatmul.mubr.f32.gmra.mrb[0].mxu0 %v7951
      %v8167 = vpop.f32.mrb[0].mxu0
      %v8168 = vadd.f32 0.0, %v8167
      %v8169 = vpop.f32.mrb[0].mxu0
      %v8170 = vadd.f32 0.0, %v8169
      %8171 = vmatprep.mubr.f32.mxu0 0.0
      %8172 = vmatmul.mubr.f32.gmra.mrb[0].mxu0 %v7952
      %v8173 = vpop.f32.mrb[0].mxu0
      %v8174 = vadd.f32 0.0, %v8173
      %v8175 = vpop.f32.mrb[0].mxu0
      %v8176 = vadd.f32 0.0, %v8175
      %8177 = vmatprep.mubr.f32.mxu0 0.0
      %8178 = vmatmul.mubr.f32.gmra.mrb[0].mxu0 %v7953
      %v8179 = vpop.f32.mrb[0].mxu0
      %v8180 = vadd.f32 0.0, %v8179
      %v8181 = vpop.f32.mrb[0].mxu0
      %v8182 = vadd.f32 0.0, %v8181
      %8183 = vmatprep.mubr.f32.mxu0 0.0
      %8184 = vmatmul.mubr.f32.gmra.mrb[0].mxu0 %v7954
      %v8185 = vpop.f32.mrb[0].mxu0
      %v8186 = vadd.f32 0.0, %v8185
      %v8187 = vpop.f32.mrb[0].mxu0
      %v8188 = vadd.f32 0.0, %v8187
      %8189 = vmatprep.mubr.f32.mxu0 0.0
      %8190 = vmatmul.mubr.f32.gmra.mrb[0].mxu0 %v7955
      %v8191 = vpop.f32.mrb[0].mxu0
      %v8192 = vadd.f32 0.0, %v8191
      %v8193 = vpop.f32.mrb[0].mxu0
      %v8194 = vadd.f32 0.0, %v8193
      %8195 = vmatprep.mubr.f32.mxu0 0.0
      %8196 = vmatmul.mubr.f32.gmra.mrb[0].mxu0 %v7956
      %v8197 = vpop.f32.mrb[0].mxu0
      %v8198 = vadd.f32 0.0, %v8197
      %v8199 = vpop.f32.mrb[0].mxu0
      %v8200 = vadd.f32 0.0, %v8199
      %8201 = vmatprep.mubr.f32.mxu0 0.0
      %8202 = vmatmul.mubr.f32.gmra.mrb[0].mxu0 %v7957
      %v8203 = vpop.f32.mrb[0].mxu0
      %v8204 = vadd.f32 0.0, %v8203
      %v8205 = vpop.f32.mrb[0].mxu0
      %v8206 = vadd.f32 0.0, %v8205
      %8207 = vmatprep.mubr.f32.mxu0 0.0
      %8208 = vmatmul.mubr.f32.gmra.mrb[0].mxu0 %v7958
      %v8209 = vpop.f32.mrb[0].mxu0
      %v8210 = vadd.f32 0.0, %v8209
      %v8211 = vpop.f32.mrb[0].mxu0
      %v8212 = vadd.f32 0.0, %v8211
      %8213 = vmatprep.mubr.f32.mxu0 0.0
      %8214 = vmatmul.mubr.f32.gmra.mrb[0].mxu0 %v7959
      %v8215 = vpop.f32.mrb[0].mxu0
      %v8216 = vadd.f32 0.0, %v8215
      %v8217 = vpop.f32.mrb[0].mxu0
      %v8218 = vadd.f32 0.0, %v8217
      %8219 = vmatprep.mubr.f32.mxu0 0.0
      %8220 = vmatmul.mubr.f32.gmra.mrb[0].mxu0 %v7960
      %v8221 = vpop.f32.mrb[0].mxu0
      %v8222 = vadd.f32 0.0, %v8221
      %v8223 = vpop.f32.mrb[0].mxu0
      %v8224 = vadd.f32 0.0, %v8223
      %8225 = vmatprep.mubr.f32.mxu0 0.0
      %8226 = vmatmul.mubr.f32.gmra.mrb[0].mxu0 %v7961
      %v8227 = vpop.f32.mrb[0].mxu0
      %v8228 = vadd.f32 0.0, %v8227
      %v8229 = vpop.f32.mrb[0].mxu0
      %v8230 = vadd.f32 0.0, %v8229
      %8231 = vmatprep.mubr.f32.mxu0 0.0
      %8232 = vmatmul.mubr.f32.gmra.mrb[0].mxu0 %v7962
      %v8233 = vpop.f32.mrb[0].mxu0
      %v8234 = vadd.f32 0.0, %v8233
      %v8235 = vpop.f32.mrb[0].mxu0
      %v8236 = vadd.f32 0.0, %v8235
      %8237 = vmatprep.mubr.f32.mxu0 0.0
      %8238 = vmatmul.mubr.f32.gmra.mrb[0].mxu0 %v7963
      %v8239 = vpop.f32.mrb[0].mxu0
      %v8240 = vadd.f32 0.0, %v8239
      %v8241 = vpop.f32.mrb[0].mxu0
      %v8242 = vadd.f32 0.0, %v8241
      %8243 = vmatprep.mubr.f32.mxu0 0.0
      %8244 = vmatmul.mubr.f32.gmra.mrb[0].mxu0 %v7964
      %v8245 = vpop.f32.mrb[0].mxu0
      %v8246 = vadd.f32 0.0, %v8245
      %v8247 = vpop.f32.mrb[0].mxu0
      %v8248 = vadd.f32 0.0, %v8247
      %8249 = vmatprep.mubr.f32.mxu0 0.0
      %8250 = vmatmul.mubr.f32.gmra.mrb[0].mxu0 %v7965
      %v8251 = vpop.f32.mrb[0].mxu0
      %v8252 = vadd.f32 0.0, %v8251
      %v8253 = vpop.f32.mrb[0].mxu0
      %v8254 = vadd.f32 0.0, %v8253
      %8255 = vmatprep.mubr.f32.mxu0 0.0
      %8256 = vmatmul.mubr.f32.gmra.mrb[0].mxu0 %v7966
      %v8257 = vpop.f32.mrb[0].mxu0
      %v8258 = vadd.f32 0.0, %v8257
      %v8259 = vpop.f32.mrb[0].mxu0
      %v8260 = vadd.f32 0.0, %v8259
      %8261 = vmatprep.mubr.f32.mxu0 0.0
      %8262 = vmatmul.mubr.f32.gmra.mrb[0].mxu0 %v7967
      %v8263 = vpop.f32.mrb[0].mxu0
      %v8264 = vadd.f32 0.0, %v8263
      %v8265 = vpop.f32.mrb[0].mxu0
      %v8266 = vadd.f32 0.0, %v8265
      %8267 = vmatprep.mubr.f32.mxu0 0.0
      %8268 = vmatmul.mubr.f32.gmra.mrb[0].mxu0 %v7968
      %v8269 = vpop.f32.mrb[0].mxu0
      %v8270 = vadd.f32 0.0, %v8269
      %v8271 = vpop.f32.mrb[0].mxu0
      %v8272 = vadd.f32 0.0, %v8271
      %8273 = vmatprep.mubr.f32.mxu0 0.0
      %8274 = vmatmul.mubr.f32.gmra.mrb[0].mxu0 %v7969
      %v8275 = vpop.f32.mrb[0].mxu0
      %v8276 = vadd.f32 0.0, %v8275
      %v8277 = vpop.f32.mrb[0].mxu0
      %v8278 = vadd.f32 0.0, %v8277
      %8279 = vmatprep.mubr.f32.mxu0 0.0
      %8280 = vmatmul.mubr.f32.gmra.mrb[0].mxu0 %v7970
      %v8281 = vpop.f32.mrb[0].mxu0
      %v8282 = vadd.f32 0.0, %v8281
      %v8283 = vpop.f32.mrb[0].mxu0
      %v8284 = vadd.f32 0.0, %v8283
      %8285 = vmatprep.mubr.f32.mxu0 0.0
      %8286 = vmatmul.mubr.f32.gmra.mrb[0].mxu0 %v7971
      %v8287 = vpop.f32.mrb[0].mxu0
      %v8288 = vadd.f32 0.0, %v8287
      %v8289 = vpop.f32.mrb[0].mxu0
      %v8290 = vadd.f32 0.0, %v8289
      %8291 = vmatprep.mubr.f32.mxu0 0.0
      %8292 = vmatmul.mubr.f32.gmra.mrb[0].mxu0 %v7972
      %v8293 = vpop.f32.mrb[0].mxu0
      %v8294 = vadd.f32 0.0, %v8293
      %v8295 = vpop.f32.mrb[0].mxu0
      %v8296 = vadd.f32 0.0, %v8295
      %8297 = vmatprep.mubr.f32.mxu0 0.0
      %8298 = vmatmul.mubr.f32.gmra.mrb[0].mxu0 %v7973
      %v8299 = vpop.f32.mrb[0].mxu0
      %v8300 = vadd.f32 0.0, %v8299
      %v8301 = vpop.f32.mrb[0].mxu0
      %v8302 = vadd.f32 0.0, %v8301
      %8303 = vdwg.mxu0
      %v8304 = vadd.f32 %v7974, %v8132
      %v8305 = vadd.f32 %v7975, %v8134
      %v8306 = vadd.f32 %v7976, %v8138
      %v8307 = vadd.f32 %v7977, %v8140
      %v8308 = vadd.f32 %v7978, %v8144
      %v8309 = vadd.f32 %v7979, %v8146
      %v8310 = vadd.f32 %v7980, %v8150
      %v8311 = vadd.f32 %v7981, %v8152
      %v8312 = vadd.f32 %v7982, %v8156
      %v8313 = vadd.f32 %v7983, %v8158
      %v8314 = vadd.f32 %v7984, %v8162
      %v8315 = vadd.f32 %v7985, %v8164
      %v8316 = vadd.f32 %v7986, %v8168
      %v8317 = vadd.f32 %v7987, %v8170
      %v8318 = vadd.f32 %v7988, %v8174
      %v8319 = vadd.f32 %v7989, %v8176
      %v8320 = vadd.f32 %v7990, %v8180
      %v8321 = vadd.f32 %v7991, %v8182
      %v8322 = vadd.f32 %v7992, %v8186
      %v8323 = vadd.f32 %v7993, %v8188
      %v8324 = vadd.f32 %v7994, %v8192
      %v8325 = vadd.f32 %v7995, %v8194
      %v8326 = vadd.f32 %v7996, %v8198
      %v8327 = vadd.f32 %v7997, %v8200
      %v8328 = vadd.f32 %v7998, %v8204
      %v8329 = vadd.f32 %v7999, %v8206
      %v8330 = vadd.f32 %v8000, %v8210
      %v8331 = vadd.f32 %v8001, %v8212
      %v8332 = vadd.f32 %v8002, %v8216
      %v8333 = vadd.f32 %v8003, %v8218
      %v8334 = vadd.f32 %v8004, %v8222
      %v8335 = vadd.f32 %v8005, %v8224
      %v8336 = vadd.f32 %v8006, %v8228
      %v8337 = vadd.f32 %v8007, %v8230
      %v8338 = vadd.f32 %v8008, %v8234
      %v8339 = vadd.f32 %v8009, %v8236
      %v8340 = vadd.f32 %v8010, %v8240
      %v8341 = vadd.f32 %v8011, %v8242
      %v8342 = vadd.f32 %v8012, %v8246
      %v8343 = vadd.f32 %v8013, %v8248
      %v8344 = vadd.f32 %v8014, %v8252
      %v8345 = vadd.f32 %v8015, %v8254
      %v8346 = vadd.f32 %v8016, %v8258
      %v8347 = vadd.f32 %v8017, %v8260
      %v8348 = vadd.f32 %v8018, %v8264
      %v8349 = vadd.f32 %v8019, %v8266
      %v8350 = vadd.f32 %v8020, %v8270
      %v8351 = vadd.f32 %v8021, %v8272
      %v8352 = vadd.f32 %v8022, %v8276
      %v8353 = vadd.f32 %v8023, %v8278
      %v8354 = vadd.f32 %v8024, %v8282
      %v8355 = vadd.f32 %v8025, %v8284
      %v8356 = vadd.f32 %v8026, %v8288
      %v8357 = vadd.f32 %v8027, %v8290
      %v8358 = vadd.f32 %v8028, %v8294
      %v8359 = vadd.f32 %v8029, %v8296
      %v8360 = vadd.f32 %v8030, %v8300
      %v8361 = vadd.f32 %v8031, %v8302
      %8362 = vst [vmem:[#allocation3] sm:$0xff] %v8304
      %8363 = vst [vmem:[#allocation3 + $0x8] sm:$0xff] %v8305
      %8364 = vst [vmem:[#allocation3 + $0x10] sm:$0xff] %v8306
      %8365 = vst [vmem:[#allocation3 + $0x18] sm:$0xff] %v8307
      %8366 = vst [vmem:[#allocation3 + $0x20] sm:$0xff] %v8308
      %8367 = vst [vmem:[#allocation3 + $0x28] sm:$0xff] %v8309
      %8368 = vst [vmem:[#allocation3 + $0x30] sm:$0xff] %v8310
      %8369 = vst [vmem:[#allocation3 + $0x38] sm:$0xff] %v8311
      %8370 = vst [vmem:[#allocation3 + $0x40] sm:$0xff] %v8312
      %8371 = vst [vmem:[#allocation3 + $0x48] sm:$0xff] %v8313
      %8372 = vst [vmem:[#allocation3 + $0x50] sm:$0xff] %v8314
      %8373 = vst [vmem:[#allocation3 + $0x58] sm:$0xff] %v8315
      %8374 = vst [vmem:[#allocation3 + $0x60] sm:$0xff] %v8316
      %8375 = vst [vmem:[#allocation3 + $0x68] sm:$0xff] %v8317
      %8376 = vst [vmem:[#allocation3 + $0x70] sm:$0xff] %v8318
      %8377 = vst [vmem:[#allocation3 + $0x78] sm:$0xff] %v8319
      %8378 = vst [vmem:[#allocation3 + $0x80] sm:$0xff] %v8320
      %8379 = vst [vmem:[#allocation3 + $0x88] sm:$0xff] %v8321
      %8380 = vst [vmem:[#allocation3 + $0x90] sm:$0xff] %v8322
      %8381 = vst [vmem:[#allocation3 + $0x98] sm:$0xff] %v8323
      %8382 = vst [vmem:[#allocation3 + $0xa0] sm:$0xff] %v8324
      %8383 = vst [vmem:[#allocation3 + $0xa8] sm:$0xff] %v8325
      %8384 = vst [vmem:[#allocation3 + $0xb0] sm:$0xff] %v8326
      %8385 = vst [vmem:[#allocation3 + $0xb8] sm:$0xff] %v8327
      %8386 = vst [vmem:[#allocation3 + $0xc0] sm:$0xff] %v8328
      %8387 = vst [vmem:[#allocation3 + $0xc8] sm:$0xff] %v8329
      %8388 = vst [vmem:[#allocation3 + $0xd0] sm:$0xff] %v8330
      %8389 = vst [vmem:[#allocation3 + $0xd8] sm:$0xff] %v8331
      %8390 = vst [vmem:[#allocation3 + $0xe0] sm:$0xff] %v8332
      %8391 = vst [vmem:[#allocation3 + $0xe8] sm:$0xff] %v8333
      %8392 = vst [vmem:[#allocation3 + $0xf0] sm:$0xff] %v8334
      %8393 = vst [vmem:[#allocation3 + $0xf8] sm:$0xff] %v8335
      %8394 = vst [vmem:[#allocation3 + $0x100] sm:$0xff] %v8336
      %8395 = vst [vmem:[#allocation3 + $0x108] sm:$0xff] %v8337
      %8396 = vst [vmem:[#allocation3 + $0x110] sm:$0xff] %v8338
      %8397 = vst [vmem:[#allocation3 + $0x118] sm:$0xff] %v8339
      %8398 = vst [vmem:[#allocation3 + $0x120] sm:$0xff] %v8340
      %8399 = vst [vmem:[#allocation3 + $0x128] sm:$0xff] %v8341
      %8400 = vst [vmem:[#allocation3 + $0x130] sm:$0xff] %v8342
      %8401 = vst [vmem:[#allocation3 + $0x138] sm:$0xff] %v8343
      %8402 = vst [vmem:[#allocation3 + $0x140] sm:$0xff] %v8344
      %8403 = vst [vmem:[#allocation3 + $0x148] sm:$0xff] %v8345
      %8404 = vst [vmem:[#allocation3 + $0x150] sm:$0xff] %v8346
      %8405 = vst [vmem:[#allocation3 + $0x158] sm:$0xff] %v8347
      %8406 = vst [vmem:[#allocation3 + $0x160] sm:$0xff] %v8348
      %8407 = vst [vmem:[#allocation3 + $0x168] sm:$0xff] %v8349
      %8408 = vst [vmem:[#allocation3 + $0x170] sm:$0xff] %v8350
      %8409 = vst [vmem:[#allocation3 + $0x178] sm:$0xff] %v8351
      %8410 = vst [vmem:[#allocation3 + $0x180] sm:$0xff] %v8352
      %8411 = vst [vmem:[#allocation3 + $0x188] sm:$0xff] %v8353
      %8412 = vst [vmem:[#allocation3 + $0x190] sm:$0xff] %v8354
      %8413 = vst [vmem:[#allocation3 + $0x198] sm:$0xff] %v8355
      %8414 = vst [vmem:[#allocation3 + $0x1a0] sm:$0xff] %v8356
      %8415 = vst [vmem:[#allocation3 + $0x1a8] sm:$0xff] %v8357
      %8416 = vst [vmem:[#allocation3 + $0x1b0] sm:$0xff] %v8358
      %8417 = vst [vmem:[#allocation3 + $0x1b8] sm:$0xff] %v8359
      %8418 = vst [vmem:[#allocation3 + $0x1c0] sm:$0x7f] %v8360
      %8419 = vst [vmem:[#allocation3 + $0x1c8] sm:$0x7f] %v8361
      %v8420 = vld [vmem:[#allocation3] sm:$0xff]
      %v8421 = vld [vmem:[#allocation3 + $0x8] sm:$0xff]
      %v8422 = vld [vmem:[#allocation3 + $0x10] sm:$0xff]
      %v8423 = vld [vmem:[#allocation3 + $0x18] sm:$0xff]
      %v8424 = vld [vmem:[#allocation3 + $0x20] sm:$0xff]
      %v8425 = vld [vmem:[#allocation3 + $0x28] sm:$0xff]
      %v8426 = vld [vmem:[#allocation3 + $0x30] sm:$0xff]
      %v8427 = vld [vmem:[#allocation3 + $0x38] sm:$0xff]
      %v8428 = vld [vmem:[#allocation3 + $0x40] sm:$0xff]
      %v8429 = vld [vmem:[#allocation3 + $0x48] sm:$0xff]
      %v8430 = vld [vmem:[#allocation3 + $0x50] sm:$0xff]
      %v8431 = vld [vmem:[#allocation3 + $0x58] sm:$0xff]
      %v8432 = vld [vmem:[#allocation3 + $0x60] sm:$0xff]
      %v8433 = vld [vmem:[#allocation3 + $0x68] sm:$0xff]
      %v8434 = vld [vmem:[#allocation3 + $0x70] sm:$0xff]
      %v8435 = vld [vmem:[#allocation3 + $0x78] sm:$0xff]
      %v8436 = vld [vmem:[#allocation3 + $0x80] sm:$0xff]
      %v8437 = vld [vmem:[#allocation3 + $0x88] sm:$0xff]
      %v8438 = vld [vmem:[#allocation3 + $0x90] sm:$0xff]
      %v8439 = vld [vmem:[#allocation3 + $0x98] sm:$0xff]
      %v8440 = vld [vmem:[#allocation3 + $0xa0] sm:$0xff]
      %v8441 = vld [vmem:[#allocation3 + $0xa8] sm:$0xff]
      %v8442 = vld [vmem:[#allocation3 + $0xb0] sm:$0xff]
      %v8443 = vld [vmem:[#allocation3 + $0xb8] sm:$0xff]
      %v8444 = vld [vmem:[#allocation3 + $0xc0] sm:$0xff]
      %v8445 = vld [vmem:[#allocation3 + $0xc8] sm:$0xff]
      %v8446 = vld [vmem:[#allocation3 + $0xd0] sm:$0xff]
      %v8447 = vld [vmem:[#allocation3 + $0xd8] sm:$0xff]
      %v8448 = vld [vmem:[#allocation3 + $0xe0] sm:$0xff]
      %v8449 = vld [vmem:[#allocation3 + $0xe8] sm:$0xff]
      %v8450 = vld [vmem:[#allocation3 + $0xf0] sm:$0xff]
      %v8451 = vld [vmem:[#allocation3 + $0xf8] sm:$0xff]
      %v8452 = vld [vmem:[#allocation3 + $0x100] sm:$0xff]
      %v8453 = vld [vmem:[#allocation3 + $0x108] sm:$0xff]
      %v8454 = vld [vmem:[#allocation3 + $0x110] sm:$0xff]
      %v8455 = vld [vmem:[#allocation3 + $0x118] sm:$0xff]
      %v8456 = vld [vmem:[#allocation3 + $0x120] sm:$0xff]
      %v8457 = vld [vmem:[#allocation3 + $0x128] sm:$0xff]
      %v8458 = vld [vmem:[#allocation3 + $0x130] sm:$0xff]
      %v8459 = vld [vmem:[#allocation3 + $0x138] sm:$0xff]
      %v8460 = vld [vmem:[#allocation3 + $0x140] sm:$0xff]
      %v8461 = vld [vmem:[#allocation3 + $0x148] sm:$0xff]
      %v8462 = vld [vmem:[#allocation3 + $0x150] sm:$0xff]
      %v8463 = vld [vmem:[#allocation3 + $0x158] sm:$0xff]
      %v8464 = vld [vmem:[#allocation3 + $0x160] sm:$0xff]
      %v8465 = vld [vmem:[#allocation3 + $0x168] sm:$0xff]
      %v8466 = vld [vmem:[#allocation3 + $0x170] sm:$0xff]
      %v8467 = vld [vmem:[#allocation3 + $0x178] sm:$0xff]
      %v8468 = vld [vmem:[#allocation3 + $0x180] sm:$0xff]
      %v8469 = vld [vmem:[#allocation3 + $0x188] sm:$0xff]
      %v8470 = vld [vmem:[#allocation3 + $0x190] sm:$0xff]
      %v8471 = vld [vmem:[#allocation3 + $0x198] sm:$0xff]
      %v8472 = vld [vmem:[#allocation3 + $0x1a0] sm:$0xff]
      %v8473 = vld [vmem:[#allocation3 + $0x1a8] sm:$0xff]
      %v8474 = vld [vmem:[#allocation3 + $0x1b0] sm:$0xff]
      %v8475 = vld [vmem:[#allocation3 + $0x1b8] sm:$0xff]
      %v8476 = vld [vmem:[#allocation3 + $0x1c0] sm:$0x7f]
      %v8477 = vld [vmem:[#allocation3 + $0x1c8] sm:$0x7f]
      %v8478 = vld [vmem:[%s3] sm:$0x3]
      %v8480 = vlaneseq
      %v8481 = vshrl.u32 %v8480, 7
      %v8482 = vsub.s32 0, %v8481
      %v8483 = vrot.slane %v8478, %v8482
      %v8484 = vlaneseq
      %v8485 = vshrl.u32 %v8484, 7
      %v8486 = vsub.s32 1, %v8485
      %v8487 = vrot.slane %v8478, %v8486
      %v8490 = vadd.f32 %v8420, %v8483
      %v8491 = vadd.f32 %v8421, %v8487
      %v8492 = vadd.f32 %v8422, %v8483
      %v8493 = vadd.f32 %v8423, %v8487
      %v8494 = vadd.f32 %v8424, %v8483
      %v8495 = vadd.f32 %v8425, %v8487
      %v8496 = vadd.f32 %v8426, %v8483
      %v8497 = vadd.f32 %v8427, %v8487
      %v8498 = vadd.f32 %v8428, %v8483
      %v8499 = vadd.f32 %v8429, %v8487
      %v8500 = vadd.f32 %v8430, %v8483
      %v8501 = vadd.f32 %v8431, %v8487
      %v8502 = vadd.f32 %v8432, %v8483
      %v8503 = vadd.f32 %v8433, %v8487
      %v8504 = vadd.f32 %v8434, %v8483
      %v8505 = vadd.f32 %v8435, %v8487
      %v8506 = vadd.f32 %v8436, %v8483
      %v8507 = vadd.f32 %v8437, %v8487
      %v8508 = vadd.f32 %v8438, %v8483
      %v8509 = vadd.f32 %v8439, %v8487
      %v8510 = vadd.f32 %v8440, %v8483
      %v8511 = vadd.f32 %v8441, %v8487
      %v8512 = vadd.f32 %v8442, %v8483
      %v8513 = vadd.f32 %v8443, %v8487
      %v8514 = vadd.f32 %v8444, %v8483
      %v8515 = vadd.f32 %v8445, %v8487
      %v8516 = vadd.f32 %v8446, %v8483
      %v8517 = vadd.f32 %v8447, %v8487
      %v8518 = vadd.f32 %v8448, %v8483
      %v8519 = vadd.f32 %v8449, %v8487
      %v8520 = vadd.f32 %v8450, %v8483
      %v8521 = vadd.f32 %v8451, %v8487
      %v8522 = vadd.f32 %v8452, %v8483
      %v8523 = vadd.f32 %v8453, %v8487
      %v8524 = vadd.f32 %v8454, %v8483
      %v8525 = vadd.f32 %v8455, %v8487
      %v8526 = vadd.f32 %v8456, %v8483
      %v8527 = vadd.f32 %v8457, %v8487
      %v8528 = vadd.f32 %v8458, %v8483
      %v8529 = vadd.f32 %v8459, %v8487
      %v8530 = vadd.f32 %v8460, %v8483
      %v8531 = vadd.f32 %v8461, %v8487
      %v8532 = vadd.f32 %v8462, %v8483
      %v8533 = vadd.f32 %v8463, %v8487
      %v8534 = vadd.f32 %v8464, %v8483
      %v8535 = vadd.f32 %v8465, %v8487
      %v8536 = vadd.f32 %v8466, %v8483
      %v8537 = vadd.f32 %v8467, %v8487
      %v8538 = vadd.f32 %v8468, %v8483
      %v8539 = vadd.f32 %v8469, %v8487
      %v8540 = vadd.f32 %v8470, %v8483
      %v8541 = vadd.f32 %v8471, %v8487
      %v8542 = vadd.f32 %v8472, %v8483
      %v8543 = vadd.f32 %v8473, %v8487
      %v8544 = vadd.f32 %v8474, %v8483
      %v8545 = vadd.f32 %v8475, %v8487
      %v8546 = vadd.f32 %v8476, %v8483
      %v8547 = vadd.f32 %v8477, %v8487
      %v8548 = vmax.f32 %v8490, 0.0
      %v8549 = vmax.f32 %v8491, 0.0
      %v8550 = vmax.f32 %v8492, 0.0
      %v8551 = vmax.f32 %v8493, 0.0
      %v8552 = vmax.f32 %v8494, 0.0
      %v8553 = vmax.f32 %v8495, 0.0
      %v8554 = vmax.f32 %v8496, 0.0
      %v8555 = vmax.f32 %v8497, 0.0
      %v8556 = vmax.f32 %v8498, 0.0
      %v8557 = vmax.f32 %v8499, 0.0
      %v8558 = vmax.f32 %v8500, 0.0
      %v8559 = vmax.f32 %v8501, 0.0
      %v8560 = vmax.f32 %v8502, 0.0
      %v8561 = vmax.f32 %v8503, 0.0
      %v8562 = vmax.f32 %v8504, 0.0
      %v8563 = vmax.f32 %v8505, 0.0
      %v8564 = vmax.f32 %v8506, 0.0
      %v8565 = vmax.f32 %v8507, 0.0
      %v8566 = vmax.f32 %v8508, 0.0
      %v8567 = vmax.f32 %v8509, 0.0
      %v8568 = vmax.f32 %v8510, 0.0
      %v8569 = vmax.f32 %v8511, 0.0
      %v8570 = vmax.f32 %v8512, 0.0
      %v8571 = vmax.f32 %v8513, 0.0
      %v8572 = vmax.f32 %v8514, 0.0
      %v8573 = vmax.f32 %v8515, 0.0
      %v8574 = vmax.f32 %v8516, 0.0
      %v8575 = vmax.f32 %v8517, 0.0
      %v8576 = vmax.f32 %v8518, 0.0
      %v8577 = vmax.f32 %v8519, 0.0
      %v8578 = vmax.f32 %v8520, 0.0
      %v8579 = vmax.f32 %v8521, 0.0
      %v8580 = vmax.f32 %v8522, 0.0
      %v8581 = vmax.f32 %v8523, 0.0
      %v8582 = vmax.f32 %v8524, 0.0
      %v8583 = vmax.f32 %v8525, 0.0
      %v8584 = vmax.f32 %v8526, 0.0
      %v8585 = vmax.f32 %v8527, 0.0
      %v8586 = vmax.f32 %v8528, 0.0
      %v8587 = vmax.f32 %v8529, 0.0
      %v8588 = vmax.f32 %v8530, 0.0
      %v8589 = vmax.f32 %v8531, 0.0
      %v8590 = vmax.f32 %v8532, 0.0
      %v8591 = vmax.f32 %v8533, 0.0
      %v8592 = vmax.f32 %v8534, 0.0
      %v8593 = vmax.f32 %v8535, 0.0
      %v8594 = vmax.f32 %v8536, 0.0
      %v8595 = vmax.f32 %v8537, 0.0
      %v8596 = vmax.f32 %v8538, 0.0
      %v8597 = vmax.f32 %v8539, 0.0
      %v8598 = vmax.f32 %v8540, 0.0
      %v8599 = vmax.f32 %v8541, 0.0
      %v8600 = vmax.f32 %v8542, 0.0
      %v8601 = vmax.f32 %v8543, 0.0
      %v8602 = vmax.f32 %v8544, 0.0
      %v8603 = vmax.f32 %v8545, 0.0
      %v8604 = vmax.f32 %v8546, 0.0
      %v8605 = vmax.f32 %v8547, 0.0
      %v8606 = vld [vmem:[%s4] sm:$0xff]
      %v8607 = vld [vmem:[%s4 + $0x8] sm:$0xff]
      %v8608 = vld [vmem:[%s4 + $0x10] sm:$0xff]
      %v8609 = vld [vmem:[%s4 + $0x18] sm:$0xff]
      %v8610 = vld [vmem:[%s4 + $0x20] sm:$0xff]
      %v8611 = vld [vmem:[%s4 + $0x28] sm:$0xff]
      %v8612 = vld [vmem:[%s4 + $0x30] sm:$0xff]
      %v8613 = vld [vmem:[%s4 + $0x38] sm:$0xff]
      %v8614 = vld [vmem:[%s4 + $0x40] sm:$0xff]
      %v8615 = vld [vmem:[%s4 + $0x48] sm:$0xff]
      %v8616 = vld [vmem:[%s4 + $0x50] sm:$0xff]
      %v8617 = vld [vmem:[%s4 + $0x58] sm:$0xff]
      %v8618 = vld [vmem:[%s4 + $0x60] sm:$0xff]
      %v8619 = vld [vmem:[%s4 + $0x68] sm:$0xff]
      %v8620 = vld [vmem:[%s4 + $0x70] sm:$0xff]
      %v8621 = vld [vmem:[%s4 + $0x78] sm:$0xff]
      %v8622 = vld [vmem:[%s4 + $0x80] sm:$0xff]
      %v8623 = vld [vmem:[%s4 + $0x88] sm:$0xff]
      %v8624 = vld [vmem:[%s4 + $0x90] sm:$0xff]
      %v8625 = vld [vmem:[%s4 + $0x98] sm:$0xff]
      %v8626 = vld [vmem:[%s4 + $0xa0] sm:$0xff]
      %v8627 = vld [vmem:[%s4 + $0xa8] sm:$0xff]
      %v8628 = vld [vmem:[%s4 + $0xb0] sm:$0xff]
      %v8629 = vld [vmem:[%s4 + $0xb8] sm:$0xff]
      %v8630 = vld [vmem:[%s4 + $0xc0] sm:$0xff]
      %v8631 = vld [vmem:[%s4 + $0xc8] sm:$0xff]
      %v8632 = vld [vmem:[%s4 + $0xd0] sm:$0xff]
      %v8633 = vld [vmem:[%s4 + $0xd8] sm:$0xff]
      %v8634 = vld [vmem:[%s4 + $0xe0] sm:$0xff]
      %v8635 = vld [vmem:[%s4 + $0xe8] sm:$0xff]
      %v8636 = vld [vmem:[%s4 + $0xf0] sm:$0xff]
      %v8637 = vld [vmem:[%s4 + $0xf8] sm:$0xff]
      %v8638 = vld [vmem:[%s4 + $0x100] sm:$0xff]
      %v8639 = vld [vmem:[%s4 + $0x108] sm:$0xff]
      %v8640 = vld [vmem:[%s4 + $0x110] sm:$0xff]
      %v8641 = vld [vmem:[%s4 + $0x118] sm:$0xff]
      %v8642 = vld [vmem:[%s4 + $0x120] sm:$0xff]
      %v8643 = vld [vmem:[%s4 + $0x128] sm:$0xff]
      %v8644 = vld [vmem:[%s4 + $0x130] sm:$0xff]
      %v8645 = vld [vmem:[%s4 + $0x138] sm:$0xff]
      %v8646 = vld [vmem:[%s4 + $0x140] sm:$0xff]
      %v8647 = vld [vmem:[%s4 + $0x148] sm:$0xff]
      %v8648 = vld [vmem:[%s4 + $0x150] sm:$0xff]
      %v8649 = vld [vmem:[%s4 + $0x158] sm:$0xff]
      %v8650 = vld [vmem:[%s4 + $0x160] sm:$0xff]
      %v8651 = vld [vmem:[%s4 + $0x168] sm:$0xff]
      %v8652 = vld [vmem:[%s4 + $0x170] sm:$0xff]
      %v8653 = vld [vmem:[%s4 + $0x178] sm:$0xff]
      %v8654 = vld [vmem:[%s4 + $0x180] sm:$0xff]
      %v8655 = vld [vmem:[%s4 + $0x188] sm:$0xff]
      %v8656 = vld [vmem:[%s4 + $0x190] sm:$0xff]
      %v8657 = vld [vmem:[%s4 + $0x198] sm:$0xff]
      %v8658 = vld [vmem:[%s4 + $0x1a0] sm:$0xff]
      %v8659 = vld [vmem:[%s4 + $0x1a8] sm:$0xff]
      %v8660 = vld [vmem:[%s4 + $0x1b0] sm:$0xff]
      %v8661 = vld [vmem:[%s4 + $0x1b8] sm:$0xff]
      %v8662 = vld [vmem:[%s4 + $0x1c0] sm:$0x7f]
      %v8663 = vld [vmem:[%s4 + $0x1c8] sm:$0x7f]
      %v8664 = vmul.f32 %v8548, %v8606
      %v8665 = vmul.f32 %v8549, %v8607
      %v8666 = vmul.f32 %v8550, %v8608
      %v8667 = vmul.f32 %v8551, %v8609
      %v8668 = vmul.f32 %v8552, %v8610
      %v8669 = vmul.f32 %v8553, %v8611
      %v8670 = vmul.f32 %v8554, %v8612
      %v8671 = vmul.f32 %v8555, %v8613
      %v8672 = vmul.f32 %v8556, %v8614
      %v8673 = vmul.f32 %v8557, %v8615
      %v8674 = vmul.f32 %v8558, %v8616
      %v8675 = vmul.f32 %v8559, %v8617
      %v8676 = vmul.f32 %v8560, %v8618
      %v8677 = vmul.f32 %v8561, %v8619
      %v8678 = vmul.f32 %v8562, %v8620
      %v8679 = vmul.f32 %v8563, %v8621
      %v8680 = vmul.f32 %v8564, %v8622
      %v8681 = vmul.f32 %v8565, %v8623
      %v8682 = vmul.f32 %v8566, %v8624
      %v8683 = vmul.f32 %v8567, %v8625
      %v8684 = vmul.f32 %v8568, %v8626
      %v8685 = vmul.f32 %v8569, %v8627
      %v8686 = vmul.f32 %v8570, %v8628
      %v8687 = vmul.f32 %v8571, %v8629
      %v8688 = vmul.f32 %v8572, %v8630
      %v8689 = vmul.f32 %v8573, %v8631
      %v8690 = vmul.f32 %v8574, %v8632
      %v8691 = vmul.f32 %v8575, %v8633
      %v8692 = vmul.f32 %v8576, %v8634
      %v8693 = vmul.f32 %v8577, %v8635
      %v8694 = vmul.f32 %v8578, %v8636
      %v8695 = vmul.f32 %v8579, %v8637
      %v8696 = vmul.f32 %v8580, %v8638
      %v8697 = vmul.f32 %v8581, %v8639
      %v8698 = vmul.f32 %v8582, %v8640
      %v8699 = vmul.f32 %v8583, %v8641
      %v8700 = vmul.f32 %v8584, %v8642
      %v8701 = vmul.f32 %v8585, %v8643
      %v8702 = vmul.f32 %v8586, %v8644
      %v8703 = vmul.f32 %v8587, %v8645
      %v8704 = vmul.f32 %v8588, %v8646
      %v8705 = vmul.f32 %v8589, %v8647
      %v8706 = vmul.f32 %v8590, %v8648
      %v8707 = vmul.f32 %v8591, %v8649
      %v8708 = vmul.f32 %v8592, %v8650
      %v8709 = vmul.f32 %v8593, %v8651
      %v8710 = vmul.f32 %v8594, %v8652
      %v8711 = vmul.f32 %v8595, %v8653
      %v8712 = vmul.f32 %v8596, %v8654
      %v8713 = vmul.f32 %v8597, %v8655
      %v8714 = vmul.f32 %v8598, %v8656
      %v8715 = vmul.f32 %v8599, %v8657
      %v8716 = vmul.f32 %v8600, %v8658
      %v8717 = vmul.f32 %v8601, %v8659
      %v8718 = vmul.f32 %v8602, %v8660
      %v8719 = vmul.f32 %v8603, %v8661
      %v8720 = vmul.f32 %v8604, %v8662
      %v8721 = vmul.f32 %v8605, %v8663
      %v8722 = vadd.f32 %v8664, %v8666
      %v8723 = vadd.f32 %v8722, %v8668
      %v8724 = vadd.f32 %v8723, %v8670
      %v8725 = vadd.f32 %v8724, %v8672
      %v8726 = vadd.f32 %v8725, %v8674
      %v8727 = vadd.f32 %v8726, %v8676
      %v8728 = vadd.f32 %v8727, %v8678
      %v8729 = vadd.f32 %v8728, %v8680
      %v8730 = vadd.f32 %v8729, %v8682
      %v8731 = vadd.f32 %v8730, %v8684
      %v8732 = vadd.f32 %v8731, %v8686
      %v8733 = vadd.f32 %v8732, %v8688
      %v8734 = vadd.f32 %v8733, %v8690
      %v8735 = vadd.f32 %v8734, %v8692
      %v8736 = vadd.f32 %v8735, %v8694
      %v8737 = vadd.f32 %v8736, %v8696
      %v8738 = vadd.f32 %v8737, %v8698
      %v8739 = vadd.f32 %v8738, %v8700
      %v8740 = vadd.f32 %v8739, %v8702
      %v8741 = vadd.f32 %v8740, %v8704
      %v8742 = vadd.f32 %v8741, %v8706
      %v8743 = vadd.f32 %v8742, %v8708
      %v8744 = vadd.f32 %v8743, %v8710
      %v8745 = vadd.f32 %v8744, %v8712
      %v8746 = vadd.f32 %v8745, %v8714
      %v8747 = vadd.f32 %v8746, %v8716
      %v8748 = vadd.f32 %v8747, %v8718
      %vm8749 = vcmask 1046528
      %v8750 = vsel %vm8749, %v8720, 0.0
      %v8751 = vadd.f32 %v8748, %v8750
      %v8752 = vrot.slane %v8751, 4
      %v8753 = vadd.f32 %v8751, %v8752
      %v8754 = vrot.slane %v8753, 2
      %v8755 = vadd.f32 %v8753, %v8754
      %v8756 = vrot.slane %v8755, 1
      %v8757 = vadd.f32 %v8755, %v8756
      %v8758 = vadd.f32 %v8665, %v8667
      %v8759 = vadd.f32 %v8758, %v8669
      %v8760 = vadd.f32 %v8759, %v8671
      %v8761 = vadd.f32 %v8760, %v8673
      %v8762 = vadd.f32 %v8761, %v8675
      %v8763 = vadd.f32 %v8762, %v8677
      %v8764 = vadd.f32 %v8763, %v8679
      %v8765 = vadd.f32 %v8764, %v8681
      %v8766 = vadd.f32 %v8765, %v8683
      %v8767 = vadd.f32 %v8766, %v8685
      %v8768 = vadd.f32 %v8767, %v8687
      %v8769 = vadd.f32 %v8768, %v8689
      %v8770 = vadd.f32 %v8769, %v8691
      %v8771 = vadd.f32 %v8770, %v8693
      %v8772 = vadd.f32 %v8771, %v8695
      %v8773 = vadd.f32 %v8772, %v8697
      %v8774 = vadd.f32 %v8773, %v8699
      %v8775 = vadd.f32 %v8774, %v8701
      %v8776 = vadd.f32 %v8775, %v8703
      %v8777 = vadd.f32 %v8776, %v8705
      %v8778 = vadd.f32 %v8777, %v8707
      %v8779 = vadd.f32 %v8778, %v8709
      %v8780 = vadd.f32 %v8779, %v8711
      %v8781 = vadd.f32 %v8780, %v8713
      %v8782 = vadd.f32 %v8781, %v8715
      %v8783 = vadd.f32 %v8782, %v8717
      %v8784 = vadd.f32 %v8783, %v8719
      %v8785 = vsel %vm8749, %v8721, 0.0
      %v8786 = vadd.f32 %v8784, %v8785
      %v8787 = vrot.slane %v8786, 4
      %v8788 = vadd.f32 %v8786, %v8787
      %v8789 = vrot.slane %v8788, 2
      %v8790 = vadd.f32 %v8788, %v8789
      %v8791 = vrot.slane %v8790, 1
      %v8792 = vadd.f32 %v8790, %v8791
      %v8793 = vadd.f32 %v8757, %v8792
      %8794 = vadd.xlane.f32.xlu0 %v8793
      %v8795 = vpop.xlane.xlu0 %8794
      %v8796 = vld [vmem:[#allocation4] sm:$0x1]
      %v8797 = vadd.f32 %v8795, %v8796
      %8799 = vset.pattern.permute.xlu0 0
      %8800 = vperm.xlu0 %8799, %v8797
      %v8801 = vpop.permute.xlu0 %8800
      %v8803 = vlaneseq
      %v8804 = vshrl.u32 %v8803, 7
      %v8805 = vsub.s32 0, %v8804
      %v8806 = vrot.slane %v8801, %v8805
      %8807 = vst [vmem:[%s249] sm:$0x1] %v8806
      %p8808 = scmp.lt.s32.totalorder %s19, 1
      %s8809 = scalar_select %p8808, %s19, 1
      %s8810 = scalar_lea.vmem %s6, %s8809
      // Predicated region
      $region45: #{cnn_forward.1} parent=43 // pred_check
        %p8811 = pneg %p168
      $region46: #{cnn_forward.1} parent=43 // pred_check_branch
        %8813 = sbr.rel (%p8811) target = $region48
      $region47: #{cnn_forward.1} parent=43 // pred_region
        _
      $region48: #{cnn_forward.1} parent=43 // pred_fallthru
        _
    $region44: #{cnn_forward.1} parent=5 // pred_fallthru
      _
    %p8814 = scmp.le.s32.totalorder 2, %s14
    // Predicated region
    $region49: #{cnn_forward.1} parent=5 // pred_check
      %p8815 = pneg %p8814
    $region50: #{cnn_forward.1} parent=5 // pred_check_branch
      %8817 = sbr.rel (%p8815) target = $region52
    $region51: #{cnn_forward.1} parent=5 // pred_region
      %s8818 = ssub.s32 %s14, 2
      // Predicated region
      $region53: #{cnn_forward.1} parent=51 // pred_check
        %p8819 = pneg %p174
      $region54: #{cnn_forward.1} parent=51 // pred_check_branch
        %8821 = sbr.rel (%p8819) target = $region56
      $region55: #{cnn_forward.1} parent=51 // pred_region
        %p8822 = scmp.lt.s32.totalorder %s20, 1
        %s8823 = scalar_select %p8822, %s20, 1
        %s8824 = scalar_lea.vmem %s6, %s8823
      $region56: #{cnn_forward.1} parent=51 // pred_fallthru
        _
    $region52: #{cnn_forward.1} parent=5 // pred_fallthru
      _
  $region6: #{cnn_forward.1} parent=0 // loop_footer
    %s18 = sadd.s32 1, %s14
  $region7: #{cnn_forward.1} parent=0 // loop_footer_branch
    %13 = sbr.rel target = $region3
  $region8: #{cnn_forward.1} parent=0 // loop_exit
    _

</llo_original>
